<compile_context>
chip_gen: v5e
topology: v5e:2x2
jax: 0.10.0
libtpu: 0.0.40
codegen_flags: <defaults>
</compile_context>

<pallas_src>
import jax
import jax.numpy as jnp
from jax.experimental import pallas as pl
from jax.experimental.pallas import tpu as pltpu

NUM_CLASSES = 7
C0 = 32             # stem width                     (ResNet-50: 64)
C1M, C1O = 16, 64   # stage-1 bottleneck mid / out   (ResNet-50: 64 / 256)
C2M, C2O = 32, 128  # stage-2 bottleneck mid / out   (ResNet-50: 128 / 512)
FC_PAD = 128        # lane-dense padding of the 7-way fc output


# ------------------------------- helpers -------------------------------------

def _relu(x):
    return jnp.maximum(x, 0.0)


def _bdot(a, w_ref):
    # activations cast to bf16 at the MXU, weights already bf16, f32 accumulate.
    return jnp.dot(a.astype(jnp.bfloat16), w_ref[...],
                   preferred_element_type=jnp.float32)


def _shift_rows(v, dr):
    """out[i] = v[i + dr] with zero fill; dr in {-1, 0, 1} (static)."""
    if dr == 0:
        return v
    z = jnp.zeros_like(v[:1])
    if dr == 1:
        return jnp.concatenate([v[1:], z], axis=0)
    return jnp.concatenate([z, v[:-1]], axis=0)


def _shift_cols(v, dc):
    """out[:, j] = v[:, j + dc] with zero fill; dc in {-1, 0, 1} (static)."""
    if dc == 0:
        return v
    z = jnp.zeros_like(v[:, :1])
    if dc == 1:
        return jnp.concatenate([v[:, 1:], z], axis=1)
    return jnp.concatenate([z, v[:, :-1]], axis=1)


def _parity4(v):
    """4 stride-2 parity planes of a [2n, 2m, c] value: v[a::2, b::2, :]."""
    n, m, c = v.shape[0] // 2, v.shape[1] // 2, v.shape[2]
    vr = v.reshape(n, 2, m, 2, c)
    return (vr[:, 0, :, 0, :], vr[:, 0, :, 1, :],
            vr[:, 1, :, 0, :], vr[:, 1, :, 1, :])


def _stride2_taps(v):
    """9 taps of a 3x3 / stride-2 / pad-1 window over [2n, 2m, c]; each tap
    tap[di*3+dj][i, j] = v[2i + di - 1, 2j + dj - 1] (zero outside)."""
    pe_e, pe_o, po_e, po_o = _parity4(v)
    pp = ((pe_e, pe_o), (po_e, po_o))
    sel = ((1, -1), (0, 0), (1, 0))   # offset d -> (parity plane, shift)
    taps = []
    for di in range(3):
        a, dr = sel[di]
        for dj in range(3):
            b, dc = sel[dj]
            taps.append(_shift_cols(_shift_rows(pp[a][b], dr), dc))
    return taps


# -------------------------------- kernel -------------------------------------

def _fused_kernel(patches_ref, stem_w, stem_b, w_r1, b_r1, w_c1, b_c1,
                  w_e1, b_e1, w_s1, b_s1, w_r2, b_r2, w_c2, b_c2,
                  w_e2, b_e2, w_s2, b_s2, fc_w, fc_b,
                  logit_ref, sig_ref):
    _, h1, _, kin = patches_ref.shape
    h2, h3 = h1 // 2, h1 // 4

    # ---- stem: 7x7 / s2 conv as ONE K=147 matmul (im2col input), BN-bias, ReLU
    patches = patches_ref[...].reshape(h1 * h1, kin)
    conv1 = _relu(_bdot(patches, stem_w) + stem_b[...])            # [h1*h1, C0]
    cmap = conv1.reshape(h1, h1, conv1.shape[-1])

    # ---- 3x3 / s2 maxpool (zero fill == -inf padding because post-ReLU >= 0)
    x0m = None
    for t in _stride2_taps(cmap):
        x0m = t if x0m is None else jnp.maximum(x0m, t)
    x0 = x0m.reshape(h2 * h2, x0m.shape[-1])                       # [h2*h2, C0]

    # ---- bottleneck 1 (stride 1): 1x1 reduce -> 3x3 (K=144) -> 1x1 expand+skip
    h = _relu(_bdot(x0, w_r1) + b_r1[...])                         # [., C1M]
    hmap = h.reshape(h2, h2, h.shape[-1])
    taps1 = [_shift_cols(_shift_rows(hmap, di - 1), dj - 1)
             for di in range(3) for dj in range(3)]
    packed1 = jnp.concatenate(taps1, axis=-1).reshape(h2 * h2, -1)  # K = 9*C1M
    h = _relu(_bdot(packed1, w_c1) + b_c1[...])
    x1 = _relu(_bdot(h, w_e1) + b_e1[...]
               + _bdot(x0, w_s1) + b_s1[...])                      # [., C1O]
    x1map = x1.reshape(h2, h2, x1.shape[-1])

    # ---- bottleneck 2 (stride 2): 1x1 reduce -> 3x3/s2 (K=288) -> expand+skip
    r2 = _relu(_bdot(x1, w_r2) + b_r2[...])                        # [., C2M]
    rmap = r2.reshape(h2, h2, r2.shape[-1])
    packed2 = jnp.concatenate(_stride2_taps(rmap),
                              axis=-1).reshape(h3 * h3, -1)        # K = 9*C2M
    h = _relu(_bdot(packed2, w_c2) + b_c2[...])
    xskip = _parity4(x1map)[0].reshape(h3 * h3, x1.shape[-1])      # x1[::2, ::2]
    x2 = _relu(_bdot(h, w_e2) + b_e2[...]
               + _bdot(xskip, w_s2) + b_s2[...])                   # [h3*h3, C2O]

    # ---- head: global average pool -> fc (lane-dense 128 cols) -> sigmoid ----
    pooled = jnp.mean(x2, axis=0, keepdims=True)                   # [1, C2O]
    logits = _bdot(pooled, fc_w) + fc_b[...]                       # [1, FC_PAD]
    neg = jnp.exp(-jnp.abs(logits))                                # stable, exact
    sig = jnp.where(logits >= 0.0, 1.0 / (1.0 + neg), neg / (1.0 + neg))
    logit_ref[...] = logits.reshape(logit_ref.shape)
    sig_ref[...] = sig.reshape(sig_ref.shape)


# ------------------------------ forward pass ---------------------------------

_WKEYS = ("stem_w", "stem_b", "w_r1", "b_r1", "w_c1", "b_c1", "w_e1", "b_e1",
          "w_s1", "b_s1", "w_r2", "b_r2", "w_c2", "b_c2", "w_e2", "b_e2",
          "w_s2", "b_s2", "fc_w", "fc_b")


def _full_spec(shape):
    nd = len(shape)
    return pl.BlockSpec(tuple(shape), lambda b, _nd=nd: (0,) * _nd)


def _batch_spec(shape):
    nd = len(shape)
    blk = (1,) + tuple(shape[1:])
    return pl.BlockSpec(blk, lambda b, _nd=nd: (b,) + (0,) * (_nd - 1))


def resnet_st_phase_forward(params, x_nchw):
    B = x_nchw.shape[0]
    x = jnp.transpose(x_nchw, (0, 2, 3, 1)).astype(jnp.float32)   # NCHW -> NHWC
    H1 = x.shape[1] // 2

    # im2col of the tiny input for the K-packed 7x7/s2 stem matmul (bf16 halves
    # its DMA); wrapper-side layout plumbing, not compute-hoisting.
    xp = jnp.pad(x, ((0, 0), (3, 3), (3, 3), (0, 0)))
    taps = [xp[:, di:di + 2 * H1:2, dj:dj + 2 * H1:2, :]
            for di in range(7) for dj in range(7)]
    patches = jnp.concatenate(taps, axis=-1).astype(jnp.bfloat16)  # [B,H1,H1,147]

    wargs = [params[k] for k in _WKEYS]
    logits_p, sig_p = pl.pallas_call(
        _fused_kernel,
        out_shape=(jax.ShapeDtypeStruct((B, 1, FC_PAD), jnp.float32),
                   jax.ShapeDtypeStruct((B, 1, FC_PAD), jnp.float32)),
        grid=(B,),
        in_specs=[_batch_spec(patches.shape)] + [_full_spec(w.shape)
                                                 for w in wargs],
        out_specs=(pl.BlockSpec((1, 1, FC_PAD), lambda b: (b, 0, 0)),
                   pl.BlockSpec((1, 1, FC_PAD), lambda b: (b, 0, 0))),
        compiler_params=pltpu.CompilerParams(
            dimension_semantics=("parallel",)),
    )(patches, *wargs)

    out = logits_p[:, 0, :NUM_CLASSES]
    sig = sig_p[:, 0, :NUM_CLASSES]
    return out, sig                                 # (logits, sigmoid(logits))


# --------------------------------- params ------------------------------------

def init_params(key):
    ks = jax.random.split(key, 10)

    def he(k, shape, fan_in):
        w = jax.random.normal(k, shape, jnp.float32) * (2.0 / fan_in) ** 0.5
        return w.astype(jnp.bfloat16)               # pre-cast weights to bf16

    def zf(*s):
        return jnp.zeros(s, jnp.float32)            # biases stay f32

    p = {}
    p["stem_w"], p["stem_b"] = he(ks[0], (49 * 3, C0), 49 * 3), zf(1, C0)
    p["w_r1"], p["b_r1"] = he(ks[1], (C0, C1M), C0), zf(1, C1M)
    p["w_c1"], p["b_c1"] = he(ks[2], (9 * C1M, C1M), 9 * C1M), zf(1, C1M)
    p["w_e1"], p["b_e1"] = he(ks[3], (C1M, C1O), C1M), zf(1, C1O)
    p["w_s1"], p["b_s1"] = he(ks[4], (C0, C1O), C0), zf(1, C1O)
    p["w_r2"], p["b_r2"] = he(ks[5], (C1O, C2M), C1O), zf(1, C2M)
    p["w_c2"], p["b_c2"] = he(ks[6], (9 * C2M, C2M), 9 * C2M), zf(1, C2M)
    p["w_e2"], p["b_e2"] = he(ks[7], (C2M, C2O), C2M), zf(1, C2O)
    p["w_s2"], p["b_s2"] = he(ks[8], (C1O, C2O), C1O), zf(1, C2O)
    # fc = Linear(num_ftrs, 7): xavier-uniform weight (like the module), zero
    # bias, zero-padded to 128 output columns so the kernel store is lane-dense.
    limit = (6.0 / (C2O + NUM_CLASSES)) ** 0.5
    fc_w = jax.random.uniform(ks[9], (C2O, NUM_CLASSES), jnp.float32,
                              -limit, limit)
    p["fc_w"] = jnp.pad(fc_w, ((0, 0), (0, FC_PAD - NUM_CLASSES))).astype(
        jnp.bfloat16)
    p["fc_b"] = zf(1, FC_PAD)
    return p


if __name__ == "__main__":
    key = jax.random.PRNGKey(0)
    xkey, pkey = jax.random.split(key)
    x = jax.random.normal(xkey, (2, 3, 64, 64), jnp.float32)   # NCHW like PyTorch
    params = init_params(pkey)

    fwd = jax.jit(resnet_st_phase_forward)
    out, sig = fwd(params, x)
    jax.block_until_ready((out, sig))

    assert out.shape == (2, NUM_CLASSES) and sig.shape == (2, NUM_CLASSES)
    assert out.dtype == jnp.float32 and sig.dtype == jnp.float32
    assert bool(jnp.all(jnp.isfinite(out))) and bool(jnp.all(jnp.isfinite(sig)))
    assert bool(jnp.all((sig >= 0.0) & (sig <= 1.0)))
    ref_sig = jax.nn.sigmoid(out)
    assert bool(jnp.allclose(sig, ref_sig, atol=2e-5, rtol=2e-5))
    print("KERNEL_OK")
</pallas_src>

<mosaic_0001>
module attributes {stable_mosaic.version = 11 : i64} {
  func.func @_fused_kernel(%arg0: i32, %arg1: memref<1x32x32x147xbf16, #tpu.memory_space<vmem>>, %arg2: memref<147x32xbf16, #tpu.memory_space<vmem>>, %arg3: memref<1x32xf32, #tpu.memory_space<vmem>>, %arg4: memref<32x16xbf16, #tpu.memory_space<vmem>>, %arg5: memref<1x16xf32, #tpu.memory_space<vmem>>, %arg6: memref<144x16xbf16, #tpu.memory_space<vmem>>, %arg7: memref<1x16xf32, #tpu.memory_space<vmem>>, %arg8: memref<16x64xbf16, #tpu.memory_space<vmem>>, %arg9: memref<1x64xf32, #tpu.memory_space<vmem>>, %arg10: memref<32x64xbf16, #tpu.memory_space<vmem>>, %arg11: memref<1x64xf32, #tpu.memory_space<vmem>>, %arg12: memref<64x32xbf16, #tpu.memory_space<vmem>>, %arg13: memref<1x32xf32, #tpu.memory_space<vmem>>, %arg14: memref<288x32xbf16, #tpu.memory_space<vmem>>, %arg15: memref<1x32xf32, #tpu.memory_space<vmem>>, %arg16: memref<32x128xbf16, #tpu.memory_space<vmem>>, %arg17: memref<1x128xf32, #tpu.memory_space<vmem>>, %arg18: memref<64x128xbf16, #tpu.memory_space<vmem>>, %arg19: memref<1x128xf32, #tpu.memory_space<vmem>>, %arg20: memref<128x128xbf16, #tpu.memory_space<vmem>>, %arg21: memref<1x128xf32, #tpu.memory_space<vmem>>, %arg22: memref<1x1x128xf32, #tpu.memory_space<vmem>>, %arg23: memref<1x1x128xf32, #tpu.memory_space<vmem>>) attributes {dimension_semantics = [#tpu.dimension_semantics<parallel>], iteration_bounds = array<i64: 2>, scalar_prefetch = 0 : i64, scratch_operands = 0 : i64, tpu.core_type = #tpu.core_type<tc>, window_params = [{transform_indices = @transform_0, window_bounds = array<i64: 1, 32, 32, 147>}, {pipeline_mode = #tpu.pipeline_mode<synchronous>, transform_indices = @transform_1, window_bounds = array<i64: 147, 32>}, {pipeline_mode = #tpu.pipeline_mode<synchronous>, transform_indices = @transform_2, window_bounds = array<i64: 1, 32>}, {pipeline_mode = #tpu.pipeline_mode<synchronous>, transform_indices = @transform_3, window_bounds = array<i64: 32, 16>}, {pipeline_mode = #tpu.pipeline_mode<synchronous>, transform_indices = @transform_4, window_bounds = array<i64: 1, 16>}, {pipeline_mode = #tpu.pipeline_mode<synchronous>, transform_indices = @transform_5, window_bounds = array<i64: 144, 16>}, {pipeline_mode = #tpu.pipeline_mode<synchronous>, transform_indices = @transform_6, window_bounds = array<i64: 1, 16>}, {pipeline_mode = #tpu.pipeline_mode<synchronous>, transform_indices = @transform_7, window_bounds = array<i64: 16, 64>}, {pipeline_mode = #tpu.pipeline_mode<synchronous>, transform_indices = @transform_8, window_bounds = array<i64: 1, 64>}, {pipeline_mode = #tpu.pipeline_mode<synchronous>, transform_indices = @transform_9, window_bounds = array<i64: 32, 64>}, {pipeline_mode = #tpu.pipeline_mode<synchronous>, transform_indices = @transform_10, window_bounds = array<i64: 1, 64>}, {pipeline_mode = #tpu.pipeline_mode<synchronous>, transform_indices = @transform_11, window_bounds = array<i64: 64, 32>}, {pipeline_mode = #tpu.pipeline_mode<synchronous>, transform_indices = @transform_12, window_bounds = array<i64: 1, 32>}, {pipeline_mode = #tpu.pipeline_mode<synchronous>, transform_indices = @transform_13, window_bounds = array<i64: 288, 32>}, {pipeline_mode = #tpu.pipeline_mode<synchronous>, transform_indices = @transform_14, window_bounds = array<i64: 1, 32>}, {pipeline_mode = #tpu.pipeline_mode<synchronous>, transform_indices = @transform_15, window_bounds = array<i64: 32, 128>}, {pipeline_mode = #tpu.pipeline_mode<synchronous>, transform_indices = @transform_16, window_bounds = array<i64: 1, 128>}, {pipeline_mode = #tpu.pipeline_mode<synchronous>, transform_indices = @transform_17, window_bounds = array<i64: 64, 128>}, {pipeline_mode = #tpu.pipeline_mode<synchronous>, transform_indices = @transform_18, window_bounds = array<i64: 1, 128>}, {pipeline_mode = #tpu.pipeline_mode<synchronous>, transform_indices = @transform_19, window_bounds = array<i64: 128, 128>}, {pipeline_mode = #tpu.pipeline_mode<synchronous>, transform_indices = @transform_20, window_bounds = array<i64: 1, 128>}, {transform_indices = @transform_21, window_bounds = array<i64: 1, 1, 128>}, {transform_indices = @transform_22, window_bounds = array<i64: 1, 1, 128>}]} {
    %c0 = arith.constant 0 : index
    %c0_0 = arith.constant 0 : index
    %c0_1 = arith.constant 0 : index
    %c0_2 = arith.constant 0 : index
    %0 = vector.load %arg1[%c0, %c0_0, %c0_1, %c0_2] : memref<1x32x32x147xbf16, #tpu.memory_space<vmem>>, vector<1x32x32x147xbf16>
    %1 = vector.shape_cast %0 : vector<1x32x32x147xbf16> to vector<1024x147xbf16>
    %c0_3 = arith.constant 0 : index
    %c0_4 = arith.constant 0 : index
    %2 = vector.load %arg2[%c0_3, %c0_4] : memref<147x32xbf16, #tpu.memory_space<vmem>>, vector<147x32xbf16>
    %cst = arith.constant dense<0.000000e+00> : vector<1024x32xf32>
    %3 = tpu.matmul %1, %2, %cst {dimension_numbers = #tpu.dot_dimension_numbers<[1], [0], [0], [1], [0, 0, 1, 1], [], []>} : vector<1024x147xbf16>, vector<147x32xbf16>, vector<1024x32xf32> -> vector<1024x32xf32>
    %c0_5 = arith.constant 0 : index
    %c0_6 = arith.constant 0 : index
    %4 = vector.load %arg3[%c0_5, %c0_6] : memref<1x32xf32, #tpu.memory_space<vmem>>, vector<1x32xf32>
    %5 = vector.broadcast %4 : vector<1x32xf32> to vector<1024x32xf32>
    %6 = arith.addf %3, %5 : vector<1024x32xf32>
    %cst_7 = arith.constant 0.000000e+00 : f32
    %7 = vector.broadcast %cst_7 : f32 to vector<1024x32xf32>
    %8 = arith.maximumf %6, %7 : vector<1024x32xf32>
    %9 = vector.shape_cast %8 : vector<1024x32xf32> to vector<32x32x32xf32>
    %10 = vector.shape_cast %9 : vector<32x32x32xf32> to vector<16x2x16x2x32xf32>
    %11 = vector.extract_strided_slice %10 {offsets = [0, 0, 0, 0, 0], sizes = [16, 1, 16, 1, 32], strides = [1, 1, 1, 1, 1]} : vector<16x2x16x2x32xf32> to vector<16x1x16x1x32xf32>
    %12 = vector.shape_cast %11 : vector<16x1x16x1x32xf32> to vector<16x16x32xf32>
    %13 = vector.extract_strided_slice %10 {offsets = [0, 0, 0, 1, 0], sizes = [16, 1, 16, 1, 32], strides = [1, 1, 1, 1, 1]} : vector<16x2x16x2x32xf32> to vector<16x1x16x1x32xf32>
    %14 = vector.shape_cast %13 : vector<16x1x16x1x32xf32> to vector<16x16x32xf32>
    %15 = vector.extract_strided_slice %10 {offsets = [0, 1, 0, 0, 0], sizes = [16, 1, 16, 1, 32], strides = [1, 1, 1, 1, 1]} : vector<16x2x16x2x32xf32> to vector<16x1x16x1x32xf32>
    %16 = vector.shape_cast %15 : vector<16x1x16x1x32xf32> to vector<16x16x32xf32>
    %17 = vector.extract_strided_slice %10 {offsets = [0, 1, 0, 1, 0], sizes = [16, 1, 16, 1, 32], strides = [1, 1, 1, 1, 1]} : vector<16x2x16x2x32xf32> to vector<16x1x16x1x32xf32>
    %18 = vector.shape_cast %17 : vector<16x1x16x1x32xf32> to vector<16x16x32xf32>
    %cst_8 = arith.constant 0.000000e+00 : f32
    %19 = vector.broadcast %cst_8 : f32 to vector<1x16x32xf32>
    %20 = vector.extract_strided_slice %18 {offsets = [0, 0, 0], sizes = [15, 16, 32], strides = [1, 1, 1]} : vector<16x16x32xf32> to vector<15x16x32xf32>
    %21 = tpu.concatenate %19, %20 in 0 : vector<1x16x32xf32>, vector<15x16x32xf32> -> vector<16x16x32xf32>
    %cst_9 = arith.constant 0.000000e+00 : f32
    %22 = vector.broadcast %cst_9 : f32 to vector<16x1x32xf32>
    %23 = vector.extract_strided_slice %21 {offsets = [0, 0, 0], sizes = [16, 15, 32], strides = [1, 1, 1]} : vector<16x16x32xf32> to vector<16x15x32xf32>
    %24 = tpu.concatenate %22, %23 in 1 : vector<16x1x32xf32>, vector<16x15x32xf32> -> vector<16x16x32xf32>
    %cst_10 = arith.constant 0.000000e+00 : f32
    %25 = vector.broadcast %cst_10 : f32 to vector<1x16x32xf32>
    %26 = vector.extract_strided_slice %16 {offsets = [0, 0, 0], sizes = [15, 16, 32], strides = [1, 1, 1]} : vector<16x16x32xf32> to vector<15x16x32xf32>
    %27 = tpu.concatenate %25, %26 in 0 : vector<1x16x32xf32>, vector<15x16x32xf32> -> vector<16x16x32xf32>
    %cst_11 = arith.constant 0.000000e+00 : f32
    %28 = vector.broadcast %cst_11 : f32 to vector<1x16x32xf32>
    %29 = vector.extract_strided_slice %18 {offsets = [0, 0, 0], sizes = [15, 16, 32], strides = [1, 1, 1]} : vector<16x16x32xf32> to vector<15x16x32xf32>
    %30 = tpu.concatenate %28, %29 in 0 : vector<1x16x32xf32>, vector<15x16x32xf32> -> vector<16x16x32xf32>
    %cst_12 = arith.constant 0.000000e+00 : f32
    %31 = vector.broadcast %cst_12 : f32 to vector<16x1x32xf32>
    %32 = vector.extract_strided_slice %14 {offsets = [0, 0, 0], sizes = [16, 15, 32], strides = [1, 1, 1]} : vector<16x16x32xf32> to vector<16x15x32xf32>
    %33 = tpu.concatenate %31, %32 in 1 : vector<16x1x32xf32>, vector<16x15x32xf32> -> vector<16x16x32xf32>
    %cst_13 = arith.constant 0.000000e+00 : f32
    %34 = vector.broadcast %cst_13 : f32 to vector<16x1x32xf32>
    %35 = vector.extract_strided_slice %18 {offsets = [0, 0, 0], sizes = [16, 15, 32], strides = [1, 1, 1]} : vector<16x16x32xf32> to vector<16x15x32xf32>
    %36 = tpu.concatenate %34, %35 in 1 : vector<16x1x32xf32>, vector<16x15x32xf32> -> vector<16x16x32xf32>
    %37 = arith.maximumf %24, %27 : vector<16x16x32xf32>
    %38 = arith.maximumf %37, %30 : vector<16x16x32xf32>
    %39 = arith.maximumf %38, %33 : vector<16x16x32xf32>
    %40 = arith.maximumf %39, %12 : vector<16x16x32xf32>
    %41 = arith.maximumf %40, %14 : vector<16x16x32xf32>
    %42 = arith.maximumf %41, %36 : vector<16x16x32xf32>
    %43 = arith.maximumf %42, %16 : vector<16x16x32xf32>
    %44 = arith.maximumf %43, %18 : vector<16x16x32xf32>
    %45 = vector.shape_cast %44 : vector<16x16x32xf32> to vector<256x32xf32>
    %46 = arith.truncf %45 : vector<256x32xf32> to vector<256x32xbf16>
    %c0_14 = arith.constant 0 : index
    %c0_15 = arith.constant 0 : index
    %47 = vector.load %arg4[%c0_14, %c0_15] : memref<32x16xbf16, #tpu.memory_space<vmem>>, vector<32x16xbf16>
    %cst_16 = arith.constant dense<0.000000e+00> : vector<256x16xf32>
    %48 = tpu.matmul %46, %47, %cst_16 {dimension_numbers = #tpu.dot_dimension_numbers<[1], [0], [0], [1], [0, 0, 1, 1], [], []>} : vector<256x32xbf16>, vector<32x16xbf16>, vector<256x16xf32> -> vector<256x16xf32>
    %c0_17 = arith.constant 0 : index
    %c0_18 = arith.constant 0 : index
    %49 = vector.load %arg5[%c0_17, %c0_18] : memref<1x16xf32, #tpu.memory_space<vmem>>, vector<1x16xf32>
    %50 = vector.broadcast %49 : vector<1x16xf32> to vector<256x16xf32>
    %51 = arith.addf %48, %50 : vector<256x16xf32>
    %cst_19 = arith.constant 0.000000e+00 : f32
    %52 = vector.broadcast %cst_19 : f32 to vector<256x16xf32>
    %53 = arith.maximumf %51, %52 : vector<256x16xf32>
    %54 = vector.shape_cast %53 : vector<256x16xf32> to vector<16x16x16xf32>
    %cst_20 = arith.constant 0.000000e+00 : f32
    %55 = vector.broadcast %cst_20 : f32 to vector<1x16x16xf32>
    %56 = vector.extract_strided_slice %54 {offsets = [0, 0, 0], sizes = [15, 16, 16], strides = [1, 1, 1]} : vector<16x16x16xf32> to vector<15x16x16xf32>
    %57 = tpu.concatenate %55, %56 in 0 : vector<1x16x16xf32>, vector<15x16x16xf32> -> vector<16x16x16xf32>
    %cst_21 = arith.constant 0.000000e+00 : f32
    %58 = vector.broadcast %cst_21 : f32 to vector<16x1x16xf32>
    %59 = vector.extract_strided_slice %57 {offsets = [0, 0, 0], sizes = [16, 15, 16], strides = [1, 1, 1]} : vector<16x16x16xf32> to vector<16x15x16xf32>
    %60 = tpu.concatenate %58, %59 in 1 : vector<16x1x16xf32>, vector<16x15x16xf32> -> vector<16x16x16xf32>
    %cst_22 = arith.constant 0.000000e+00 : f32
    %61 = vector.broadcast %cst_22 : f32 to vector<1x16x16xf32>
    %62 = vector.extract_strided_slice %54 {offsets = [0, 0, 0], sizes = [15, 16, 16], strides = [1, 1, 1]} : vector<16x16x16xf32> to vector<15x16x16xf32>
    %63 = tpu.concatenate %61, %62 in 0 : vector<1x16x16xf32>, vector<15x16x16xf32> -> vector<16x16x16xf32>
    %cst_23 = arith.constant 0.000000e+00 : f32
    %64 = vector.broadcast %cst_23 : f32 to vector<1x16x16xf32>
    %65 = vector.extract_strided_slice %54 {offsets = [0, 0, 0], sizes = [15, 16, 16], strides = [1, 1, 1]} : vector<16x16x16xf32> to vector<15x16x16xf32>
    %66 = tpu.concatenate %64, %65 in 0 : vector<1x16x16xf32>, vector<15x16x16xf32> -> vector<16x16x16xf32>
    %cst_24 = arith.constant 0.000000e+00 : f32
    %67 = vector.broadcast %cst_24 : f32 to vector<16x1x16xf32>
    %68 = vector.extract_strided_slice %66 {offsets = [0, 1, 0], sizes = [16, 15, 16], strides = [1, 1, 1]} : vector<16x16x16xf32> to vector<16x15x16xf32>
    %69 = tpu.concatenate %68, %67 in 1 : vector<16x15x16xf32>, vector<16x1x16xf32> -> vector<16x16x16xf32>
    %cst_25 = arith.constant 0.000000e+00 : f32
    %70 = vector.broadcast %cst_25 : f32 to vector<16x1x16xf32>
    %71 = vector.extract_strided_slice %54 {offsets = [0, 0, 0], sizes = [16, 15, 16], strides = [1, 1, 1]} : vector<16x16x16xf32> to vector<16x15x16xf32>
    %72 = tpu.concatenate %70, %71 in 1 : vector<16x1x16xf32>, vector<16x15x16xf32> -> vector<16x16x16xf32>
    %cst_26 = arith.constant 0.000000e+00 : f32
    %73 = vector.broadcast %cst_26 : f32 to vector<16x1x16xf32>
    %74 = vector.extract_strided_slice %54 {offsets = [0, 1, 0], sizes = [16, 15, 16], strides = [1, 1, 1]} : vector<16x16x16xf32> to vector<16x15x16xf32>
    %75 = tpu.concatenate %74, %73 in 1 : vector<16x15x16xf32>, vector<16x1x16xf32> -> vector<16x16x16xf32>
    %cst_27 = arith.constant 0.000000e+00 : f32
    %76 = vector.broadcast %cst_27 : f32 to vector<1x16x16xf32>
    %77 = vector.extract_strided_slice %54 {offsets = [1, 0, 0], sizes = [15, 16, 16], strides = [1, 1, 1]} : vector<16x16x16xf32> to vector<15x16x16xf32>
    %78 = tpu.concatenate %77, %76 in 0 : vector<15x16x16xf32>, vector<1x16x16xf32> -> vector<16x16x16xf32>
    %cst_28 = arith.constant 0.000000e+00 : f32
    %79 = vector.broadcast %cst_28 : f32 to vector<16x1x16xf32>
    %80 = vector.extract_strided_slice %78 {offsets = [0, 0, 0], sizes = [16, 15, 16], strides = [1, 1, 1]} : vector<16x16x16xf32> to vector<16x15x16xf32>
    %81 = tpu.concatenate %79, %80 in 1 : vector<16x1x16xf32>, vector<16x15x16xf32> -> vector<16x16x16xf32>
    %cst_29 = arith.constant 0.000000e+00 : f32
    %82 = vector.broadcast %cst_29 : f32 to vector<1x16x16xf32>
    %83 = vector.extract_strided_slice %54 {offsets = [1, 0, 0], sizes = [15, 16, 16], strides = [1, 1, 1]} : vector<16x16x16xf32> to vector<15x16x16xf32>
    %84 = tpu.concatenate %83, %82 in 0 : vector<15x16x16xf32>, vector<1x16x16xf32> -> vector<16x16x16xf32>
    %cst_30 = arith.constant 0.000000e+00 : f32
    %85 = vector.broadcast %cst_30 : f32 to vector<1x16x16xf32>
    %86 = vector.extract_strided_slice %54 {offsets = [1, 0, 0], sizes = [15, 16, 16], strides = [1, 1, 1]} : vector<16x16x16xf32> to vector<15x16x16xf32>
    %87 = tpu.concatenate %86, %85 in 0 : vector<15x16x16xf32>, vector<1x16x16xf32> -> vector<16x16x16xf32>
    %cst_31 = arith.constant 0.000000e+00 : f32
    %88 = vector.broadcast %cst_31 : f32 to vector<16x1x16xf32>
    %89 = vector.extract_strided_slice %87 {offsets = [0, 1, 0], sizes = [16, 15, 16], strides = [1, 1, 1]} : vector<16x16x16xf32> to vector<16x15x16xf32>
    %90 = tpu.concatenate %89, %88 in 1 : vector<16x15x16xf32>, vector<16x1x16xf32> -> vector<16x16x16xf32>
    %91 = tpu.concatenate %60, %63, %69, %72, %54, %75, %81, %84, %90 in 2 : vector<16x16x16xf32>, vector<16x16x16xf32>, vector<16x16x16xf32>, vector<16x16x16xf32>, vector<16x16x16xf32>, vector<16x16x16xf32>, vector<16x16x16xf32>, vector<16x16x16xf32>, vector<16x16x16xf32> -> vector<16x16x144xf32>
    %92 = vector.shape_cast %91 : vector<16x16x144xf32> to vector<256x144xf32>
    %93 = arith.truncf %92 : vector<256x144xf32> to vector<256x144xbf16>
    %c0_32 = arith.constant 0 : index
    %c0_33 = arith.constant 0 : index
    %94 = vector.load %arg6[%c0_32, %c0_33] : memref<144x16xbf16, #tpu.memory_space<vmem>>, vector<144x16xbf16>
    %cst_34 = arith.constant dense<0.000000e+00> : vector<256x16xf32>
    %95 = tpu.matmul %93, %94, %cst_34 {dimension_numbers = #tpu.dot_dimension_numbers<[1], [0], [0], [1], [0, 0, 1, 1], [], []>} : vector<256x144xbf16>, vector<144x16xbf16>, vector<256x16xf32> -> vector<256x16xf32>
    %c0_35 = arith.constant 0 : index
    %c0_36 = arith.constant 0 : index
    %96 = vector.load %arg7[%c0_35, %c0_36] : memref<1x16xf32, #tpu.memory_space<vmem>>, vector<1x16xf32>
    %97 = vector.broadcast %96 : vector<1x16xf32> to vector<256x16xf32>
    %98 = arith.addf %95, %97 : vector<256x16xf32>
    %cst_37 = arith.constant 0.000000e+00 : f32
    %99 = vector.broadcast %cst_37 : f32 to vector<256x16xf32>
    %100 = arith.maximumf %98, %99 : vector<256x16xf32>
    %101 = arith.truncf %100 : vector<256x16xf32> to vector<256x16xbf16>
    %c0_38 = arith.constant 0 : index
    %c0_39 = arith.constant 0 : index
    %102 = vector.load %arg8[%c0_38, %c0_39] : memref<16x64xbf16, #tpu.memory_space<vmem>>, vector<16x64xbf16>
    %cst_40 = arith.constant dense<0.000000e+00> : vector<256x64xf32>
    %103 = tpu.matmul %101, %102, %cst_40 {dimension_numbers = #tpu.dot_dimension_numbers<[1], [0], [0], [1], [0, 0, 1, 1], [], []>} : vector<256x16xbf16>, vector<16x64xbf16>, vector<256x64xf32> -> vector<256x64xf32>
    %c0_41 = arith.constant 0 : index
    %c0_42 = arith.constant 0 : index
    %104 = vector.load %arg9[%c0_41, %c0_42] : memref<1x64xf32, #tpu.memory_space<vmem>>, vector<1x64xf32>
    %105 = vector.broadcast %104 : vector<1x64xf32> to vector<256x64xf32>
    %106 = arith.addf %103, %105 : vector<256x64xf32>
    %107 = arith.truncf %45 : vector<256x32xf32> to vector<256x32xbf16>
    %c0_43 = arith.constant 0 : index
    %c0_44 = arith.constant 0 : index
    %108 = vector.load %arg10[%c0_43, %c0_44] : memref<32x64xbf16, #tpu.memory_space<vmem>>, vector<32x64xbf16>
    %cst_45 = arith.constant dense<0.000000e+00> : vector<256x64xf32>
    %109 = tpu.matmul %107, %108, %cst_45 {dimension_numbers = #tpu.dot_dimension_numbers<[1], [0], [0], [1], [0, 0, 1, 1], [], []>} : vector<256x32xbf16>, vector<32x64xbf16>, vector<256x64xf32> -> vector<256x64xf32>
    %110 = arith.addf %106, %109 : vector<256x64xf32>
    %c0_46 = arith.constant 0 : index
    %c0_47 = arith.constant 0 : index
    %111 = vector.load %arg11[%c0_46, %c0_47] : memref<1x64xf32, #tpu.memory_space<vmem>>, vector<1x64xf32>
    %112 = vector.broadcast %111 : vector<1x64xf32> to vector<256x64xf32>
    %113 = arith.addf %110, %112 : vector<256x64xf32>
    %cst_48 = arith.constant 0.000000e+00 : f32
    %114 = vector.broadcast %cst_48 : f32 to vector<256x64xf32>
    %115 = arith.maximumf %113, %114 : vector<256x64xf32>
    %116 = vector.shape_cast %115 : vector<256x64xf32> to vector<16x16x64xf32>
    %117 = arith.truncf %115 : vector<256x64xf32> to vector<256x64xbf16>
    %c0_49 = arith.constant 0 : index
    %c0_50 = arith.constant 0 : index
    %118 = vector.load %arg12[%c0_49, %c0_50] : memref<64x32xbf16, #tpu.memory_space<vmem>>, vector<64x32xbf16>
    %cst_51 = arith.constant dense<0.000000e+00> : vector<256x32xf32>
    %119 = tpu.matmul %117, %118, %cst_51 {dimension_numbers = #tpu.dot_dimension_numbers<[1], [0], [0], [1], [0, 0, 1, 1], [], []>} : vector<256x64xbf16>, vector<64x32xbf16>, vector<256x32xf32> -> vector<256x32xf32>
    %c0_52 = arith.constant 0 : index
    %c0_53 = arith.constant 0 : index
    %120 = vector.load %arg13[%c0_52, %c0_53] : memref<1x32xf32, #tpu.memory_space<vmem>>, vector<1x32xf32>
    %121 = vector.broadcast %120 : vector<1x32xf32> to vector<256x32xf32>
    %122 = arith.addf %119, %121 : vector<256x32xf32>
    %cst_54 = arith.constant 0.000000e+00 : f32
    %123 = vector.broadcast %cst_54 : f32 to vector<256x32xf32>
    %124 = arith.maximumf %122, %123 : vector<256x32xf32>
    %125 = vector.shape_cast %124 : vector<256x32xf32> to vector<16x16x32xf32>
    %126 = vector.shape_cast %125 : vector<16x16x32xf32> to vector<8x2x8x2x32xf32>
    %127 = vector.extract_strided_slice %126 {offsets = [0, 0, 0, 0, 0], sizes = [8, 1, 8, 1, 32], strides = [1, 1, 1, 1, 1]} : vector<8x2x8x2x32xf32> to vector<8x1x8x1x32xf32>
    %128 = vector.shape_cast %127 : vector<8x1x8x1x32xf32> to vector<8x8x32xf32>
    %129 = vector.extract_strided_slice %126 {offsets = [0, 0, 0, 1, 0], sizes = [8, 1, 8, 1, 32], strides = [1, 1, 1, 1, 1]} : vector<8x2x8x2x32xf32> to vector<8x1x8x1x32xf32>
    %130 = vector.shape_cast %129 : vector<8x1x8x1x32xf32> to vector<8x8x32xf32>
    %131 = vector.extract_strided_slice %126 {offsets = [0, 1, 0, 0, 0], sizes = [8, 1, 8, 1, 32], strides = [1, 1, 1, 1, 1]} : vector<8x2x8x2x32xf32> to vector<8x1x8x1x32xf32>
    %132 = vector.shape_cast %131 : vector<8x1x8x1x32xf32> to vector<8x8x32xf32>
    %133 = vector.extract_strided_slice %126 {offsets = [0, 1, 0, 1, 0], sizes = [8, 1, 8, 1, 32], strides = [1, 1, 1, 1, 1]} : vector<8x2x8x2x32xf32> to vector<8x1x8x1x32xf32>
    %134 = vector.shape_cast %133 : vector<8x1x8x1x32xf32> to vector<8x8x32xf32>
    %cst_55 = arith.constant 0.000000e+00 : f32
    %135 = vector.broadcast %cst_55 : f32 to vector<1x8x32xf32>
    %136 = vector.extract_strided_slice %134 {offsets = [0, 0, 0], sizes = [7, 8, 32], strides = [1, 1, 1]} : vector<8x8x32xf32> to vector<7x8x32xf32>
    %137 = tpu.concatenate %135, %136 in 0 : vector<1x8x32xf32>, vector<7x8x32xf32> -> vector<8x8x32xf32>
    %cst_56 = arith.constant 0.000000e+00 : f32
    %138 = vector.broadcast %cst_56 : f32 to vector<8x1x32xf32>
    %139 = vector.extract_strided_slice %137 {offsets = [0, 0, 0], sizes = [8, 7, 32], strides = [1, 1, 1]} : vector<8x8x32xf32> to vector<8x7x32xf32>
    %140 = tpu.concatenate %138, %139 in 1 : vector<8x1x32xf32>, vector<8x7x32xf32> -> vector<8x8x32xf32>
    %cst_57 = arith.constant 0.000000e+00 : f32
    %141 = vector.broadcast %cst_57 : f32 to vector<1x8x32xf32>
    %142 = vector.extract_strided_slice %132 {offsets = [0, 0, 0], sizes = [7, 8, 32], strides = [1, 1, 1]} : vector<8x8x32xf32> to vector<7x8x32xf32>
    %143 = tpu.concatenate %141, %142 in 0 : vector<1x8x32xf32>, vector<7x8x32xf32> -> vector<8x8x32xf32>
    %cst_58 = arith.constant 0.000000e+00 : f32
    %144 = vector.broadcast %cst_58 : f32 to vector<1x8x32xf32>
    %145 = vector.extract_strided_slice %134 {offsets = [0, 0, 0], sizes = [7, 8, 32], strides = [1, 1, 1]} : vector<8x8x32xf32> to vector<7x8x32xf32>
    %146 = tpu.concatenate %144, %145 in 0 : vector<1x8x32xf32>, vector<7x8x32xf32> -> vector<8x8x32xf32>
    %cst_59 = arith.constant 0.000000e+00 : f32
    %147 = vector.broadcast %cst_59 : f32 to vector<8x1x32xf32>
    %148 = vector.extract_strided_slice %130 {offsets = [0, 0, 0], sizes = [8, 7, 32], strides = [1, 1, 1]} : vector<8x8x32xf32> to vector<8x7x32xf32>
    %149 = tpu.concatenate %147, %148 in 1 : vector<8x1x32xf32>, vector<8x7x32xf32> -> vector<8x8x32xf32>
    %cst_60 = arith.constant 0.000000e+00 : f32
    %150 = vector.broadcast %cst_60 : f32 to vector<8x1x32xf32>
    %151 = vector.extract_strided_slice %134 {offsets = [0, 0, 0], sizes = [8, 7, 32], strides = [1, 1, 1]} : vector<8x8x32xf32> to vector<8x7x32xf32>
    %152 = tpu.concatenate %150, %151 in 1 : vector<8x1x32xf32>, vector<8x7x32xf32> -> vector<8x8x32xf32>
    %153 = tpu.concatenate %140, %143, %146, %149, %128, %130, %152, %132, %134 in 2 : vector<8x8x32xf32>, vector<8x8x32xf32>, vector<8x8x32xf32>, vector<8x8x32xf32>, vector<8x8x32xf32>, vector<8x8x32xf32>, vector<8x8x32xf32>, vector<8x8x32xf32>, vector<8x8x32xf32> -> vector<8x8x288xf32>
    %154 = vector.shape_cast %153 : vector<8x8x288xf32> to vector<64x288xf32>
    %155 = arith.truncf %154 : vector<64x288xf32> to vector<64x288xbf16>
    %c0_61 = arith.constant 0 : index
    %c0_62 = arith.constant 0 : index
    %156 = vector.load %arg14[%c0_61, %c0_62] : memref<288x32xbf16, #tpu.memory_space<vmem>>, vector<288x32xbf16>
    %cst_63 = arith.constant dense<0.000000e+00> : vector<64x32xf32>
    %157 = tpu.matmul %155, %156, %cst_63 {dimension_numbers = #tpu.dot_dimension_numbers<[1], [0], [0], [1], [0, 0, 1, 1], [], []>} : vector<64x288xbf16>, vector<288x32xbf16>, vector<64x32xf32> -> vector<64x32xf32>
    %c0_64 = arith.constant 0 : index
    %c0_65 = arith.constant 0 : index
    %158 = vector.load %arg15[%c0_64, %c0_65] : memref<1x32xf32, #tpu.memory_space<vmem>>, vector<1x32xf32>
    %159 = vector.broadcast %158 : vector<1x32xf32> to vector<64x32xf32>
    %160 = arith.addf %157, %159 : vector<64x32xf32>
    %cst_66 = arith.constant 0.000000e+00 : f32
    %161 = vector.broadcast %cst_66 : f32 to vector<64x32xf32>
    %162 = arith.maximumf %160, %161 : vector<64x32xf32>
    %163 = vector.shape_cast %116 : vector<16x16x64xf32> to vector<8x2x8x2x64xf32>
    %164 = vector.extract_strided_slice %163 {offsets = [0, 0, 0, 0, 0], sizes = [8, 1, 8, 1, 64], strides = [1, 1, 1, 1, 1]} : vector<8x2x8x2x64xf32> to vector<8x1x8x1x64xf32>
    %165 = vector.shape_cast %164 : vector<8x1x8x1x64xf32> to vector<8x8x64xf32>
    %166 = vector.shape_cast %165 : vector<8x8x64xf32> to vector<64x64xf32>
    %167 = arith.truncf %162 : vector<64x32xf32> to vector<64x32xbf16>
    %c0_67 = arith.constant 0 : index
    %c0_68 = arith.constant 0 : index
    %168 = vector.load %arg16[%c0_67, %c0_68] : memref<32x128xbf16, #tpu.memory_space<vmem>>, vector<32x128xbf16>
    %cst_69 = arith.constant dense<0.000000e+00> : vector<64x128xf32>
    %169 = tpu.matmul %167, %168, %cst_69 {dimension_numbers = #tpu.dot_dimension_numbers<[1], [0], [0], [1], [0, 0, 1, 1], [], []>} : vector<64x32xbf16>, vector<32x128xbf16>, vector<64x128xf32> -> vector<64x128xf32>
    %c0_70 = arith.constant 0 : index
    %c0_71 = arith.constant 0 : index
    %170 = vector.load %arg17[%c0_70, %c0_71] : memref<1x128xf32, #tpu.memory_space<vmem>>, vector<1x128xf32>
    %171 = vector.broadcast %170 : vector<1x128xf32> to vector<64x128xf32>
    %172 = arith.addf %169, %171 : vector<64x128xf32>
    %173 = arith.truncf %166 : vector<64x64xf32> to vector<64x64xbf16>
    %c0_72 = arith.constant 0 : index
    %c0_73 = arith.constant 0 : index
    %174 = vector.load %arg18[%c0_72, %c0_73] : memref<64x128xbf16, #tpu.memory_space<vmem>>, vector<64x128xbf16>
    %cst_74 = arith.constant dense<0.000000e+00> : vector<64x128xf32>
    %175 = tpu.matmul %173, %174, %cst_74 {dimension_numbers = #tpu.dot_dimension_numbers<[1], [0], [0], [1], [0, 0, 1, 1], [], []>} : vector<64x64xbf16>, vector<64x128xbf16>, vector<64x128xf32> -> vector<64x128xf32>
    %176 = arith.addf %172, %175 : vector<64x128xf32>
    %c0_75 = arith.constant 0 : index
    %c0_76 = arith.constant 0 : index
    %177 = vector.load %arg19[%c0_75, %c0_76] : memref<1x128xf32, #tpu.memory_space<vmem>>, vector<1x128xf32>
    %178 = vector.broadcast %177 : vector<1x128xf32> to vector<64x128xf32>
    %179 = arith.addf %176, %178 : vector<64x128xf32>
    %cst_77 = arith.constant 0.000000e+00 : f32
    %180 = vector.broadcast %cst_77 : f32 to vector<64x128xf32>
    %181 = arith.maximumf %179, %180 : vector<64x128xf32>
    %cst_78 = arith.constant dense<0.000000e+00> : vector<128xf32>
    %182 = vector.multi_reduction <add>, %181, %cst_78 [0] : vector<64x128xf32> to vector<128xf32>
    %183 = vector.shape_cast %182 : vector<128xf32> to vector<1x128xf32>
    %cst_79 = arith.constant 6.400000e+01 : f32
    %184 = vector.broadcast %cst_79 : f32 to vector<1x128xf32>
    %185 = arith.divf %183, %184 : vector<1x128xf32>
    %186 = arith.truncf %185 : vector<1x128xf32> to vector<1x128xbf16>
    %c0_80 = arith.constant 0 : index
    %c0_81 = arith.constant 0 : index
    %187 = vector.load %arg20[%c0_80, %c0_81] : memref<128x128xbf16, #tpu.memory_space<vmem>>, vector<128x128xbf16>
    %cst_82 = arith.constant dense<0.000000e+00> : vector<1x128xf32>
    %188 = tpu.matmul %186, %187, %cst_82 {dimension_numbers = #tpu.dot_dimension_numbers<[1], [0], [0], [1], [0, 0, 1, 1], [], []>} : vector<1x128xbf16>, vector<128x128xbf16>, vector<1x128xf32> -> vector<1x128xf32>
    %c0_83 = arith.constant 0 : index
    %c0_84 = arith.constant 0 : index
    %189 = vector.load %arg21[%c0_83, %c0_84] : memref<1x128xf32, #tpu.memory_space<vmem>>, vector<1x128xf32>
    %190 = arith.addf %188, %189 : vector<1x128xf32>
    %191 = math.absf %190 : vector<1x128xf32>
    %cst_85 = arith.constant 0.000000e+00 : f32
    %192 = vector.broadcast %cst_85 : f32 to vector<1x128xf32>
    %193 = arith.subf %192, %191 : vector<1x128xf32>
    %194 = math.exp %193 : vector<1x128xf32>
    %cst_86 = arith.constant 0.000000e+00 : f32
    %195 = vector.broadcast %cst_86 : f32 to vector<1x128xf32>
    %196 = arith.cmpf oge, %190, %195 : vector<1x128xf32>
    %cst_87 = arith.constant 1.000000e+00 : f32
    %197 = vector.broadcast %cst_87 : f32 to vector<1x128xf32>
    %198 = arith.addf %197, %194 : vector<1x128xf32>
    %cst_88 = arith.constant 1.000000e+00 : f32
    %199 = vector.broadcast %cst_88 : f32 to vector<1x128xf32>
    %200 = arith.divf %199, %198 : vector<1x128xf32>
    %cst_89 = arith.constant 1.000000e+00 : f32
    %201 = vector.broadcast %cst_89 : f32 to vector<1x128xf32>
    %202 = arith.addf %201, %194 : vector<1x128xf32>
    %203 = arith.divf %194, %202 : vector<1x128xf32>
    %204 = arith.select %196, %200, %203 : vector<1x128xi1>, vector<1x128xf32>
    %205 = vector.shape_cast %190 : vector<1x128xf32> to vector<1x1x128xf32>
    %c0_90 = arith.constant 0 : index
    %c0_91 = arith.constant 0 : index
    %c0_92 = arith.constant 0 : index
    %206 = vector.load %arg22[%c0_90, %c0_91, %c0_92] : memref<1x1x128xf32, #tpu.memory_space<vmem>>, vector<1x1x128xf32>
    tpu.vector_store %arg22[%c0_90, %c0_91, %c0_92], %205 {strides = array<i32>} : memref<1x1x128xf32, #tpu.memory_space<vmem>>, vector<1x1x128xf32>,
    %207 = vector.shape_cast %204 : vector<1x128xf32> to vector<1x1x128xf32>
    %c0_93 = arith.constant 0 : index
    %c0_94 = arith.constant 0 : index
    %c0_95 = arith.constant 0 : index
    %208 = vector.load %arg23[%c0_93, %c0_94, %c0_95] : memref<1x1x128xf32, #tpu.memory_space<vmem>>, vector<1x1x128xf32>
    tpu.vector_store %arg23[%c0_93, %c0_94, %c0_95], %207 {strides = array<i32>} : memref<1x1x128xf32, #tpu.memory_space<vmem>>, vector<1x1x128xf32>,
    return
  }
  func.func @transform_0(%arg0: i32) -> (i32, i32, i32, i32) {
    %c0_i32 = arith.constant 0 : i32
    %c0_i32_0 = arith.constant 0 : i32
    %c0_i32_1 = arith.constant 0 : i32
    %c0_i32_2 = arith.constant 0 : i32
    return %arg0, %c0_i32, %c0_i32_0, %c0_i32_1 : i32, i32, i32, i32
  }
  func.func @transform_1(%arg0: i32) -> (i32, i32) {
    %c0_i32 = arith.constant 0 : i32
    %c0_i32_0 = arith.constant 0 : i32
    %c0_i32_1 = arith.constant 0 : i32
    return %c0_i32, %c0_i32_0 : i32, i32
  }
  func.func @transform_2(%arg0: i32) -> (i32, i32) {
    %c0_i32 = arith.constant 0 : i32
    %c0_i32_0 = arith.constant 0 : i32
    %c0_i32_1 = arith.constant 0 : i32
    return %c0_i32, %c0_i32_0 : i32, i32
  }
  func.func @transform_3(%arg0: i32) -> (i32, i32) {
    %c0_i32 = arith.constant 0 : i32
    %c0_i32_0 = arith.constant 0 : i32
    %c0_i32_1 = arith.constant 0 : i32
    return %c0_i32, %c0_i32_0 : i32, i32
  }
  func.func @transform_4(%arg0: i32) -> (i32, i32) {
    %c0_i32 = arith.constant 0 : i32
    %c0_i32_0 = arith.constant 0 : i32
    %c0_i32_1 = arith.constant 0 : i32
    return %c0_i32, %c0_i32_0 : i32, i32
  }
  func.func @transform_5(%arg0: i32) -> (i32, i32) {
    %c0_i32 = arith.constant 0 : i32
    %c0_i32_0 = arith.constant 0 : i32
    %c0_i32_1 = arith.constant 0 : i32
    return %c0_i32, %c0_i32_0 : i32, i32
  }
  func.func @transform_6(%arg0: i32) -> (i32, i32) {
    %c0_i32 = arith.constant 0 : i32
    %c0_i32_0 = arith.constant 0 : i32
    %c0_i32_1 = arith.constant 0 : i32
    return %c0_i32, %c0_i32_0 : i32, i32
  }
  func.func @transform_7(%arg0: i32) -> (i32, i32) {
    %c0_i32 = arith.constant 0 : i32
    %c0_i32_0 = arith.constant 0 : i32
    %c0_i32_1 = arith.constant 0 : i32
    return %c0_i32, %c0_i32_0 : i32, i32
  }
  func.func @transform_8(%arg0: i32) -> (i32, i32) {
    %c0_i32 = arith.constant 0 : i32
    %c0_i32_0 = arith.constant 0 : i32
    %c0_i32_1 = arith.constant 0 : i32
    return %c0_i32, %c0_i32_0 : i32, i32
  }
  func.func @transform_9(%arg0: i32) -> (i32, i32) {
    %c0_i32 = arith.constant 0 : i32
    %c0_i32_0 = arith.constant 0 : i32
    %c0_i32_1 = arith.constant 0 : i32
    return %c0_i32, %c0_i32_0 : i32, i32
  }
  func.func @transform_10(%arg0: i32) -> (i32, i32) {
    %c0_i32 = arith.constant 0 : i32
    %c0_i32_0 = arith.constant 0 : i32
    %c0_i32_1 = arith.constant 0 : i32
    return %c0_i32, %c0_i32_0 : i32, i32
  }
  func.func @transform_11(%arg0: i32) -> (i32, i32) {
    %c0_i32 = arith.constant 0 : i32
    %c0_i32_0 = arith.constant 0 : i32
    %c0_i32_1 = arith.constant 0 : i32
    return %c0_i32, %c0_i32_0 : i32, i32
  }
  func.func @transform_12(%arg0: i32) -> (i32, i32) {
    %c0_i32 = arith.constant 0 : i32
    %c0_i32_0 = arith.constant 0 : i32
    %c0_i32_1 = arith.constant 0 : i32
    return %c0_i32, %c0_i32_0 : i32, i32
  }
  func.func @transform_13(%arg0: i32) -> (i32, i32) {
    %c0_i32 = arith.constant 0 : i32
    %c0_i32_0 = arith.constant 0 : i32
    %c0_i32_1 = arith.constant 0 : i32
    return %c0_i32, %c0_i32_0 : i32, i32
  }
  func.func @transform_14(%arg0: i32) -> (i32, i32) {
    %c0_i32 = arith.constant 0 : i32
    %c0_i32_0 = arith.constant 0 : i32
    %c0_i32_1 = arith.constant 0 : i32
    return %c0_i32, %c0_i32_0 : i32, i32
  }
  func.func @transform_15(%arg0: i32) -> (i32, i32) {
    %c0_i32 = arith.constant 0 : i32
    %c0_i32_0 = arith.constant 0 : i32
    %c0_i32_1 = arith.constant 0 : i32
    return %c0_i32, %c0_i32_0 : i32, i32
  }
  func.func @transform_16(%arg0: i32) -> (i32, i32) {
    %c0_i32 = arith.constant 0 : i32
    %c0_i32_0 = arith.constant 0 : i32
    %c0_i32_1 = arith.constant 0 : i32
    return %c0_i32, %c0_i32_0 : i32, i32
  }
  func.func @transform_17(%arg0: i32) -> (i32, i32) {
    %c0_i32 = arith.constant 0 : i32
    %c0_i32_0 = arith.constant 0 : i32
    %c0_i32_1 = arith.constant 0 : i32
    return %c0_i32, %c0_i32_0 : i32, i32
  }
  func.func @transform_18(%arg0: i32) -> (i32, i32) {
    %c0_i32 = arith.constant 0 : i32
    %c0_i32_0 = arith.constant 0 : i32
    %c0_i32_1 = arith.constant 0 : i32
    return %c0_i32, %c0_i32_0 : i32, i32
  }
  func.func @transform_19(%arg0: i32) -> (i32, i32) {
    %c0_i32 = arith.constant 0 : i32
    %c0_i32_0 = arith.constant 0 : i32
    %c0_i32_1 = arith.constant 0 : i32
    return %c0_i32, %c0_i32_0 : i32, i32
  }
  func.func @transform_20(%arg0: i32) -> (i32, i32) {
    %c0_i32 = arith.constant 0 : i32
    %c0_i32_0 = arith.constant 0 : i32
    %c0_i32_1 = arith.constant 0 : i32
    return %c0_i32, %c0_i32_0 : i32, i32
  }
  func.func @transform_21(%arg0: i32) -> (i32, i32, i32) {
    %c0_i32 = arith.constant 0 : i32
    %c0_i32_0 = arith.constant 0 : i32
    %c0_i32_1 = arith.constant 0 : i32
    return %arg0, %c0_i32, %c0_i32_0 : i32, i32, i32
  }
  func.func @transform_22(%arg0: i32) -> (i32, i32, i32) {
    %c0_i32 = arith.constant 0 : i32
    %c0_i32_0 = arith.constant 0 : i32
    %c0_i32_1 = arith.constant 0 : i32
    return %arg0, %c0_i32, %c0_i32_0 : i32, i32, i32
  }
}

</mosaic_0001>

<llo_original>
// kernel: resnet_st_phase_forward.1
$region0: #{resnet_st_phase_forward.1}
  #allocation0 [shape = 'u32[]', space=smem, size = 0x4, offset = 0x4, fixed_abs, tag = 'smem constant byte address 0x4 - core index']
  #allocation1 [shape = 'u32[72,128]{1,0:T(1,128)}', space=vmem, size = 0x9000, scoped, tag = 'internal scratch']
  %s0 = inlined_call_operand.vmem [shape: bf16[2,32,32,147], index: 0, kind: input, shape index: {}]
  %s1 = inlined_call_operand.vmem [shape: bf16[147,32], index: 1, kind: input, shape index: {}]
  %s2 = inlined_call_operand.vmem [shape: f32[1,32], index: 2, kind: input, shape index: {}]
  %s3 = inlined_call_operand.vmem [shape: bf16[32,16], index: 3, kind: input, shape index: {}]
  %s4 = inlined_call_operand.vmem [shape: f32[1,16], index: 4, kind: input, shape index: {}]
  %s5 = inlined_call_operand.vmem [shape: bf16[144,16], index: 5, kind: input, shape index: {}]
  %s6 = inlined_call_operand.vmem [shape: f32[1,16], index: 6, kind: input, shape index: {}]
  %s7 = inlined_call_operand.vmem [shape: bf16[16,64], index: 7, kind: input, shape index: {}]
  %s8 = inlined_call_operand.vmem [shape: f32[1,64], index: 8, kind: input, shape index: {}]
  %s9 = inlined_call_operand.vmem [shape: bf16[32,64], index: 9, kind: input, shape index: {}]
  %s10 = inlined_call_operand.vmem [shape: f32[1,64], index: 10, kind: input, shape index: {}]
  %s11 = inlined_call_operand.vmem [shape: bf16[64,32], index: 11, kind: input, shape index: {}]
  %s12 = inlined_call_operand.vmem [shape: f32[1,32], index: 12, kind: input, shape index: {}]
  %s13 = inlined_call_operand.vmem [shape: bf16[288,32], index: 13, kind: input, shape index: {}]
  %s14 = inlined_call_operand.vmem [shape: f32[1,32], index: 14, kind: input, shape index: {}]
  %s15 = inlined_call_operand.vmem [shape: bf16[32,128], index: 15, kind: input, shape index: {}]
  %s16 = inlined_call_operand.vmem [shape: f32[1,128], index: 16, kind: input, shape index: {}]
  %s17 = inlined_call_operand.vmem [shape: bf16[64,128], index: 17, kind: input, shape index: {}]
  %s18 = inlined_call_operand.vmem [shape: f32[1,128], index: 18, kind: input, shape index: {}]
  %s19 = inlined_call_operand.vmem [shape: bf16[128,128], index: 19, kind: input, shape index: {}]
  %s20 = inlined_call_operand.vmem [shape: f32[1,128], index: 20, kind: input, shape index: {}]
  %s21 = inlined_call_operand.hbm [shape: f32[2,1,128], index: 21, kind: output, shape index: {0}]
  %s22 = inlined_call_operand.hbm [shape: f32[2,1,128], index: 22, kind: output, shape index: {1}]
  %23 = xla_tuple %s21, %s22
  %s24 = sld [smem:[#allocation0]]
  $region125: #{resnet_st_phase_forward.1} parent=0
    _
  %s26 = ssub.s32 1, %s24
  %s27 = scalar_select 0, %s26, %s24
  $region1: #{resnet_st_phase_forward.1} parent=0
    #allocation2 [shape = 'u8[1024]{0}', space=vmem, size = 0x400, scoped, tag = 'output window, operand 0']
    #allocation3 [shape = 's32[2]{0}', space=sflag, size = 0x8, scoped, tag = 'scoped memory for resnet_st_phase_forward.1']
    #allocation4 [shape = 'u8[1024]{0}', space=vmem, size = 0x400, scoped, tag = 'output window, operand 1']
    #allocation5 [shape = 's32[2]{0}', space=sflag, size = 0x8, scoped, tag = 'scoped memory for resnet_st_phase_forward.1']
    %28 = vsyncpa [#allocation3], 0
    %s29 = scalar_lea.sflag [#allocation3], 1
    %30 = vsyncpa %s29, 0
    %31 = vsyncpa [#allocation5], 0
    %s32 = scalar_lea.sflag [#allocation5], 1
    %33 = vsyncpa %s32, 0
    loop: start=0, step=1, limit=4
    $region2: #{resnet_st_phase_forward.1} parent=1 // loop_pre_header
      _
    $region3: #{resnet_st_phase_forward.1} parent=1 // loop_header
      %s35 = sphi 0, %s39
      %p36 = scmp.ge.s32.totalorder %s35, 4
      %s45 = sphi 0, %s47
      %s48 = sphi 0, %s45
      %s49 = sphi 0, %s48
      %s65 = sphi 0, %s49
      %s69 = sphi 0, %s69
      %s71 = sphi 0, %s69
      %s72 = sphi 0, %s71
      %s86 = sphi 0, %s72
      %s90 = sphi 0, %s90
      %s92 = sphi 0, %s90
      %s93 = sphi 0, %s92
      %s107 = sphi 0, %s93
      %s111 = sphi 0, %s111
      %s113 = sphi 0, %s111
      %s114 = sphi 0, %s113
      %s128 = sphi 0, %s114
      %s132 = sphi 0, %s132
      %s134 = sphi 0, %s132
      %s135 = sphi 0, %s134
      %s149 = sphi 0, %s135
      %s153 = sphi 0, %s153
      %s155 = sphi 0, %s153
      %s156 = sphi 0, %s155
      %s170 = sphi 0, %s156
      %s174 = sphi 0, %s174
      %s176 = sphi 0, %s174
      %s177 = sphi 0, %s176
      %s191 = sphi 0, %s177
      %s195 = sphi 0, %s195
      %s197 = sphi 0, %s195
      %s198 = sphi 0, %s197
      %s212 = sphi 0, %s198
      %s216 = sphi 0, %s216
      %s218 = sphi 0, %s216
      %s219 = sphi 0, %s218
      %s233 = sphi 0, %s219
      %s237 = sphi 0, %s237
      %s239 = sphi 0, %s237
      %s240 = sphi 0, %s239
      %s254 = sphi 0, %s240
      %s258 = sphi 0, %s258
      %s260 = sphi 0, %s258
      %s261 = sphi 0, %s260
      %s275 = sphi 0, %s261
      %s279 = sphi 0, %s279
      %s281 = sphi 0, %s279
      %s282 = sphi 0, %s281
      %s296 = sphi 0, %s282
      %s300 = sphi 0, %s300
      %s302 = sphi 0, %s300
      %s303 = sphi 0, %s302
      %s317 = sphi 0, %s303
      %s321 = sphi 0, %s321
      %s323 = sphi 0, %s321
      %s324 = sphi 0, %s323
      %s338 = sphi 0, %s324
      %s342 = sphi 0, %s342
      %s344 = sphi 0, %s342
      %s345 = sphi 0, %s344
      %s359 = sphi 0, %s345
      %s363 = sphi 0, %s363
      %s365 = sphi 0, %s363
      %s366 = sphi 0, %s365
      %s380 = sphi 0, %s366
      %s384 = sphi 0, %s384
      %s386 = sphi 0, %s384
      %s387 = sphi 0, %s386
      %s401 = sphi 0, %s387
      %s405 = sphi 0, %s405
      %s407 = sphi 0, %s405
      %s408 = sphi 0, %s407
      %s422 = sphi 0, %s408
      %s426 = sphi 0, %s426
      %s428 = sphi 0, %s426
      %s429 = sphi 0, %s428
      %s443 = sphi 0, %s429
      %s447 = sphi 0, %s447
      %s449 = sphi 0, %s447
      %s450 = sphi 0, %s449
      %s464 = sphi 0, %s450
      %s468 = sphi 0, %s468
      %s470 = sphi 0, %s468
      %s471 = sphi 0, %s470
      %s485 = sphi 0, %s471
      %s491 = sphi 0, %s493
      %s494 = sphi 0, %s491
      %s495 = sphi 0, %s494
      %s511 = sphi 0, %s495
      %s517 = sphi 0, %s519
      %s520 = sphi 0, %s517
      %s521 = sphi 0, %s520
      %s537 = sphi 0, %s521
    $region4: #{resnet_st_phase_forward.1} parent=1 // loop_header_branch
      %38 = sbr.rel (%p36) target = $region8
    $region5: #{resnet_st_phase_forward.1} parent=1 // loop_body
      %s40 = ssub.s32 %s35, 1
      %s41 = ssub.s32 %s35, 2
      %s42 = sadd.s32 %s35, 1
      %s43 = ssub.s32 %s35, %s42
      %p44 = scmp.eq.s32.totalorder %s43, 0
      %s46 = sadd.s32 %s45, 1
      %s47 = scalar_select %p44, %s45, %s46
      %p50 = pneg %p44
      %p51 = scmp.eq.s32.totalorder %s35, 1
      %p52 = por %p50, %p51
      %p53 = scmp.ne.s32.totalorder %s45, %s48
      %p54 = scmp.eq.s32.totalorder %s35, 0
      %p55 = por %p53, %p54
      %p56 = scmp.ne.s32.totalorder %s45, %s48
      %p57 = scmp.eq.s32.totalorder %s40, 1
      %p58 = por %p56, %p57
      %p59 = scmp.ne.s32.totalorder %s48, %s49
      %p60 = scmp.eq.s32.totalorder %s40, 0
      %p61 = por %p59, %p60
      %p62 = scmp.ne.s32.totalorder %s48, %s49
      %p63 = scmp.eq.s32.totalorder %s41, 1
      %p64 = por %p62, %p63
      %p66 = scmp.ne.s32.totalorder %s49, %s65
      %p67 = scmp.eq.s32.totalorder %s41, 0
      %p68 = por %p66, %p67
      %s70 = sadd.s32 %s69, 1
      %p73 = scmp.eq.s32.totalorder %s35, 1
      %p74 = scmp.ne.s32.totalorder %s69, %s71
      %p75 = scmp.eq.s32.totalorder %s35, 0
      %p76 = por %p74, %p75
      %p77 = scmp.ne.s32.totalorder %s69, %s71
      %p78 = scmp.eq.s32.totalorder %s40, 1
      %p79 = por %p77, %p78
      %p80 = scmp.ne.s32.totalorder %s71, %s72
      %p81 = scmp.eq.s32.totalorder %s40, 0
      %p82 = por %p80, %p81
      %p83 = scmp.ne.s32.totalorder %s71, %s72
      %p84 = scmp.eq.s32.totalorder %s41, 1
      %p85 = por %p83, %p84
      %p87 = scmp.ne.s32.totalorder %s72, %s86
      %p88 = scmp.eq.s32.totalorder %s41, 0
      %p89 = por %p87, %p88
      %s91 = sadd.s32 %s90, 1
      %p94 = scmp.eq.s32.totalorder %s35, 1
      %p95 = scmp.ne.s32.totalorder %s90, %s92
      %p96 = scmp.eq.s32.totalorder %s35, 0
      %p97 = por %p95, %p96
      %p98 = scmp.ne.s32.totalorder %s90, %s92
      %p99 = scmp.eq.s32.totalorder %s40, 1
      %p100 = por %p98, %p99
      %p101 = scmp.ne.s32.totalorder %s92, %s93
      %p102 = scmp.eq.s32.totalorder %s40, 0
      %p103 = por %p101, %p102
      %p104 = scmp.ne.s32.totalorder %s92, %s93
      %p105 = scmp.eq.s32.totalorder %s41, 1
      %p106 = por %p104, %p105
      %p108 = scmp.ne.s32.totalorder %s93, %s107
      %p109 = scmp.eq.s32.totalorder %s41, 0
      %p110 = por %p108, %p109
      %s112 = sadd.s32 %s111, 1
      %p115 = scmp.eq.s32.totalorder %s35, 1
      %p116 = scmp.ne.s32.totalorder %s111, %s113
      %p117 = scmp.eq.s32.totalorder %s35, 0
      %p118 = por %p116, %p117
      %p119 = scmp.ne.s32.totalorder %s111, %s113
      %p120 = scmp.eq.s32.totalorder %s40, 1
      %p121 = por %p119, %p120
      %p122 = scmp.ne.s32.totalorder %s113, %s114
      %p123 = scmp.eq.s32.totalorder %s40, 0
      %p124 = por %p122, %p123
      %p125 = scmp.ne.s32.totalorder %s113, %s114
      %p126 = scmp.eq.s32.totalorder %s41, 1
      %p127 = por %p125, %p126
      %p129 = scmp.ne.s32.totalorder %s114, %s128
      %p130 = scmp.eq.s32.totalorder %s41, 0
      %p131 = por %p129, %p130
      %s133 = sadd.s32 %s132, 1
      %p136 = scmp.eq.s32.totalorder %s35, 1
      %p137 = scmp.ne.s32.totalorder %s132, %s134
      %p138 = scmp.eq.s32.totalorder %s35, 0
      %p139 = por %p137, %p138
      %p140 = scmp.ne.s32.totalorder %s132, %s134
      %p141 = scmp.eq.s32.totalorder %s40, 1
      %p142 = por %p140, %p141
      %p143 = scmp.ne.s32.totalorder %s134, %s135
      %p144 = scmp.eq.s32.totalorder %s40, 0
      %p145 = por %p143, %p144
      %p146 = scmp.ne.s32.totalorder %s134, %s135
      %p147 = scmp.eq.s32.totalorder %s41, 1
      %p148 = por %p146, %p147
      %p150 = scmp.ne.s32.totalorder %s135, %s149
      %p151 = scmp.eq.s32.totalorder %s41, 0
      %p152 = por %p150, %p151
      %s154 = sadd.s32 %s153, 1
      %p157 = scmp.eq.s32.totalorder %s35, 1
      %p158 = scmp.ne.s32.totalorder %s153, %s155
      %p159 = scmp.eq.s32.totalorder %s35, 0
      %p160 = por %p158, %p159
      %p161 = scmp.ne.s32.totalorder %s153, %s155
      %p162 = scmp.eq.s32.totalorder %s40, 1
      %p163 = por %p161, %p162
      %p164 = scmp.ne.s32.totalorder %s155, %s156
      %p165 = scmp.eq.s32.totalorder %s40, 0
      %p166 = por %p164, %p165
      %p167 = scmp.ne.s32.totalorder %s155, %s156
      %p168 = scmp.eq.s32.totalorder %s41, 1
      %p169 = por %p167, %p168
      %p171 = scmp.ne.s32.totalorder %s156, %s170
      %p172 = scmp.eq.s32.totalorder %s41, 0
      %p173 = por %p171, %p172
      %s175 = sadd.s32 %s174, 1
      %p178 = scmp.eq.s32.totalorder %s35, 1
      %p179 = scmp.ne.s32.totalorder %s174, %s176
      %p180 = scmp.eq.s32.totalorder %s35, 0
      %p181 = por %p179, %p180
      %p182 = scmp.ne.s32.totalorder %s174, %s176
      %p183 = scmp.eq.s32.totalorder %s40, 1
      %p184 = por %p182, %p183
      %p185 = scmp.ne.s32.totalorder %s176, %s177
      %p186 = scmp.eq.s32.totalorder %s40, 0
      %p187 = por %p185, %p186
      %p188 = scmp.ne.s32.totalorder %s176, %s177
      %p189 = scmp.eq.s32.totalorder %s41, 1
      %p190 = por %p188, %p189
      %p192 = scmp.ne.s32.totalorder %s177, %s191
      %p193 = scmp.eq.s32.totalorder %s41, 0
      %p194 = por %p192, %p193
      %s196 = sadd.s32 %s195, 1
      %p199 = scmp.eq.s32.totalorder %s35, 1
      %p200 = scmp.ne.s32.totalorder %s195, %s197
      %p201 = scmp.eq.s32.totalorder %s35, 0
      %p202 = por %p200, %p201
      %p203 = scmp.ne.s32.totalorder %s195, %s197
      %p204 = scmp.eq.s32.totalorder %s40, 1
      %p205 = por %p203, %p204
      %p206 = scmp.ne.s32.totalorder %s197, %s198
      %p207 = scmp.eq.s32.totalorder %s40, 0
      %p208 = por %p206, %p207
      %p209 = scmp.ne.s32.totalorder %s197, %s198
      %p210 = scmp.eq.s32.totalorder %s41, 1
      %p211 = por %p209, %p210
      %p213 = scmp.ne.s32.totalorder %s198, %s212
      %p214 = scmp.eq.s32.totalorder %s41, 0
      %p215 = por %p213, %p214
      %s217 = sadd.s32 %s216, 1
      %p220 = scmp.eq.s32.totalorder %s35, 1
      %p221 = scmp.ne.s32.totalorder %s216, %s218
      %p222 = scmp.eq.s32.totalorder %s35, 0
      %p223 = por %p221, %p222
      %p224 = scmp.ne.s32.totalorder %s216, %s218
      %p225 = scmp.eq.s32.totalorder %s40, 1
      %p226 = por %p224, %p225
      %p227 = scmp.ne.s32.totalorder %s218, %s219
      %p228 = scmp.eq.s32.totalorder %s40, 0
      %p229 = por %p227, %p228
      %p230 = scmp.ne.s32.totalorder %s218, %s219
      %p231 = scmp.eq.s32.totalorder %s41, 1
      %p232 = por %p230, %p231
      %p234 = scmp.ne.s32.totalorder %s219, %s233
      %p235 = scmp.eq.s32.totalorder %s41, 0
      %p236 = por %p234, %p235
      %s238 = sadd.s32 %s237, 1
      %p241 = scmp.eq.s32.totalorder %s35, 1
      %p242 = scmp.ne.s32.totalorder %s237, %s239
      %p243 = scmp.eq.s32.totalorder %s35, 0
      %p244 = por %p242, %p243
      %p245 = scmp.ne.s32.totalorder %s237, %s239
      %p246 = scmp.eq.s32.totalorder %s40, 1
      %p247 = por %p245, %p246
      %p248 = scmp.ne.s32.totalorder %s239, %s240
      %p249 = scmp.eq.s32.totalorder %s40, 0
      %p250 = por %p248, %p249
      %p251 = scmp.ne.s32.totalorder %s239, %s240
      %p252 = scmp.eq.s32.totalorder %s41, 1
      %p253 = por %p251, %p252
      %p255 = scmp.ne.s32.totalorder %s240, %s254
      %p256 = scmp.eq.s32.totalorder %s41, 0
      %p257 = por %p255, %p256
      %s259 = sadd.s32 %s258, 1
      %p262 = scmp.eq.s32.totalorder %s35, 1
      %p263 = scmp.ne.s32.totalorder %s258, %s260
      %p264 = scmp.eq.s32.totalorder %s35, 0
      %p265 = por %p263, %p264
      %p266 = scmp.ne.s32.totalorder %s258, %s260
      %p267 = scmp.eq.s32.totalorder %s40, 1
      %p268 = por %p266, %p267
      %p269 = scmp.ne.s32.totalorder %s260, %s261
      %p270 = scmp.eq.s32.totalorder %s40, 0
      %p271 = por %p269, %p270
      %p272 = scmp.ne.s32.totalorder %s260, %s261
      %p273 = scmp.eq.s32.totalorder %s41, 1
      %p274 = por %p272, %p273
      %p276 = scmp.ne.s32.totalorder %s261, %s275
      %p277 = scmp.eq.s32.totalorder %s41, 0
      %p278 = por %p276, %p277
      %s280 = sadd.s32 %s279, 1
      %p283 = scmp.eq.s32.totalorder %s35, 1
      %p284 = scmp.ne.s32.totalorder %s279, %s281
      %p285 = scmp.eq.s32.totalorder %s35, 0
      %p286 = por %p284, %p285
      %p287 = scmp.ne.s32.totalorder %s279, %s281
      %p288 = scmp.eq.s32.totalorder %s40, 1
      %p289 = por %p287, %p288
      %p290 = scmp.ne.s32.totalorder %s281, %s282
      %p291 = scmp.eq.s32.totalorder %s40, 0
      %p292 = por %p290, %p291
      %p293 = scmp.ne.s32.totalorder %s281, %s282
      %p294 = scmp.eq.s32.totalorder %s41, 1
      %p295 = por %p293, %p294
      %p297 = scmp.ne.s32.totalorder %s282, %s296
      %p298 = scmp.eq.s32.totalorder %s41, 0
      %p299 = por %p297, %p298
      %s301 = sadd.s32 %s300, 1
      %p304 = scmp.eq.s32.totalorder %s35, 1
      %p305 = scmp.ne.s32.totalorder %s300, %s302
      %p306 = scmp.eq.s32.totalorder %s35, 0
      %p307 = por %p305, %p306
      %p308 = scmp.ne.s32.totalorder %s300, %s302
      %p309 = scmp.eq.s32.totalorder %s40, 1
      %p310 = por %p308, %p309
      %p311 = scmp.ne.s32.totalorder %s302, %s303
      %p312 = scmp.eq.s32.totalorder %s40, 0
      %p313 = por %p311, %p312
      %p314 = scmp.ne.s32.totalorder %s302, %s303
      %p315 = scmp.eq.s32.totalorder %s41, 1
      %p316 = por %p314, %p315
      %p318 = scmp.ne.s32.totalorder %s303, %s317
      %p319 = scmp.eq.s32.totalorder %s41, 0
      %p320 = por %p318, %p319
      %s322 = sadd.s32 %s321, 1
      %p325 = scmp.eq.s32.totalorder %s35, 1
      %p326 = scmp.ne.s32.totalorder %s321, %s323
      %p327 = scmp.eq.s32.totalorder %s35, 0
      %p328 = por %p326, %p327
      %p329 = scmp.ne.s32.totalorder %s321, %s323
      %p330 = scmp.eq.s32.totalorder %s40, 1
      %p331 = por %p329, %p330
      %p332 = scmp.ne.s32.totalorder %s323, %s324
      %p333 = scmp.eq.s32.totalorder %s40, 0
      %p334 = por %p332, %p333
      %p335 = scmp.ne.s32.totalorder %s323, %s324
      %p336 = scmp.eq.s32.totalorder %s41, 1
      %p337 = por %p335, %p336
      %p339 = scmp.ne.s32.totalorder %s324, %s338
      %p340 = scmp.eq.s32.totalorder %s41, 0
      %p341 = por %p339, %p340
      %s343 = sadd.s32 %s342, 1
      %p346 = scmp.eq.s32.totalorder %s35, 1
      %p347 = scmp.ne.s32.totalorder %s342, %s344
      %p348 = scmp.eq.s32.totalorder %s35, 0
      %p349 = por %p347, %p348
      %p350 = scmp.ne.s32.totalorder %s342, %s344
      %p351 = scmp.eq.s32.totalorder %s40, 1
      %p352 = por %p350, %p351
      %p353 = scmp.ne.s32.totalorder %s344, %s345
      %p354 = scmp.eq.s32.totalorder %s40, 0
      %p355 = por %p353, %p354
      %p356 = scmp.ne.s32.totalorder %s344, %s345
      %p357 = scmp.eq.s32.totalorder %s41, 1
      %p358 = por %p356, %p357
      %p360 = scmp.ne.s32.totalorder %s345, %s359
      %p361 = scmp.eq.s32.totalorder %s41, 0
      %p362 = por %p360, %p361
      %s364 = sadd.s32 %s363, 1
      %p367 = scmp.eq.s32.totalorder %s35, 1
      %p368 = scmp.ne.s32.totalorder %s363, %s365
      %p369 = scmp.eq.s32.totalorder %s35, 0
      %p370 = por %p368, %p369
      %p371 = scmp.ne.s32.totalorder %s363, %s365
      %p372 = scmp.eq.s32.totalorder %s40, 1
      %p373 = por %p371, %p372
      %p374 = scmp.ne.s32.totalorder %s365, %s366
      %p375 = scmp.eq.s32.totalorder %s40, 0
      %p376 = por %p374, %p375
      %p377 = scmp.ne.s32.totalorder %s365, %s366
      %p378 = scmp.eq.s32.totalorder %s41, 1
      %p379 = por %p377, %p378
      %p381 = scmp.ne.s32.totalorder %s366, %s380
      %p382 = scmp.eq.s32.totalorder %s41, 0
      %p383 = por %p381, %p382
      %s385 = sadd.s32 %s384, 1
      %p388 = scmp.eq.s32.totalorder %s35, 1
      %p389 = scmp.ne.s32.totalorder %s384, %s386
      %p390 = scmp.eq.s32.totalorder %s35, 0
      %p391 = por %p389, %p390
      %p392 = scmp.ne.s32.totalorder %s384, %s386
      %p393 = scmp.eq.s32.totalorder %s40, 1
      %p394 = por %p392, %p393
      %p395 = scmp.ne.s32.totalorder %s386, %s387
      %p396 = scmp.eq.s32.totalorder %s40, 0
      %p397 = por %p395, %p396
      %p398 = scmp.ne.s32.totalorder %s386, %s387
      %p399 = scmp.eq.s32.totalorder %s41, 1
      %p400 = por %p398, %p399
      %p402 = scmp.ne.s32.totalorder %s387, %s401
      %p403 = scmp.eq.s32.totalorder %s41, 0
      %p404 = por %p402, %p403
      %s406 = sadd.s32 %s405, 1
      %p409 = scmp.eq.s32.totalorder %s35, 1
      %p410 = scmp.ne.s32.totalorder %s405, %s407
      %p411 = scmp.eq.s32.totalorder %s35, 0
      %p412 = por %p410, %p411
      %p413 = scmp.ne.s32.totalorder %s405, %s407
      %p414 = scmp.eq.s32.totalorder %s40, 1
      %p415 = por %p413, %p414
      %p416 = scmp.ne.s32.totalorder %s407, %s408
      %p417 = scmp.eq.s32.totalorder %s40, 0
      %p418 = por %p416, %p417
      %p419 = scmp.ne.s32.totalorder %s407, %s408
      %p420 = scmp.eq.s32.totalorder %s41, 1
      %p421 = por %p419, %p420
      %p423 = scmp.ne.s32.totalorder %s408, %s422
      %p424 = scmp.eq.s32.totalorder %s41, 0
      %p425 = por %p423, %p424
      %s427 = sadd.s32 %s426, 1
      %p430 = scmp.eq.s32.totalorder %s35, 1
      %p431 = scmp.ne.s32.totalorder %s426, %s428
      %p432 = scmp.eq.s32.totalorder %s35, 0
      %p433 = por %p431, %p432
      %p434 = scmp.ne.s32.totalorder %s426, %s428
      %p435 = scmp.eq.s32.totalorder %s40, 1
      %p436 = por %p434, %p435
      %p437 = scmp.ne.s32.totalorder %s428, %s429
      %p438 = scmp.eq.s32.totalorder %s40, 0
      %p439 = por %p437, %p438
      %p440 = scmp.ne.s32.totalorder %s428, %s429
      %p441 = scmp.eq.s32.totalorder %s41, 1
      %p442 = por %p440, %p441
      %p444 = scmp.ne.s32.totalorder %s429, %s443
      %p445 = scmp.eq.s32.totalorder %s41, 0
      %p446 = por %p444, %p445
      %s448 = sadd.s32 %s447, 1
      %p451 = scmp.eq.s32.totalorder %s35, 1
      %p452 = scmp.ne.s32.totalorder %s447, %s449
      %p453 = scmp.eq.s32.totalorder %s35, 0
      %p454 = por %p452, %p453
      %p455 = scmp.ne.s32.totalorder %s447, %s449
      %p456 = scmp.eq.s32.totalorder %s40, 1
      %p457 = por %p455, %p456
      %p458 = scmp.ne.s32.totalorder %s449, %s450
      %p459 = scmp.eq.s32.totalorder %s40, 0
      %p460 = por %p458, %p459
      %p461 = scmp.ne.s32.totalorder %s449, %s450
      %p462 = scmp.eq.s32.totalorder %s41, 1
      %p463 = por %p461, %p462
      %p465 = scmp.ne.s32.totalorder %s450, %s464
      %p466 = scmp.eq.s32.totalorder %s41, 0
      %p467 = por %p465, %p466
      %s469 = sadd.s32 %s468, 1
      %p472 = scmp.eq.s32.totalorder %s35, 1
      %p473 = scmp.ne.s32.totalorder %s468, %s470
      %p474 = scmp.eq.s32.totalorder %s35, 0
      %p475 = por %p473, %p474
      %p476 = scmp.ne.s32.totalorder %s468, %s470
      %p477 = scmp.eq.s32.totalorder %s40, 1
      %p478 = por %p476, %p477
      %p479 = scmp.ne.s32.totalorder %s470, %s471
      %p480 = scmp.eq.s32.totalorder %s40, 0
      %p481 = por %p479, %p480
      %p482 = scmp.ne.s32.totalorder %s470, %s471
      %p483 = scmp.eq.s32.totalorder %s41, 1
      %p484 = por %p482, %p483
      %p486 = scmp.ne.s32.totalorder %s471, %s485
      %p487 = scmp.eq.s32.totalorder %s41, 0
      %p488 = por %p486, %p487
      %s489 = ssub.s32 %s35, %s42
      %p490 = scmp.eq.s32.totalorder %s489, 0
      %s492 = sadd.s32 %s491, 1
      %s493 = scalar_select %p490, %s491, %s492
      %p496 = pneg %p490
      %p497 = scmp.eq.s32.totalorder %s35, 1
      %p498 = por %p496, %p497
      %p499 = scmp.ne.s32.totalorder %s491, %s494
      %p500 = scmp.eq.s32.totalorder %s35, 0
      %p501 = por %p499, %p500
      %p502 = scmp.ne.s32.totalorder %s491, %s494
      %p503 = scmp.eq.s32.totalorder %s40, 1
      %p504 = por %p502, %p503
      %p505 = scmp.ne.s32.totalorder %s494, %s495
      %p506 = scmp.eq.s32.totalorder %s40, 0
      %p507 = por %p505, %p506
      %p508 = scmp.ne.s32.totalorder %s494, %s495
      %p509 = scmp.eq.s32.totalorder %s41, 1
      %p510 = por %p508, %p509
      %p512 = scmp.ne.s32.totalorder %s495, %s511
      %p513 = scmp.eq.s32.totalorder %s41, 0
      %p514 = por %p512, %p513
      %s515 = ssub.s32 %s35, %s42
      %p516 = scmp.eq.s32.totalorder %s515, 0
      %s518 = sadd.s32 %s517, 1
      %s519 = scalar_select %p516, %s517, %s518
      %p522 = pneg %p516
      %p523 = scmp.eq.s32.totalorder %s35, 1
      %p524 = por %p522, %p523
      %p525 = scmp.ne.s32.totalorder %s517, %s520
      %p526 = scmp.eq.s32.totalorder %s35, 0
      %p527 = por %p525, %p526
      %p528 = scmp.ne.s32.totalorder %s517, %s520
      %p529 = scmp.eq.s32.totalorder %s40, 1
      %p530 = por %p528, %p529
      %p531 = scmp.ne.s32.totalorder %s520, %s521
      %p532 = scmp.eq.s32.totalorder %s40, 0
      %p533 = por %p531, %p532
      %p534 = scmp.ne.s32.totalorder %s520, %s521
      %p535 = scmp.eq.s32.totalorder %s41, 1
      %p536 = por %p534, %p535
      %p538 = scmp.ne.s32.totalorder %s521, %s537
      %p539 = scmp.eq.s32.totalorder %s41, 0
      %p540 = por %p538, %p539
      %p541 = scmp.le.s32.totalorder 1, %s35
      %p542 = scmp.lt.s32.totalorder %s35, 3
      %p543 = pnand %p541, %p542
      %p544 = pneg %p543
      // Predicated region
      $region9: #{resnet_st_phase_forward.1} parent=5 // pred_check
        _
      $region10: #{resnet_st_phase_forward.1} parent=5 // pred_check_branch
        %546 = sbr.rel (%p543) target = $region12
      $region11: #{resnet_st_phase_forward.1} parent=5 // pred_region
        %s547 = ssub.s32 %s35, 1
        // Predicated region
        $region13: #{resnet_st_phase_forward.1} parent=11 // pred_check
          %p548 = pneg %p82
        $region14: #{resnet_st_phase_forward.1} parent=11 // pred_check_branch
          %550 = sbr.rel (%p548) target = $region16
        $region15: #{resnet_st_phase_forward.1} parent=11 // pred_region
          _
        $region16: #{resnet_st_phase_forward.1} parent=11 // pred_fallthru
          _
        // Predicated region
        $region17: #{resnet_st_phase_forward.1} parent=11 // pred_check
          %p551 = pneg %p103
        $region18: #{resnet_st_phase_forward.1} parent=11 // pred_check_branch
          %553 = sbr.rel (%p551) target = $region20
        $region19: #{resnet_st_phase_forward.1} parent=11 // pred_region
          _
        $region20: #{resnet_st_phase_forward.1} parent=11 // pred_fallthru
          _
        // Predicated region
        $region21: #{resnet_st_phase_forward.1} parent=11 // pred_check
          %p554 = pneg %p124
        $region22: #{resnet_st_phase_forward.1} parent=11 // pred_check_branch
          %556 = sbr.rel (%p554) target = $region24
        $region23: #{resnet_st_phase_forward.1} parent=11 // pred_region
          _
        $region24: #{resnet_st_phase_forward.1} parent=11 // pred_fallthru
          _
        // Predicated region
        $region25: #{resnet_st_phase_forward.1} parent=11 // pred_check
          %p557 = pneg %p145
        $region26: #{resnet_st_phase_forward.1} parent=11 // pred_check_branch
          %559 = sbr.rel (%p557) target = $region28
        $region27: #{resnet_st_phase_forward.1} parent=11 // pred_region
          _
        $region28: #{resnet_st_phase_forward.1} parent=11 // pred_fallthru
          _
        // Predicated region
        $region29: #{resnet_st_phase_forward.1} parent=11 // pred_check
          %p560 = pneg %p166
        $region30: #{resnet_st_phase_forward.1} parent=11 // pred_check_branch
          %562 = sbr.rel (%p560) target = $region32
        $region31: #{resnet_st_phase_forward.1} parent=11 // pred_region
          _
        $region32: #{resnet_st_phase_forward.1} parent=11 // pred_fallthru
          _
        // Predicated region
        $region33: #{resnet_st_phase_forward.1} parent=11 // pred_check
          %p563 = pneg %p187
        $region34: #{resnet_st_phase_forward.1} parent=11 // pred_check_branch
          %565 = sbr.rel (%p563) target = $region36
        $region35: #{resnet_st_phase_forward.1} parent=11 // pred_region
          _
        $region36: #{resnet_st_phase_forward.1} parent=11 // pred_fallthru
          _
        // Predicated region
        $region37: #{resnet_st_phase_forward.1} parent=11 // pred_check
          %p566 = pneg %p208
        $region38: #{resnet_st_phase_forward.1} parent=11 // pred_check_branch
          %568 = sbr.rel (%p566) target = $region40
        $region39: #{resnet_st_phase_forward.1} parent=11 // pred_region
          _
        $region40: #{resnet_st_phase_forward.1} parent=11 // pred_fallthru
          _
        // Predicated region
        $region41: #{resnet_st_phase_forward.1} parent=11 // pred_check
          %p569 = pneg %p229
        $region42: #{resnet_st_phase_forward.1} parent=11 // pred_check_branch
          %571 = sbr.rel (%p569) target = $region44
        $region43: #{resnet_st_phase_forward.1} parent=11 // pred_region
          _
        $region44: #{resnet_st_phase_forward.1} parent=11 // pred_fallthru
          _
        // Predicated region
        $region45: #{resnet_st_phase_forward.1} parent=11 // pred_check
          %p572 = pneg %p250
        $region46: #{resnet_st_phase_forward.1} parent=11 // pred_check_branch
          %574 = sbr.rel (%p572) target = $region48
        $region47: #{resnet_st_phase_forward.1} parent=11 // pred_region
          _
        $region48: #{resnet_st_phase_forward.1} parent=11 // pred_fallthru
          _
        // Predicated region
        $region49: #{resnet_st_phase_forward.1} parent=11 // pred_check
          %p575 = pneg %p271
        $region50: #{resnet_st_phase_forward.1} parent=11 // pred_check_branch
          %577 = sbr.rel (%p575) target = $region52
        $region51: #{resnet_st_phase_forward.1} parent=11 // pred_region
          _
        $region52: #{resnet_st_phase_forward.1} parent=11 // pred_fallthru
          _
        // Predicated region
        $region53: #{resnet_st_phase_forward.1} parent=11 // pred_check
          %p578 = pneg %p292
        $region54: #{resnet_st_phase_forward.1} parent=11 // pred_check_branch
          %580 = sbr.rel (%p578) target = $region56
        $region55: #{resnet_st_phase_forward.1} parent=11 // pred_region
          _
        $region56: #{resnet_st_phase_forward.1} parent=11 // pred_fallthru
          _
        // Predicated region
        $region57: #{resnet_st_phase_forward.1} parent=11 // pred_check
          %p581 = pneg %p313
        $region58: #{resnet_st_phase_forward.1} parent=11 // pred_check_branch
          %583 = sbr.rel (%p581) target = $region60
        $region59: #{resnet_st_phase_forward.1} parent=11 // pred_region
          _
        $region60: #{resnet_st_phase_forward.1} parent=11 // pred_fallthru
          _
        // Predicated region
        $region61: #{resnet_st_phase_forward.1} parent=11 // pred_check
          %p584 = pneg %p334
        $region62: #{resnet_st_phase_forward.1} parent=11 // pred_check_branch
          %586 = sbr.rel (%p584) target = $region64
        $region63: #{resnet_st_phase_forward.1} parent=11 // pred_region
          _
        $region64: #{resnet_st_phase_forward.1} parent=11 // pred_fallthru
          _
        // Predicated region
        $region65: #{resnet_st_phase_forward.1} parent=11 // pred_check
          %p587 = pneg %p355
        $region66: #{resnet_st_phase_forward.1} parent=11 // pred_check_branch
          %589 = sbr.rel (%p587) target = $region68
        $region67: #{resnet_st_phase_forward.1} parent=11 // pred_region
          _
        $region68: #{resnet_st_phase_forward.1} parent=11 // pred_fallthru
          _
        // Predicated region
        $region69: #{resnet_st_phase_forward.1} parent=11 // pred_check
          %p590 = pneg %p376
        $region70: #{resnet_st_phase_forward.1} parent=11 // pred_check_branch
          %592 = sbr.rel (%p590) target = $region72
        $region71: #{resnet_st_phase_forward.1} parent=11 // pred_region
          _
        $region72: #{resnet_st_phase_forward.1} parent=11 // pred_fallthru
          _
        // Predicated region
        $region73: #{resnet_st_phase_forward.1} parent=11 // pred_check
          %p593 = pneg %p397
        $region74: #{resnet_st_phase_forward.1} parent=11 // pred_check_branch
          %595 = sbr.rel (%p593) target = $region76
        $region75: #{resnet_st_phase_forward.1} parent=11 // pred_region
          _
        $region76: #{resnet_st_phase_forward.1} parent=11 // pred_fallthru
          _
        // Predicated region
        $region77: #{resnet_st_phase_forward.1} parent=11 // pred_check
          %p596 = pneg %p418
        $region78: #{resnet_st_phase_forward.1} parent=11 // pred_check_branch
          %598 = sbr.rel (%p596) target = $region80
        $region79: #{resnet_st_phase_forward.1} parent=11 // pred_region
          _
        $region80: #{resnet_st_phase_forward.1} parent=11 // pred_fallthru
          _
        // Predicated region
        $region81: #{resnet_st_phase_forward.1} parent=11 // pred_check
          %p599 = pneg %p439
        $region82: #{resnet_st_phase_forward.1} parent=11 // pred_check_branch
          %601 = sbr.rel (%p599) target = $region84
        $region83: #{resnet_st_phase_forward.1} parent=11 // pred_region
          _
        $region84: #{resnet_st_phase_forward.1} parent=11 // pred_fallthru
          _
        // Predicated region
        $region85: #{resnet_st_phase_forward.1} parent=11 // pred_check
          %p602 = pneg %p460
        $region86: #{resnet_st_phase_forward.1} parent=11 // pred_check_branch
          %604 = sbr.rel (%p602) target = $region88
        $region87: #{resnet_st_phase_forward.1} parent=11 // pred_region
          _
        $region88: #{resnet_st_phase_forward.1} parent=11 // pred_fallthru
          _
        // Predicated region
        $region89: #{resnet_st_phase_forward.1} parent=11 // pred_check
          %p605 = pneg %p481
        $region90: #{resnet_st_phase_forward.1} parent=11 // pred_check_branch
          %607 = sbr.rel (%p605) target = $region92
        $region91: #{resnet_st_phase_forward.1} parent=11 // pred_region
          _
        $region92: #{resnet_st_phase_forward.1} parent=11 // pred_fallthru
          _
      $region12: #{resnet_st_phase_forward.1} parent=5 // pred_fallthru
        _
      %p608 = scmp.lt.s32.totalorder %s35, 2
      // Predicated region
      $region93: #{resnet_st_phase_forward.1} parent=5 // pred_check
        %p609 = pneg %p608
      $region94: #{resnet_st_phase_forward.1} parent=5 // pred_check_branch
        %611 = sbr.rel (%p609) target = $region96
      $region95: #{resnet_st_phase_forward.1} parent=5 // pred_region
        // Predicated region
        $region97: #{resnet_st_phase_forward.1} parent=95 // pred_check
          %p612 = pneg %p55
        $region98: #{resnet_st_phase_forward.1} parent=95 // pred_check_branch
          %614 = sbr.rel (%p612) target = $region100
        $region99: #{resnet_st_phase_forward.1} parent=95 // pred_region
          %p615 = scmp.lt.s32.totalorder %s35, 1
          %s616 = scalar_select %p615, %s35, 1
          %s617 = smul.addr %s616, 256
          %s618 = smul.addr %s617, 4
          %s619 = scalar_lea.vmem %s0, %s618
        $region100: #{resnet_st_phase_forward.1} parent=95 // pred_fallthru
          _
      $region96: #{resnet_st_phase_forward.1} parent=5 // pred_fallthru
        _
      %p620 = scmp.le.s32.totalorder 1, %s35
      %p621 = scmp.lt.s32.totalorder %s35, 3
      %p622 = pnand %p620, %p621
      %p623 = pneg %p622
      // Predicated region
      $region101: #{resnet_st_phase_forward.1} parent=5 // pred_check
        _
      $region102: #{resnet_st_phase_forward.1} parent=5 // pred_check_branch
        %625 = sbr.rel (%p622) target = $region104
      $region103: #{resnet_st_phase_forward.1} parent=5 // pred_region
        %s626 = ssub.s32 %s35, 1
        %p627 = scmp.lt.s32.totalorder %s40, 1
        %s628 = scalar_select %p627, %s40, 1
        %s629 = smul.addr %s628, 256
        %s630 = smul.addr %s629, 4
        %s631 = scalar_lea.vmem %s0, %s630
        %p632 = pneg %p61
        %p633 = pneg %p58
        %p634 = pneg %p82
        %p635 = pneg %p79
        %p636 = pneg %p103
        %p637 = pneg %p100
        %p638 = pneg %p124
        %p639 = pneg %p121
        %p640 = pneg %p145
        %p641 = pneg %p142
        %p642 = pneg %p166
        %p643 = pneg %p163
        %p644 = pneg %p187
        %p645 = pneg %p184
        %p646 = pneg %p208
        %p647 = pneg %p205
        %p648 = pneg %p229
        %p649 = pneg %p226
        %p650 = pneg %p250
        %p651 = pneg %p247
        %p652 = pneg %p271
        %p653 = pneg %p268
        %p654 = pneg %p292
        %p655 = pneg %p289
        %p656 = pneg %p313
        %p657 = pneg %p310
        %p658 = pneg %p334
        %p659 = pneg %p331
        %p660 = pneg %p355
        %p661 = pneg %p352
        %p662 = pneg %p376
        %p663 = pneg %p373
        %p664 = pneg %p397
        %p665 = pneg %p394
        %p666 = pneg %p418
        %p667 = pneg %p415
        %p668 = pneg %p439
        %p669 = pneg %p436
        %p670 = pneg %p460
        %p671 = pneg %p457
        %p672 = pneg %p481
        %p673 = pneg %p478
        %p674 = pneg %p507
        %p675 = pneg %p504
        %s676 = sand.u32 %s494, 1
        %s677 = scalar_lea.sflag [#allocation3], %s676
        %s678 = sand.u32 %s494, 1
        %s679 = scalar_lea.vmem [#allocation2], %s678
        %p680 = pneg %p533
        %p681 = pneg %p530
        %s682 = sand.u32 %s520, 1
        %s683 = scalar_lea.sflag [#allocation5], %s682
        %s684 = sand.u32 %s520, 1
        %s685 = scalar_lea.vmem [#allocation4], %s684
        %p686 = scmp.lt.s32.totalorder %s40, 1
        %s687 = scalar_select %p686, %s40, 1
        %s688 = smul.addr %s687, 256
        %s689 = smul.addr %s688, 4
        %s690 = scalar_lea.vmem %s0, %s689
        %v692 = vld [vmem:[%s690] sm:$0xff]
        %v693 = vld [vmem:[%s690 + $0x8] sm:$0xff]
        %v694 = vld [vmem:[%s690 + $0x10] sm:$0xff]
        %v695 = vld [vmem:[%s690 + $0x18] sm:$0xff]
        %v696 = vld [vmem:[%s690 + $0x20] sm:$0xff]
        %v697 = vld [vmem:[%s690 + $0x28] sm:$0xff]
        %v698 = vld [vmem:[%s690 + $0x30] sm:$0xff]
        %v699 = vld [vmem:[%s690 + $0x38] sm:$0xff]
        %v700 = vld [vmem:[%s690 + $0x40] sm:$0xff]
        %v701 = vld [vmem:[%s690 + $0x48] sm:$0xff]
        %v702 = vld [vmem:[%s690 + $0x50] sm:$0xff]
        %v703 = vld [vmem:[%s690 + $0x58] sm:$0xff]
        %v704 = vld [vmem:[%s690 + $0x60] sm:$0xff]
        %v705 = vld [vmem:[%s690 + $0x68] sm:$0xff]
        %v706 = vld [vmem:[%s690 + $0x70] sm:$0xff]
        %v707 = vld [vmem:[%s690 + $0x78] sm:$0xff]
        %v708 = vld [vmem:[%s690 + $0x80] sm:$0xff]
        %v709 = vld [vmem:[%s690 + $0x88] sm:$0xff]
        %v710 = vld [vmem:[%s690 + $0x90] sm:$0xff]
        %v711 = vld [vmem:[%s690 + $0x98] sm:$0xff]
        %v712 = vld [vmem:[%s690 + $0xa0] sm:$0xff]
        %v713 = vld [vmem:[%s690 + $0xa8] sm:$0xff]
        %v714 = vld [vmem:[%s690 + $0xb0] sm:$0xff]
        %v715 = vld [vmem:[%s690 + $0xb8] sm:$0xff]
        %v716 = vld [vmem:[%s690 + $0xc0] sm:$0xff]
        %v717 = vld [vmem:[%s690 + $0xc8] sm:$0xff]
        %v718 = vld [vmem:[%s690 + $0xd0] sm:$0xff]
        %v719 = vld [vmem:[%s690 + $0xd8] sm:$0xff]
        %v720 = vld [vmem:[%s690 + $0xe0] sm:$0xff]
        %v721 = vld [vmem:[%s690 + $0xe8] sm:$0xff]
        %v722 = vld [vmem:[%s690 + $0xf0] sm:$0xff]
        %v723 = vld [vmem:[%s690 + $0xf8] sm:$0xff]
        %v724 = vld [vmem:[%s690 + $0x100] sm:$0xff]
        %v725 = vld [vmem:[%s690 + $0x108] sm:$0xff]
        %v726 = vld [vmem:[%s690 + $0x110] sm:$0xff]
        %v727 = vld [vmem:[%s690 + $0x118] sm:$0xff]
        %v728 = vld [vmem:[%s690 + $0x120] sm:$0xff]
        %v729 = vld [vmem:[%s690 + $0x128] sm:$0xff]
        %v730 = vld [vmem:[%s690 + $0x130] sm:$0xff]
        %v731 = vld [vmem:[%s690 + $0x138] sm:$0xff]
        %v732 = vld [vmem:[%s690 + $0x140] sm:$0xff]
        %v733 = vld [vmem:[%s690 + $0x148] sm:$0xff]
        %v734 = vld [vmem:[%s690 + $0x150] sm:$0xff]
        %v735 = vld [vmem:[%s690 + $0x158] sm:$0xff]
        %v736 = vld [vmem:[%s690 + $0x160] sm:$0xff]
        %v737 = vld [vmem:[%s690 + $0x168] sm:$0xff]
        %v738 = vld [vmem:[%s690 + $0x170] sm:$0xff]
        %v739 = vld [vmem:[%s690 + $0x178] sm:$0xff]
        %v740 = vld [vmem:[%s690 + $0x180] sm:$0xff]
        %v741 = vld [vmem:[%s690 + $0x188] sm:$0xff]
        %v742 = vld [vmem:[%s690 + $0x190] sm:$0xff]
        %v743 = vld [vmem:[%s690 + $0x198] sm:$0xff]
        %v744 = vld [vmem:[%s690 + $0x1a0] sm:$0xff]
        %v745 = vld [vmem:[%s690 + $0x1a8] sm:$0xff]
        %v746 = vld [vmem:[%s690 + $0x1b0] sm:$0xff]
        %v747 = vld [vmem:[%s690 + $0x1b8] sm:$0xff]
        %v748 = vld [vmem:[%s690 + $0x1c0] sm:$0xff]
        %v749 = vld [vmem:[%s690 + $0x1c8] sm:$0xff]
        %v750 = vld [vmem:[%s690 + $0x1d0] sm:$0xff]
        %v751 = vld [vmem:[%s690 + $0x1d8] sm:$0xff]
        %v752 = vld [vmem:[%s690 + $0x1e0] sm:$0xff]
        %v753 = vld [vmem:[%s690 + $0x1e8] sm:$0xff]
        %v754 = vld [vmem:[%s690 + $0x1f0] sm:$0xff]
        %v755 = vld [vmem:[%s690 + $0x1f8] sm:$0xff]
        %v756 = vld [vmem:[%s690 + $0x200] sm:$0xff]
        %v757 = vld [vmem:[%s690 + $0x208] sm:$0xff]
        %v758 = vld [vmem:[%s690 + $0x210] sm:$0xff]
        %v759 = vld [vmem:[%s690 + $0x218] sm:$0xff]
        %v760 = vld [vmem:[%s690 + $0x220] sm:$0xff]
        %v761 = vld [vmem:[%s690 + $0x228] sm:$0xff]
        %v762 = vld [vmem:[%s690 + $0x230] sm:$0xff]
        %v763 = vld [vmem:[%s690 + $0x238] sm:$0xff]
        %v764 = vld [vmem:[%s690 + $0x240] sm:$0xff]
        %v765 = vld [vmem:[%s690 + $0x248] sm:$0xff]
        %v766 = vld [vmem:[%s690 + $0x250] sm:$0xff]
        %v767 = vld [vmem:[%s690 + $0x258] sm:$0xff]
        %v768 = vld [vmem:[%s690 + $0x260] sm:$0xff]
        %v769 = vld [vmem:[%s690 + $0x268] sm:$0xff]
        %v770 = vld [vmem:[%s690 + $0x270] sm:$0xff]
        %v771 = vld [vmem:[%s690 + $0x278] sm:$0xff]
        %v772 = vld [vmem:[%s690 + $0x280] sm:$0xff]
        %v773 = vld [vmem:[%s690 + $0x288] sm:$0xff]
        %v774 = vld [vmem:[%s690 + $0x290] sm:$0xff]
        %v775 = vld [vmem:[%s690 + $0x298] sm:$0xff]
        %v776 = vld [vmem:[%s690 + $0x2a0] sm:$0xff]
        %v777 = vld [vmem:[%s690 + $0x2a8] sm:$0xff]
        %v778 = vld [vmem:[%s690 + $0x2b0] sm:$0xff]
        %v779 = vld [vmem:[%s690 + $0x2b8] sm:$0xff]
        %v780 = vld [vmem:[%s690 + $0x2c0] sm:$0xff]
        %v781 = vld [vmem:[%s690 + $0x2c8] sm:$0xff]
        %v782 = vld [vmem:[%s690 + $0x2d0] sm:$0xff]
        %v783 = vld [vmem:[%s690 + $0x2d8] sm:$0xff]
        %v784 = vld [vmem:[%s690 + $0x2e0] sm:$0xff]
        %v785 = vld [vmem:[%s690 + $0x2e8] sm:$0xff]
        %v786 = vld [vmem:[%s690 + $0x2f0] sm:$0xff]
        %v787 = vld [vmem:[%s690 + $0x2f8] sm:$0xff]
        %v788 = vld [vmem:[%s690 + $0x300] sm:$0xff]
        %v789 = vld [vmem:[%s690 + $0x308] sm:$0xff]
        %v790 = vld [vmem:[%s690 + $0x310] sm:$0xff]
        %v791 = vld [vmem:[%s690 + $0x318] sm:$0xff]
        %v792 = vld [vmem:[%s690 + $0x320] sm:$0xff]
        %v793 = vld [vmem:[%s690 + $0x328] sm:$0xff]
        %v794 = vld [vmem:[%s690 + $0x330] sm:$0xff]
        %v795 = vld [vmem:[%s690 + $0x338] sm:$0xff]
        %v796 = vld [vmem:[%s690 + $0x340] sm:$0xff]
        %v797 = vld [vmem:[%s690 + $0x348] sm:$0xff]
        %v798 = vld [vmem:[%s690 + $0x350] sm:$0xff]
        %v799 = vld [vmem:[%s690 + $0x358] sm:$0xff]
        %v800 = vld [vmem:[%s690 + $0x360] sm:$0xff]
        %v801 = vld [vmem:[%s690 + $0x368] sm:$0xff]
        %v802 = vld [vmem:[%s690 + $0x370] sm:$0xff]
        %v803 = vld [vmem:[%s690 + $0x378] sm:$0xff]
        %v804 = vld [vmem:[%s690 + $0x380] sm:$0xff]
        %v805 = vld [vmem:[%s690 + $0x388] sm:$0xff]
        %v806 = vld [vmem:[%s690 + $0x390] sm:$0xff]
        %v807 = vld [vmem:[%s690 + $0x398] sm:$0xff]
        %v808 = vld [vmem:[%s690 + $0x3a0] sm:$0xff]
        %v809 = vld [vmem:[%s690 + $0x3a8] sm:$0xff]
        %v810 = vld [vmem:[%s690 + $0x3b0] sm:$0xff]
        %v811 = vld [vmem:[%s690 + $0x3b8] sm:$0xff]
        %v812 = vld [vmem:[%s690 + $0x3c0] sm:$0xff]
        %v813 = vld [vmem:[%s690 + $0x3c8] sm:$0xff]
        %v814 = vld [vmem:[%s690 + $0x3d0] sm:$0xff]
        %v815 = vld [vmem:[%s690 + $0x3d8] sm:$0xff]
        %v816 = vld [vmem:[%s690 + $0x3e0] sm:$0xff]
        %v817 = vld [vmem:[%s690 + $0x3e8] sm:$0xff]
        %v818 = vld [vmem:[%s690 + $0x3f0] sm:$0xff]
        %v819 = vld [vmem:[%s690 + $0x3f8] sm:$0xff]
        %v820 = vld [vmem:[%s1] sm:$0xf]
        %v821 = vld [vmem:[%s1 + $0x4] sm:$0xf]
        %v822 = vld [vmem:[%s1 + $0x8] sm:$0xf]
        %v823 = vld [vmem:[%s1 + $0xc] sm:$0xf]
        %v824 = vld [vmem:[%s1 + $0x10] sm:$0xf]
        %v825 = vld [vmem:[%s1 + $0x14] sm:$0xf]
        %v826 = vld [vmem:[%s1 + $0x18] sm:$0xf]
        %v827 = vld [vmem:[%s1 + $0x1c] sm:$0xf]
        %v828 = vld [vmem:[%s1 + $0x20] sm:$0xf]
        %v829 = vld [vmem:[%s1 + $0x24] sm:$0xf]
        %v830 = vld [vmem:[%s1 + $0x28] sm:$0xf]
        %v831 = vld [vmem:[%s1 + $0x2c] sm:$0xf]
        %v832 = vld [vmem:[%s1 + $0x30] sm:$0xf]
        %v833 = vld [vmem:[%s1 + $0x34] sm:$0xf]
        %v834 = vld [vmem:[%s1 + $0x38] sm:$0xf]
        %v835 = vld [vmem:[%s1 + $0x3c] sm:$0xf]
        %v836 = vld [vmem:[%s1 + $0x40] sm:$0xf]
        %v837 = vld [vmem:[%s1 + $0x44] sm:$0xf]
        %v838 = vld [vmem:[%s1 + $0x48] sm:$0x3]
        %v839 = vld [vmem:[%s2] sm:$0x1]
        %v841 = vperm.slane %v839, 0
        %v971 = vunpack.c.l.b16 %v692
        %v972 = vunpack.c.h.b16 %v692
        %v973 = vunpack.c.l.b16 %v693
        %v974 = vunpack.c.h.b16 %v693
        %v975 = vunpack.c.l.b16 %v694
        %v976 = vunpack.c.h.b16 %v694
        %v977 = vunpack.c.l.b16 %v695
        %v978 = vunpack.c.h.b16 %v695
        %v979 = vunpack.c.l.b16 %v696
        %v980 = vunpack.c.h.b16 %v696
        %v981 = vunpack.c.l.b16 %v697
        %v982 = vunpack.c.h.b16 %v697
        %v983 = vunpack.c.l.b16 %v698
        %v984 = vunpack.c.h.b16 %v698
        %v985 = vunpack.c.l.b16 %v699
        %v986 = vunpack.c.h.b16 %v699
        %v987 = vunpack.c.l.b16 %v700
        %v988 = vunpack.c.h.b16 %v700
        %v989 = vunpack.c.l.b16 %v701
        %v990 = vunpack.c.h.b16 %v701
        %v991 = vunpack.c.l.b16 %v702
        %v992 = vunpack.c.h.b16 %v702
        %v993 = vunpack.c.l.b16 %v703
        %v994 = vunpack.c.h.b16 %v703
        %v995 = vunpack.c.l.b16 %v704
        %v996 = vunpack.c.h.b16 %v704
        %v997 = vunpack.c.l.b16 %v705
        %v998 = vunpack.c.h.b16 %v705
        %v999 = vunpack.c.l.b16 %v706
        %v1000 = vunpack.c.h.b16 %v706
        %v1001 = vunpack.c.l.b16 %v707
        %v1002 = vunpack.c.h.b16 %v707
        %v1003 = vunpack.c.l.b16 %v708
        %v1004 = vunpack.c.h.b16 %v708
        %v1005 = vunpack.c.l.b16 %v709
        %v1006 = vunpack.c.h.b16 %v709
        %v1007 = vunpack.c.l.b16 %v710
        %v1008 = vunpack.c.h.b16 %v710
        %v1009 = vunpack.c.l.b16 %v711
        %v1010 = vunpack.c.h.b16 %v711
        %v1011 = vunpack.c.l.b16 %v712
        %v1012 = vunpack.c.h.b16 %v712
        %v1013 = vunpack.c.l.b16 %v713
        %v1014 = vunpack.c.h.b16 %v713
        %v1015 = vunpack.c.l.b16 %v714
        %v1016 = vunpack.c.h.b16 %v714
        %v1017 = vunpack.c.l.b16 %v715
        %v1018 = vunpack.c.h.b16 %v715
        %v1019 = vunpack.c.l.b16 %v716
        %v1020 = vunpack.c.h.b16 %v716
        %v1021 = vunpack.c.l.b16 %v717
        %v1022 = vunpack.c.h.b16 %v717
        %v1023 = vunpack.c.l.b16 %v718
        %v1024 = vunpack.c.h.b16 %v718
        %v1025 = vunpack.c.l.b16 %v719
        %v1026 = vunpack.c.h.b16 %v719
        %v1027 = vunpack.c.l.b16 %v720
        %v1028 = vunpack.c.h.b16 %v720
        %v1029 = vunpack.c.l.b16 %v721
        %v1030 = vunpack.c.h.b16 %v721
        %v1031 = vunpack.c.l.b16 %v722
        %v1032 = vunpack.c.h.b16 %v722
        %v1033 = vunpack.c.l.b16 %v723
        %v1034 = vunpack.c.h.b16 %v723
        %v1035 = vunpack.c.l.b16 %v724
        %v1036 = vunpack.c.h.b16 %v724
        %v1037 = vunpack.c.l.b16 %v725
        %v1038 = vunpack.c.h.b16 %v725
        %v1039 = vunpack.c.l.b16 %v726
        %v1040 = vunpack.c.h.b16 %v726
        %v1041 = vunpack.c.l.b16 %v727
        %v1042 = vunpack.c.h.b16 %v727
        %v1043 = vunpack.c.l.b16 %v728
        %v1044 = vunpack.c.h.b16 %v728
        %v1045 = vunpack.c.l.b16 %v729
        %v1046 = vunpack.c.h.b16 %v729
        %v1047 = vunpack.c.l.b16 %v730
        %v1048 = vunpack.c.h.b16 %v730
        %v1049 = vunpack.c.l.b16 %v731
        %v1050 = vunpack.c.h.b16 %v731
        %v1051 = vunpack.c.l.b16 %v732
        %v1052 = vunpack.c.h.b16 %v732
        %v1053 = vunpack.c.l.b16 %v733
        %v1054 = vunpack.c.h.b16 %v733
        %v1055 = vunpack.c.l.b16 %v734
        %v1056 = vunpack.c.h.b16 %v734
        %v1057 = vunpack.c.l.b16 %v735
        %v1058 = vunpack.c.h.b16 %v735
        %v1059 = vunpack.c.l.b16 %v736
        %v1060 = vunpack.c.h.b16 %v736
        %v1061 = vunpack.c.l.b16 %v737
        %v1062 = vunpack.c.h.b16 %v737
        %v1063 = vunpack.c.l.b16 %v738
        %v1064 = vunpack.c.h.b16 %v738
        %v1065 = vunpack.c.l.b16 %v739
        %v1066 = vunpack.c.h.b16 %v739
        %v1067 = vunpack.c.l.b16 %v740
        %v1068 = vunpack.c.h.b16 %v740
        %v1069 = vunpack.c.l.b16 %v741
        %v1070 = vunpack.c.h.b16 %v741
        %v1071 = vunpack.c.l.b16 %v742
        %v1072 = vunpack.c.h.b16 %v742
        %v1073 = vunpack.c.l.b16 %v743
        %v1074 = vunpack.c.h.b16 %v743
        %v1075 = vunpack.c.l.b16 %v744
        %v1076 = vunpack.c.h.b16 %v744
        %v1077 = vunpack.c.l.b16 %v745
        %v1078 = vunpack.c.h.b16 %v745
        %v1079 = vunpack.c.l.b16 %v746
        %v1080 = vunpack.c.h.b16 %v746
        %v1081 = vunpack.c.l.b16 %v747
        %v1082 = vunpack.c.h.b16 %v747
        %v1083 = vunpack.c.l.b16 %v748
        %v1084 = vunpack.c.h.b16 %v748
        %v1085 = vunpack.c.l.b16 %v749
        %v1086 = vunpack.c.h.b16 %v749
        %v1087 = vunpack.c.l.b16 %v750
        %v1088 = vunpack.c.h.b16 %v750
        %v1089 = vunpack.c.l.b16 %v751
        %v1090 = vunpack.c.h.b16 %v751
        %v1091 = vunpack.c.l.b16 %v752
        %v1092 = vunpack.c.h.b16 %v752
        %v1093 = vunpack.c.l.b16 %v753
        %v1094 = vunpack.c.h.b16 %v753
        %v1095 = vunpack.c.l.b16 %v754
        %v1096 = vunpack.c.h.b16 %v754
        %v1097 = vunpack.c.l.b16 %v755
        %v1098 = vunpack.c.h.b16 %v755
        %v1099 = vunpack.c.l.b16 %v756
        %v1100 = vunpack.c.h.b16 %v756
        %v1101 = vunpack.c.l.b16 %v757
        %v1102 = vunpack.c.h.b16 %v757
        %v1103 = vunpack.c.l.b16 %v758
        %v1104 = vunpack.c.h.b16 %v758
        %v1105 = vunpack.c.l.b16 %v759
        %v1106 = vunpack.c.h.b16 %v759
        %v1107 = vunpack.c.l.b16 %v760
        %v1108 = vunpack.c.h.b16 %v760
        %v1109 = vunpack.c.l.b16 %v761
        %v1110 = vunpack.c.h.b16 %v761
        %v1111 = vunpack.c.l.b16 %v762
        %v1112 = vunpack.c.h.b16 %v762
        %v1113 = vunpack.c.l.b16 %v763
        %v1114 = vunpack.c.h.b16 %v763
        %v1115 = vunpack.c.l.b16 %v764
        %v1116 = vunpack.c.h.b16 %v764
        %v1117 = vunpack.c.l.b16 %v765
        %v1118 = vunpack.c.h.b16 %v765
        %v1119 = vunpack.c.l.b16 %v766
        %v1120 = vunpack.c.h.b16 %v766
        %v1121 = vunpack.c.l.b16 %v767
        %v1122 = vunpack.c.h.b16 %v767
        %v1123 = vunpack.c.l.b16 %v768
        %v1124 = vunpack.c.h.b16 %v768
        %v1125 = vunpack.c.l.b16 %v769
        %v1126 = vunpack.c.h.b16 %v769
        %v1127 = vunpack.c.l.b16 %v770
        %v1128 = vunpack.c.h.b16 %v770
        %v1129 = vunpack.c.l.b16 %v771
        %v1130 = vunpack.c.h.b16 %v771
        %v1131 = vunpack.c.l.b16 %v772
        %v1132 = vunpack.c.h.b16 %v772
        %v1133 = vunpack.c.l.b16 %v773
        %v1134 = vunpack.c.h.b16 %v773
        %v1135 = vunpack.c.l.b16 %v774
        %v1136 = vunpack.c.h.b16 %v774
        %v1137 = vunpack.c.l.b16 %v775
        %v1138 = vunpack.c.h.b16 %v775
        %v1139 = vunpack.c.l.b16 %v776
        %v1140 = vunpack.c.h.b16 %v776
        %v1141 = vunpack.c.l.b16 %v777
        %v1142 = vunpack.c.h.b16 %v777
        %v1143 = vunpack.c.l.b16 %v778
        %v1144 = vunpack.c.h.b16 %v778
        %v1145 = vunpack.c.l.b16 %v779
        %v1146 = vunpack.c.h.b16 %v779
        %v1147 = vunpack.c.l.b16 %v780
        %v1148 = vunpack.c.h.b16 %v780
        %v1149 = vunpack.c.l.b16 %v781
        %v1150 = vunpack.c.h.b16 %v781
        %v1151 = vunpack.c.l.b16 %v782
        %v1152 = vunpack.c.h.b16 %v782
        %v1153 = vunpack.c.l.b16 %v783
        %v1154 = vunpack.c.h.b16 %v783
        %v1155 = vunpack.c.l.b16 %v784
        %v1156 = vunpack.c.h.b16 %v784
        %v1157 = vunpack.c.l.b16 %v785
        %v1158 = vunpack.c.h.b16 %v785
        %v1159 = vunpack.c.l.b16 %v786
        %v1160 = vunpack.c.h.b16 %v786
        %v1161 = vunpack.c.l.b16 %v787
        %v1162 = vunpack.c.h.b16 %v787
        %v1163 = vunpack.c.l.b16 %v788
        %v1164 = vunpack.c.h.b16 %v788
        %v1165 = vunpack.c.l.b16 %v789
        %v1166 = vunpack.c.h.b16 %v789
        %v1167 = vunpack.c.l.b16 %v790
        %v1168 = vunpack.c.h.b16 %v790
        %v1169 = vunpack.c.l.b16 %v791
        %v1170 = vunpack.c.h.b16 %v791
        %v1171 = vunpack.c.l.b16 %v792
        %v1172 = vunpack.c.h.b16 %v792
        %v1173 = vunpack.c.l.b16 %v793
        %v1174 = vunpack.c.h.b16 %v793
        %v1175 = vunpack.c.l.b16 %v794
        %v1176 = vunpack.c.h.b16 %v794
        %v1177 = vunpack.c.l.b16 %v795
        %v1178 = vunpack.c.h.b16 %v795
        %v1179 = vunpack.c.l.b16 %v796
        %v1180 = vunpack.c.h.b16 %v796
        %v1181 = vunpack.c.l.b16 %v797
        %v1182 = vunpack.c.h.b16 %v797
        %v1183 = vunpack.c.l.b16 %v798
        %v1184 = vunpack.c.h.b16 %v798
        %v1185 = vunpack.c.l.b16 %v799
        %v1186 = vunpack.c.h.b16 %v799
        %v1187 = vunpack.c.l.b16 %v800
        %v1188 = vunpack.c.h.b16 %v800
        %v1189 = vunpack.c.l.b16 %v801
        %v1190 = vunpack.c.h.b16 %v801
        %v1191 = vunpack.c.l.b16 %v802
        %v1192 = vunpack.c.h.b16 %v802
        %v1193 = vunpack.c.l.b16 %v803
        %v1194 = vunpack.c.h.b16 %v803
        %v1195 = vunpack.c.l.b16 %v804
        %v1196 = vunpack.c.h.b16 %v804
        %v1197 = vunpack.c.l.b16 %v805
        %v1198 = vunpack.c.h.b16 %v805
        %v1199 = vunpack.c.l.b16 %v806
        %v1200 = vunpack.c.h.b16 %v806
        %v1201 = vunpack.c.l.b16 %v807
        %v1202 = vunpack.c.h.b16 %v807
        %v1203 = vunpack.c.l.b16 %v808
        %v1204 = vunpack.c.h.b16 %v808
        %v1205 = vunpack.c.l.b16 %v809
        %v1206 = vunpack.c.h.b16 %v809
        %v1207 = vunpack.c.l.b16 %v810
        %v1208 = vunpack.c.h.b16 %v810
        %v1209 = vunpack.c.l.b16 %v811
        %v1210 = vunpack.c.h.b16 %v811
        %v1211 = vunpack.c.l.b16 %v812
        %v1212 = vunpack.c.h.b16 %v812
        %v1213 = vunpack.c.l.b16 %v813
        %v1214 = vunpack.c.h.b16 %v813
        %v1215 = vunpack.c.l.b16 %v814
        %v1216 = vunpack.c.h.b16 %v814
        %v1217 = vunpack.c.l.b16 %v815
        %v1218 = vunpack.c.h.b16 %v815
        %v1219 = vunpack.c.l.b16 %v816
        %v1220 = vunpack.c.h.b16 %v816
        %v1221 = vunpack.c.l.b16 %v817
        %v1222 = vunpack.c.h.b16 %v817
        %v1223 = vunpack.c.l.b16 %v818
        %v1224 = vunpack.c.h.b16 %v818
        %v1225 = vunpack.c.l.b16 %v819
        %v1226 = vunpack.c.h.b16 %v819
        %v1227 = vpack.c.b16 %v973, %v971
        %v1228 = vpack.c.b16 %v974, %v972
        %v1229 = vpack.c.b16 %v977, %v975
        %v1230 = vpack.c.b16 %v978, %v976
        %v1231 = vpack.c.b16 %v981, %v979
        %v1232 = vpack.c.b16 %v982, %v980
        %v1233 = vpack.c.b16 %v985, %v983
        %v1234 = vpack.c.b16 %v986, %v984
        %v1235 = vpack.c.b16 %v989, %v987
        %v1236 = vpack.c.b16 %v990, %v988
        %v1237 = vpack.c.b16 %v993, %v991
        %v1238 = vpack.c.b16 %v994, %v992
        %v1239 = vpack.c.b16 %v997, %v995
        %v1240 = vpack.c.b16 %v998, %v996
        %v1241 = vpack.c.b16 %v1001, %v999
        %v1242 = vpack.c.b16 %v1002, %v1000
        %v1243 = vpack.c.b16 %v1005, %v1003
        %v1244 = vpack.c.b16 %v1006, %v1004
        %v1245 = vpack.c.b16 %v1009, %v1007
        %v1246 = vpack.c.b16 %v1010, %v1008
        %v1247 = vpack.c.b16 %v1013, %v1011
        %v1248 = vpack.c.b16 %v1014, %v1012
        %v1249 = vpack.c.b16 %v1017, %v1015
        %v1250 = vpack.c.b16 %v1018, %v1016
        %v1251 = vpack.c.b16 %v1021, %v1019
        %v1252 = vpack.c.b16 %v1022, %v1020
        %v1253 = vpack.c.b16 %v1025, %v1023
        %v1254 = vpack.c.b16 %v1026, %v1024
        %v1255 = vpack.c.b16 %v1029, %v1027
        %v1256 = vpack.c.b16 %v1030, %v1028
        %v1257 = vpack.c.b16 %v1033, %v1031
        %v1258 = vpack.c.b16 %v1034, %v1032
        %v1259 = vpack.c.b16 %v1037, %v1035
        %v1260 = vpack.c.b16 %v1038, %v1036
        %v1261 = vpack.c.b16 %v1041, %v1039
        %v1262 = vpack.c.b16 %v1042, %v1040
        %v1263 = vpack.c.b16 %v1045, %v1043
        %v1264 = vpack.c.b16 %v1046, %v1044
        %v1265 = vpack.c.b16 %v1049, %v1047
        %v1266 = vpack.c.b16 %v1050, %v1048
        %v1267 = vpack.c.b16 %v1053, %v1051
        %v1268 = vpack.c.b16 %v1054, %v1052
        %v1269 = vpack.c.b16 %v1057, %v1055
        %v1270 = vpack.c.b16 %v1058, %v1056
        %v1271 = vpack.c.b16 %v1061, %v1059
        %v1272 = vpack.c.b16 %v1062, %v1060
        %v1273 = vpack.c.b16 %v1065, %v1063
        %v1274 = vpack.c.b16 %v1066, %v1064
        %v1275 = vpack.c.b16 %v1069, %v1067
        %v1276 = vpack.c.b16 %v1070, %v1068
        %v1277 = vpack.c.b16 %v1073, %v1071
        %v1278 = vpack.c.b16 %v1074, %v1072
        %v1279 = vpack.c.b16 %v1077, %v1075
        %v1280 = vpack.c.b16 %v1078, %v1076
        %v1281 = vpack.c.b16 %v1081, %v1079
        %v1282 = vpack.c.b16 %v1082, %v1080
        %v1283 = vpack.c.b16 %v1085, %v1083
        %v1284 = vpack.c.b16 %v1086, %v1084
        %v1285 = vpack.c.b16 %v1089, %v1087
        %v1286 = vpack.c.b16 %v1090, %v1088
        %v1287 = vpack.c.b16 %v1093, %v1091
        %v1288 = vpack.c.b16 %v1094, %v1092
        %v1289 = vpack.c.b16 %v1097, %v1095
        %v1290 = vpack.c.b16 %v1098, %v1096
        %v1291 = vpack.c.b16 %v1101, %v1099
        %v1292 = vpack.c.b16 %v1102, %v1100
        %v1293 = vpack.c.b16 %v1105, %v1103
        %v1294 = vpack.c.b16 %v1106, %v1104
        %v1295 = vpack.c.b16 %v1109, %v1107
        %v1296 = vpack.c.b16 %v1110, %v1108
        %v1297 = vpack.c.b16 %v1113, %v1111
        %v1298 = vpack.c.b16 %v1114, %v1112
        %v1299 = vpack.c.b16 %v1117, %v1115
        %v1300 = vpack.c.b16 %v1118, %v1116
        %v1301 = vpack.c.b16 %v1121, %v1119
        %v1302 = vpack.c.b16 %v1122, %v1120
        %v1303 = vpack.c.b16 %v1125, %v1123
        %v1304 = vpack.c.b16 %v1126, %v1124
        %v1305 = vpack.c.b16 %v1129, %v1127
        %v1306 = vpack.c.b16 %v1130, %v1128
        %v1307 = vpack.c.b16 %v1133, %v1131
        %v1308 = vpack.c.b16 %v1134, %v1132
        %v1309 = vpack.c.b16 %v1137, %v1135
        %v1310 = vpack.c.b16 %v1138, %v1136
        %v1311 = vpack.c.b16 %v1141, %v1139
        %v1312 = vpack.c.b16 %v1142, %v1140
        %v1313 = vpack.c.b16 %v1145, %v1143
        %v1314 = vpack.c.b16 %v1146, %v1144
        %v1315 = vpack.c.b16 %v1149, %v1147
        %v1316 = vpack.c.b16 %v1150, %v1148
        %v1317 = vpack.c.b16 %v1153, %v1151
        %v1318 = vpack.c.b16 %v1154, %v1152
        %v1319 = vpack.c.b16 %v1157, %v1155
        %v1320 = vpack.c.b16 %v1158, %v1156
        %v1321 = vpack.c.b16 %v1161, %v1159
        %v1322 = vpack.c.b16 %v1162, %v1160
        %v1323 = vpack.c.b16 %v1165, %v1163
        %v1324 = vpack.c.b16 %v1166, %v1164
        %v1325 = vpack.c.b16 %v1169, %v1167
        %v1326 = vpack.c.b16 %v1170, %v1168
        %v1327 = vpack.c.b16 %v1173, %v1171
        %v1328 = vpack.c.b16 %v1174, %v1172
        %v1329 = vpack.c.b16 %v1177, %v1175
        %v1330 = vpack.c.b16 %v1178, %v1176
        %v1331 = vpack.c.b16 %v1181, %v1179
        %v1332 = vpack.c.b16 %v1182, %v1180
        %v1333 = vpack.c.b16 %v1185, %v1183
        %v1334 = vpack.c.b16 %v1186, %v1184
        %v1335 = vpack.c.b16 %v1189, %v1187
        %v1336 = vpack.c.b16 %v1190, %v1188
        %v1337 = vpack.c.b16 %v1193, %v1191
        %v1338 = vpack.c.b16 %v1194, %v1192
        %v1339 = vpack.c.b16 %v1197, %v1195
        %v1340 = vpack.c.b16 %v1198, %v1196
        %v1341 = vpack.c.b16 %v1201, %v1199
        %v1342 = vpack.c.b16 %v1202, %v1200
        %v1343 = vpack.c.b16 %v1205, %v1203
        %v1344 = vpack.c.b16 %v1206, %v1204
        %v1345 = vpack.c.b16 %v1209, %v1207
        %v1346 = vpack.c.b16 %v1210, %v1208
        %v1347 = vpack.c.b16 %v1213, %v1211
        %v1348 = vpack.c.b16 %v1214, %v1212
        %v1349 = vpack.c.b16 %v1217, %v1215
        %v1350 = vpack.c.b16 %v1218, %v1216
        %v1351 = vpack.c.b16 %v1221, %v1219
        %v1352 = vpack.c.b16 %v1222, %v1220
        %v1353 = vpack.c.b16 %v1225, %v1223
        %v1354 = vpack.c.b16 %v1226, %v1224
        %v1438 = vunpack.c.l.b16 %v820
        %v1439 = vunpack.c.l.b16 %v821
        %v1440 = vunpack.c.l.b16 %v822
        %v1441 = vunpack.c.l.b16 %v823
        %v1442 = vunpack.c.l.b16 %v824
        %v1443 = vunpack.c.l.b16 %v825
        %v1444 = vunpack.c.l.b16 %v826
        %v1445 = vunpack.c.l.b16 %v827
        %v1446 = vunpack.c.l.b16 %v828
        %v1447 = vunpack.c.l.b16 %v829
        %v1448 = vunpack.c.l.b16 %v830
        %v1449 = vunpack.c.l.b16 %v831
        %v1450 = vunpack.c.l.b16 %v832
        %v1451 = vunpack.c.l.b16 %v833
        %v1452 = vunpack.c.l.b16 %v834
        %v1453 = vunpack.c.l.b16 %v835
        %v1454 = vunpack.c.l.b16 %v836
        %v1455 = vunpack.c.l.b16 %v837
        %v1456 = vunpack.c.l.b16 %v838
        %v1457 = vpack.c.b16 %v1439, %v1438
        %v1458 = vpack.c.b16 %v1441, %v1440
        %v1459 = vpack.c.b16 %v1443, %v1442
        %v1460 = vpack.c.b16 %v1445, %v1444
        %v1461 = vpack.c.b16 %v1447, %v1446
        %v1462 = vpack.c.b16 %v1449, %v1448
        %v1463 = vpack.c.b16 %v1451, %v1450
        %v1464 = vpack.c.b16 %v1453, %v1452
        %v1465 = vpack.c.b16 %v1455, %v1454
        %v1466 = vpack.c.b16 %v1456, %v1456
        %vm1476 = vcmask 154624
        %v1478 = vsel %vm1476, %v1228, 0
        %v1481 = vsel %vm1476, %v1230, 0
        %v1484 = vsel %vm1476, %v1232, 0
        %v1487 = vsel %vm1476, %v1234, 0
        %v1490 = vsel %vm1476, %v1236, 0
        %v1493 = vsel %vm1476, %v1238, 0
        %v1496 = vsel %vm1476, %v1240, 0
        %v1499 = vsel %vm1476, %v1242, 0
        %v1502 = vsel %vm1476, %v1244, 0
        %v1505 = vsel %vm1476, %v1246, 0
        %v1508 = vsel %vm1476, %v1248, 0
        %v1511 = vsel %vm1476, %v1250, 0
        %v1514 = vsel %vm1476, %v1252, 0
        %v1517 = vsel %vm1476, %v1254, 0
        %v1520 = vsel %vm1476, %v1256, 0
        %v1523 = vsel %vm1476, %v1258, 0
        %v1526 = vsel %vm1476, %v1260, 0
        %v1529 = vsel %vm1476, %v1262, 0
        %v1532 = vsel %vm1476, %v1264, 0
        %v1535 = vsel %vm1476, %v1266, 0
        %v1538 = vsel %vm1476, %v1268, 0
        %v1541 = vsel %vm1476, %v1270, 0
        %v1544 = vsel %vm1476, %v1272, 0
        %v1547 = vsel %vm1476, %v1274, 0
        %v1550 = vsel %vm1476, %v1276, 0
        %v1553 = vsel %vm1476, %v1278, 0
        %v1556 = vsel %vm1476, %v1280, 0
        %v1559 = vsel %vm1476, %v1282, 0
        %v1562 = vsel %vm1476, %v1284, 0
        %v1565 = vsel %vm1476, %v1286, 0
        %v1568 = vsel %vm1476, %v1288, 0
        %v1571 = vsel %vm1476, %v1290, 0
        %v1574 = vsel %vm1476, %v1292, 0
        %v1577 = vsel %vm1476, %v1294, 0
        %v1580 = vsel %vm1476, %v1296, 0
        %v1583 = vsel %vm1476, %v1298, 0
        %v1586 = vsel %vm1476, %v1300, 0
        %v1589 = vsel %vm1476, %v1302, 0
        %v1592 = vsel %vm1476, %v1304, 0
        %v1595 = vsel %vm1476, %v1306, 0
        %v1598 = vsel %vm1476, %v1308, 0
        %v1601 = vsel %vm1476, %v1310, 0
        %v1604 = vsel %vm1476, %v1312, 0
        %v1607 = vsel %vm1476, %v1314, 0
        %v1610 = vsel %vm1476, %v1316, 0
        %v1613 = vsel %vm1476, %v1318, 0
        %v1616 = vsel %vm1476, %v1320, 0
        %v1619 = vsel %vm1476, %v1322, 0
        %v1622 = vsel %vm1476, %v1324, 0
        %v1625 = vsel %vm1476, %v1326, 0
        %v1628 = vsel %vm1476, %v1328, 0
        %v1631 = vsel %vm1476, %v1330, 0
        %v1634 = vsel %vm1476, %v1332, 0
        %v1637 = vsel %vm1476, %v1334, 0
        %v1640 = vsel %vm1476, %v1336, 0
        %v1643 = vsel %vm1476, %v1338, 0
        %v1646 = vsel %vm1476, %v1340, 0
        %v1649 = vsel %vm1476, %v1342, 0
        %v1652 = vsel %vm1476, %v1344, 0
        %v1655 = vsel %vm1476, %v1346, 0
        %v1658 = vsel %vm1476, %v1348, 0
        %v1661 = vsel %vm1476, %v1350, 0
        %v1664 = vsel %vm1476, %v1352, 0
        %v1667 = vsel %vm1476, %v1354, 0
        %vm1669 = vcmask 1040384
        %vm1670 = vcmask 1041408
        %v1671 = vsel %vm1669, 4294967295, 65535
        %v1672 = vsel %vm1670, %v1671, 0
        %v1674 = vand.u32 %v1466, %v1672
        %1676 = vmatpush.bf16.msra.mxu0 %v1464
        %1677 = vmatpush.bf16.msra.mxu0 %v1463
        %1678 = vmatpush.bf16.msra.mxu0 %v1462
        %1679 = vmatpush.bf16.msra.mxu0 %v1461
        %1680 = vmatpush.bf16.msra.mxu0 %v1460
        %1681 = vmatpush.bf16.msra.mxu0 %v1459
        %1682 = vmatpush.bf16.msra.mxu0 %v1458
        %1683 = vmatpush.bf16.msra.mxu0 %v1457
        %1684 = vmatmul.bf16.gmra.mxu0 %v1227
        %v1685 = vpop.f32.mrf.mxu0
        %v1686 = vadd.f32 %v841, %v1685
        %v1687 = vpop.f32.mrf.mxu0
        %v1688 = vadd.f32 %v841, %v1687
        %1689 = vmatmul.bf16.gmra.mxu0 %v1229
        %v1690 = vpop.f32.mrf.mxu0
        %v1691 = vadd.f32 %v841, %v1690
        %v1692 = vpop.f32.mrf.mxu0
        %v1693 = vadd.f32 %v841, %v1692
        %1694 = vmatmul.bf16.gmra.mxu0 %v1231
        %v1695 = vpop.f32.mrf.mxu0
        %v1696 = vadd.f32 %v841, %v1695
        %v1697 = vpop.f32.mrf.mxu0
        %v1698 = vadd.f32 %v841, %v1697
        %1699 = vmatmul.bf16.gmra.mxu0 %v1233
        %v1700 = vpop.f32.mrf.mxu0
        %v1701 = vadd.f32 %v841, %v1700
        %v1702 = vpop.f32.mrf.mxu0
        %v1703 = vadd.f32 %v841, %v1702
        %1704 = vmatmul.bf16.gmra.mxu0 %v1235
        %v1705 = vpop.f32.mrf.mxu0
        %v1706 = vadd.f32 %v841, %v1705
        %v1707 = vpop.f32.mrf.mxu0
        %v1708 = vadd.f32 %v841, %v1707
        %1709 = vmatmul.bf16.gmra.mxu0 %v1237
        %v1710 = vpop.f32.mrf.mxu0
        %v1711 = vadd.f32 %v841, %v1710
        %v1712 = vpop.f32.mrf.mxu0
        %v1713 = vadd.f32 %v841, %v1712
        %1714 = vmatmul.bf16.gmra.mxu0 %v1239
        %v1715 = vpop.f32.mrf.mxu0
        %v1716 = vadd.f32 %v841, %v1715
        %v1717 = vpop.f32.mrf.mxu0
        %v1718 = vadd.f32 %v841, %v1717
        %1719 = vmatmul.bf16.gmra.mxu0 %v1241
        %v1720 = vpop.f32.mrf.mxu0
        %v1721 = vadd.f32 %v841, %v1720
        %v1722 = vpop.f32.mrf.mxu0
        %v1723 = vadd.f32 %v841, %v1722
        %1724 = vmatmul.bf16.gmra.mxu0 %v1243
        %v1725 = vpop.f32.mrf.mxu0
        %v1726 = vadd.f32 %v841, %v1725
        %v1727 = vpop.f32.mrf.mxu0
        %v1728 = vadd.f32 %v841, %v1727
        %1729 = vmatmul.bf16.gmra.mxu0 %v1245
        %v1730 = vpop.f32.mrf.mxu0
        %v1731 = vadd.f32 %v841, %v1730
        %v1732 = vpop.f32.mrf.mxu0
        %v1733 = vadd.f32 %v841, %v1732
        %1734 = vmatmul.bf16.gmra.mxu0 %v1247
        %v1735 = vpop.f32.mrf.mxu0
        %v1736 = vadd.f32 %v841, %v1735
        %v1737 = vpop.f32.mrf.mxu0
        %v1738 = vadd.f32 %v841, %v1737
        %1739 = vmatmul.bf16.gmra.mxu0 %v1249
        %v1740 = vpop.f32.mrf.mxu0
        %v1741 = vadd.f32 %v841, %v1740
        %v1742 = vpop.f32.mrf.mxu0
        %v1743 = vadd.f32 %v841, %v1742
        %1744 = vmatmul.bf16.gmra.mxu0 %v1251
        %v1745 = vpop.f32.mrf.mxu0
        %v1746 = vadd.f32 %v841, %v1745
        %v1747 = vpop.f32.mrf.mxu0
        %v1748 = vadd.f32 %v841, %v1747
        %1749 = vmatmul.bf16.gmra.mxu0 %v1253
        %v1750 = vpop.f32.mrf.mxu0
        %v1751 = vadd.f32 %v841, %v1750
        %v1752 = vpop.f32.mrf.mxu0
        %v1753 = vadd.f32 %v841, %v1752
        %1754 = vmatmul.bf16.gmra.mxu0 %v1255
        %v1755 = vpop.f32.mrf.mxu0
        %v1756 = vadd.f32 %v841, %v1755
        %v1757 = vpop.f32.mrf.mxu0
        %v1758 = vadd.f32 %v841, %v1757
        %1759 = vmatmul.bf16.gmra.mxu0 %v1257
        %v1760 = vpop.f32.mrf.mxu0
        %v1761 = vadd.f32 %v841, %v1760
        %v1762 = vpop.f32.mrf.mxu0
        %v1763 = vadd.f32 %v841, %v1762
        %1764 = vmatmul.bf16.gmra.mxu0 %v1259
        %v1765 = vpop.f32.mrf.mxu0
        %v1766 = vadd.f32 %v841, %v1765
        %v1767 = vpop.f32.mrf.mxu0
        %v1768 = vadd.f32 %v841, %v1767
        %1769 = vmatmul.bf16.gmra.mxu0 %v1261
        %v1770 = vpop.f32.mrf.mxu0
        %v1771 = vadd.f32 %v841, %v1770
        %v1772 = vpop.f32.mrf.mxu0
        %v1773 = vadd.f32 %v841, %v1772
        %1774 = vmatmul.bf16.gmra.mxu0 %v1263
        %v1775 = vpop.f32.mrf.mxu0
        %v1776 = vadd.f32 %v841, %v1775
        %v1777 = vpop.f32.mrf.mxu0
        %v1778 = vadd.f32 %v841, %v1777
        %1779 = vmatmul.bf16.gmra.mxu0 %v1265
        %v1780 = vpop.f32.mrf.mxu0
        %v1781 = vadd.f32 %v841, %v1780
        %v1782 = vpop.f32.mrf.mxu0
        %v1783 = vadd.f32 %v841, %v1782
        %1784 = vmatmul.bf16.gmra.mxu0 %v1267
        %v1785 = vpop.f32.mrf.mxu0
        %v1786 = vadd.f32 %v841, %v1785
        %v1787 = vpop.f32.mrf.mxu0
        %v1788 = vadd.f32 %v841, %v1787
        %1789 = vmatmul.bf16.gmra.mxu0 %v1269
        %v1790 = vpop.f32.mrf.mxu0
        %v1791 = vadd.f32 %v841, %v1790
        %v1792 = vpop.f32.mrf.mxu0
        %v1793 = vadd.f32 %v841, %v1792
        %1794 = vmatmul.bf16.gmra.mxu0 %v1271
        %v1795 = vpop.f32.mrf.mxu0
        %v1796 = vadd.f32 %v841, %v1795
        %v1797 = vpop.f32.mrf.mxu0
        %v1798 = vadd.f32 %v841, %v1797
        %1799 = vmatmul.bf16.gmra.mxu0 %v1273
        %v1800 = vpop.f32.mrf.mxu0
        %v1801 = vadd.f32 %v841, %v1800
        %v1802 = vpop.f32.mrf.mxu0
        %v1803 = vadd.f32 %v841, %v1802
        %1804 = vmatmul.bf16.gmra.mxu0 %v1275
        %v1805 = vpop.f32.mrf.mxu0
        %v1806 = vadd.f32 %v841, %v1805
        %v1807 = vpop.f32.mrf.mxu0
        %v1808 = vadd.f32 %v841, %v1807
        %1809 = vmatmul.bf16.gmra.mxu0 %v1277
        %v1810 = vpop.f32.mrf.mxu0
        %v1811 = vadd.f32 %v841, %v1810
        %v1812 = vpop.f32.mrf.mxu0
        %v1813 = vadd.f32 %v841, %v1812
        %1814 = vmatmul.bf16.gmra.mxu0 %v1279
        %v1815 = vpop.f32.mrf.mxu0
        %v1816 = vadd.f32 %v841, %v1815
        %v1817 = vpop.f32.mrf.mxu0
        %v1818 = vadd.f32 %v841, %v1817
        %1819 = vmatmul.bf16.gmra.mxu0 %v1281
        %v1820 = vpop.f32.mrf.mxu0
        %v1821 = vadd.f32 %v841, %v1820
        %v1822 = vpop.f32.mrf.mxu0
        %v1823 = vadd.f32 %v841, %v1822
        %1824 = vmatmul.bf16.gmra.mxu0 %v1283
        %v1825 = vpop.f32.mrf.mxu0
        %v1826 = vadd.f32 %v841, %v1825
        %v1827 = vpop.f32.mrf.mxu0
        %v1828 = vadd.f32 %v841, %v1827
        %1829 = vmatmul.bf16.gmra.mxu0 %v1285
        %v1830 = vpop.f32.mrf.mxu0
        %v1831 = vadd.f32 %v841, %v1830
        %v1832 = vpop.f32.mrf.mxu0
        %v1833 = vadd.f32 %v841, %v1832
        %1834 = vmatmul.bf16.gmra.mxu0 %v1287
        %v1835 = vpop.f32.mrf.mxu0
        %v1836 = vadd.f32 %v841, %v1835
        %v1837 = vpop.f32.mrf.mxu0
        %v1838 = vadd.f32 %v841, %v1837
        %1839 = vmatmul.bf16.gmra.mxu0 %v1289
        %v1840 = vpop.f32.mrf.mxu0
        %v1841 = vadd.f32 %v841, %v1840
        %v1842 = vpop.f32.mrf.mxu0
        %v1843 = vadd.f32 %v841, %v1842
        %1844 = vmatmul.bf16.gmra.mxu0 %v1291
        %v1845 = vpop.f32.mrf.mxu0
        %v1846 = vadd.f32 %v841, %v1845
        %v1847 = vpop.f32.mrf.mxu0
        %v1848 = vadd.f32 %v841, %v1847
        %1849 = vmatmul.bf16.gmra.mxu0 %v1293
        %v1850 = vpop.f32.mrf.mxu0
        %v1851 = vadd.f32 %v841, %v1850
        %v1852 = vpop.f32.mrf.mxu0
        %v1853 = vadd.f32 %v841, %v1852
        %1854 = vmatmul.bf16.gmra.mxu0 %v1295
        %v1855 = vpop.f32.mrf.mxu0
        %v1856 = vadd.f32 %v841, %v1855
        %v1857 = vpop.f32.mrf.mxu0
        %v1858 = vadd.f32 %v841, %v1857
        %1859 = vmatmul.bf16.gmra.mxu0 %v1297
        %v1860 = vpop.f32.mrf.mxu0
        %v1861 = vadd.f32 %v841, %v1860
        %v1862 = vpop.f32.mrf.mxu0
        %v1863 = vadd.f32 %v841, %v1862
        %1864 = vmatmul.bf16.gmra.mxu0 %v1299
        %v1865 = vpop.f32.mrf.mxu0
        %v1866 = vadd.f32 %v841, %v1865
        %v1867 = vpop.f32.mrf.mxu0
        %v1868 = vadd.f32 %v841, %v1867
        %1869 = vmatmul.bf16.gmra.mxu0 %v1301
        %v1870 = vpop.f32.mrf.mxu0
        %v1871 = vadd.f32 %v841, %v1870
        %v1872 = vpop.f32.mrf.mxu0
        %v1873 = vadd.f32 %v841, %v1872
        %1874 = vmatmul.bf16.gmra.mxu0 %v1303
        %v1875 = vpop.f32.mrf.mxu0
        %v1876 = vadd.f32 %v841, %v1875
        %v1877 = vpop.f32.mrf.mxu0
        %v1878 = vadd.f32 %v841, %v1877
        %1879 = vmatmul.bf16.gmra.mxu0 %v1305
        %v1880 = vpop.f32.mrf.mxu0
        %v1881 = vadd.f32 %v841, %v1880
        %v1882 = vpop.f32.mrf.mxu0
        %v1883 = vadd.f32 %v841, %v1882
        %1884 = vmatmul.bf16.gmra.mxu0 %v1307
        %v1885 = vpop.f32.mrf.mxu0
        %v1886 = vadd.f32 %v841, %v1885
        %v1887 = vpop.f32.mrf.mxu0
        %v1888 = vadd.f32 %v841, %v1887
        %1889 = vmatmul.bf16.gmra.mxu0 %v1309
        %v1890 = vpop.f32.mrf.mxu0
        %v1891 = vadd.f32 %v841, %v1890
        %v1892 = vpop.f32.mrf.mxu0
        %v1893 = vadd.f32 %v841, %v1892
        %1894 = vmatmul.bf16.gmra.mxu0 %v1311
        %v1895 = vpop.f32.mrf.mxu0
        %v1896 = vadd.f32 %v841, %v1895
        %v1897 = vpop.f32.mrf.mxu0
        %v1898 = vadd.f32 %v841, %v1897
        %1899 = vmatmul.bf16.gmra.mxu0 %v1313
        %v1900 = vpop.f32.mrf.mxu0
        %v1901 = vadd.f32 %v841, %v1900
        %v1902 = vpop.f32.mrf.mxu0
        %v1903 = vadd.f32 %v841, %v1902
        %1904 = vmatmul.bf16.gmra.mxu0 %v1315
        %v1905 = vpop.f32.mrf.mxu0
        %v1906 = vadd.f32 %v841, %v1905
        %v1907 = vpop.f32.mrf.mxu0
        %v1908 = vadd.f32 %v841, %v1907
        %1909 = vmatmul.bf16.gmra.mxu0 %v1317
        %v1910 = vpop.f32.mrf.mxu0
        %v1911 = vadd.f32 %v841, %v1910
        %v1912 = vpop.f32.mrf.mxu0
        %v1913 = vadd.f32 %v841, %v1912
        %1914 = vmatmul.bf16.gmra.mxu0 %v1319
        %v1915 = vpop.f32.mrf.mxu0
        %v1916 = vadd.f32 %v841, %v1915
        %v1917 = vpop.f32.mrf.mxu0
        %v1918 = vadd.f32 %v841, %v1917
        %1919 = vmatmul.bf16.gmra.mxu0 %v1321
        %v1920 = vpop.f32.mrf.mxu0
        %v1921 = vadd.f32 %v841, %v1920
        %v1922 = vpop.f32.mrf.mxu0
        %v1923 = vadd.f32 %v841, %v1922
        %1924 = vmatmul.bf16.gmra.mxu0 %v1323
        %v1925 = vpop.f32.mrf.mxu0
        %v1926 = vadd.f32 %v841, %v1925
        %v1927 = vpop.f32.mrf.mxu0
        %v1928 = vadd.f32 %v841, %v1927
        %1929 = vmatmul.bf16.gmra.mxu0 %v1325
        %v1930 = vpop.f32.mrf.mxu0
        %v1931 = vadd.f32 %v841, %v1930
        %v1932 = vpop.f32.mrf.mxu0
        %v1933 = vadd.f32 %v841, %v1932
        %1934 = vmatmul.bf16.gmra.mxu0 %v1327
        %v1935 = vpop.f32.mrf.mxu0
        %v1936 = vadd.f32 %v841, %v1935
        %v1937 = vpop.f32.mrf.mxu0
        %v1938 = vadd.f32 %v841, %v1937
        %1939 = vmatmul.bf16.gmra.mxu0 %v1329
        %v1940 = vpop.f32.mrf.mxu0
        %v1941 = vadd.f32 %v841, %v1940
        %v1942 = vpop.f32.mrf.mxu0
        %v1943 = vadd.f32 %v841, %v1942
        %1944 = vmatmul.bf16.gmra.mxu0 %v1331
        %v1945 = vpop.f32.mrf.mxu0
        %v1946 = vadd.f32 %v841, %v1945
        %v1947 = vpop.f32.mrf.mxu0
        %v1948 = vadd.f32 %v841, %v1947
        %1949 = vmatmul.bf16.gmra.mxu0 %v1333
        %v1950 = vpop.f32.mrf.mxu0
        %v1951 = vadd.f32 %v841, %v1950
        %v1952 = vpop.f32.mrf.mxu0
        %v1953 = vadd.f32 %v841, %v1952
        %1954 = vmatmul.bf16.gmra.mxu0 %v1335
        %v1955 = vpop.f32.mrf.mxu0
        %v1956 = vadd.f32 %v841, %v1955
        %v1957 = vpop.f32.mrf.mxu0
        %v1958 = vadd.f32 %v841, %v1957
        %1959 = vmatmul.bf16.gmra.mxu0 %v1337
        %v1960 = vpop.f32.mrf.mxu0
        %v1961 = vadd.f32 %v841, %v1960
        %v1962 = vpop.f32.mrf.mxu0
        %v1963 = vadd.f32 %v841, %v1962
        %1964 = vmatmul.bf16.gmra.mxu0 %v1339
        %v1965 = vpop.f32.mrf.mxu0
        %v1966 = vadd.f32 %v841, %v1965
        %v1967 = vpop.f32.mrf.mxu0
        %v1968 = vadd.f32 %v841, %v1967
        %1969 = vmatmul.bf16.gmra.mxu0 %v1341
        %v1970 = vpop.f32.mrf.mxu0
        %v1971 = vadd.f32 %v841, %v1970
        %v1972 = vpop.f32.mrf.mxu0
        %v1973 = vadd.f32 %v841, %v1972
        %1974 = vmatmul.bf16.gmra.mxu0 %v1343
        %v1975 = vpop.f32.mrf.mxu0
        %v1976 = vadd.f32 %v841, %v1975
        %v1977 = vpop.f32.mrf.mxu0
        %v1978 = vadd.f32 %v841, %v1977
        %1979 = vmatmul.bf16.gmra.mxu0 %v1345
        %v1980 = vpop.f32.mrf.mxu0
        %v1981 = vadd.f32 %v841, %v1980
        %v1982 = vpop.f32.mrf.mxu0
        %v1983 = vadd.f32 %v841, %v1982
        %1984 = vmatmul.bf16.gmra.mxu0 %v1347
        %v1985 = vpop.f32.mrf.mxu0
        %v1986 = vadd.f32 %v841, %v1985
        %v1987 = vpop.f32.mrf.mxu0
        %v1988 = vadd.f32 %v841, %v1987
        %1989 = vmatmul.bf16.gmra.mxu0 %v1349
        %v1990 = vpop.f32.mrf.mxu0
        %v1991 = vadd.f32 %v841, %v1990
        %v1992 = vpop.f32.mrf.mxu0
        %v1993 = vadd.f32 %v841, %v1992
        %1994 = vmatmul.bf16.gmra.mxu0 %v1351
        %v1995 = vpop.f32.mrf.mxu0
        %v1996 = vadd.f32 %v841, %v1995
        %v1997 = vpop.f32.mrf.mxu0
        %v1998 = vadd.f32 %v841, %v1997
        %1999 = vmatmul.bf16.gmra.mxu0 %v1353
        %v2000 = vpop.f32.mrf.mxu0
        %v2001 = vadd.f32 %v841, %v2000
        %v2002 = vpop.f32.mrf.mxu0
        %v2003 = vadd.f32 %v841, %v2002
        %2004 = vdwg.mxu0
        %2005 = vmatpush.bf16.msra.mxu0 0
        %2006 = vmatpush.bf16.msra.mxu0 0
        %2007 = vmatpush.bf16.msra.mxu0 0
        %2008 = vmatpush.bf16.msra.mxu0 0
        %2009 = vmatpush.bf16.msra.mxu0 0
        %2010 = vmatpush.bf16.msra.mxu0 0
        %2011 = vmatpush.bf16.msra.mxu0 %v1674
        %2012 = vmatpush.bf16.msra.mxu0 %v1465
        %2013 = vmatmul.bf16.gmra.mxu0 %v1478
        %v2014 = vpop.f32.mrf.mxu0
        %v2015 = vadd.f32 %v1686, %v2014
        %v2016 = vpop.f32.mrf.mxu0
        %v2017 = vadd.f32 %v1688, %v2016
        %2018 = vmatmul.bf16.gmra.mxu0 %v1481
        %v2019 = vpop.f32.mrf.mxu0
        %v2020 = vadd.f32 %v1691, %v2019
        %v2021 = vpop.f32.mrf.mxu0
        %v2022 = vadd.f32 %v1693, %v2021
        %2023 = vmatmul.bf16.gmra.mxu0 %v1484
        %v2024 = vpop.f32.mrf.mxu0
        %v2025 = vadd.f32 %v1696, %v2024
        %v2026 = vpop.f32.mrf.mxu0
        %v2027 = vadd.f32 %v1698, %v2026
        %2028 = vmatmul.bf16.gmra.mxu0 %v1487
        %v2029 = vpop.f32.mrf.mxu0
        %v2030 = vadd.f32 %v1701, %v2029
        %v2031 = vpop.f32.mrf.mxu0
        %v2032 = vadd.f32 %v1703, %v2031
        %2033 = vmatmul.bf16.gmra.mxu0 %v1490
        %v2034 = vpop.f32.mrf.mxu0
        %v2035 = vadd.f32 %v1706, %v2034
        %v2036 = vpop.f32.mrf.mxu0
        %v2037 = vadd.f32 %v1708, %v2036
        %2038 = vmatmul.bf16.gmra.mxu0 %v1493
        %v2039 = vpop.f32.mrf.mxu0
        %v2040 = vadd.f32 %v1711, %v2039
        %v2041 = vpop.f32.mrf.mxu0
        %v2042 = vadd.f32 %v1713, %v2041
        %2043 = vmatmul.bf16.gmra.mxu0 %v1496
        %v2044 = vpop.f32.mrf.mxu0
        %v2045 = vadd.f32 %v1716, %v2044
        %v2046 = vpop.f32.mrf.mxu0
        %v2047 = vadd.f32 %v1718, %v2046
        %2048 = vmatmul.bf16.gmra.mxu0 %v1499
        %v2049 = vpop.f32.mrf.mxu0
        %v2050 = vadd.f32 %v1721, %v2049
        %v2051 = vpop.f32.mrf.mxu0
        %v2052 = vadd.f32 %v1723, %v2051
        %2053 = vmatmul.bf16.gmra.mxu0 %v1502
        %v2054 = vpop.f32.mrf.mxu0
        %v2055 = vadd.f32 %v1726, %v2054
        %v2056 = vpop.f32.mrf.mxu0
        %v2057 = vadd.f32 %v1728, %v2056
        %2058 = vmatmul.bf16.gmra.mxu0 %v1505
        %v2059 = vpop.f32.mrf.mxu0
        %v2060 = vadd.f32 %v1731, %v2059
        %v2061 = vpop.f32.mrf.mxu0
        %v2062 = vadd.f32 %v1733, %v2061
        %2063 = vmatmul.bf16.gmra.mxu0 %v1508
        %v2064 = vpop.f32.mrf.mxu0
        %v2065 = vadd.f32 %v1736, %v2064
        %v2066 = vpop.f32.mrf.mxu0
        %v2067 = vadd.f32 %v1738, %v2066
        %2068 = vmatmul.bf16.gmra.mxu0 %v1511
        %v2069 = vpop.f32.mrf.mxu0
        %v2070 = vadd.f32 %v1741, %v2069
        %v2071 = vpop.f32.mrf.mxu0
        %v2072 = vadd.f32 %v1743, %v2071
        %2073 = vmatmul.bf16.gmra.mxu0 %v1514
        %v2074 = vpop.f32.mrf.mxu0
        %v2075 = vadd.f32 %v1746, %v2074
        %v2076 = vpop.f32.mrf.mxu0
        %v2077 = vadd.f32 %v1748, %v2076
        %2078 = vmatmul.bf16.gmra.mxu0 %v1517
        %v2079 = vpop.f32.mrf.mxu0
        %v2080 = vadd.f32 %v1751, %v2079
        %v2081 = vpop.f32.mrf.mxu0
        %v2082 = vadd.f32 %v1753, %v2081
        %2083 = vmatmul.bf16.gmra.mxu0 %v1520
        %v2084 = vpop.f32.mrf.mxu0
        %v2085 = vadd.f32 %v1756, %v2084
        %v2086 = vpop.f32.mrf.mxu0
        %v2087 = vadd.f32 %v1758, %v2086
        %2088 = vmatmul.bf16.gmra.mxu0 %v1523
        %v2089 = vpop.f32.mrf.mxu0
        %v2090 = vadd.f32 %v1761, %v2089
        %v2091 = vpop.f32.mrf.mxu0
        %v2092 = vadd.f32 %v1763, %v2091
        %2093 = vmatmul.bf16.gmra.mxu0 %v1526
        %v2094 = vpop.f32.mrf.mxu0
        %v2095 = vadd.f32 %v1766, %v2094
        %v2096 = vpop.f32.mrf.mxu0
        %v2097 = vadd.f32 %v1768, %v2096
        %2098 = vmatmul.bf16.gmra.mxu0 %v1529
        %v2099 = vpop.f32.mrf.mxu0
        %v2100 = vadd.f32 %v1771, %v2099
        %v2101 = vpop.f32.mrf.mxu0
        %v2102 = vadd.f32 %v1773, %v2101
        %2103 = vmatmul.bf16.gmra.mxu0 %v1532
        %v2104 = vpop.f32.mrf.mxu0
        %v2105 = vadd.f32 %v1776, %v2104
        %v2106 = vpop.f32.mrf.mxu0
        %v2107 = vadd.f32 %v1778, %v2106
        %2108 = vmatmul.bf16.gmra.mxu0 %v1535
        %v2109 = vpop.f32.mrf.mxu0
        %v2110 = vadd.f32 %v1781, %v2109
        %v2111 = vpop.f32.mrf.mxu0
        %v2112 = vadd.f32 %v1783, %v2111
        %2113 = vmatmul.bf16.gmra.mxu0 %v1538
        %v2114 = vpop.f32.mrf.mxu0
        %v2115 = vadd.f32 %v1786, %v2114
        %v2116 = vpop.f32.mrf.mxu0
        %v2117 = vadd.f32 %v1788, %v2116
        %2118 = vmatmul.bf16.gmra.mxu0 %v1541
        %v2119 = vpop.f32.mrf.mxu0
        %v2120 = vadd.f32 %v1791, %v2119
        %v2121 = vpop.f32.mrf.mxu0
        %v2122 = vadd.f32 %v1793, %v2121
        %2123 = vmatmul.bf16.gmra.mxu0 %v1544
        %v2124 = vpop.f32.mrf.mxu0
        %v2125 = vadd.f32 %v1796, %v2124
        %v2126 = vpop.f32.mrf.mxu0
        %v2127 = vadd.f32 %v1798, %v2126
        %2128 = vmatmul.bf16.gmra.mxu0 %v1547
        %v2129 = vpop.f32.mrf.mxu0
        %v2130 = vadd.f32 %v1801, %v2129
        %v2131 = vpop.f32.mrf.mxu0
        %v2132 = vadd.f32 %v1803, %v2131
        %2133 = vmatmul.bf16.gmra.mxu0 %v1550
        %v2134 = vpop.f32.mrf.mxu0
        %v2135 = vadd.f32 %v1806, %v2134
        %v2136 = vpop.f32.mrf.mxu0
        %v2137 = vadd.f32 %v1808, %v2136
        %2138 = vmatmul.bf16.gmra.mxu0 %v1553
        %v2139 = vpop.f32.mrf.mxu0
        %v2140 = vadd.f32 %v1811, %v2139
        %v2141 = vpop.f32.mrf.mxu0
        %v2142 = vadd.f32 %v1813, %v2141
        %2143 = vmatmul.bf16.gmra.mxu0 %v1556
        %v2144 = vpop.f32.mrf.mxu0
        %v2145 = vadd.f32 %v1816, %v2144
        %v2146 = vpop.f32.mrf.mxu0
        %v2147 = vadd.f32 %v1818, %v2146
        %2148 = vmatmul.bf16.gmra.mxu0 %v1559
        %v2149 = vpop.f32.mrf.mxu0
        %v2150 = vadd.f32 %v1821, %v2149
        %v2151 = vpop.f32.mrf.mxu0
        %v2152 = vadd.f32 %v1823, %v2151
        %2153 = vmatmul.bf16.gmra.mxu0 %v1562
        %v2154 = vpop.f32.mrf.mxu0
        %v2155 = vadd.f32 %v1826, %v2154
        %v2156 = vpop.f32.mrf.mxu0
        %v2157 = vadd.f32 %v1828, %v2156
        %2158 = vmatmul.bf16.gmra.mxu0 %v1565
        %v2159 = vpop.f32.mrf.mxu0
        %v2160 = vadd.f32 %v1831, %v2159
        %v2161 = vpop.f32.mrf.mxu0
        %v2162 = vadd.f32 %v1833, %v2161
        %2163 = vmatmul.bf16.gmra.mxu0 %v1568
        %v2164 = vpop.f32.mrf.mxu0
        %v2165 = vadd.f32 %v1836, %v2164
        %v2166 = vpop.f32.mrf.mxu0
        %v2167 = vadd.f32 %v1838, %v2166
        %2168 = vmatmul.bf16.gmra.mxu0 %v1571
        %v2169 = vpop.f32.mrf.mxu0
        %v2170 = vadd.f32 %v1841, %v2169
        %v2171 = vpop.f32.mrf.mxu0
        %v2172 = vadd.f32 %v1843, %v2171
        %2173 = vmatmul.bf16.gmra.mxu0 %v1574
        %v2174 = vpop.f32.mrf.mxu0
        %v2175 = vadd.f32 %v1846, %v2174
        %v2176 = vpop.f32.mrf.mxu0
        %v2177 = vadd.f32 %v1848, %v2176
        %2178 = vmatmul.bf16.gmra.mxu0 %v1577
        %v2179 = vpop.f32.mrf.mxu0
        %v2180 = vadd.f32 %v1851, %v2179
        %v2181 = vpop.f32.mrf.mxu0
        %v2182 = vadd.f32 %v1853, %v2181
        %2183 = vmatmul.bf16.gmra.mxu0 %v1580
        %v2184 = vpop.f32.mrf.mxu0
        %v2185 = vadd.f32 %v1856, %v2184
        %v2186 = vpop.f32.mrf.mxu0
        %v2187 = vadd.f32 %v1858, %v2186
        %2188 = vmatmul.bf16.gmra.mxu0 %v1583
        %v2189 = vpop.f32.mrf.mxu0
        %v2190 = vadd.f32 %v1861, %v2189
        %v2191 = vpop.f32.mrf.mxu0
        %v2192 = vadd.f32 %v1863, %v2191
        %2193 = vmatmul.bf16.gmra.mxu0 %v1586
        %v2194 = vpop.f32.mrf.mxu0
        %v2195 = vadd.f32 %v1866, %v2194
        %v2196 = vpop.f32.mrf.mxu0
        %v2197 = vadd.f32 %v1868, %v2196
        %2198 = vmatmul.bf16.gmra.mxu0 %v1589
        %v2199 = vpop.f32.mrf.mxu0
        %v2200 = vadd.f32 %v1871, %v2199
        %v2201 = vpop.f32.mrf.mxu0
        %v2202 = vadd.f32 %v1873, %v2201
        %2203 = vmatmul.bf16.gmra.mxu0 %v1592
        %v2204 = vpop.f32.mrf.mxu0
        %v2205 = vadd.f32 %v1876, %v2204
        %v2206 = vpop.f32.mrf.mxu0
        %v2207 = vadd.f32 %v1878, %v2206
        %2208 = vmatmul.bf16.gmra.mxu0 %v1595
        %v2209 = vpop.f32.mrf.mxu0
        %v2210 = vadd.f32 %v1881, %v2209
        %v2211 = vpop.f32.mrf.mxu0
        %v2212 = vadd.f32 %v1883, %v2211
        %2213 = vmatmul.bf16.gmra.mxu0 %v1598
        %v2214 = vpop.f32.mrf.mxu0
        %v2215 = vadd.f32 %v1886, %v2214
        %v2216 = vpop.f32.mrf.mxu0
        %v2217 = vadd.f32 %v1888, %v2216
        %2218 = vmatmul.bf16.gmra.mxu0 %v1601
        %v2219 = vpop.f32.mrf.mxu0
        %v2220 = vadd.f32 %v1891, %v2219
        %v2221 = vpop.f32.mrf.mxu0
        %v2222 = vadd.f32 %v1893, %v2221
        %2223 = vmatmul.bf16.gmra.mxu0 %v1604
        %v2224 = vpop.f32.mrf.mxu0
        %v2225 = vadd.f32 %v1896, %v2224
        %v2226 = vpop.f32.mrf.mxu0
        %v2227 = vadd.f32 %v1898, %v2226
        %2228 = vmatmul.bf16.gmra.mxu0 %v1607
        %v2229 = vpop.f32.mrf.mxu0
        %v2230 = vadd.f32 %v1901, %v2229
        %v2231 = vpop.f32.mrf.mxu0
        %v2232 = vadd.f32 %v1903, %v2231
        %2233 = vmatmul.bf16.gmra.mxu0 %v1610
        %v2234 = vpop.f32.mrf.mxu0
        %v2235 = vadd.f32 %v1906, %v2234
        %v2236 = vpop.f32.mrf.mxu0
        %v2237 = vadd.f32 %v1908, %v2236
        %2238 = vmatmul.bf16.gmra.mxu0 %v1613
        %v2239 = vpop.f32.mrf.mxu0
        %v2240 = vadd.f32 %v1911, %v2239
        %v2241 = vpop.f32.mrf.mxu0
        %v2242 = vadd.f32 %v1913, %v2241
        %2243 = vmatmul.bf16.gmra.mxu0 %v1616
        %v2244 = vpop.f32.mrf.mxu0
        %v2245 = vadd.f32 %v1916, %v2244
        %v2246 = vpop.f32.mrf.mxu0
        %v2247 = vadd.f32 %v1918, %v2246
        %2248 = vmatmul.bf16.gmra.mxu0 %v1619
        %v2249 = vpop.f32.mrf.mxu0
        %v2250 = vadd.f32 %v1921, %v2249
        %v2251 = vpop.f32.mrf.mxu0
        %v2252 = vadd.f32 %v1923, %v2251
        %2253 = vmatmul.bf16.gmra.mxu0 %v1622
        %v2254 = vpop.f32.mrf.mxu0
        %v2255 = vadd.f32 %v1926, %v2254
        %v2256 = vpop.f32.mrf.mxu0
        %v2257 = vadd.f32 %v1928, %v2256
        %2258 = vmatmul.bf16.gmra.mxu0 %v1625
        %v2259 = vpop.f32.mrf.mxu0
        %v2260 = vadd.f32 %v1931, %v2259
        %v2261 = vpop.f32.mrf.mxu0
        %v2262 = vadd.f32 %v1933, %v2261
        %2263 = vmatmul.bf16.gmra.mxu0 %v1628
        %v2264 = vpop.f32.mrf.mxu0
        %v2265 = vadd.f32 %v1936, %v2264
        %v2266 = vpop.f32.mrf.mxu0
        %v2267 = vadd.f32 %v1938, %v2266
        %2268 = vmatmul.bf16.gmra.mxu0 %v1631
        %v2269 = vpop.f32.mrf.mxu0
        %v2270 = vadd.f32 %v1941, %v2269
        %v2271 = vpop.f32.mrf.mxu0
        %v2272 = vadd.f32 %v1943, %v2271
        %2273 = vmatmul.bf16.gmra.mxu0 %v1634
        %v2274 = vpop.f32.mrf.mxu0
        %v2275 = vadd.f32 %v1946, %v2274
        %v2276 = vpop.f32.mrf.mxu0
        %v2277 = vadd.f32 %v1948, %v2276
        %2278 = vmatmul.bf16.gmra.mxu0 %v1637
        %v2279 = vpop.f32.mrf.mxu0
        %v2280 = vadd.f32 %v1951, %v2279
        %v2281 = vpop.f32.mrf.mxu0
        %v2282 = vadd.f32 %v1953, %v2281
        %2283 = vmatmul.bf16.gmra.mxu0 %v1640
        %v2284 = vpop.f32.mrf.mxu0
        %v2285 = vadd.f32 %v1956, %v2284
        %v2286 = vpop.f32.mrf.mxu0
        %v2287 = vadd.f32 %v1958, %v2286
        %2288 = vmatmul.bf16.gmra.mxu0 %v1643
        %v2289 = vpop.f32.mrf.mxu0
        %v2290 = vadd.f32 %v1961, %v2289
        %v2291 = vpop.f32.mrf.mxu0
        %v2292 = vadd.f32 %v1963, %v2291
        %2293 = vmatmul.bf16.gmra.mxu0 %v1646
        %v2294 = vpop.f32.mrf.mxu0
        %v2295 = vadd.f32 %v1966, %v2294
        %v2296 = vpop.f32.mrf.mxu0
        %v2297 = vadd.f32 %v1968, %v2296
        %2298 = vmatmul.bf16.gmra.mxu0 %v1649
        %v2299 = vpop.f32.mrf.mxu0
        %v2300 = vadd.f32 %v1971, %v2299
        %v2301 = vpop.f32.mrf.mxu0
        %v2302 = vadd.f32 %v1973, %v2301
        %2303 = vmatmul.bf16.gmra.mxu0 %v1652
        %v2304 = vpop.f32.mrf.mxu0
        %v2305 = vadd.f32 %v1976, %v2304
        %v2306 = vpop.f32.mrf.mxu0
        %v2307 = vadd.f32 %v1978, %v2306
        %2308 = vmatmul.bf16.gmra.mxu0 %v1655
        %v2309 = vpop.f32.mrf.mxu0
        %v2310 = vadd.f32 %v1981, %v2309
        %v2311 = vpop.f32.mrf.mxu0
        %v2312 = vadd.f32 %v1983, %v2311
        %2313 = vmatmul.bf16.gmra.mxu0 %v1658
        %v2314 = vpop.f32.mrf.mxu0
        %v2315 = vadd.f32 %v1986, %v2314
        %v2316 = vpop.f32.mrf.mxu0
        %v2317 = vadd.f32 %v1988, %v2316
        %2318 = vmatmul.bf16.gmra.mxu0 %v1661
        %v2319 = vpop.f32.mrf.mxu0
        %v2320 = vadd.f32 %v1991, %v2319
        %v2321 = vpop.f32.mrf.mxu0
        %v2322 = vadd.f32 %v1993, %v2321
        %2323 = vmatmul.bf16.gmra.mxu0 %v1664
        %v2324 = vpop.f32.mrf.mxu0
        %v2325 = vadd.f32 %v1996, %v2324
        %v2326 = vpop.f32.mrf.mxu0
        %v2327 = vadd.f32 %v1998, %v2326
        %2328 = vmatmul.bf16.gmra.mxu0 %v1667
        %v2329 = vpop.f32.mrf.mxu0
        %v2330 = vadd.f32 %v2001, %v2329
        %v2331 = vpop.f32.mrf.mxu0
        %v2332 = vadd.f32 %v2003, %v2331
        %2333 = vdwg.mxu0
        %v2334 = vmax.f32 %v2015, 0.0
        %v2335 = vmax.f32 %v2017, 0.0
        %v2336 = vmax.f32 %v2020, 0.0
        %v2337 = vmax.f32 %v2022, 0.0
        %v2338 = vmax.f32 %v2025, 0.0
        %v2339 = vmax.f32 %v2027, 0.0
        %v2340 = vmax.f32 %v2030, 0.0
        %v2341 = vmax.f32 %v2032, 0.0
        %v2342 = vmax.f32 %v2035, 0.0
        %v2343 = vmax.f32 %v2037, 0.0
        %v2344 = vmax.f32 %v2040, 0.0
        %v2345 = vmax.f32 %v2042, 0.0
        %v2346 = vmax.f32 %v2045, 0.0
        %v2347 = vmax.f32 %v2047, 0.0
        %v2348 = vmax.f32 %v2050, 0.0
        %v2349 = vmax.f32 %v2052, 0.0
        %v2350 = vmax.f32 %v2055, 0.0
        %v2351 = vmax.f32 %v2057, 0.0
        %v2352 = vmax.f32 %v2060, 0.0
        %v2353 = vmax.f32 %v2062, 0.0
        %v2354 = vmax.f32 %v2065, 0.0
        %v2355 = vmax.f32 %v2067, 0.0
        %v2356 = vmax.f32 %v2070, 0.0
        %v2357 = vmax.f32 %v2072, 0.0
        %v2358 = vmax.f32 %v2075, 0.0
        %v2359 = vmax.f32 %v2077, 0.0
        %v2360 = vmax.f32 %v2080, 0.0
        %v2361 = vmax.f32 %v2082, 0.0
        %v2362 = vmax.f32 %v2085, 0.0
        %v2363 = vmax.f32 %v2087, 0.0
        %v2364 = vmax.f32 %v2090, 0.0
        %v2365 = vmax.f32 %v2092, 0.0
        %v2366 = vmax.f32 %v2095, 0.0
        %v2367 = vmax.f32 %v2097, 0.0
        %v2368 = vmax.f32 %v2100, 0.0
        %v2369 = vmax.f32 %v2102, 0.0
        %v2370 = vmax.f32 %v2105, 0.0
        %v2371 = vmax.f32 %v2107, 0.0
        %v2372 = vmax.f32 %v2110, 0.0
        %v2373 = vmax.f32 %v2112, 0.0
        %v2374 = vmax.f32 %v2115, 0.0
        %v2375 = vmax.f32 %v2117, 0.0
        %v2376 = vmax.f32 %v2120, 0.0
        %v2377 = vmax.f32 %v2122, 0.0
        %v2378 = vmax.f32 %v2125, 0.0
        %v2379 = vmax.f32 %v2127, 0.0
        %v2380 = vmax.f32 %v2130, 0.0
        %v2381 = vmax.f32 %v2132, 0.0
        %v2382 = vmax.f32 %v2135, 0.0
        %v2383 = vmax.f32 %v2137, 0.0
        %v2384 = vmax.f32 %v2140, 0.0
        %v2385 = vmax.f32 %v2142, 0.0
        %v2386 = vmax.f32 %v2145, 0.0
        %v2387 = vmax.f32 %v2147, 0.0
        %v2388 = vmax.f32 %v2150, 0.0
        %v2389 = vmax.f32 %v2152, 0.0
        %v2390 = vmax.f32 %v2155, 0.0
        %v2391 = vmax.f32 %v2157, 0.0
        %v2392 = vmax.f32 %v2160, 0.0
        %v2393 = vmax.f32 %v2162, 0.0
        %v2394 = vmax.f32 %v2165, 0.0
        %v2395 = vmax.f32 %v2167, 0.0
        %v2396 = vmax.f32 %v2170, 0.0
        %v2397 = vmax.f32 %v2172, 0.0
        %v2398 = vmax.f32 %v2175, 0.0
        %v2399 = vmax.f32 %v2177, 0.0
        %v2400 = vmax.f32 %v2180, 0.0
        %v2401 = vmax.f32 %v2182, 0.0
        %v2402 = vmax.f32 %v2185, 0.0
        %v2403 = vmax.f32 %v2187, 0.0
        %v2404 = vmax.f32 %v2190, 0.0
        %v2405 = vmax.f32 %v2192, 0.0
        %v2406 = vmax.f32 %v2195, 0.0
        %v2407 = vmax.f32 %v2197, 0.0
        %v2408 = vmax.f32 %v2200, 0.0
        %v2409 = vmax.f32 %v2202, 0.0
        %v2410 = vmax.f32 %v2205, 0.0
        %v2411 = vmax.f32 %v2207, 0.0
        %v2412 = vmax.f32 %v2210, 0.0
        %v2413 = vmax.f32 %v2212, 0.0
        %v2414 = vmax.f32 %v2215, 0.0
        %v2415 = vmax.f32 %v2217, 0.0
        %v2416 = vmax.f32 %v2220, 0.0
        %v2417 = vmax.f32 %v2222, 0.0
        %v2418 = vmax.f32 %v2225, 0.0
        %v2419 = vmax.f32 %v2227, 0.0
        %v2420 = vmax.f32 %v2230, 0.0
        %v2421 = vmax.f32 %v2232, 0.0
        %v2422 = vmax.f32 %v2235, 0.0
        %v2423 = vmax.f32 %v2237, 0.0
        %v2424 = vmax.f32 %v2240, 0.0
        %v2425 = vmax.f32 %v2242, 0.0
        %v2426 = vmax.f32 %v2245, 0.0
        %v2427 = vmax.f32 %v2247, 0.0
        %v2428 = vmax.f32 %v2250, 0.0
        %v2429 = vmax.f32 %v2252, 0.0
        %v2430 = vmax.f32 %v2255, 0.0
        %v2431 = vmax.f32 %v2257, 0.0
        %v2432 = vmax.f32 %v2260, 0.0
        %v2433 = vmax.f32 %v2262, 0.0
        %v2434 = vmax.f32 %v2265, 0.0
        %v2435 = vmax.f32 %v2267, 0.0
        %v2436 = vmax.f32 %v2270, 0.0
        %v2437 = vmax.f32 %v2272, 0.0
        %v2438 = vmax.f32 %v2275, 0.0
        %v2439 = vmax.f32 %v2277, 0.0
        %v2440 = vmax.f32 %v2280, 0.0
        %v2441 = vmax.f32 %v2282, 0.0
        %v2442 = vmax.f32 %v2285, 0.0
        %v2443 = vmax.f32 %v2287, 0.0
        %v2444 = vmax.f32 %v2290, 0.0
        %v2445 = vmax.f32 %v2292, 0.0
        %v2446 = vmax.f32 %v2295, 0.0
        %v2447 = vmax.f32 %v2297, 0.0
        %v2448 = vmax.f32 %v2300, 0.0
        %v2449 = vmax.f32 %v2302, 0.0
        %v2450 = vmax.f32 %v2305, 0.0
        %v2451 = vmax.f32 %v2307, 0.0
        %v2452 = vmax.f32 %v2310, 0.0
        %v2453 = vmax.f32 %v2312, 0.0
        %v2454 = vmax.f32 %v2315, 0.0
        %v2455 = vmax.f32 %v2317, 0.0
        %v2456 = vmax.f32 %v2320, 0.0
        %v2457 = vmax.f32 %v2322, 0.0
        %v2458 = vmax.f32 %v2325, 0.0
        %v2459 = vmax.f32 %v2327, 0.0
        %v2460 = vmax.f32 %v2330, 0.0
        %v2461 = vmax.f32 %v2332, 0.0
        %v2590 = vrot.slane %v2334, 2
        %v2591 = vrot.slane %v2334, 4
        %v2592 = vrot.slane %v2334, 6
        %v2593 = vrot.slane %v2335, 2
        %v2594 = vrot.slane %v2335, 4
        %v2595 = vrot.slane %v2335, 6
        %v2596 = vrot.slane %v2336, 2
        %v2597 = vrot.slane %v2336, 4
        %v2598 = vrot.slane %v2336, 6
        %v2599 = vrot.slane %v2337, 2
        %v2600 = vrot.slane %v2337, 4
        %v2601 = vrot.slane %v2337, 6
        %v2602 = vrot.slane %v2338, 2
        %v2603 = vrot.slane %v2338, 4
        %v2604 = vrot.slane %v2338, 6
        %v2605 = vrot.slane %v2339, 2
        %v2606 = vrot.slane %v2339, 4
        %v2607 = vrot.slane %v2339, 6
        %v2608 = vrot.slane %v2340, 2
        %v2609 = vrot.slane %v2340, 4
        %v2610 = vrot.slane %v2340, 6
        %v2611 = vrot.slane %v2341, 2
        %v2612 = vrot.slane %v2341, 4
        %v2613 = vrot.slane %v2341, 6
        %v2614 = vrot.slane %v2342, 2
        %v2615 = vrot.slane %v2342, 4
        %v2616 = vrot.slane %v2342, 6
        %v2617 = vrot.slane %v2343, 2
        %v2618 = vrot.slane %v2343, 4
        %v2619 = vrot.slane %v2343, 6
        %v2620 = vrot.slane %v2344, 2
        %v2621 = vrot.slane %v2344, 4
        %v2622 = vrot.slane %v2344, 6
        %v2623 = vrot.slane %v2345, 2
        %v2624 = vrot.slane %v2345, 4
        %v2625 = vrot.slane %v2345, 6
        %v2626 = vrot.slane %v2346, 2
        %v2627 = vrot.slane %v2346, 4
        %v2628 = vrot.slane %v2346, 6
        %v2629 = vrot.slane %v2347, 2
        %v2630 = vrot.slane %v2347, 4
        %v2631 = vrot.slane %v2347, 6
        %v2632 = vrot.slane %v2348, 2
        %v2633 = vrot.slane %v2348, 4
        %v2634 = vrot.slane %v2348, 6
        %v2635 = vrot.slane %v2349, 2
        %v2636 = vrot.slane %v2349, 4
        %v2637 = vrot.slane %v2349, 6
        %v2638 = vrot.slane %v2350, 2
        %v2639 = vrot.slane %v2350, 4
        %v2640 = vrot.slane %v2350, 6
        %v2641 = vrot.slane %v2351, 2
        %v2642 = vrot.slane %v2351, 4
        %v2643 = vrot.slane %v2351, 6
        %v2644 = vrot.slane %v2352, 2
        %v2645 = vrot.slane %v2352, 4
        %v2646 = vrot.slane %v2352, 6
        %v2647 = vrot.slane %v2353, 2
        %v2648 = vrot.slane %v2353, 4
        %v2649 = vrot.slane %v2353, 6
        %v2650 = vrot.slane %v2354, 2
        %v2651 = vrot.slane %v2354, 4
        %v2652 = vrot.slane %v2354, 6
        %v2653 = vrot.slane %v2355, 2
        %v2654 = vrot.slane %v2355, 4
        %v2655 = vrot.slane %v2355, 6
        %v2656 = vrot.slane %v2356, 2
        %v2657 = vrot.slane %v2356, 4
        %v2658 = vrot.slane %v2356, 6
        %v2659 = vrot.slane %v2357, 2
        %v2660 = vrot.slane %v2357, 4
        %v2661 = vrot.slane %v2357, 6
        %v2662 = vrot.slane %v2358, 2
        %v2663 = vrot.slane %v2358, 4
        %v2664 = vrot.slane %v2358, 6
        %v2665 = vrot.slane %v2359, 2
        %v2666 = vrot.slane %v2359, 4
        %v2667 = vrot.slane %v2359, 6
        %v2668 = vrot.slane %v2360, 2
        %v2669 = vrot.slane %v2360, 4
        %v2670 = vrot.slane %v2360, 6
        %v2671 = vrot.slane %v2361, 2
        %v2672 = vrot.slane %v2361, 4
        %v2673 = vrot.slane %v2361, 6
        %v2674 = vrot.slane %v2362, 2
        %v2675 = vrot.slane %v2362, 4
        %v2676 = vrot.slane %v2362, 6
        %v2677 = vrot.slane %v2363, 2
        %v2678 = vrot.slane %v2363, 4
        %v2679 = vrot.slane %v2363, 6
        %v2680 = vrot.slane %v2364, 2
        %v2681 = vrot.slane %v2364, 4
        %v2682 = vrot.slane %v2364, 6
        %v2683 = vrot.slane %v2365, 2
        %v2684 = vrot.slane %v2365, 4
        %v2685 = vrot.slane %v2365, 6
        %v2686 = vrot.slane %v2366, 2
        %v2687 = vrot.slane %v2366, 4
        %v2688 = vrot.slane %v2366, 6
        %v2689 = vrot.slane %v2367, 2
        %v2690 = vrot.slane %v2367, 4
        %v2691 = vrot.slane %v2367, 6
        %v2692 = vrot.slane %v2368, 2
        %v2693 = vrot.slane %v2368, 4
        %v2694 = vrot.slane %v2368, 6
        %v2695 = vrot.slane %v2369, 2
        %v2696 = vrot.slane %v2369, 4
        %v2697 = vrot.slane %v2369, 6
        %v2698 = vrot.slane %v2370, 2
        %v2699 = vrot.slane %v2370, 4
        %v2700 = vrot.slane %v2370, 6
        %v2701 = vrot.slane %v2371, 2
        %v2702 = vrot.slane %v2371, 4
        %v2703 = vrot.slane %v2371, 6
        %v2704 = vrot.slane %v2372, 2
        %v2705 = vrot.slane %v2372, 4
        %v2706 = vrot.slane %v2372, 6
        %v2707 = vrot.slane %v2373, 2
        %v2708 = vrot.slane %v2373, 4
        %v2709 = vrot.slane %v2373, 6
        %v2710 = vrot.slane %v2374, 2
        %v2711 = vrot.slane %v2374, 4
        %v2712 = vrot.slane %v2374, 6
        %v2713 = vrot.slane %v2375, 2
        %v2714 = vrot.slane %v2375, 4
        %v2715 = vrot.slane %v2375, 6
        %v2716 = vrot.slane %v2376, 2
        %v2717 = vrot.slane %v2376, 4
        %v2718 = vrot.slane %v2376, 6
        %v2719 = vrot.slane %v2377, 2
        %v2720 = vrot.slane %v2377, 4
        %v2721 = vrot.slane %v2377, 6
        %v2722 = vrot.slane %v2378, 2
        %v2723 = vrot.slane %v2378, 4
        %v2724 = vrot.slane %v2378, 6
        %v2725 = vrot.slane %v2379, 2
        %v2726 = vrot.slane %v2379, 4
        %v2727 = vrot.slane %v2379, 6
        %v2728 = vrot.slane %v2380, 2
        %v2729 = vrot.slane %v2380, 4
        %v2730 = vrot.slane %v2380, 6
        %v2731 = vrot.slane %v2381, 2
        %v2732 = vrot.slane %v2381, 4
        %v2733 = vrot.slane %v2381, 6
        %v2734 = vrot.slane %v2382, 2
        %v2735 = vrot.slane %v2382, 4
        %v2736 = vrot.slane %v2382, 6
        %v2737 = vrot.slane %v2383, 2
        %v2738 = vrot.slane %v2383, 4
        %v2739 = vrot.slane %v2383, 6
        %v2740 = vrot.slane %v2384, 2
        %v2741 = vrot.slane %v2384, 4
        %v2742 = vrot.slane %v2384, 6
        %v2743 = vrot.slane %v2385, 2
        %v2744 = vrot.slane %v2385, 4
        %v2745 = vrot.slane %v2385, 6
        %v2746 = vrot.slane %v2386, 2
        %v2747 = vrot.slane %v2386, 4
        %v2748 = vrot.slane %v2386, 6
        %v2749 = vrot.slane %v2387, 2
        %v2750 = vrot.slane %v2387, 4
        %v2751 = vrot.slane %v2387, 6
        %v2752 = vrot.slane %v2388, 2
        %v2753 = vrot.slane %v2388, 4
        %v2754 = vrot.slane %v2388, 6
        %v2755 = vrot.slane %v2389, 2
        %v2756 = vrot.slane %v2389, 4
        %v2757 = vrot.slane %v2389, 6
        %v2758 = vrot.slane %v2390, 2
        %v2759 = vrot.slane %v2390, 4
        %v2760 = vrot.slane %v2390, 6
        %v2761 = vrot.slane %v2391, 2
        %v2762 = vrot.slane %v2391, 4
        %v2763 = vrot.slane %v2391, 6
        %v2764 = vrot.slane %v2392, 2
        %v2765 = vrot.slane %v2392, 4
        %v2766 = vrot.slane %v2392, 6
        %v2767 = vrot.slane %v2393, 2
        %v2768 = vrot.slane %v2393, 4
        %v2769 = vrot.slane %v2393, 6
        %v2770 = vrot.slane %v2394, 2
        %v2771 = vrot.slane %v2394, 4
        %v2772 = vrot.slane %v2394, 6
        %v2773 = vrot.slane %v2395, 2
        %v2774 = vrot.slane %v2395, 4
        %v2775 = vrot.slane %v2395, 6
        %v2776 = vrot.slane %v2396, 2
        %v2777 = vrot.slane %v2396, 4
        %v2778 = vrot.slane %v2396, 6
        %v2779 = vrot.slane %v2397, 2
        %v2780 = vrot.slane %v2397, 4
        %v2781 = vrot.slane %v2397, 6
        %v2782 = vrot.slane %v2398, 2
        %v2783 = vrot.slane %v2398, 4
        %v2784 = vrot.slane %v2398, 6
        %v2785 = vrot.slane %v2399, 2
        %v2786 = vrot.slane %v2399, 4
        %v2787 = vrot.slane %v2399, 6
        %v2788 = vrot.slane %v2400, 2
        %v2789 = vrot.slane %v2400, 4
        %v2790 = vrot.slane %v2400, 6
        %v2791 = vrot.slane %v2401, 2
        %v2792 = vrot.slane %v2401, 4
        %v2793 = vrot.slane %v2401, 6
        %v2794 = vrot.slane %v2402, 2
        %v2795 = vrot.slane %v2402, 4
        %v2796 = vrot.slane %v2402, 6
        %v2797 = vrot.slane %v2403, 2
        %v2798 = vrot.slane %v2403, 4
        %v2799 = vrot.slane %v2403, 6
        %v2800 = vrot.slane %v2404, 2
        %v2801 = vrot.slane %v2404, 4
        %v2802 = vrot.slane %v2404, 6
        %v2803 = vrot.slane %v2405, 2
        %v2804 = vrot.slane %v2405, 4
        %v2805 = vrot.slane %v2405, 6
        %v2806 = vrot.slane %v2406, 2
        %v2807 = vrot.slane %v2406, 4
        %v2808 = vrot.slane %v2406, 6
        %v2809 = vrot.slane %v2407, 2
        %v2810 = vrot.slane %v2407, 4
        %v2811 = vrot.slane %v2407, 6
        %v2812 = vrot.slane %v2408, 2
        %v2813 = vrot.slane %v2408, 4
        %v2814 = vrot.slane %v2408, 6
        %v2815 = vrot.slane %v2409, 2
        %v2816 = vrot.slane %v2409, 4
        %v2817 = vrot.slane %v2409, 6
        %v2818 = vrot.slane %v2410, 2
        %v2819 = vrot.slane %v2410, 4
        %v2820 = vrot.slane %v2410, 6
        %v2821 = vrot.slane %v2411, 2
        %v2822 = vrot.slane %v2411, 4
        %v2823 = vrot.slane %v2411, 6
        %v2824 = vrot.slane %v2412, 2
        %v2825 = vrot.slane %v2412, 4
        %v2826 = vrot.slane %v2412, 6
        %v2827 = vrot.slane %v2413, 2
        %v2828 = vrot.slane %v2413, 4
        %v2829 = vrot.slane %v2413, 6
        %v2830 = vrot.slane %v2414, 2
        %v2831 = vrot.slane %v2414, 4
        %v2832 = vrot.slane %v2414, 6
        %v2833 = vrot.slane %v2415, 2
        %v2834 = vrot.slane %v2415, 4
        %v2835 = vrot.slane %v2415, 6
        %v2836 = vrot.slane %v2416, 2
        %v2837 = vrot.slane %v2416, 4
        %v2838 = vrot.slane %v2416, 6
        %v2839 = vrot.slane %v2417, 2
        %v2840 = vrot.slane %v2417, 4
        %v2841 = vrot.slane %v2417, 6
        %v2842 = vrot.slane %v2418, 2
        %v2843 = vrot.slane %v2418, 4
        %v2844 = vrot.slane %v2418, 6
        %v2845 = vrot.slane %v2419, 2
        %v2846 = vrot.slane %v2419, 4
        %v2847 = vrot.slane %v2419, 6
        %v2848 = vrot.slane %v2420, 2
        %v2849 = vrot.slane %v2420, 4
        %v2850 = vrot.slane %v2420, 6
        %v2851 = vrot.slane %v2421, 2
        %v2852 = vrot.slane %v2421, 4
        %v2853 = vrot.slane %v2421, 6
        %v2854 = vrot.slane %v2422, 2
        %v2855 = vrot.slane %v2422, 4
        %v2856 = vrot.slane %v2422, 6
        %v2857 = vrot.slane %v2423, 2
        %v2858 = vrot.slane %v2423, 4
        %v2859 = vrot.slane %v2423, 6
        %v2860 = vrot.slane %v2424, 2
        %v2861 = vrot.slane %v2424, 4
        %v2862 = vrot.slane %v2424, 6
        %v2863 = vrot.slane %v2425, 2
        %v2864 = vrot.slane %v2425, 4
        %v2865 = vrot.slane %v2425, 6
        %v2866 = vrot.slane %v2426, 2
        %v2867 = vrot.slane %v2426, 4
        %v2868 = vrot.slane %v2426, 6
        %v2869 = vrot.slane %v2427, 2
        %v2870 = vrot.slane %v2427, 4
        %v2871 = vrot.slane %v2427, 6
        %v2872 = vrot.slane %v2428, 2
        %v2873 = vrot.slane %v2428, 4
        %v2874 = vrot.slane %v2428, 6
        %v2875 = vrot.slane %v2429, 2
        %v2876 = vrot.slane %v2429, 4
        %v2877 = vrot.slane %v2429, 6
        %v2878 = vrot.slane %v2430, 2
        %v2879 = vrot.slane %v2430, 4
        %v2880 = vrot.slane %v2430, 6
        %v2881 = vrot.slane %v2431, 2
        %v2882 = vrot.slane %v2431, 4
        %v2883 = vrot.slane %v2431, 6
        %v2884 = vrot.slane %v2432, 2
        %v2885 = vrot.slane %v2432, 4
        %v2886 = vrot.slane %v2432, 6
        %v2887 = vrot.slane %v2433, 2
        %v2888 = vrot.slane %v2433, 4
        %v2889 = vrot.slane %v2433, 6
        %v2890 = vrot.slane %v2434, 2
        %v2891 = vrot.slane %v2434, 4
        %v2892 = vrot.slane %v2434, 6
        %v2893 = vrot.slane %v2435, 2
        %v2894 = vrot.slane %v2435, 4
        %v2895 = vrot.slane %v2435, 6
        %v2896 = vrot.slane %v2436, 2
        %v2897 = vrot.slane %v2436, 4
        %v2898 = vrot.slane %v2436, 6
        %v2899 = vrot.slane %v2437, 2
        %v2900 = vrot.slane %v2437, 4
        %v2901 = vrot.slane %v2437, 6
        %v2902 = vrot.slane %v2438, 2
        %v2903 = vrot.slane %v2438, 4
        %v2904 = vrot.slane %v2438, 6
        %v2905 = vrot.slane %v2439, 2
        %v2906 = vrot.slane %v2439, 4
        %v2907 = vrot.slane %v2439, 6
        %v2908 = vrot.slane %v2440, 2
        %v2909 = vrot.slane %v2440, 4
        %v2910 = vrot.slane %v2440, 6
        %v2911 = vrot.slane %v2441, 2
        %v2912 = vrot.slane %v2441, 4
        %v2913 = vrot.slane %v2441, 6
        %v2914 = vrot.slane %v2442, 2
        %v2915 = vrot.slane %v2442, 4
        %v2916 = vrot.slane %v2442, 6
        %v2917 = vrot.slane %v2443, 2
        %v2918 = vrot.slane %v2443, 4
        %v2919 = vrot.slane %v2443, 6
        %v2920 = vrot.slane %v2444, 2
        %v2921 = vrot.slane %v2444, 4
        %v2922 = vrot.slane %v2444, 6
        %v2923 = vrot.slane %v2445, 2
        %v2924 = vrot.slane %v2445, 4
        %v2925 = vrot.slane %v2445, 6
        %v2926 = vrot.slane %v2446, 2
        %v2927 = vrot.slane %v2446, 4
        %v2928 = vrot.slane %v2446, 6
        %v2929 = vrot.slane %v2447, 2
        %v2930 = vrot.slane %v2447, 4
        %v2931 = vrot.slane %v2447, 6
        %v2932 = vrot.slane %v2448, 2
        %v2933 = vrot.slane %v2448, 4
        %v2934 = vrot.slane %v2448, 6
        %v2935 = vrot.slane %v2449, 2
        %v2936 = vrot.slane %v2449, 4
        %v2937 = vrot.slane %v2449, 6
        %v2938 = vrot.slane %v2450, 2
        %v2939 = vrot.slane %v2450, 4
        %v2940 = vrot.slane %v2450, 6
        %v2941 = vrot.slane %v2451, 2
        %v2942 = vrot.slane %v2451, 4
        %v2943 = vrot.slane %v2451, 6
        %v2944 = vrot.slane %v2452, 2
        %v2945 = vrot.slane %v2452, 4
        %v2946 = vrot.slane %v2452, 6
        %v2947 = vrot.slane %v2453, 2
        %v2948 = vrot.slane %v2453, 4
        %v2949 = vrot.slane %v2453, 6
        %v2950 = vrot.slane %v2454, 2
        %v2951 = vrot.slane %v2454, 4
        %v2952 = vrot.slane %v2454, 6
        %v2953 = vrot.slane %v2455, 2
        %v2954 = vrot.slane %v2455, 4
        %v2955 = vrot.slane %v2455, 6
        %v2956 = vrot.slane %v2456, 2
        %v2957 = vrot.slane %v2456, 4
        %v2958 = vrot.slane %v2456, 6
        %v2959 = vrot.slane %v2457, 2
        %v2960 = vrot.slane %v2457, 4
        %v2961 = vrot.slane %v2457, 6
        %v2962 = vrot.slane %v2458, 2
        %v2963 = vrot.slane %v2458, 4
        %v2964 = vrot.slane %v2458, 6
        %v2965 = vrot.slane %v2459, 2
        %v2966 = vrot.slane %v2459, 4
        %v2967 = vrot.slane %v2459, 6
        %v2968 = vrot.slane %v2460, 2
        %v2969 = vrot.slane %v2460, 4
        %v2970 = vrot.slane %v2460, 6
        %v2971 = vrot.slane %v2461, 2
        %v2972 = vrot.slane %v2461, 4
        %v2973 = vrot.slane %v2461, 6
        %v2974 = vperm.slane %v2338, 1
        %v2975 = vperm.slane %v2602, 1
        %v2976 = vperm.slane %v2603, 1
        %v2977 = vperm.slane %v2604, 1
        %v2978 = vperm.slane %v2339, 1
        %v2979 = vperm.slane %v2605, 1
        %v2980 = vperm.slane %v2606, 1
        %v2981 = vperm.slane %v2607, 1
        %v2982 = vperm.slane %v2340, 1
        %v2983 = vperm.slane %v2608, 1
        %v2984 = vperm.slane %v2609, 1
        %v2985 = vperm.slane %v2610, 1
        %v2986 = vperm.slane %v2341, 1
        %v2987 = vperm.slane %v2611, 1
        %v2988 = vperm.slane %v2612, 1
        %v2989 = vperm.slane %v2613, 1
        %v2990 = vperm.slane %v2346, 1
        %v2991 = vperm.slane %v2626, 1
        %v2992 = vperm.slane %v2627, 1
        %v2993 = vperm.slane %v2628, 1
        %v2994 = vperm.slane %v2347, 1
        %v2995 = vperm.slane %v2629, 1
        %v2996 = vperm.slane %v2630, 1
        %v2997 = vperm.slane %v2631, 1
        %v2998 = vperm.slane %v2348, 1
        %v2999 = vperm.slane %v2632, 1
        %v3000 = vperm.slane %v2633, 1
        %v3001 = vperm.slane %v2634, 1
        %v3002 = vperm.slane %v2349, 1
        %v3003 = vperm.slane %v2635, 1
        %v3004 = vperm.slane %v2636, 1
        %v3005 = vperm.slane %v2637, 1
        %v3006 = vperm.slane %v2354, 1
        %v3007 = vperm.slane %v2650, 1
        %v3008 = vperm.slane %v2651, 1
        %v3009 = vperm.slane %v2652, 1
        %v3010 = vperm.slane %v2355, 1
        %v3011 = vperm.slane %v2653, 1
        %v3012 = vperm.slane %v2654, 1
        %v3013 = vperm.slane %v2655, 1
        %v3014 = vperm.slane %v2356, 1
        %v3015 = vperm.slane %v2656, 1
        %v3016 = vperm.slane %v2657, 1
        %v3017 = vperm.slane %v2658, 1
        %v3018 = vperm.slane %v2357, 1
        %v3019 = vperm.slane %v2659, 1
        %v3020 = vperm.slane %v2660, 1
        %v3021 = vperm.slane %v2661, 1
        %v3022 = vperm.slane %v2362, 1
        %v3023 = vperm.slane %v2674, 1
        %v3024 = vperm.slane %v2675, 1
        %v3025 = vperm.slane %v2676, 1
        %v3026 = vperm.slane %v2363, 1
        %v3027 = vperm.slane %v2677, 1
        %v3028 = vperm.slane %v2678, 1
        %v3029 = vperm.slane %v2679, 1
        %v3030 = vperm.slane %v2364, 1
        %v3031 = vperm.slane %v2680, 1
        %v3032 = vperm.slane %v2681, 1
        %v3033 = vperm.slane %v2682, 1
        %v3034 = vperm.slane %v2365, 1
        %v3035 = vperm.slane %v2683, 1
        %v3036 = vperm.slane %v2684, 1
        %v3037 = vperm.slane %v2685, 1
        %v3038 = vperm.slane %v2370, 1
        %v3039 = vperm.slane %v2698, 1
        %v3040 = vperm.slane %v2699, 1
        %v3041 = vperm.slane %v2700, 1
        %v3042 = vperm.slane %v2371, 1
        %v3043 = vperm.slane %v2701, 1
        %v3044 = vperm.slane %v2702, 1
        %v3045 = vperm.slane %v2703, 1
        %v3046 = vperm.slane %v2372, 1
        %v3047 = vperm.slane %v2704, 1
        %v3048 = vperm.slane %v2705, 1
        %v3049 = vperm.slane %v2706, 1
        %v3050 = vperm.slane %v2373, 1
        %v3051 = vperm.slane %v2707, 1
        %v3052 = vperm.slane %v2708, 1
        %v3053 = vperm.slane %v2709, 1
        %v3054 = vperm.slane %v2378, 1
        %v3055 = vperm.slane %v2722, 1
        %v3056 = vperm.slane %v2723, 1
        %v3057 = vperm.slane %v2724, 1
        %v3058 = vperm.slane %v2379, 1
        %v3059 = vperm.slane %v2725, 1
        %v3060 = vperm.slane %v2726, 1
        %v3061 = vperm.slane %v2727, 1
        %v3062 = vperm.slane %v2380, 1
        %v3063 = vperm.slane %v2728, 1
        %v3064 = vperm.slane %v2729, 1
        %v3065 = vperm.slane %v2730, 1
        %v3066 = vperm.slane %v2381, 1
        %v3067 = vperm.slane %v2731, 1
        %v3068 = vperm.slane %v2732, 1
        %v3069 = vperm.slane %v2733, 1
        %v3070 = vperm.slane %v2386, 1
        %v3071 = vperm.slane %v2746, 1
        %v3072 = vperm.slane %v2747, 1
        %v3073 = vperm.slane %v2748, 1
        %v3074 = vperm.slane %v2387, 1
        %v3075 = vperm.slane %v2749, 1
        %v3076 = vperm.slane %v2750, 1
        %v3077 = vperm.slane %v2751, 1
        %v3078 = vperm.slane %v2388, 1
        %v3079 = vperm.slane %v2752, 1
        %v3080 = vperm.slane %v2753, 1
        %v3081 = vperm.slane %v2754, 1
        %v3082 = vperm.slane %v2389, 1
        %v3083 = vperm.slane %v2755, 1
        %v3084 = vperm.slane %v2756, 1
        %v3085 = vperm.slane %v2757, 1
        %v3086 = vperm.slane %v2394, 1
        %v3087 = vperm.slane %v2770, 1
        %v3088 = vperm.slane %v2771, 1
        %v3089 = vperm.slane %v2772, 1
        %v3090 = vperm.slane %v2395, 1
        %v3091 = vperm.slane %v2773, 1
        %v3092 = vperm.slane %v2774, 1
        %v3093 = vperm.slane %v2775, 1
        %v3094 = vperm.slane %v2396, 1
        %v3095 = vperm.slane %v2776, 1
        %v3096 = vperm.slane %v2777, 1
        %v3097 = vperm.slane %v2778, 1
        %v3098 = vperm.slane %v2397, 1
        %v3099 = vperm.slane %v2779, 1
        %v3100 = vperm.slane %v2780, 1
        %v3101 = vperm.slane %v2781, 1
        %v3102 = vperm.slane %v2402, 1
        %v3103 = vperm.slane %v2794, 1
        %v3104 = vperm.slane %v2795, 1
        %v3105 = vperm.slane %v2796, 1
        %v3106 = vperm.slane %v2403, 1
        %v3107 = vperm.slane %v2797, 1
        %v3108 = vperm.slane %v2798, 1
        %v3109 = vperm.slane %v2799, 1
        %v3110 = vperm.slane %v2404, 1
        %v3111 = vperm.slane %v2800, 1
        %v3112 = vperm.slane %v2801, 1
        %v3113 = vperm.slane %v2802, 1
        %v3114 = vperm.slane %v2405, 1
        %v3115 = vperm.slane %v2803, 1
        %v3116 = vperm.slane %v2804, 1
        %v3117 = vperm.slane %v2805, 1
        %v3118 = vperm.slane %v2410, 1
        %v3119 = vperm.slane %v2818, 1
        %v3120 = vperm.slane %v2819, 1
        %v3121 = vperm.slane %v2820, 1
        %v3122 = vperm.slane %v2411, 1
        %v3123 = vperm.slane %v2821, 1
        %v3124 = vperm.slane %v2822, 1
        %v3125 = vperm.slane %v2823, 1
        %v3126 = vperm.slane %v2412, 1
        %v3127 = vperm.slane %v2824, 1
        %v3128 = vperm.slane %v2825, 1
        %v3129 = vperm.slane %v2826, 1
        %v3130 = vperm.slane %v2413, 1
        %v3131 = vperm.slane %v2827, 1
        %v3132 = vperm.slane %v2828, 1
        %v3133 = vperm.slane %v2829, 1
        %v3134 = vperm.slane %v2418, 1
        %v3135 = vperm.slane %v2842, 1
        %v3136 = vperm.slane %v2843, 1
        %v3137 = vperm.slane %v2844, 1
        %v3138 = vperm.slane %v2419, 1
        %v3139 = vperm.slane %v2845, 1
        %v3140 = vperm.slane %v2846, 1
        %v3141 = vperm.slane %v2847, 1
        %v3142 = vperm.slane %v2420, 1
        %v3143 = vperm.slane %v2848, 1
        %v3144 = vperm.slane %v2849, 1
        %v3145 = vperm.slane %v2850, 1
        %v3146 = vperm.slane %v2421, 1
        %v3147 = vperm.slane %v2851, 1
        %v3148 = vperm.slane %v2852, 1
        %v3149 = vperm.slane %v2853, 1
        %v3150 = vperm.slane %v2426, 1
        %v3151 = vperm.slane %v2866, 1
        %v3152 = vperm.slane %v2867, 1
        %v3153 = vperm.slane %v2868, 1
        %v3154 = vperm.slane %v2427, 1
        %v3155 = vperm.slane %v2869, 1
        %v3156 = vperm.slane %v2870, 1
        %v3157 = vperm.slane %v2871, 1
        %v3158 = vperm.slane %v2428, 1
        %v3159 = vperm.slane %v2872, 1
        %v3160 = vperm.slane %v2873, 1
        %v3161 = vperm.slane %v2874, 1
        %v3162 = vperm.slane %v2429, 1
        %v3163 = vperm.slane %v2875, 1
        %v3164 = vperm.slane %v2876, 1
        %v3165 = vperm.slane %v2877, 1
        %v3166 = vperm.slane %v2434, 1
        %v3167 = vperm.slane %v2890, 1
        %v3168 = vperm.slane %v2891, 1
        %v3169 = vperm.slane %v2892, 1
        %v3170 = vperm.slane %v2435, 1
        %v3171 = vperm.slane %v2893, 1
        %v3172 = vperm.slane %v2894, 1
        %v3173 = vperm.slane %v2895, 1
        %v3174 = vperm.slane %v2436, 1
        %v3175 = vperm.slane %v2896, 1
        %v3176 = vperm.slane %v2897, 1
        %v3177 = vperm.slane %v2898, 1
        %v3178 = vperm.slane %v2437, 1
        %v3179 = vperm.slane %v2899, 1
        %v3180 = vperm.slane %v2900, 1
        %v3181 = vperm.slane %v2901, 1
        %v3182 = vperm.slane %v2442, 1
        %v3183 = vperm.slane %v2914, 1
        %v3184 = vperm.slane %v2915, 1
        %v3185 = vperm.slane %v2916, 1
        %v3186 = vperm.slane %v2443, 1
        %v3187 = vperm.slane %v2917, 1
        %v3188 = vperm.slane %v2918, 1
        %v3189 = vperm.slane %v2919, 1
        %v3190 = vperm.slane %v2444, 1
        %v3191 = vperm.slane %v2920, 1
        %v3192 = vperm.slane %v2921, 1
        %v3193 = vperm.slane %v2922, 1
        %v3194 = vperm.slane %v2445, 1
        %v3195 = vperm.slane %v2923, 1
        %v3196 = vperm.slane %v2924, 1
        %v3197 = vperm.slane %v2925, 1
        %v3198 = vperm.slane %v2450, 1
        %v3199 = vperm.slane %v2938, 1
        %v3200 = vperm.slane %v2939, 1
        %v3201 = vperm.slane %v2940, 1
        %v3202 = vperm.slane %v2451, 1
        %v3203 = vperm.slane %v2941, 1
        %v3204 = vperm.slane %v2942, 1
        %v3205 = vperm.slane %v2943, 1
        %v3206 = vperm.slane %v2452, 1
        %v3207 = vperm.slane %v2944, 1
        %v3208 = vperm.slane %v2945, 1
        %v3209 = vperm.slane %v2946, 1
        %v3210 = vperm.slane %v2453, 1
        %v3211 = vperm.slane %v2947, 1
        %v3212 = vperm.slane %v2948, 1
        %v3213 = vperm.slane %v2949, 1
        %vm3214 = vcmask 1041409
        %v3215 = vsel %vm3214, %v2975, %v2974
        %vm3216 = vcmask 1042434
        %v3217 = vsel %vm3216, %v2976, %v3215
        %vm3218 = vcmask 1043459
        %v3219 = vsel %vm3218, %v2977, %v3217
        %vm3220 = vcmask 1044484
        %v3221 = vsel %vm3220, %v2978, %v3219
        %vm3222 = vcmask 1045509
        %v3223 = vsel %vm3222, %v2979, %v3221
        %vm3224 = vcmask 1046534
        %v3225 = vsel %vm3224, %v2980, %v3223
        %vm3226 = vcmask 1047559
        %v3227 = vsel %vm3226, %v2981, %v3225
        %v3228 = vsel %vm3214, %v2983, %v2982
        %v3229 = vsel %vm3216, %v2984, %v3228
        %v3230 = vsel %vm3218, %v2985, %v3229
        %v3231 = vsel %vm3220, %v2986, %v3230
        %v3232 = vsel %vm3222, %v2987, %v3231
        %v3233 = vsel %vm3224, %v2988, %v3232
        %v3234 = vsel %vm3226, %v2989, %v3233
        %v3235 = vsel %vm3214, %v2991, %v2990
        %v3236 = vsel %vm3216, %v2992, %v3235
        %v3237 = vsel %vm3218, %v2993, %v3236
        %v3238 = vsel %vm3220, %v2994, %v3237
        %v3239 = vsel %vm3222, %v2995, %v3238
        %v3240 = vsel %vm3224, %v2996, %v3239
        %v3241 = vsel %vm3226, %v2997, %v3240
        %v3242 = vsel %vm3214, %v2999, %v2998
        %v3243 = vsel %vm3216, %v3000, %v3242
        %v3244 = vsel %vm3218, %v3001, %v3243
        %v3245 = vsel %vm3220, %v3002, %v3244
        %v3246 = vsel %vm3222, %v3003, %v3245
        %v3247 = vsel %vm3224, %v3004, %v3246
        %v3248 = vsel %vm3226, %v3005, %v3247
        %v3249 = vsel %vm3214, %v3007, %v3006
        %v3250 = vsel %vm3216, %v3008, %v3249
        %v3251 = vsel %vm3218, %v3009, %v3250
        %v3252 = vsel %vm3220, %v3010, %v3251
        %v3253 = vsel %vm3222, %v3011, %v3252
        %v3254 = vsel %vm3224, %v3012, %v3253
        %v3255 = vsel %vm3226, %v3013, %v3254
        %v3256 = vsel %vm3214, %v3015, %v3014
        %v3257 = vsel %vm3216, %v3016, %v3256
        %v3258 = vsel %vm3218, %v3017, %v3257
        %v3259 = vsel %vm3220, %v3018, %v3258
        %v3260 = vsel %vm3222, %v3019, %v3259
        %v3261 = vsel %vm3224, %v3020, %v3260
        %v3262 = vsel %vm3226, %v3021, %v3261
        %v3263 = vsel %vm3214, %v3023, %v3022
        %v3264 = vsel %vm3216, %v3024, %v3263
        %v3265 = vsel %vm3218, %v3025, %v3264
        %v3266 = vsel %vm3220, %v3026, %v3265
        %v3267 = vsel %vm3222, %v3027, %v3266
        %v3268 = vsel %vm3224, %v3028, %v3267
        %v3269 = vsel %vm3226, %v3029, %v3268
        %v3270 = vsel %vm3214, %v3031, %v3030
        %v3271 = vsel %vm3216, %v3032, %v3270
        %v3272 = vsel %vm3218, %v3033, %v3271
        %v3273 = vsel %vm3220, %v3034, %v3272
        %v3274 = vsel %vm3222, %v3035, %v3273
        %v3275 = vsel %vm3224, %v3036, %v3274
        %v3276 = vsel %vm3226, %v3037, %v3275
        %v3277 = vsel %vm3214, %v3039, %v3038
        %v3278 = vsel %vm3216, %v3040, %v3277
        %v3279 = vsel %vm3218, %v3041, %v3278
        %v3280 = vsel %vm3220, %v3042, %v3279
        %v3281 = vsel %vm3222, %v3043, %v3280
        %v3282 = vsel %vm3224, %v3044, %v3281
        %v3283 = vsel %vm3226, %v3045, %v3282
        %v3284 = vsel %vm3214, %v3047, %v3046
        %v3285 = vsel %vm3216, %v3048, %v3284
        %v3286 = vsel %vm3218, %v3049, %v3285
        %v3287 = vsel %vm3220, %v3050, %v3286
        %v3288 = vsel %vm3222, %v3051, %v3287
        %v3289 = vsel %vm3224, %v3052, %v3288
        %v3290 = vsel %vm3226, %v3053, %v3289
        %v3291 = vsel %vm3214, %v3055, %v3054
        %v3292 = vsel %vm3216, %v3056, %v3291
        %v3293 = vsel %vm3218, %v3057, %v3292
        %v3294 = vsel %vm3220, %v3058, %v3293
        %v3295 = vsel %vm3222, %v3059, %v3294
        %v3296 = vsel %vm3224, %v3060, %v3295
        %v3297 = vsel %vm3226, %v3061, %v3296
        %v3298 = vsel %vm3214, %v3063, %v3062
        %v3299 = vsel %vm3216, %v3064, %v3298
        %v3300 = vsel %vm3218, %v3065, %v3299
        %v3301 = vsel %vm3220, %v3066, %v3300
        %v3302 = vsel %vm3222, %v3067, %v3301
        %v3303 = vsel %vm3224, %v3068, %v3302
        %v3304 = vsel %vm3226, %v3069, %v3303
        %v3305 = vsel %vm3214, %v3071, %v3070
        %v3306 = vsel %vm3216, %v3072, %v3305
        %v3307 = vsel %vm3218, %v3073, %v3306
        %v3308 = vsel %vm3220, %v3074, %v3307
        %v3309 = vsel %vm3222, %v3075, %v3308
        %v3310 = vsel %vm3224, %v3076, %v3309
        %v3311 = vsel %vm3226, %v3077, %v3310
        %v3312 = vsel %vm3214, %v3079, %v3078
        %v3313 = vsel %vm3216, %v3080, %v3312
        %v3314 = vsel %vm3218, %v3081, %v3313
        %v3315 = vsel %vm3220, %v3082, %v3314
        %v3316 = vsel %vm3222, %v3083, %v3315
        %v3317 = vsel %vm3224, %v3084, %v3316
        %v3318 = vsel %vm3226, %v3085, %v3317
        %v3319 = vsel %vm3214, %v3087, %v3086
        %v3320 = vsel %vm3216, %v3088, %v3319
        %v3321 = vsel %vm3218, %v3089, %v3320
        %v3322 = vsel %vm3220, %v3090, %v3321
        %v3323 = vsel %vm3222, %v3091, %v3322
        %v3324 = vsel %vm3224, %v3092, %v3323
        %v3325 = vsel %vm3226, %v3093, %v3324
        %v3326 = vsel %vm3214, %v3095, %v3094
        %v3327 = vsel %vm3216, %v3096, %v3326
        %v3328 = vsel %vm3218, %v3097, %v3327
        %v3329 = vsel %vm3220, %v3098, %v3328
        %v3330 = vsel %vm3222, %v3099, %v3329
        %v3331 = vsel %vm3224, %v3100, %v3330
        %v3332 = vsel %vm3226, %v3101, %v3331
        %v3333 = vsel %vm3214, %v3103, %v3102
        %v3334 = vsel %vm3216, %v3104, %v3333
        %v3335 = vsel %vm3218, %v3105, %v3334
        %v3336 = vsel %vm3220, %v3106, %v3335
        %v3337 = vsel %vm3222, %v3107, %v3336
        %v3338 = vsel %vm3224, %v3108, %v3337
        %v3339 = vsel %vm3226, %v3109, %v3338
        %v3340 = vsel %vm3214, %v3111, %v3110
        %v3341 = vsel %vm3216, %v3112, %v3340
        %v3342 = vsel %vm3218, %v3113, %v3341
        %v3343 = vsel %vm3220, %v3114, %v3342
        %v3344 = vsel %vm3222, %v3115, %v3343
        %v3345 = vsel %vm3224, %v3116, %v3344
        %v3346 = vsel %vm3226, %v3117, %v3345
        %v3347 = vsel %vm3214, %v3119, %v3118
        %v3348 = vsel %vm3216, %v3120, %v3347
        %v3349 = vsel %vm3218, %v3121, %v3348
        %v3350 = vsel %vm3220, %v3122, %v3349
        %v3351 = vsel %vm3222, %v3123, %v3350
        %v3352 = vsel %vm3224, %v3124, %v3351
        %v3353 = vsel %vm3226, %v3125, %v3352
        %v3354 = vsel %vm3214, %v3127, %v3126
        %v3355 = vsel %vm3216, %v3128, %v3354
        %v3356 = vsel %vm3218, %v3129, %v3355
        %v3357 = vsel %vm3220, %v3130, %v3356
        %v3358 = vsel %vm3222, %v3131, %v3357
        %v3359 = vsel %vm3224, %v3132, %v3358
        %v3360 = vsel %vm3226, %v3133, %v3359
        %v3361 = vsel %vm3214, %v3135, %v3134
        %v3362 = vsel %vm3216, %v3136, %v3361
        %v3363 = vsel %vm3218, %v3137, %v3362
        %v3364 = vsel %vm3220, %v3138, %v3363
        %v3365 = vsel %vm3222, %v3139, %v3364
        %v3366 = vsel %vm3224, %v3140, %v3365
        %v3367 = vsel %vm3226, %v3141, %v3366
        %v3368 = vsel %vm3214, %v3143, %v3142
        %v3369 = vsel %vm3216, %v3144, %v3368
        %v3370 = vsel %vm3218, %v3145, %v3369
        %v3371 = vsel %vm3220, %v3146, %v3370
        %v3372 = vsel %vm3222, %v3147, %v3371
        %v3373 = vsel %vm3224, %v3148, %v3372
        %v3374 = vsel %vm3226, %v3149, %v3373
        %v3375 = vsel %vm3214, %v3151, %v3150
        %v3376 = vsel %vm3216, %v3152, %v3375
        %v3377 = vsel %vm3218, %v3153, %v3376
        %v3378 = vsel %vm3220, %v3154, %v3377
        %v3379 = vsel %vm3222, %v3155, %v3378
        %v3380 = vsel %vm3224, %v3156, %v3379
        %v3381 = vsel %vm3226, %v3157, %v3380
        %v3382 = vsel %vm3214, %v3159, %v3158
        %v3383 = vsel %vm3216, %v3160, %v3382
        %v3384 = vsel %vm3218, %v3161, %v3383
        %v3385 = vsel %vm3220, %v3162, %v3384
        %v3386 = vsel %vm3222, %v3163, %v3385
        %v3387 = vsel %vm3224, %v3164, %v3386
        %v3388 = vsel %vm3226, %v3165, %v3387
        %v3389 = vsel %vm3214, %v3167, %v3166
        %v3390 = vsel %vm3216, %v3168, %v3389
        %v3391 = vsel %vm3218, %v3169, %v3390
        %v3392 = vsel %vm3220, %v3170, %v3391
        %v3393 = vsel %vm3222, %v3171, %v3392
        %v3394 = vsel %vm3224, %v3172, %v3393
        %v3395 = vsel %vm3226, %v3173, %v3394
        %v3396 = vsel %vm3214, %v3175, %v3174
        %v3397 = vsel %vm3216, %v3176, %v3396
        %v3398 = vsel %vm3218, %v3177, %v3397
        %v3399 = vsel %vm3220, %v3178, %v3398
        %v3400 = vsel %vm3222, %v3179, %v3399
        %v3401 = vsel %vm3224, %v3180, %v3400
        %v3402 = vsel %vm3226, %v3181, %v3401
        %v3403 = vsel %vm3214, %v3183, %v3182
        %v3404 = vsel %vm3216, %v3184, %v3403
        %v3405 = vsel %vm3218, %v3185, %v3404
        %v3406 = vsel %vm3220, %v3186, %v3405
        %v3407 = vsel %vm3222, %v3187, %v3406
        %v3408 = vsel %vm3224, %v3188, %v3407
        %v3409 = vsel %vm3226, %v3189, %v3408
        %v3410 = vsel %vm3214, %v3191, %v3190
        %v3411 = vsel %vm3216, %v3192, %v3410
        %v3412 = vsel %vm3218, %v3193, %v3411
        %v3413 = vsel %vm3220, %v3194, %v3412
        %v3414 = vsel %vm3222, %v3195, %v3413
        %v3415 = vsel %vm3224, %v3196, %v3414
        %v3416 = vsel %vm3226, %v3197, %v3415
        %v3417 = vsel %vm3214, %v3199, %v3198
        %v3418 = vsel %vm3216, %v3200, %v3417
        %v3419 = vsel %vm3218, %v3201, %v3418
        %v3420 = vsel %vm3220, %v3202, %v3419
        %v3421 = vsel %vm3222, %v3203, %v3420
        %v3422 = vsel %vm3224, %v3204, %v3421
        %v3423 = vsel %vm3226, %v3205, %v3422
        %v3424 = vsel %vm3214, %v3207, %v3206
        %v3425 = vsel %vm3216, %v3208, %v3424
        %v3426 = vsel %vm3218, %v3209, %v3425
        %v3427 = vsel %vm3220, %v3210, %v3426
        %v3428 = vsel %vm3222, %v3211, %v3427
        %v3429 = vsel %vm3224, %v3212, %v3428
        %v3430 = vsel %vm3226, %v3213, %v3429
        %v3462 = vrot.slane 0.0, 7
        %v3463 = vsel %vm1669, %v3462, %v3462
        %v3464 = vrot.slane %v3227, 7
        %v3465 = vrot.slane %v3234, 7
        %v3466 = vsel %vm1669, %v3464, %v3465
        %v3467 = vrot.slane %v3241, 7
        %v3468 = vrot.slane %v3248, 7
        %v3469 = vsel %vm1669, %v3467, %v3468
        %v3470 = vrot.slane %v3255, 7
        %v3471 = vrot.slane %v3262, 7
        %v3472 = vsel %vm1669, %v3470, %v3471
        %v3473 = vrot.slane %v3269, 7
        %v3474 = vrot.slane %v3276, 7
        %v3475 = vsel %vm1669, %v3473, %v3474
        %v3476 = vrot.slane %v3283, 7
        %v3477 = vrot.slane %v3290, 7
        %v3478 = vsel %vm1669, %v3476, %v3477
        %v3479 = vrot.slane %v3297, 7
        %v3480 = vrot.slane %v3304, 7
        %v3481 = vsel %vm1669, %v3479, %v3480
        %v3482 = vrot.slane %v3311, 7
        %v3483 = vrot.slane %v3318, 7
        %v3484 = vsel %vm1669, %v3482, %v3483
        %v3485 = vrot.slane %v3325, 7
        %v3486 = vrot.slane %v3332, 7
        %v3487 = vsel %vm1669, %v3485, %v3486
        %v3488 = vrot.slane %v3339, 7
        %v3489 = vrot.slane %v3346, 7
        %v3490 = vsel %vm1669, %v3488, %v3489
        %v3491 = vrot.slane %v3353, 7
        %v3492 = vrot.slane %v3360, 7
        %v3493 = vsel %vm1669, %v3491, %v3492
        %v3494 = vrot.slane %v3367, 7
        %v3495 = vrot.slane %v3374, 7
        %v3496 = vsel %vm1669, %v3494, %v3495
        %v3497 = vrot.slane %v3381, 7
        %v3498 = vrot.slane %v3388, 7
        %v3499 = vsel %vm1669, %v3497, %v3498
        %v3500 = vrot.slane %v3395, 7
        %v3501 = vrot.slane %v3402, 7
        %v3502 = vsel %vm1669, %v3500, %v3501
        %v3503 = vrot.slane %v3409, 7
        %v3504 = vrot.slane %v3416, 7
        %v3505 = vsel %vm1669, %v3503, %v3504
        %v3506 = vrot.slane %v3423, 7
        %v3507 = vrot.slane %v3430, 7
        %v3508 = vsel %vm1669, %v3506, %v3507
        %v3541 = vsel %vm1669, 0.0, %v3462
        %v3542 = vsel %vm1669, 0.0, %v3464
        %v3543 = vsel %vm1669, 0.0, %v3467
        %v3544 = vsel %vm1669, 0.0, %v3470
        %v3545 = vsel %vm1669, 0.0, %v3473
        %v3546 = vsel %vm1669, 0.0, %v3476
        %v3547 = vsel %vm1669, 0.0, %v3479
        %v3548 = vsel %vm1669, 0.0, %v3482
        %v3549 = vsel %vm1669, 0.0, %v3485
        %v3550 = vsel %vm1669, 0.0, %v3488
        %v3551 = vsel %vm1669, 0.0, %v3491
        %v3552 = vsel %vm1669, 0.0, %v3494
        %v3553 = vsel %vm1669, 0.0, %v3497
        %v3554 = vsel %vm1669, 0.0, %v3500
        %v3555 = vsel %vm1669, 0.0, %v3503
        %v3556 = vsel %vm1669, 0.0, %v3506
        %v3557 = vperm.slane %v2338, 0
        %v3558 = vperm.slane %v2602, 0
        %v3559 = vperm.slane %v2603, 0
        %v3560 = vperm.slane %v2604, 0
        %v3561 = vperm.slane %v2339, 0
        %v3562 = vperm.slane %v2605, 0
        %v3563 = vperm.slane %v2606, 0
        %v3564 = vperm.slane %v2607, 0
        %v3565 = vperm.slane %v2340, 0
        %v3566 = vperm.slane %v2608, 0
        %v3567 = vperm.slane %v2609, 0
        %v3568 = vperm.slane %v2610, 0
        %v3569 = vperm.slane %v2341, 0
        %v3570 = vperm.slane %v2611, 0
        %v3571 = vperm.slane %v2612, 0
        %v3572 = vperm.slane %v2613, 0
        %v3573 = vperm.slane %v2346, 0
        %v3574 = vperm.slane %v2626, 0
        %v3575 = vperm.slane %v2627, 0
        %v3576 = vperm.slane %v2628, 0
        %v3577 = vperm.slane %v2347, 0
        %v3578 = vperm.slane %v2629, 0
        %v3579 = vperm.slane %v2630, 0
        %v3580 = vperm.slane %v2631, 0
        %v3581 = vperm.slane %v2348, 0
        %v3582 = vperm.slane %v2632, 0
        %v3583 = vperm.slane %v2633, 0
        %v3584 = vperm.slane %v2634, 0
        %v3585 = vperm.slane %v2349, 0
        %v3586 = vperm.slane %v2635, 0
        %v3587 = vperm.slane %v2636, 0
        %v3588 = vperm.slane %v2637, 0
        %v3589 = vperm.slane %v2354, 0
        %v3590 = vperm.slane %v2650, 0
        %v3591 = vperm.slane %v2651, 0
        %v3592 = vperm.slane %v2652, 0
        %v3593 = vperm.slane %v2355, 0
        %v3594 = vperm.slane %v2653, 0
        %v3595 = vperm.slane %v2654, 0
        %v3596 = vperm.slane %v2655, 0
        %v3597 = vperm.slane %v2356, 0
        %v3598 = vperm.slane %v2656, 0
        %v3599 = vperm.slane %v2657, 0
        %v3600 = vperm.slane %v2658, 0
        %v3601 = vperm.slane %v2357, 0
        %v3602 = vperm.slane %v2659, 0
        %v3603 = vperm.slane %v2660, 0
        %v3604 = vperm.slane %v2661, 0
        %v3605 = vperm.slane %v2362, 0
        %v3606 = vperm.slane %v2674, 0
        %v3607 = vperm.slane %v2675, 0
        %v3608 = vperm.slane %v2676, 0
        %v3609 = vperm.slane %v2363, 0
        %v3610 = vperm.slane %v2677, 0
        %v3611 = vperm.slane %v2678, 0
        %v3612 = vperm.slane %v2679, 0
        %v3613 = vperm.slane %v2364, 0
        %v3614 = vperm.slane %v2680, 0
        %v3615 = vperm.slane %v2681, 0
        %v3616 = vperm.slane %v2682, 0
        %v3617 = vperm.slane %v2365, 0
        %v3618 = vperm.slane %v2683, 0
        %v3619 = vperm.slane %v2684, 0
        %v3620 = vperm.slane %v2685, 0
        %v3621 = vperm.slane %v2370, 0
        %v3622 = vperm.slane %v2698, 0
        %v3623 = vperm.slane %v2699, 0
        %v3624 = vperm.slane %v2700, 0
        %v3625 = vperm.slane %v2371, 0
        %v3626 = vperm.slane %v2701, 0
        %v3627 = vperm.slane %v2702, 0
        %v3628 = vperm.slane %v2703, 0
        %v3629 = vperm.slane %v2372, 0
        %v3630 = vperm.slane %v2704, 0
        %v3631 = vperm.slane %v2705, 0
        %v3632 = vperm.slane %v2706, 0
        %v3633 = vperm.slane %v2373, 0
        %v3634 = vperm.slane %v2707, 0
        %v3635 = vperm.slane %v2708, 0
        %v3636 = vperm.slane %v2709, 0
        %v3637 = vperm.slane %v2378, 0
        %v3638 = vperm.slane %v2722, 0
        %v3639 = vperm.slane %v2723, 0
        %v3640 = vperm.slane %v2724, 0
        %v3641 = vperm.slane %v2379, 0
        %v3642 = vperm.slane %v2725, 0
        %v3643 = vperm.slane %v2726, 0
        %v3644 = vperm.slane %v2727, 0
        %v3645 = vperm.slane %v2380, 0
        %v3646 = vperm.slane %v2728, 0
        %v3647 = vperm.slane %v2729, 0
        %v3648 = vperm.slane %v2730, 0
        %v3649 = vperm.slane %v2381, 0
        %v3650 = vperm.slane %v2731, 0
        %v3651 = vperm.slane %v2732, 0
        %v3652 = vperm.slane %v2733, 0
        %v3653 = vperm.slane %v2386, 0
        %v3654 = vperm.slane %v2746, 0
        %v3655 = vperm.slane %v2747, 0
        %v3656 = vperm.slane %v2748, 0
        %v3657 = vperm.slane %v2387, 0
        %v3658 = vperm.slane %v2749, 0
        %v3659 = vperm.slane %v2750, 0
        %v3660 = vperm.slane %v2751, 0
        %v3661 = vperm.slane %v2388, 0
        %v3662 = vperm.slane %v2752, 0
        %v3663 = vperm.slane %v2753, 0
        %v3664 = vperm.slane %v2754, 0
        %v3665 = vperm.slane %v2389, 0
        %v3666 = vperm.slane %v2755, 0
        %v3667 = vperm.slane %v2756, 0
        %v3668 = vperm.slane %v2757, 0
        %v3669 = vperm.slane %v2394, 0
        %v3670 = vperm.slane %v2770, 0
        %v3671 = vperm.slane %v2771, 0
        %v3672 = vperm.slane %v2772, 0
        %v3673 = vperm.slane %v2395, 0
        %v3674 = vperm.slane %v2773, 0
        %v3675 = vperm.slane %v2774, 0
        %v3676 = vperm.slane %v2775, 0
        %v3677 = vperm.slane %v2396, 0
        %v3678 = vperm.slane %v2776, 0
        %v3679 = vperm.slane %v2777, 0
        %v3680 = vperm.slane %v2778, 0
        %v3681 = vperm.slane %v2397, 0
        %v3682 = vperm.slane %v2779, 0
        %v3683 = vperm.slane %v2780, 0
        %v3684 = vperm.slane %v2781, 0
        %v3685 = vperm.slane %v2402, 0
        %v3686 = vperm.slane %v2794, 0
        %v3687 = vperm.slane %v2795, 0
        %v3688 = vperm.slane %v2796, 0
        %v3689 = vperm.slane %v2403, 0
        %v3690 = vperm.slane %v2797, 0
        %v3691 = vperm.slane %v2798, 0
        %v3692 = vperm.slane %v2799, 0
        %v3693 = vperm.slane %v2404, 0
        %v3694 = vperm.slane %v2800, 0
        %v3695 = vperm.slane %v2801, 0
        %v3696 = vperm.slane %v2802, 0
        %v3697 = vperm.slane %v2405, 0
        %v3698 = vperm.slane %v2803, 0
        %v3699 = vperm.slane %v2804, 0
        %v3700 = vperm.slane %v2805, 0
        %v3701 = vperm.slane %v2410, 0
        %v3702 = vperm.slane %v2818, 0
        %v3703 = vperm.slane %v2819, 0
        %v3704 = vperm.slane %v2820, 0
        %v3705 = vperm.slane %v2411, 0
        %v3706 = vperm.slane %v2821, 0
        %v3707 = vperm.slane %v2822, 0
        %v3708 = vperm.slane %v2823, 0
        %v3709 = vperm.slane %v2412, 0
        %v3710 = vperm.slane %v2824, 0
        %v3711 = vperm.slane %v2825, 0
        %v3712 = vperm.slane %v2826, 0
        %v3713 = vperm.slane %v2413, 0
        %v3714 = vperm.slane %v2827, 0
        %v3715 = vperm.slane %v2828, 0
        %v3716 = vperm.slane %v2829, 0
        %v3717 = vperm.slane %v2418, 0
        %v3718 = vperm.slane %v2842, 0
        %v3719 = vperm.slane %v2843, 0
        %v3720 = vperm.slane %v2844, 0
        %v3721 = vperm.slane %v2419, 0
        %v3722 = vperm.slane %v2845, 0
        %v3723 = vperm.slane %v2846, 0
        %v3724 = vperm.slane %v2847, 0
        %v3725 = vperm.slane %v2420, 0
        %v3726 = vperm.slane %v2848, 0
        %v3727 = vperm.slane %v2849, 0
        %v3728 = vperm.slane %v2850, 0
        %v3729 = vperm.slane %v2421, 0
        %v3730 = vperm.slane %v2851, 0
        %v3731 = vperm.slane %v2852, 0
        %v3732 = vperm.slane %v2853, 0
        %v3733 = vperm.slane %v2426, 0
        %v3734 = vperm.slane %v2866, 0
        %v3735 = vperm.slane %v2867, 0
        %v3736 = vperm.slane %v2868, 0
        %v3737 = vperm.slane %v2427, 0
        %v3738 = vperm.slane %v2869, 0
        %v3739 = vperm.slane %v2870, 0
        %v3740 = vperm.slane %v2871, 0
        %v3741 = vperm.slane %v2428, 0
        %v3742 = vperm.slane %v2872, 0
        %v3743 = vperm.slane %v2873, 0
        %v3744 = vperm.slane %v2874, 0
        %v3745 = vperm.slane %v2429, 0
        %v3746 = vperm.slane %v2875, 0
        %v3747 = vperm.slane %v2876, 0
        %v3748 = vperm.slane %v2877, 0
        %v3749 = vperm.slane %v2434, 0
        %v3750 = vperm.slane %v2890, 0
        %v3751 = vperm.slane %v2891, 0
        %v3752 = vperm.slane %v2892, 0
        %v3753 = vperm.slane %v2435, 0
        %v3754 = vperm.slane %v2893, 0
        %v3755 = vperm.slane %v2894, 0
        %v3756 = vperm.slane %v2895, 0
        %v3757 = vperm.slane %v2436, 0
        %v3758 = vperm.slane %v2896, 0
        %v3759 = vperm.slane %v2897, 0
        %v3760 = vperm.slane %v2898, 0
        %v3761 = vperm.slane %v2437, 0
        %v3762 = vperm.slane %v2899, 0
        %v3763 = vperm.slane %v2900, 0
        %v3764 = vperm.slane %v2901, 0
        %v3765 = vperm.slane %v2442, 0
        %v3766 = vperm.slane %v2914, 0
        %v3767 = vperm.slane %v2915, 0
        %v3768 = vperm.slane %v2916, 0
        %v3769 = vperm.slane %v2443, 0
        %v3770 = vperm.slane %v2917, 0
        %v3771 = vperm.slane %v2918, 0
        %v3772 = vperm.slane %v2919, 0
        %v3773 = vperm.slane %v2444, 0
        %v3774 = vperm.slane %v2920, 0
        %v3775 = vperm.slane %v2921, 0
        %v3776 = vperm.slane %v2922, 0
        %v3777 = vperm.slane %v2445, 0
        %v3778 = vperm.slane %v2923, 0
        %v3779 = vperm.slane %v2924, 0
        %v3780 = vperm.slane %v2925, 0
        %v3781 = vperm.slane %v2450, 0
        %v3782 = vperm.slane %v2938, 0
        %v3783 = vperm.slane %v2939, 0
        %v3784 = vperm.slane %v2940, 0
        %v3785 = vperm.slane %v2451, 0
        %v3786 = vperm.slane %v2941, 0
        %v3787 = vperm.slane %v2942, 0
        %v3788 = vperm.slane %v2943, 0
        %v3789 = vperm.slane %v2452, 0
        %v3790 = vperm.slane %v2944, 0
        %v3791 = vperm.slane %v2945, 0
        %v3792 = vperm.slane %v2946, 0
        %v3793 = vperm.slane %v2453, 0
        %v3794 = vperm.slane %v2947, 0
        %v3795 = vperm.slane %v2948, 0
        %v3796 = vperm.slane %v2949, 0
        %v3797 = vsel %vm3214, %v3558, %v3557
        %v3798 = vsel %vm3216, %v3559, %v3797
        %v3799 = vsel %vm3218, %v3560, %v3798
        %v3800 = vsel %vm3220, %v3561, %v3799
        %v3801 = vsel %vm3222, %v3562, %v3800
        %v3802 = vsel %vm3224, %v3563, %v3801
        %v3803 = vsel %vm3226, %v3564, %v3802
        %v3804 = vsel %vm3214, %v3566, %v3565
        %v3805 = vsel %vm3216, %v3567, %v3804
        %v3806 = vsel %vm3218, %v3568, %v3805
        %v3807 = vsel %vm3220, %v3569, %v3806
        %v3808 = vsel %vm3222, %v3570, %v3807
        %v3809 = vsel %vm3224, %v3571, %v3808
        %v3810 = vsel %vm3226, %v3572, %v3809
        %v3811 = vsel %vm3214, %v3574, %v3573
        %v3812 = vsel %vm3216, %v3575, %v3811
        %v3813 = vsel %vm3218, %v3576, %v3812
        %v3814 = vsel %vm3220, %v3577, %v3813
        %v3815 = vsel %vm3222, %v3578, %v3814
        %v3816 = vsel %vm3224, %v3579, %v3815
        %v3817 = vsel %vm3226, %v3580, %v3816
        %v3818 = vsel %vm3214, %v3582, %v3581
        %v3819 = vsel %vm3216, %v3583, %v3818
        %v3820 = vsel %vm3218, %v3584, %v3819
        %v3821 = vsel %vm3220, %v3585, %v3820
        %v3822 = vsel %vm3222, %v3586, %v3821
        %v3823 = vsel %vm3224, %v3587, %v3822
        %v3824 = vsel %vm3226, %v3588, %v3823
        %v3825 = vsel %vm3214, %v3590, %v3589
        %v3826 = vsel %vm3216, %v3591, %v3825
        %v3827 = vsel %vm3218, %v3592, %v3826
        %v3828 = vsel %vm3220, %v3593, %v3827
        %v3829 = vsel %vm3222, %v3594, %v3828
        %v3830 = vsel %vm3224, %v3595, %v3829
        %v3831 = vsel %vm3226, %v3596, %v3830
        %v3832 = vsel %vm3214, %v3598, %v3597
        %v3833 = vsel %vm3216, %v3599, %v3832
        %v3834 = vsel %vm3218, %v3600, %v3833
        %v3835 = vsel %vm3220, %v3601, %v3834
        %v3836 = vsel %vm3222, %v3602, %v3835
        %v3837 = vsel %vm3224, %v3603, %v3836
        %v3838 = vsel %vm3226, %v3604, %v3837
        %v3839 = vsel %vm3214, %v3606, %v3605
        %v3840 = vsel %vm3216, %v3607, %v3839
        %v3841 = vsel %vm3218, %v3608, %v3840
        %v3842 = vsel %vm3220, %v3609, %v3841
        %v3843 = vsel %vm3222, %v3610, %v3842
        %v3844 = vsel %vm3224, %v3611, %v3843
        %v3845 = vsel %vm3226, %v3612, %v3844
        %v3846 = vsel %vm3214, %v3614, %v3613
        %v3847 = vsel %vm3216, %v3615, %v3846
        %v3848 = vsel %vm3218, %v3616, %v3847
        %v3849 = vsel %vm3220, %v3617, %v3848
        %v3850 = vsel %vm3222, %v3618, %v3849
        %v3851 = vsel %vm3224, %v3619, %v3850
        %v3852 = vsel %vm3226, %v3620, %v3851
        %v3853 = vsel %vm3214, %v3622, %v3621
        %v3854 = vsel %vm3216, %v3623, %v3853
        %v3855 = vsel %vm3218, %v3624, %v3854
        %v3856 = vsel %vm3220, %v3625, %v3855
        %v3857 = vsel %vm3222, %v3626, %v3856
        %v3858 = vsel %vm3224, %v3627, %v3857
        %v3859 = vsel %vm3226, %v3628, %v3858
        %v3860 = vsel %vm3214, %v3630, %v3629
        %v3861 = vsel %vm3216, %v3631, %v3860
        %v3862 = vsel %vm3218, %v3632, %v3861
        %v3863 = vsel %vm3220, %v3633, %v3862
        %v3864 = vsel %vm3222, %v3634, %v3863
        %v3865 = vsel %vm3224, %v3635, %v3864
        %v3866 = vsel %vm3226, %v3636, %v3865
        %v3867 = vsel %vm3214, %v3638, %v3637
        %v3868 = vsel %vm3216, %v3639, %v3867
        %v3869 = vsel %vm3218, %v3640, %v3868
        %v3870 = vsel %vm3220, %v3641, %v3869
        %v3871 = vsel %vm3222, %v3642, %v3870
        %v3872 = vsel %vm3224, %v3643, %v3871
        %v3873 = vsel %vm3226, %v3644, %v3872
        %v3874 = vsel %vm3214, %v3646, %v3645
        %v3875 = vsel %vm3216, %v3647, %v3874
        %v3876 = vsel %vm3218, %v3648, %v3875
        %v3877 = vsel %vm3220, %v3649, %v3876
        %v3878 = vsel %vm3222, %v3650, %v3877
        %v3879 = vsel %vm3224, %v3651, %v3878
        %v3880 = vsel %vm3226, %v3652, %v3879
        %v3881 = vsel %vm3214, %v3654, %v3653
        %v3882 = vsel %vm3216, %v3655, %v3881
        %v3883 = vsel %vm3218, %v3656, %v3882
        %v3884 = vsel %vm3220, %v3657, %v3883
        %v3885 = vsel %vm3222, %v3658, %v3884
        %v3886 = vsel %vm3224, %v3659, %v3885
        %v3887 = vsel %vm3226, %v3660, %v3886
        %v3888 = vsel %vm3214, %v3662, %v3661
        %v3889 = vsel %vm3216, %v3663, %v3888
        %v3890 = vsel %vm3218, %v3664, %v3889
        %v3891 = vsel %vm3220, %v3665, %v3890
        %v3892 = vsel %vm3222, %v3666, %v3891
        %v3893 = vsel %vm3224, %v3667, %v3892
        %v3894 = vsel %vm3226, %v3668, %v3893
        %v3895 = vsel %vm3214, %v3670, %v3669
        %v3896 = vsel %vm3216, %v3671, %v3895
        %v3897 = vsel %vm3218, %v3672, %v3896
        %v3898 = vsel %vm3220, %v3673, %v3897
        %v3899 = vsel %vm3222, %v3674, %v3898
        %v3900 = vsel %vm3224, %v3675, %v3899
        %v3901 = vsel %vm3226, %v3676, %v3900
        %v3902 = vsel %vm3214, %v3678, %v3677
        %v3903 = vsel %vm3216, %v3679, %v3902
        %v3904 = vsel %vm3218, %v3680, %v3903
        %v3905 = vsel %vm3220, %v3681, %v3904
        %v3906 = vsel %vm3222, %v3682, %v3905
        %v3907 = vsel %vm3224, %v3683, %v3906
        %v3908 = vsel %vm3226, %v3684, %v3907
        %v3909 = vsel %vm3214, %v3686, %v3685
        %v3910 = vsel %vm3216, %v3687, %v3909
        %v3911 = vsel %vm3218, %v3688, %v3910
        %v3912 = vsel %vm3220, %v3689, %v3911
        %v3913 = vsel %vm3222, %v3690, %v3912
        %v3914 = vsel %vm3224, %v3691, %v3913
        %v3915 = vsel %vm3226, %v3692, %v3914
        %v3916 = vsel %vm3214, %v3694, %v3693
        %v3917 = vsel %vm3216, %v3695, %v3916
        %v3918 = vsel %vm3218, %v3696, %v3917
        %v3919 = vsel %vm3220, %v3697, %v3918
        %v3920 = vsel %vm3222, %v3698, %v3919
        %v3921 = vsel %vm3224, %v3699, %v3920
        %v3922 = vsel %vm3226, %v3700, %v3921
        %v3923 = vsel %vm3214, %v3702, %v3701
        %v3924 = vsel %vm3216, %v3703, %v3923
        %v3925 = vsel %vm3218, %v3704, %v3924
        %v3926 = vsel %vm3220, %v3705, %v3925
        %v3927 = vsel %vm3222, %v3706, %v3926
        %v3928 = vsel %vm3224, %v3707, %v3927
        %v3929 = vsel %vm3226, %v3708, %v3928
        %v3930 = vsel %vm3214, %v3710, %v3709
        %v3931 = vsel %vm3216, %v3711, %v3930
        %v3932 = vsel %vm3218, %v3712, %v3931
        %v3933 = vsel %vm3220, %v3713, %v3932
        %v3934 = vsel %vm3222, %v3714, %v3933
        %v3935 = vsel %vm3224, %v3715, %v3934
        %v3936 = vsel %vm3226, %v3716, %v3935
        %v3937 = vsel %vm3214, %v3718, %v3717
        %v3938 = vsel %vm3216, %v3719, %v3937
        %v3939 = vsel %vm3218, %v3720, %v3938
        %v3940 = vsel %vm3220, %v3721, %v3939
        %v3941 = vsel %vm3222, %v3722, %v3940
        %v3942 = vsel %vm3224, %v3723, %v3941
        %v3943 = vsel %vm3226, %v3724, %v3942
        %v3944 = vsel %vm3214, %v3726, %v3725
        %v3945 = vsel %vm3216, %v3727, %v3944
        %v3946 = vsel %vm3218, %v3728, %v3945
        %v3947 = vsel %vm3220, %v3729, %v3946
        %v3948 = vsel %vm3222, %v3730, %v3947
        %v3949 = vsel %vm3224, %v3731, %v3948
        %v3950 = vsel %vm3226, %v3732, %v3949
        %v3951 = vsel %vm3214, %v3734, %v3733
        %v3952 = vsel %vm3216, %v3735, %v3951
        %v3953 = vsel %vm3218, %v3736, %v3952
        %v3954 = vsel %vm3220, %v3737, %v3953
        %v3955 = vsel %vm3222, %v3738, %v3954
        %v3956 = vsel %vm3224, %v3739, %v3955
        %v3957 = vsel %vm3226, %v3740, %v3956
        %v3958 = vsel %vm3214, %v3742, %v3741
        %v3959 = vsel %vm3216, %v3743, %v3958
        %v3960 = vsel %vm3218, %v3744, %v3959
        %v3961 = vsel %vm3220, %v3745, %v3960
        %v3962 = vsel %vm3222, %v3746, %v3961
        %v3963 = vsel %vm3224, %v3747, %v3962
        %v3964 = vsel %vm3226, %v3748, %v3963
        %v3965 = vsel %vm3214, %v3750, %v3749
        %v3966 = vsel %vm3216, %v3751, %v3965
        %v3967 = vsel %vm3218, %v3752, %v3966
        %v3968 = vsel %vm3220, %v3753, %v3967
        %v3969 = vsel %vm3222, %v3754, %v3968
        %v3970 = vsel %vm3224, %v3755, %v3969
        %v3971 = vsel %vm3226, %v3756, %v3970
        %v3972 = vsel %vm3214, %v3758, %v3757
        %v3973 = vsel %vm3216, %v3759, %v3972
        %v3974 = vsel %vm3218, %v3760, %v3973
        %v3975 = vsel %vm3220, %v3761, %v3974
        %v3976 = vsel %vm3222, %v3762, %v3975
        %v3977 = vsel %vm3224, %v3763, %v3976
        %v3978 = vsel %vm3226, %v3764, %v3977
        %v3979 = vsel %vm3214, %v3766, %v3765
        %v3980 = vsel %vm3216, %v3767, %v3979
        %v3981 = vsel %vm3218, %v3768, %v3980
        %v3982 = vsel %vm3220, %v3769, %v3981
        %v3983 = vsel %vm3222, %v3770, %v3982
        %v3984 = vsel %vm3224, %v3771, %v3983
        %v3985 = vsel %vm3226, %v3772, %v3984
        %v3986 = vsel %vm3214, %v3774, %v3773
        %v3987 = vsel %vm3216, %v3775, %v3986
        %v3988 = vsel %vm3218, %v3776, %v3987
        %v3989 = vsel %vm3220, %v3777, %v3988
        %v3990 = vsel %vm3222, %v3778, %v3989
        %v3991 = vsel %vm3224, %v3779, %v3990
        %v3992 = vsel %vm3226, %v3780, %v3991
        %v3993 = vsel %vm3214, %v3782, %v3781
        %v3994 = vsel %vm3216, %v3783, %v3993
        %v3995 = vsel %vm3218, %v3784, %v3994
        %v3996 = vsel %vm3220, %v3785, %v3995
        %v3997 = vsel %vm3222, %v3786, %v3996
        %v3998 = vsel %vm3224, %v3787, %v3997
        %v3999 = vsel %vm3226, %v3788, %v3998
        %v4000 = vsel %vm3214, %v3790, %v3789
        %v4001 = vsel %vm3216, %v3791, %v4000
        %v4002 = vsel %vm3218, %v3792, %v4001
        %v4003 = vsel %vm3220, %v3793, %v4002
        %v4004 = vsel %vm3222, %v3794, %v4003
        %v4005 = vsel %vm3224, %v3795, %v4004
        %v4006 = vsel %vm3226, %v3796, %v4005
        %v4037 = vperm.slane %v2334, 1
        %v4038 = vperm.slane %v2590, 1
        %v4039 = vperm.slane %v2591, 1
        %v4040 = vperm.slane %v2592, 1
        %v4041 = vperm.slane %v2335, 1
        %v4042 = vperm.slane %v2593, 1
        %v4043 = vperm.slane %v2594, 1
        %v4044 = vperm.slane %v2595, 1
        %v4045 = vperm.slane %v2336, 1
        %v4046 = vperm.slane %v2596, 1
        %v4047 = vperm.slane %v2597, 1
        %v4048 = vperm.slane %v2598, 1
        %v4049 = vperm.slane %v2337, 1
        %v4050 = vperm.slane %v2599, 1
        %v4051 = vperm.slane %v2600, 1
        %v4052 = vperm.slane %v2342, 1
        %v4053 = vperm.slane %v2614, 1
        %v4054 = vperm.slane %v2615, 1
        %v4055 = vperm.slane %v2616, 1
        %v4056 = vperm.slane %v2343, 1
        %v4057 = vperm.slane %v2617, 1
        %v4058 = vperm.slane %v2618, 1
        %v4059 = vperm.slane %v2619, 1
        %v4060 = vperm.slane %v2344, 1
        %v4061 = vperm.slane %v2620, 1
        %v4062 = vperm.slane %v2621, 1
        %v4063 = vperm.slane %v2622, 1
        %v4064 = vperm.slane %v2345, 1
        %v4065 = vperm.slane %v2623, 1
        %v4066 = vperm.slane %v2624, 1
        %v4067 = vperm.slane %v2350, 1
        %v4068 = vperm.slane %v2638, 1
        %v4069 = vperm.slane %v2639, 1
        %v4070 = vperm.slane %v2640, 1
        %v4071 = vperm.slane %v2351, 1
        %v4072 = vperm.slane %v2641, 1
        %v4073 = vperm.slane %v2642, 1
        %v4074 = vperm.slane %v2643, 1
        %v4075 = vperm.slane %v2352, 1
        %v4076 = vperm.slane %v2644, 1
        %v4077 = vperm.slane %v2645, 1
        %v4078 = vperm.slane %v2646, 1
        %v4079 = vperm.slane %v2353, 1
        %v4080 = vperm.slane %v2647, 1
        %v4081 = vperm.slane %v2648, 1
        %v4082 = vperm.slane %v2358, 1
        %v4083 = vperm.slane %v2662, 1
        %v4084 = vperm.slane %v2663, 1
        %v4085 = vperm.slane %v2664, 1
        %v4086 = vperm.slane %v2359, 1
        %v4087 = vperm.slane %v2665, 1
        %v4088 = vperm.slane %v2666, 1
        %v4089 = vperm.slane %v2667, 1
        %v4090 = vperm.slane %v2360, 1
        %v4091 = vperm.slane %v2668, 1
        %v4092 = vperm.slane %v2669, 1
        %v4093 = vperm.slane %v2670, 1
        %v4094 = vperm.slane %v2361, 1
        %v4095 = vperm.slane %v2671, 1
        %v4096 = vperm.slane %v2672, 1
        %v4097 = vperm.slane %v2366, 1
        %v4098 = vperm.slane %v2686, 1
        %v4099 = vperm.slane %v2687, 1
        %v4100 = vperm.slane %v2688, 1
        %v4101 = vperm.slane %v2367, 1
        %v4102 = vperm.slane %v2689, 1
        %v4103 = vperm.slane %v2690, 1
        %v4104 = vperm.slane %v2691, 1
        %v4105 = vperm.slane %v2368, 1
        %v4106 = vperm.slane %v2692, 1
        %v4107 = vperm.slane %v2693, 1
        %v4108 = vperm.slane %v2694, 1
        %v4109 = vperm.slane %v2369, 1
        %v4110 = vperm.slane %v2695, 1
        %v4111 = vperm.slane %v2696, 1
        %v4112 = vperm.slane %v2374, 1
        %v4113 = vperm.slane %v2710, 1
        %v4114 = vperm.slane %v2711, 1
        %v4115 = vperm.slane %v2712, 1
        %v4116 = vperm.slane %v2375, 1
        %v4117 = vperm.slane %v2713, 1
        %v4118 = vperm.slane %v2714, 1
        %v4119 = vperm.slane %v2715, 1
        %v4120 = vperm.slane %v2376, 1
        %v4121 = vperm.slane %v2716, 1
        %v4122 = vperm.slane %v2717, 1
        %v4123 = vperm.slane %v2718, 1
        %v4124 = vperm.slane %v2377, 1
        %v4125 = vperm.slane %v2719, 1
        %v4126 = vperm.slane %v2720, 1
        %v4127 = vperm.slane %v2382, 1
        %v4128 = vperm.slane %v2734, 1
        %v4129 = vperm.slane %v2735, 1
        %v4130 = vperm.slane %v2736, 1
        %v4131 = vperm.slane %v2383, 1
        %v4132 = vperm.slane %v2737, 1
        %v4133 = vperm.slane %v2738, 1
        %v4134 = vperm.slane %v2739, 1
        %v4135 = vperm.slane %v2384, 1
        %v4136 = vperm.slane %v2740, 1
        %v4137 = vperm.slane %v2741, 1
        %v4138 = vperm.slane %v2742, 1
        %v4139 = vperm.slane %v2385, 1
        %v4140 = vperm.slane %v2743, 1
        %v4141 = vperm.slane %v2744, 1
        %v4142 = vperm.slane %v2390, 1
        %v4143 = vperm.slane %v2758, 1
        %v4144 = vperm.slane %v2759, 1
        %v4145 = vperm.slane %v2760, 1
        %v4146 = vperm.slane %v2391, 1
        %v4147 = vperm.slane %v2761, 1
        %v4148 = vperm.slane %v2762, 1
        %v4149 = vperm.slane %v2763, 1
        %v4150 = vperm.slane %v2392, 1
        %v4151 = vperm.slane %v2764, 1
        %v4152 = vperm.slane %v2765, 1
        %v4153 = vperm.slane %v2766, 1
        %v4154 = vperm.slane %v2393, 1
        %v4155 = vperm.slane %v2767, 1
        %v4156 = vperm.slane %v2768, 1
        %v4157 = vperm.slane %v2398, 1
        %v4158 = vperm.slane %v2782, 1
        %v4159 = vperm.slane %v2783, 1
        %v4160 = vperm.slane %v2784, 1
        %v4161 = vperm.slane %v2399, 1
        %v4162 = vperm.slane %v2785, 1
        %v4163 = vperm.slane %v2786, 1
        %v4164 = vperm.slane %v2787, 1
        %v4165 = vperm.slane %v2400, 1
        %v4166 = vperm.slane %v2788, 1
        %v4167 = vperm.slane %v2789, 1
        %v4168 = vperm.slane %v2790, 1
        %v4169 = vperm.slane %v2401, 1
        %v4170 = vperm.slane %v2791, 1
        %v4171 = vperm.slane %v2792, 1
        %v4172 = vperm.slane %v2406, 1
        %v4173 = vperm.slane %v2806, 1
        %v4174 = vperm.slane %v2807, 1
        %v4175 = vperm.slane %v2808, 1
        %v4176 = vperm.slane %v2407, 1
        %v4177 = vperm.slane %v2809, 1
        %v4178 = vperm.slane %v2810, 1
        %v4179 = vperm.slane %v2811, 1
        %v4180 = vperm.slane %v2408, 1
        %v4181 = vperm.slane %v2812, 1
        %v4182 = vperm.slane %v2813, 1
        %v4183 = vperm.slane %v2814, 1
        %v4184 = vperm.slane %v2409, 1
        %v4185 = vperm.slane %v2815, 1
        %v4186 = vperm.slane %v2816, 1
        %v4187 = vperm.slane %v2414, 1
        %v4188 = vperm.slane %v2830, 1
        %v4189 = vperm.slane %v2831, 1
        %v4190 = vperm.slane %v2832, 1
        %v4191 = vperm.slane %v2415, 1
        %v4192 = vperm.slane %v2833, 1
        %v4193 = vperm.slane %v2834, 1
        %v4194 = vperm.slane %v2835, 1
        %v4195 = vperm.slane %v2416, 1
        %v4196 = vperm.slane %v2836, 1
        %v4197 = vperm.slane %v2837, 1
        %v4198 = vperm.slane %v2838, 1
        %v4199 = vperm.slane %v2417, 1
        %v4200 = vperm.slane %v2839, 1
        %v4201 = vperm.slane %v2840, 1
        %v4202 = vperm.slane %v2422, 1
        %v4203 = vperm.slane %v2854, 1
        %v4204 = vperm.slane %v2855, 1
        %v4205 = vperm.slane %v2856, 1
        %v4206 = vperm.slane %v2423, 1
        %v4207 = vperm.slane %v2857, 1
        %v4208 = vperm.slane %v2858, 1
        %v4209 = vperm.slane %v2859, 1
        %v4210 = vperm.slane %v2424, 1
        %v4211 = vperm.slane %v2860, 1
        %v4212 = vperm.slane %v2861, 1
        %v4213 = vperm.slane %v2862, 1
        %v4214 = vperm.slane %v2425, 1
        %v4215 = vperm.slane %v2863, 1
        %v4216 = vperm.slane %v2864, 1
        %v4217 = vperm.slane %v2430, 1
        %v4218 = vperm.slane %v2878, 1
        %v4219 = vperm.slane %v2879, 1
        %v4220 = vperm.slane %v2880, 1
        %v4221 = vperm.slane %v2431, 1
        %v4222 = vperm.slane %v2881, 1
        %v4223 = vperm.slane %v2882, 1
        %v4224 = vperm.slane %v2883, 1
        %v4225 = vperm.slane %v2432, 1
        %v4226 = vperm.slane %v2884, 1
        %v4227 = vperm.slane %v2885, 1
        %v4228 = vperm.slane %v2886, 1
        %v4229 = vperm.slane %v2433, 1
        %v4230 = vperm.slane %v2887, 1
        %v4231 = vperm.slane %v2888, 1
        %v4232 = vperm.slane %v2438, 1
        %v4233 = vperm.slane %v2902, 1
        %v4234 = vperm.slane %v2903, 1
        %v4235 = vperm.slane %v2904, 1
        %v4236 = vperm.slane %v2439, 1
        %v4237 = vperm.slane %v2905, 1
        %v4238 = vperm.slane %v2906, 1
        %v4239 = vperm.slane %v2907, 1
        %v4240 = vperm.slane %v2440, 1
        %v4241 = vperm.slane %v2908, 1
        %v4242 = vperm.slane %v2909, 1
        %v4243 = vperm.slane %v2910, 1
        %v4244 = vperm.slane %v2441, 1
        %v4245 = vperm.slane %v2911, 1
        %v4246 = vperm.slane %v2912, 1
        %v4247 = vperm.slane %v2446, 1
        %v4248 = vperm.slane %v2926, 1
        %v4249 = vperm.slane %v2927, 1
        %v4250 = vperm.slane %v2928, 1
        %v4251 = vperm.slane %v2447, 1
        %v4252 = vperm.slane %v2929, 1
        %v4253 = vperm.slane %v2930, 1
        %v4254 = vperm.slane %v2931, 1
        %v4255 = vperm.slane %v2448, 1
        %v4256 = vperm.slane %v2932, 1
        %v4257 = vperm.slane %v2933, 1
        %v4258 = vperm.slane %v2934, 1
        %v4259 = vperm.slane %v2449, 1
        %v4260 = vperm.slane %v2935, 1
        %v4261 = vperm.slane %v2936, 1
        %v4262 = vperm.slane %v2454, 1
        %v4263 = vperm.slane %v2950, 1
        %v4264 = vperm.slane %v2951, 1
        %v4265 = vperm.slane %v2952, 1
        %v4266 = vperm.slane %v2455, 1
        %v4267 = vperm.slane %v2953, 1
        %v4268 = vperm.slane %v2954, 1
        %v4269 = vperm.slane %v2955, 1
        %v4270 = vperm.slane %v2456, 1
        %v4271 = vperm.slane %v2956, 1
        %v4272 = vperm.slane %v2957, 1
        %v4273 = vperm.slane %v2958, 1
        %v4274 = vperm.slane %v2457, 1
        %v4275 = vperm.slane %v2959, 1
        %v4276 = vperm.slane %v2960, 1
        %v4277 = vsel %vm3216, %v4038, %v4037
        %v4278 = vsel %vm3218, %v4039, %v4277
        %v4279 = vsel %vm3220, %v4040, %v4278
        %v4280 = vsel %vm3222, %v4041, %v4279
        %v4281 = vsel %vm3224, %v4042, %v4280
        %v4282 = vsel %vm3226, %v4043, %v4281
        %v4283 = vsel %vm3214, %v4045, %v4044
        %v4284 = vsel %vm3216, %v4046, %v4283
        %v4285 = vsel %vm3218, %v4047, %v4284
        %v4286 = vsel %vm3220, %v4048, %v4285
        %v4287 = vsel %vm3222, %v4049, %v4286
        %v4288 = vsel %vm3224, %v4050, %v4287
        %v4289 = vsel %vm3226, %v4051, %v4288
        %v4290 = vsel %vm3216, %v4053, %v4052
        %v4291 = vsel %vm3218, %v4054, %v4290
        %v4292 = vsel %vm3220, %v4055, %v4291
        %v4293 = vsel %vm3222, %v4056, %v4292
        %v4294 = vsel %vm3224, %v4057, %v4293
        %v4295 = vsel %vm3226, %v4058, %v4294
        %v4296 = vsel %vm3214, %v4060, %v4059
        %v4297 = vsel %vm3216, %v4061, %v4296
        %v4298 = vsel %vm3218, %v4062, %v4297
        %v4299 = vsel %vm3220, %v4063, %v4298
        %v4300 = vsel %vm3222, %v4064, %v4299
        %v4301 = vsel %vm3224, %v4065, %v4300
        %v4302 = vsel %vm3226, %v4066, %v4301
        %v4303 = vsel %vm3216, %v4068, %v4067
        %v4304 = vsel %vm3218, %v4069, %v4303
        %v4305 = vsel %vm3220, %v4070, %v4304
        %v4306 = vsel %vm3222, %v4071, %v4305
        %v4307 = vsel %vm3224, %v4072, %v4306
        %v4308 = vsel %vm3226, %v4073, %v4307
        %v4309 = vsel %vm3214, %v4075, %v4074
        %v4310 = vsel %vm3216, %v4076, %v4309
        %v4311 = vsel %vm3218, %v4077, %v4310
        %v4312 = vsel %vm3220, %v4078, %v4311
        %v4313 = vsel %vm3222, %v4079, %v4312
        %v4314 = vsel %vm3224, %v4080, %v4313
        %v4315 = vsel %vm3226, %v4081, %v4314
        %v4316 = vsel %vm3216, %v4083, %v4082
        %v4317 = vsel %vm3218, %v4084, %v4316
        %v4318 = vsel %vm3220, %v4085, %v4317
        %v4319 = vsel %vm3222, %v4086, %v4318
        %v4320 = vsel %vm3224, %v4087, %v4319
        %v4321 = vsel %vm3226, %v4088, %v4320
        %v4322 = vsel %vm3214, %v4090, %v4089
        %v4323 = vsel %vm3216, %v4091, %v4322
        %v4324 = vsel %vm3218, %v4092, %v4323
        %v4325 = vsel %vm3220, %v4093, %v4324
        %v4326 = vsel %vm3222, %v4094, %v4325
        %v4327 = vsel %vm3224, %v4095, %v4326
        %v4328 = vsel %vm3226, %v4096, %v4327
        %v4329 = vsel %vm3216, %v4098, %v4097
        %v4330 = vsel %vm3218, %v4099, %v4329
        %v4331 = vsel %vm3220, %v4100, %v4330
        %v4332 = vsel %vm3222, %v4101, %v4331
        %v4333 = vsel %vm3224, %v4102, %v4332
        %v4334 = vsel %vm3226, %v4103, %v4333
        %v4335 = vsel %vm3214, %v4105, %v4104
        %v4336 = vsel %vm3216, %v4106, %v4335
        %v4337 = vsel %vm3218, %v4107, %v4336
        %v4338 = vsel %vm3220, %v4108, %v4337
        %v4339 = vsel %vm3222, %v4109, %v4338
        %v4340 = vsel %vm3224, %v4110, %v4339
        %v4341 = vsel %vm3226, %v4111, %v4340
        %v4342 = vsel %vm3216, %v4113, %v4112
        %v4343 = vsel %vm3218, %v4114, %v4342
        %v4344 = vsel %vm3220, %v4115, %v4343
        %v4345 = vsel %vm3222, %v4116, %v4344
        %v4346 = vsel %vm3224, %v4117, %v4345
        %v4347 = vsel %vm3226, %v4118, %v4346
        %v4348 = vsel %vm3214, %v4120, %v4119
        %v4349 = vsel %vm3216, %v4121, %v4348
        %v4350 = vsel %vm3218, %v4122, %v4349
        %v4351 = vsel %vm3220, %v4123, %v4350
        %v4352 = vsel %vm3222, %v4124, %v4351
        %v4353 = vsel %vm3224, %v4125, %v4352
        %v4354 = vsel %vm3226, %v4126, %v4353
        %v4355 = vsel %vm3216, %v4128, %v4127
        %v4356 = vsel %vm3218, %v4129, %v4355
        %v4357 = vsel %vm3220, %v4130, %v4356
        %v4358 = vsel %vm3222, %v4131, %v4357
        %v4359 = vsel %vm3224, %v4132, %v4358
        %v4360 = vsel %vm3226, %v4133, %v4359
        %v4361 = vsel %vm3214, %v4135, %v4134
        %v4362 = vsel %vm3216, %v4136, %v4361
        %v4363 = vsel %vm3218, %v4137, %v4362
        %v4364 = vsel %vm3220, %v4138, %v4363
        %v4365 = vsel %vm3222, %v4139, %v4364
        %v4366 = vsel %vm3224, %v4140, %v4365
        %v4367 = vsel %vm3226, %v4141, %v4366
        %v4368 = vsel %vm3216, %v4143, %v4142
        %v4369 = vsel %vm3218, %v4144, %v4368
        %v4370 = vsel %vm3220, %v4145, %v4369
        %v4371 = vsel %vm3222, %v4146, %v4370
        %v4372 = vsel %vm3224, %v4147, %v4371
        %v4373 = vsel %vm3226, %v4148, %v4372
        %v4374 = vsel %vm3214, %v4150, %v4149
        %v4375 = vsel %vm3216, %v4151, %v4374
        %v4376 = vsel %vm3218, %v4152, %v4375
        %v4377 = vsel %vm3220, %v4153, %v4376
        %v4378 = vsel %vm3222, %v4154, %v4377
        %v4379 = vsel %vm3224, %v4155, %v4378
        %v4380 = vsel %vm3226, %v4156, %v4379
        %v4381 = vsel %vm3216, %v4158, %v4157
        %v4382 = vsel %vm3218, %v4159, %v4381
        %v4383 = vsel %vm3220, %v4160, %v4382
        %v4384 = vsel %vm3222, %v4161, %v4383
        %v4385 = vsel %vm3224, %v4162, %v4384
        %v4386 = vsel %vm3226, %v4163, %v4385
        %v4387 = vsel %vm3214, %v4165, %v4164
        %v4388 = vsel %vm3216, %v4166, %v4387
        %v4389 = vsel %vm3218, %v4167, %v4388
        %v4390 = vsel %vm3220, %v4168, %v4389
        %v4391 = vsel %vm3222, %v4169, %v4390
        %v4392 = vsel %vm3224, %v4170, %v4391
        %v4393 = vsel %vm3226, %v4171, %v4392
        %v4394 = vsel %vm3216, %v4173, %v4172
        %v4395 = vsel %vm3218, %v4174, %v4394
        %v4396 = vsel %vm3220, %v4175, %v4395
        %v4397 = vsel %vm3222, %v4176, %v4396
        %v4398 = vsel %vm3224, %v4177, %v4397
        %v4399 = vsel %vm3226, %v4178, %v4398
        %v4400 = vsel %vm3214, %v4180, %v4179
        %v4401 = vsel %vm3216, %v4181, %v4400
        %v4402 = vsel %vm3218, %v4182, %v4401
        %v4403 = vsel %vm3220, %v4183, %v4402
        %v4404 = vsel %vm3222, %v4184, %v4403
        %v4405 = vsel %vm3224, %v4185, %v4404
        %v4406 = vsel %vm3226, %v4186, %v4405
        %v4407 = vsel %vm3216, %v4188, %v4187
        %v4408 = vsel %vm3218, %v4189, %v4407
        %v4409 = vsel %vm3220, %v4190, %v4408
        %v4410 = vsel %vm3222, %v4191, %v4409
        %v4411 = vsel %vm3224, %v4192, %v4410
        %v4412 = vsel %vm3226, %v4193, %v4411
        %v4413 = vsel %vm3214, %v4195, %v4194
        %v4414 = vsel %vm3216, %v4196, %v4413
        %v4415 = vsel %vm3218, %v4197, %v4414
        %v4416 = vsel %vm3220, %v4198, %v4415
        %v4417 = vsel %vm3222, %v4199, %v4416
        %v4418 = vsel %vm3224, %v4200, %v4417
        %v4419 = vsel %vm3226, %v4201, %v4418
        %v4420 = vsel %vm3216, %v4203, %v4202
        %v4421 = vsel %vm3218, %v4204, %v4420
        %v4422 = vsel %vm3220, %v4205, %v4421
        %v4423 = vsel %vm3222, %v4206, %v4422
        %v4424 = vsel %vm3224, %v4207, %v4423
        %v4425 = vsel %vm3226, %v4208, %v4424
        %v4426 = vsel %vm3214, %v4210, %v4209
        %v4427 = vsel %vm3216, %v4211, %v4426
        %v4428 = vsel %vm3218, %v4212, %v4427
        %v4429 = vsel %vm3220, %v4213, %v4428
        %v4430 = vsel %vm3222, %v4214, %v4429
        %v4431 = vsel %vm3224, %v4215, %v4430
        %v4432 = vsel %vm3226, %v4216, %v4431
        %v4433 = vsel %vm3216, %v4218, %v4217
        %v4434 = vsel %vm3218, %v4219, %v4433
        %v4435 = vsel %vm3220, %v4220, %v4434
        %v4436 = vsel %vm3222, %v4221, %v4435
        %v4437 = vsel %vm3224, %v4222, %v4436
        %v4438 = vsel %vm3226, %v4223, %v4437
        %v4439 = vsel %vm3214, %v4225, %v4224
        %v4440 = vsel %vm3216, %v4226, %v4439
        %v4441 = vsel %vm3218, %v4227, %v4440
        %v4442 = vsel %vm3220, %v4228, %v4441
        %v4443 = vsel %vm3222, %v4229, %v4442
        %v4444 = vsel %vm3224, %v4230, %v4443
        %v4445 = vsel %vm3226, %v4231, %v4444
        %v4446 = vsel %vm3216, %v4233, %v4232
        %v4447 = vsel %vm3218, %v4234, %v4446
        %v4448 = vsel %vm3220, %v4235, %v4447
        %v4449 = vsel %vm3222, %v4236, %v4448
        %v4450 = vsel %vm3224, %v4237, %v4449
        %v4451 = vsel %vm3226, %v4238, %v4450
        %v4452 = vsel %vm3214, %v4240, %v4239
        %v4453 = vsel %vm3216, %v4241, %v4452
        %v4454 = vsel %vm3218, %v4242, %v4453
        %v4455 = vsel %vm3220, %v4243, %v4454
        %v4456 = vsel %vm3222, %v4244, %v4455
        %v4457 = vsel %vm3224, %v4245, %v4456
        %v4458 = vsel %vm3226, %v4246, %v4457
        %v4459 = vsel %vm3216, %v4248, %v4247
        %v4460 = vsel %vm3218, %v4249, %v4459
        %v4461 = vsel %vm3220, %v4250, %v4460
        %v4462 = vsel %vm3222, %v4251, %v4461
        %v4463 = vsel %vm3224, %v4252, %v4462
        %v4464 = vsel %vm3226, %v4253, %v4463
        %v4465 = vsel %vm3214, %v4255, %v4254
        %v4466 = vsel %vm3216, %v4256, %v4465
        %v4467 = vsel %vm3218, %v4257, %v4466
        %v4468 = vsel %vm3220, %v4258, %v4467
        %v4469 = vsel %vm3222, %v4259, %v4468
        %v4470 = vsel %vm3224, %v4260, %v4469
        %v4471 = vsel %vm3226, %v4261, %v4470
        %v4472 = vsel %vm3216, %v4263, %v4262
        %v4473 = vsel %vm3218, %v4264, %v4472
        %v4474 = vsel %vm3220, %v4265, %v4473
        %v4475 = vsel %vm3222, %v4266, %v4474
        %v4476 = vsel %vm3224, %v4267, %v4475
        %v4477 = vsel %vm3226, %v4268, %v4476
        %v4478 = vsel %vm3214, %v4270, %v4269
        %v4479 = vsel %vm3216, %v4271, %v4478
        %v4480 = vsel %vm3218, %v4272, %v4479
        %v4481 = vsel %vm3220, %v4273, %v4480
        %v4482 = vsel %vm3222, %v4274, %v4481
        %v4483 = vsel %vm3224, %v4275, %v4482
        %v4484 = vsel %vm3226, %v4276, %v4483
        %v4517 = vsel %vm1669, 0.0, %v4282
        %v4518 = vsel %vm1669, 0.0, %v4295
        %v4519 = vsel %vm1669, 0.0, %v4308
        %v4520 = vsel %vm1669, 0.0, %v4321
        %v4521 = vsel %vm1669, 0.0, %v4334
        %v4522 = vsel %vm1669, 0.0, %v4347
        %v4523 = vsel %vm1669, 0.0, %v4360
        %v4524 = vsel %vm1669, 0.0, %v4373
        %v4525 = vsel %vm1669, 0.0, %v4386
        %v4526 = vsel %vm1669, 0.0, %v4399
        %v4527 = vsel %vm1669, 0.0, %v4412
        %v4528 = vsel %vm1669, 0.0, %v4425
        %v4529 = vsel %vm1669, 0.0, %v4438
        %v4530 = vsel %vm1669, 0.0, %v4451
        %v4531 = vsel %vm1669, 0.0, %v4464
        %v4532 = vsel %vm1669, 0.0, %v4477
        %v4533 = vperm.slane %v2458, 1
        %v4534 = vperm.slane %v2962, 1
        %v4535 = vperm.slane %v2963, 1
        %v4536 = vperm.slane %v2964, 1
        %v4537 = vperm.slane %v2459, 1
        %v4538 = vperm.slane %v2965, 1
        %v4539 = vperm.slane %v2966, 1
        %v4540 = vperm.slane %v2967, 1
        %v4541 = vperm.slane %v2460, 1
        %v4542 = vperm.slane %v2968, 1
        %v4543 = vperm.slane %v2969, 1
        %v4544 = vperm.slane %v2970, 1
        %v4545 = vperm.slane %v2461, 1
        %v4546 = vperm.slane %v2971, 1
        %v4547 = vperm.slane %v2972, 1
        %v4548 = vsel %vm3216, %v2975, %v2974
        %v4549 = vsel %vm3218, %v2976, %v4548
        %v4550 = vsel %vm3220, %v2977, %v4549
        %v4551 = vsel %vm3222, %v2978, %v4550
        %v4552 = vsel %vm3224, %v2979, %v4551
        %v4553 = vsel %vm3226, %v2980, %v4552
        %v4554 = vsel %vm3214, %v2982, %v2981
        %v4555 = vsel %vm3216, %v2983, %v4554
        %v4556 = vsel %vm3218, %v2984, %v4555
        %v4557 = vsel %vm3220, %v2985, %v4556
        %v4558 = vsel %vm3222, %v2986, %v4557
        %v4559 = vsel %vm3224, %v2987, %v4558
        %v4560 = vsel %vm3226, %v2988, %v4559
        %v4561 = vsel %vm3216, %v2991, %v2990
        %v4562 = vsel %vm3218, %v2992, %v4561
        %v4563 = vsel %vm3220, %v2993, %v4562
        %v4564 = vsel %vm3222, %v2994, %v4563
        %v4565 = vsel %vm3224, %v2995, %v4564
        %v4566 = vsel %vm3226, %v2996, %v4565
        %v4567 = vsel %vm3214, %v2998, %v2997
        %v4568 = vsel %vm3216, %v2999, %v4567
        %v4569 = vsel %vm3218, %v3000, %v4568
        %v4570 = vsel %vm3220, %v3001, %v4569
        %v4571 = vsel %vm3222, %v3002, %v4570
        %v4572 = vsel %vm3224, %v3003, %v4571
        %v4573 = vsel %vm3226, %v3004, %v4572
        %v4574 = vsel %vm3216, %v3007, %v3006
        %v4575 = vsel %vm3218, %v3008, %v4574
        %v4576 = vsel %vm3220, %v3009, %v4575
        %v4577 = vsel %vm3222, %v3010, %v4576
        %v4578 = vsel %vm3224, %v3011, %v4577
        %v4579 = vsel %vm3226, %v3012, %v4578
        %v4580 = vsel %vm3214, %v3014, %v3013
        %v4581 = vsel %vm3216, %v3015, %v4580
        %v4582 = vsel %vm3218, %v3016, %v4581
        %v4583 = vsel %vm3220, %v3017, %v4582
        %v4584 = vsel %vm3222, %v3018, %v4583
        %v4585 = vsel %vm3224, %v3019, %v4584
        %v4586 = vsel %vm3226, %v3020, %v4585
        %v4587 = vsel %vm3216, %v3023, %v3022
        %v4588 = vsel %vm3218, %v3024, %v4587
        %v4589 = vsel %vm3220, %v3025, %v4588
        %v4590 = vsel %vm3222, %v3026, %v4589
        %v4591 = vsel %vm3224, %v3027, %v4590
        %v4592 = vsel %vm3226, %v3028, %v4591
        %v4593 = vsel %vm3214, %v3030, %v3029
        %v4594 = vsel %vm3216, %v3031, %v4593
        %v4595 = vsel %vm3218, %v3032, %v4594
        %v4596 = vsel %vm3220, %v3033, %v4595
        %v4597 = vsel %vm3222, %v3034, %v4596
        %v4598 = vsel %vm3224, %v3035, %v4597
        %v4599 = vsel %vm3226, %v3036, %v4598
        %v4600 = vsel %vm3216, %v3039, %v3038
        %v4601 = vsel %vm3218, %v3040, %v4600
        %v4602 = vsel %vm3220, %v3041, %v4601
        %v4603 = vsel %vm3222, %v3042, %v4602
        %v4604 = vsel %vm3224, %v3043, %v4603
        %v4605 = vsel %vm3226, %v3044, %v4604
        %v4606 = vsel %vm3214, %v3046, %v3045
        %v4607 = vsel %vm3216, %v3047, %v4606
        %v4608 = vsel %vm3218, %v3048, %v4607
        %v4609 = vsel %vm3220, %v3049, %v4608
        %v4610 = vsel %vm3222, %v3050, %v4609
        %v4611 = vsel %vm3224, %v3051, %v4610
        %v4612 = vsel %vm3226, %v3052, %v4611
        %v4613 = vsel %vm3216, %v3055, %v3054
        %v4614 = vsel %vm3218, %v3056, %v4613
        %v4615 = vsel %vm3220, %v3057, %v4614
        %v4616 = vsel %vm3222, %v3058, %v4615
        %v4617 = vsel %vm3224, %v3059, %v4616
        %v4618 = vsel %vm3226, %v3060, %v4617
        %v4619 = vsel %vm3214, %v3062, %v3061
        %v4620 = vsel %vm3216, %v3063, %v4619
        %v4621 = vsel %vm3218, %v3064, %v4620
        %v4622 = vsel %vm3220, %v3065, %v4621
        %v4623 = vsel %vm3222, %v3066, %v4622
        %v4624 = vsel %vm3224, %v3067, %v4623
        %v4625 = vsel %vm3226, %v3068, %v4624
        %v4626 = vsel %vm3216, %v3071, %v3070
        %v4627 = vsel %vm3218, %v3072, %v4626
        %v4628 = vsel %vm3220, %v3073, %v4627
        %v4629 = vsel %vm3222, %v3074, %v4628
        %v4630 = vsel %vm3224, %v3075, %v4629
        %v4631 = vsel %vm3226, %v3076, %v4630
        %v4632 = vsel %vm3214, %v3078, %v3077
        %v4633 = vsel %vm3216, %v3079, %v4632
        %v4634 = vsel %vm3218, %v3080, %v4633
        %v4635 = vsel %vm3220, %v3081, %v4634
        %v4636 = vsel %vm3222, %v3082, %v4635
        %v4637 = vsel %vm3224, %v3083, %v4636
        %v4638 = vsel %vm3226, %v3084, %v4637
        %v4639 = vsel %vm3216, %v3087, %v3086
        %v4640 = vsel %vm3218, %v3088, %v4639
        %v4641 = vsel %vm3220, %v3089, %v4640
        %v4642 = vsel %vm3222, %v3090, %v4641
        %v4643 = vsel %vm3224, %v3091, %v4642
        %v4644 = vsel %vm3226, %v3092, %v4643
        %v4645 = vsel %vm3214, %v3094, %v3093
        %v4646 = vsel %vm3216, %v3095, %v4645
        %v4647 = vsel %vm3218, %v3096, %v4646
        %v4648 = vsel %vm3220, %v3097, %v4647
        %v4649 = vsel %vm3222, %v3098, %v4648
        %v4650 = vsel %vm3224, %v3099, %v4649
        %v4651 = vsel %vm3226, %v3100, %v4650
        %v4652 = vsel %vm3216, %v3103, %v3102
        %v4653 = vsel %vm3218, %v3104, %v4652
        %v4654 = vsel %vm3220, %v3105, %v4653
        %v4655 = vsel %vm3222, %v3106, %v4654
        %v4656 = vsel %vm3224, %v3107, %v4655
        %v4657 = vsel %vm3226, %v3108, %v4656
        %v4658 = vsel %vm3214, %v3110, %v3109
        %v4659 = vsel %vm3216, %v3111, %v4658
        %v4660 = vsel %vm3218, %v3112, %v4659
        %v4661 = vsel %vm3220, %v3113, %v4660
        %v4662 = vsel %vm3222, %v3114, %v4661
        %v4663 = vsel %vm3224, %v3115, %v4662
        %v4664 = vsel %vm3226, %v3116, %v4663
        %v4665 = vsel %vm3216, %v3119, %v3118
        %v4666 = vsel %vm3218, %v3120, %v4665
        %v4667 = vsel %vm3220, %v3121, %v4666
        %v4668 = vsel %vm3222, %v3122, %v4667
        %v4669 = vsel %vm3224, %v3123, %v4668
        %v4670 = vsel %vm3226, %v3124, %v4669
        %v4671 = vsel %vm3214, %v3126, %v3125
        %v4672 = vsel %vm3216, %v3127, %v4671
        %v4673 = vsel %vm3218, %v3128, %v4672
        %v4674 = vsel %vm3220, %v3129, %v4673
        %v4675 = vsel %vm3222, %v3130, %v4674
        %v4676 = vsel %vm3224, %v3131, %v4675
        %v4677 = vsel %vm3226, %v3132, %v4676
        %v4678 = vsel %vm3216, %v3135, %v3134
        %v4679 = vsel %vm3218, %v3136, %v4678
        %v4680 = vsel %vm3220, %v3137, %v4679
        %v4681 = vsel %vm3222, %v3138, %v4680
        %v4682 = vsel %vm3224, %v3139, %v4681
        %v4683 = vsel %vm3226, %v3140, %v4682
        %v4684 = vsel %vm3214, %v3142, %v3141
        %v4685 = vsel %vm3216, %v3143, %v4684
        %v4686 = vsel %vm3218, %v3144, %v4685
        %v4687 = vsel %vm3220, %v3145, %v4686
        %v4688 = vsel %vm3222, %v3146, %v4687
        %v4689 = vsel %vm3224, %v3147, %v4688
        %v4690 = vsel %vm3226, %v3148, %v4689
        %v4691 = vsel %vm3216, %v3151, %v3150
        %v4692 = vsel %vm3218, %v3152, %v4691
        %v4693 = vsel %vm3220, %v3153, %v4692
        %v4694 = vsel %vm3222, %v3154, %v4693
        %v4695 = vsel %vm3224, %v3155, %v4694
        %v4696 = vsel %vm3226, %v3156, %v4695
        %v4697 = vsel %vm3214, %v3158, %v3157
        %v4698 = vsel %vm3216, %v3159, %v4697
        %v4699 = vsel %vm3218, %v3160, %v4698
        %v4700 = vsel %vm3220, %v3161, %v4699
        %v4701 = vsel %vm3222, %v3162, %v4700
        %v4702 = vsel %vm3224, %v3163, %v4701
        %v4703 = vsel %vm3226, %v3164, %v4702
        %v4704 = vsel %vm3216, %v3167, %v3166
        %v4705 = vsel %vm3218, %v3168, %v4704
        %v4706 = vsel %vm3220, %v3169, %v4705
        %v4707 = vsel %vm3222, %v3170, %v4706
        %v4708 = vsel %vm3224, %v3171, %v4707
        %v4709 = vsel %vm3226, %v3172, %v4708
        %v4710 = vsel %vm3214, %v3174, %v3173
        %v4711 = vsel %vm3216, %v3175, %v4710
        %v4712 = vsel %vm3218, %v3176, %v4711
        %v4713 = vsel %vm3220, %v3177, %v4712
        %v4714 = vsel %vm3222, %v3178, %v4713
        %v4715 = vsel %vm3224, %v3179, %v4714
        %v4716 = vsel %vm3226, %v3180, %v4715
        %v4717 = vsel %vm3216, %v3183, %v3182
        %v4718 = vsel %vm3218, %v3184, %v4717
        %v4719 = vsel %vm3220, %v3185, %v4718
        %v4720 = vsel %vm3222, %v3186, %v4719
        %v4721 = vsel %vm3224, %v3187, %v4720
        %v4722 = vsel %vm3226, %v3188, %v4721
        %v4723 = vsel %vm3214, %v3190, %v3189
        %v4724 = vsel %vm3216, %v3191, %v4723
        %v4725 = vsel %vm3218, %v3192, %v4724
        %v4726 = vsel %vm3220, %v3193, %v4725
        %v4727 = vsel %vm3222, %v3194, %v4726
        %v4728 = vsel %vm3224, %v3195, %v4727
        %v4729 = vsel %vm3226, %v3196, %v4728
        %v4730 = vsel %vm3216, %v3199, %v3198
        %v4731 = vsel %vm3218, %v3200, %v4730
        %v4732 = vsel %vm3220, %v3201, %v4731
        %v4733 = vsel %vm3222, %v3202, %v4732
        %v4734 = vsel %vm3224, %v3203, %v4733
        %v4735 = vsel %vm3226, %v3204, %v4734
        %v4736 = vsel %vm3214, %v3206, %v3205
        %v4737 = vsel %vm3216, %v3207, %v4736
        %v4738 = vsel %vm3218, %v3208, %v4737
        %v4739 = vsel %vm3220, %v3209, %v4738
        %v4740 = vsel %vm3222, %v3210, %v4739
        %v4741 = vsel %vm3224, %v3211, %v4740
        %v4742 = vsel %vm3226, %v3212, %v4741
        %v4743 = vsel %vm3216, %v4534, %v4533
        %v4744 = vsel %vm3218, %v4535, %v4743
        %v4745 = vsel %vm3220, %v4536, %v4744
        %v4746 = vsel %vm3222, %v4537, %v4745
        %v4747 = vsel %vm3224, %v4538, %v4746
        %v4748 = vsel %vm3226, %v4539, %v4747
        %v4749 = vsel %vm3214, %v4541, %v4540
        %v4750 = vsel %vm3216, %v4542, %v4749
        %v4751 = vsel %vm3218, %v4543, %v4750
        %v4752 = vsel %vm3220, %v4544, %v4751
        %v4753 = vsel %vm3222, %v4545, %v4752
        %v4754 = vsel %vm3224, %v4546, %v4753
        %v4755 = vsel %vm3226, %v4547, %v4754
        %v4788 = vsel %vm1669, 0.0, %v4553
        %v4789 = vsel %vm1669, 0.0, %v4566
        %v4790 = vsel %vm1669, 0.0, %v4579
        %v4791 = vsel %vm1669, 0.0, %v4592
        %v4792 = vsel %vm1669, 0.0, %v4605
        %v4793 = vsel %vm1669, 0.0, %v4618
        %v4794 = vsel %vm1669, 0.0, %v4631
        %v4795 = vsel %vm1669, 0.0, %v4644
        %v4796 = vsel %vm1669, 0.0, %v4657
        %v4797 = vsel %vm1669, 0.0, %v4670
        %v4798 = vsel %vm1669, 0.0, %v4683
        %v4799 = vsel %vm1669, 0.0, %v4696
        %v4800 = vsel %vm1669, 0.0, %v4709
        %v4801 = vsel %vm1669, 0.0, %v4722
        %v4802 = vsel %vm1669, 0.0, %v4735
        %v4803 = vsel %vm1669, 0.0, %v4748
        %v4804 = vmax.f32 %v3541, 0.0
        %v4805 = vmax.f32 %v3463, 0.0
        %v4806 = vmax.f32 %v3542, %v3803
        %v4807 = vmax.f32 %v3466, %v3810
        %v4808 = vmax.f32 %v3543, %v3817
        %v4809 = vmax.f32 %v3469, %v3824
        %v4810 = vmax.f32 %v3544, %v3831
        %v4811 = vmax.f32 %v3472, %v3838
        %v4812 = vmax.f32 %v3545, %v3845
        %v4813 = vmax.f32 %v3475, %v3852
        %v4814 = vmax.f32 %v3546, %v3859
        %v4815 = vmax.f32 %v3478, %v3866
        %v4816 = vmax.f32 %v3547, %v3873
        %v4817 = vmax.f32 %v3481, %v3880
        %v4818 = vmax.f32 %v3548, %v3887
        %v4819 = vmax.f32 %v3484, %v3894
        %v4820 = vmax.f32 %v3549, %v3901
        %v4821 = vmax.f32 %v3487, %v3908
        %v4822 = vmax.f32 %v3550, %v3915
        %v4823 = vmax.f32 %v3490, %v3922
        %v4824 = vmax.f32 %v3551, %v3929
        %v4825 = vmax.f32 %v3493, %v3936
        %v4826 = vmax.f32 %v3552, %v3943
        %v4827 = vmax.f32 %v3496, %v3950
        %v4828 = vmax.f32 %v3553, %v3957
        %v4829 = vmax.f32 %v3499, %v3964
        %v4830 = vmax.f32 %v3554, %v3971
        %v4831 = vmax.f32 %v3502, %v3978
        %v4832 = vmax.f32 %v3555, %v3985
        %v4833 = vmax.f32 %v3505, %v3992
        %v4834 = vmax.f32 %v3556, %v3999
        %v4835 = vmax.f32 %v3508, %v4006
        %v4836 = vmax.f32 %v4804, 0.0
        %v4837 = vmax.f32 %v4805, 0.0
        %v4838 = vmax.f32 %v4806, %v3227
        %v4839 = vmax.f32 %v4807, %v3234
        %v4840 = vmax.f32 %v4808, %v3241
        %v4841 = vmax.f32 %v4809, %v3248
        %v4842 = vmax.f32 %v4810, %v3255
        %v4843 = vmax.f32 %v4811, %v3262
        %v4844 = vmax.f32 %v4812, %v3269
        %v4845 = vmax.f32 %v4813, %v3276
        %v4846 = vmax.f32 %v4814, %v3283
        %v4847 = vmax.f32 %v4815, %v3290
        %v4848 = vmax.f32 %v4816, %v3297
        %v4849 = vmax.f32 %v4817, %v3304
        %v4850 = vmax.f32 %v4818, %v3311
        %v4851 = vmax.f32 %v4819, %v3318
        %v4852 = vmax.f32 %v4820, %v3325
        %v4853 = vmax.f32 %v4821, %v3332
        %v4854 = vmax.f32 %v4822, %v3339
        %v4855 = vmax.f32 %v4823, %v3346
        %v4856 = vmax.f32 %v4824, %v3353
        %v4857 = vmax.f32 %v4825, %v3360
        %v4858 = vmax.f32 %v4826, %v3367
        %v4859 = vmax.f32 %v4827, %v3374
        %v4860 = vmax.f32 %v4828, %v3381
        %v4861 = vmax.f32 %v4829, %v3388
        %v4862 = vmax.f32 %v4830, %v3395
        %v4863 = vmax.f32 %v4831, %v3402
        %v4864 = vmax.f32 %v4832, %v3409
        %v4865 = vmax.f32 %v4833, %v3416
        %v4866 = vmax.f32 %v4834, %v3423
        %v4867 = vmax.f32 %v4835, %v3430
        %v4868 = vmax.f32 %v4836, %v4517
        %v4869 = vmax.f32 %v4837, %v4289
        %v4870 = vmax.f32 %v4838, %v4518
        %v4871 = vmax.f32 %v4839, %v4302
        %v4872 = vmax.f32 %v4840, %v4519
        %v4873 = vmax.f32 %v4841, %v4315
        %v4874 = vmax.f32 %v4842, %v4520
        %v4875 = vmax.f32 %v4843, %v4328
        %v4876 = vmax.f32 %v4844, %v4521
        %v4877 = vmax.f32 %v4845, %v4341
        %v4878 = vmax.f32 %v4846, %v4522
        %v4879 = vmax.f32 %v4847, %v4354
        %v4880 = vmax.f32 %v4848, %v4523
        %v4881 = vmax.f32 %v4849, %v4367
        %v4882 = vmax.f32 %v4850, %v4524
        %v4883 = vmax.f32 %v4851, %v4380
        %v4884 = vmax.f32 %v4852, %v4525
        %v4885 = vmax.f32 %v4853, %v4393
        %v4886 = vmax.f32 %v4854, %v4526
        %v4887 = vmax.f32 %v4855, %v4406
        %v4888 = vmax.f32 %v4856, %v4527
        %v4889 = vmax.f32 %v4857, %v4419
        %v4890 = vmax.f32 %v4858, %v4528
        %v4891 = vmax.f32 %v4859, %v4432
        %v4892 = vmax.f32 %v4860, %v4529
        %v4893 = vmax.f32 %v4861, %v4445
        %v4894 = vmax.f32 %v4862, %v4530
        %v4895 = vmax.f32 %v4863, %v4458
        %v4896 = vmax.f32 %v4864, %v4531
        %v4897 = vmax.f32 %v4865, %v4471
        %v4898 = vmax.f32 %v4866, %v4532
        %v4899 = vmax.f32 %v4867, %v4484
        %v4900 = vperm.slane %v2334, 0
        %v4901 = vperm.slane %v2590, 0
        %v4902 = vperm.slane %v2591, 0
        %v4903 = vperm.slane %v2592, 0
        %v4904 = vperm.slane %v2335, 0
        %v4905 = vperm.slane %v2593, 0
        %v4906 = vperm.slane %v2594, 0
        %v4907 = vperm.slane %v2595, 0
        %v4908 = vperm.slane %v2336, 0
        %v4909 = vperm.slane %v2596, 0
        %v4910 = vperm.slane %v2597, 0
        %v4911 = vperm.slane %v2598, 0
        %v4912 = vperm.slane %v2337, 0
        %v4913 = vperm.slane %v2599, 0
        %v4914 = vperm.slane %v2600, 0
        %v4915 = vperm.slane %v2601, 0
        %v4916 = vperm.slane %v2342, 0
        %v4917 = vperm.slane %v2614, 0
        %v4918 = vperm.slane %v2615, 0
        %v4919 = vperm.slane %v2616, 0
        %v4920 = vperm.slane %v2343, 0
        %v4921 = vperm.slane %v2617, 0
        %v4922 = vperm.slane %v2618, 0
        %v4923 = vperm.slane %v2619, 0
        %v4924 = vperm.slane %v2344, 0
        %v4925 = vperm.slane %v2620, 0
        %v4926 = vperm.slane %v2621, 0
        %v4927 = vperm.slane %v2622, 0
        %v4928 = vperm.slane %v2345, 0
        %v4929 = vperm.slane %v2623, 0
        %v4930 = vperm.slane %v2624, 0
        %v4931 = vperm.slane %v2625, 0
        %v4932 = vperm.slane %v2350, 0
        %v4933 = vperm.slane %v2638, 0
        %v4934 = vperm.slane %v2639, 0
        %v4935 = vperm.slane %v2640, 0
        %v4936 = vperm.slane %v2351, 0
        %v4937 = vperm.slane %v2641, 0
        %v4938 = vperm.slane %v2642, 0
        %v4939 = vperm.slane %v2643, 0
        %v4940 = vperm.slane %v2352, 0
        %v4941 = vperm.slane %v2644, 0
        %v4942 = vperm.slane %v2645, 0
        %v4943 = vperm.slane %v2646, 0
        %v4944 = vperm.slane %v2353, 0
        %v4945 = vperm.slane %v2647, 0
        %v4946 = vperm.slane %v2648, 0
        %v4947 = vperm.slane %v2649, 0
        %v4948 = vperm.slane %v2358, 0
        %v4949 = vperm.slane %v2662, 0
        %v4950 = vperm.slane %v2663, 0
        %v4951 = vperm.slane %v2664, 0
        %v4952 = vperm.slane %v2359, 0
        %v4953 = vperm.slane %v2665, 0
        %v4954 = vperm.slane %v2666, 0
        %v4955 = vperm.slane %v2667, 0
        %v4956 = vperm.slane %v2360, 0
        %v4957 = vperm.slane %v2668, 0
        %v4958 = vperm.slane %v2669, 0
        %v4959 = vperm.slane %v2670, 0
        %v4960 = vperm.slane %v2361, 0
        %v4961 = vperm.slane %v2671, 0
        %v4962 = vperm.slane %v2672, 0
        %v4963 = vperm.slane %v2673, 0
        %v4964 = vperm.slane %v2366, 0
        %v4965 = vperm.slane %v2686, 0
        %v4966 = vperm.slane %v2687, 0
        %v4967 = vperm.slane %v2688, 0
        %v4968 = vperm.slane %v2367, 0
        %v4969 = vperm.slane %v2689, 0
        %v4970 = vperm.slane %v2690, 0
        %v4971 = vperm.slane %v2691, 0
        %v4972 = vperm.slane %v2368, 0
        %v4973 = vperm.slane %v2692, 0
        %v4974 = vperm.slane %v2693, 0
        %v4975 = vperm.slane %v2694, 0
        %v4976 = vperm.slane %v2369, 0
        %v4977 = vperm.slane %v2695, 0
        %v4978 = vperm.slane %v2696, 0
        %v4979 = vperm.slane %v2697, 0
        %v4980 = vperm.slane %v2374, 0
        %v4981 = vperm.slane %v2710, 0
        %v4982 = vperm.slane %v2711, 0
        %v4983 = vperm.slane %v2712, 0
        %v4984 = vperm.slane %v2375, 0
        %v4985 = vperm.slane %v2713, 0
        %v4986 = vperm.slane %v2714, 0
        %v4987 = vperm.slane %v2715, 0
        %v4988 = vperm.slane %v2376, 0
        %v4989 = vperm.slane %v2716, 0
        %v4990 = vperm.slane %v2717, 0
        %v4991 = vperm.slane %v2718, 0
        %v4992 = vperm.slane %v2377, 0
        %v4993 = vperm.slane %v2719, 0
        %v4994 = vperm.slane %v2720, 0
        %v4995 = vperm.slane %v2721, 0
        %v4996 = vperm.slane %v2382, 0
        %v4997 = vperm.slane %v2734, 0
        %v4998 = vperm.slane %v2735, 0
        %v4999 = vperm.slane %v2736, 0
        %v5000 = vperm.slane %v2383, 0
        %v5001 = vperm.slane %v2737, 0
        %v5002 = vperm.slane %v2738, 0
        %v5003 = vperm.slane %v2739, 0
        %v5004 = vperm.slane %v2384, 0
        %v5005 = vperm.slane %v2740, 0
        %v5006 = vperm.slane %v2741, 0
        %v5007 = vperm.slane %v2742, 0
        %v5008 = vperm.slane %v2385, 0
        %v5009 = vperm.slane %v2743, 0
        %v5010 = vperm.slane %v2744, 0
        %v5011 = vperm.slane %v2745, 0
        %v5012 = vperm.slane %v2390, 0
        %v5013 = vperm.slane %v2758, 0
        %v5014 = vperm.slane %v2759, 0
        %v5015 = vperm.slane %v2760, 0
        %v5016 = vperm.slane %v2391, 0
        %v5017 = vperm.slane %v2761, 0
        %v5018 = vperm.slane %v2762, 0
        %v5019 = vperm.slane %v2763, 0
        %v5020 = vperm.slane %v2392, 0
        %v5021 = vperm.slane %v2764, 0
        %v5022 = vperm.slane %v2765, 0
        %v5023 = vperm.slane %v2766, 0
        %v5024 = vperm.slane %v2393, 0
        %v5025 = vperm.slane %v2767, 0
        %v5026 = vperm.slane %v2768, 0
        %v5027 = vperm.slane %v2769, 0
        %v5028 = vperm.slane %v2398, 0
        %v5029 = vperm.slane %v2782, 0
        %v5030 = vperm.slane %v2783, 0
        %v5031 = vperm.slane %v2784, 0
        %v5032 = vperm.slane %v2399, 0
        %v5033 = vperm.slane %v2785, 0
        %v5034 = vperm.slane %v2786, 0
        %v5035 = vperm.slane %v2787, 0
        %v5036 = vperm.slane %v2400, 0
        %v5037 = vperm.slane %v2788, 0
        %v5038 = vperm.slane %v2789, 0
        %v5039 = vperm.slane %v2790, 0
        %v5040 = vperm.slane %v2401, 0
        %v5041 = vperm.slane %v2791, 0
        %v5042 = vperm.slane %v2792, 0
        %v5043 = vperm.slane %v2793, 0
        %v5044 = vperm.slane %v2406, 0
        %v5045 = vperm.slane %v2806, 0
        %v5046 = vperm.slane %v2807, 0
        %v5047 = vperm.slane %v2808, 0
        %v5048 = vperm.slane %v2407, 0
        %v5049 = vperm.slane %v2809, 0
        %v5050 = vperm.slane %v2810, 0
        %v5051 = vperm.slane %v2811, 0
        %v5052 = vperm.slane %v2408, 0
        %v5053 = vperm.slane %v2812, 0
        %v5054 = vperm.slane %v2813, 0
        %v5055 = vperm.slane %v2814, 0
        %v5056 = vperm.slane %v2409, 0
        %v5057 = vperm.slane %v2815, 0
        %v5058 = vperm.slane %v2816, 0
        %v5059 = vperm.slane %v2817, 0
        %v5060 = vperm.slane %v2414, 0
        %v5061 = vperm.slane %v2830, 0
        %v5062 = vperm.slane %v2831, 0
        %v5063 = vperm.slane %v2832, 0
        %v5064 = vperm.slane %v2415, 0
        %v5065 = vperm.slane %v2833, 0
        %v5066 = vperm.slane %v2834, 0
        %v5067 = vperm.slane %v2835, 0
        %v5068 = vperm.slane %v2416, 0
        %v5069 = vperm.slane %v2836, 0
        %v5070 = vperm.slane %v2837, 0
        %v5071 = vperm.slane %v2838, 0
        %v5072 = vperm.slane %v2417, 0
        %v5073 = vperm.slane %v2839, 0
        %v5074 = vperm.slane %v2840, 0
        %v5075 = vperm.slane %v2841, 0
        %v5076 = vperm.slane %v2422, 0
        %v5077 = vperm.slane %v2854, 0
        %v5078 = vperm.slane %v2855, 0
        %v5079 = vperm.slane %v2856, 0
        %v5080 = vperm.slane %v2423, 0
        %v5081 = vperm.slane %v2857, 0
        %v5082 = vperm.slane %v2858, 0
        %v5083 = vperm.slane %v2859, 0
        %v5084 = vperm.slane %v2424, 0
        %v5085 = vperm.slane %v2860, 0
        %v5086 = vperm.slane %v2861, 0
        %v5087 = vperm.slane %v2862, 0
        %v5088 = vperm.slane %v2425, 0
        %v5089 = vperm.slane %v2863, 0
        %v5090 = vperm.slane %v2864, 0
        %v5091 = vperm.slane %v2865, 0
        %v5092 = vperm.slane %v2430, 0
        %v5093 = vperm.slane %v2878, 0
        %v5094 = vperm.slane %v2879, 0
        %v5095 = vperm.slane %v2880, 0
        %v5096 = vperm.slane %v2431, 0
        %v5097 = vperm.slane %v2881, 0
        %v5098 = vperm.slane %v2882, 0
        %v5099 = vperm.slane %v2883, 0
        %v5100 = vperm.slane %v2432, 0
        %v5101 = vperm.slane %v2884, 0
        %v5102 = vperm.slane %v2885, 0
        %v5103 = vperm.slane %v2886, 0
        %v5104 = vperm.slane %v2433, 0
        %v5105 = vperm.slane %v2887, 0
        %v5106 = vperm.slane %v2888, 0
        %v5107 = vperm.slane %v2889, 0
        %v5108 = vperm.slane %v2438, 0
        %v5109 = vperm.slane %v2902, 0
        %v5110 = vperm.slane %v2903, 0
        %v5111 = vperm.slane %v2904, 0
        %v5112 = vperm.slane %v2439, 0
        %v5113 = vperm.slane %v2905, 0
        %v5114 = vperm.slane %v2906, 0
        %v5115 = vperm.slane %v2907, 0
        %v5116 = vperm.slane %v2440, 0
        %v5117 = vperm.slane %v2908, 0
        %v5118 = vperm.slane %v2909, 0
        %v5119 = vperm.slane %v2910, 0
        %v5120 = vperm.slane %v2441, 0
        %v5121 = vperm.slane %v2911, 0
        %v5122 = vperm.slane %v2912, 0
        %v5123 = vperm.slane %v2913, 0
        %v5124 = vperm.slane %v2446, 0
        %v5125 = vperm.slane %v2926, 0
        %v5126 = vperm.slane %v2927, 0
        %v5127 = vperm.slane %v2928, 0
        %v5128 = vperm.slane %v2447, 0
        %v5129 = vperm.slane %v2929, 0
        %v5130 = vperm.slane %v2930, 0
        %v5131 = vperm.slane %v2931, 0
        %v5132 = vperm.slane %v2448, 0
        %v5133 = vperm.slane %v2932, 0
        %v5134 = vperm.slane %v2933, 0
        %v5135 = vperm.slane %v2934, 0
        %v5136 = vperm.slane %v2449, 0
        %v5137 = vperm.slane %v2935, 0
        %v5138 = vperm.slane %v2936, 0
        %v5139 = vperm.slane %v2937, 0
        %v5140 = vperm.slane %v2454, 0
        %v5141 = vperm.slane %v2950, 0
        %v5142 = vperm.slane %v2951, 0
        %v5143 = vperm.slane %v2952, 0
        %v5144 = vperm.slane %v2455, 0
        %v5145 = vperm.slane %v2953, 0
        %v5146 = vperm.slane %v2954, 0
        %v5147 = vperm.slane %v2955, 0
        %v5148 = vperm.slane %v2456, 0
        %v5149 = vperm.slane %v2956, 0
        %v5150 = vperm.slane %v2957, 0
        %v5151 = vperm.slane %v2958, 0
        %v5152 = vperm.slane %v2457, 0
        %v5153 = vperm.slane %v2959, 0
        %v5154 = vperm.slane %v2960, 0
        %v5155 = vperm.slane %v2961, 0
        %v5156 = vsel %vm3214, %v4901, %v4900
        %v5157 = vsel %vm3216, %v4902, %v5156
        %v5158 = vsel %vm3218, %v4903, %v5157
        %v5159 = vsel %vm3220, %v4904, %v5158
        %v5160 = vsel %vm3222, %v4905, %v5159
        %v5161 = vsel %vm3224, %v4906, %v5160
        %v5162 = vsel %vm3226, %v4907, %v5161
        %v5163 = vsel %vm3214, %v4909, %v4908
        %v5164 = vsel %vm3216, %v4910, %v5163
        %v5165 = vsel %vm3218, %v4911, %v5164
        %v5166 = vsel %vm3220, %v4912, %v5165
        %v5167 = vsel %vm3222, %v4913, %v5166
        %v5168 = vsel %vm3224, %v4914, %v5167
        %v5169 = vsel %vm3226, %v4915, %v5168
        %v5170 = vsel %vm3214, %v4917, %v4916
        %v5171 = vsel %vm3216, %v4918, %v5170
        %v5172 = vsel %vm3218, %v4919, %v5171
        %v5173 = vsel %vm3220, %v4920, %v5172
        %v5174 = vsel %vm3222, %v4921, %v5173
        %v5175 = vsel %vm3224, %v4922, %v5174
        %v5176 = vsel %vm3226, %v4923, %v5175
        %v5177 = vsel %vm3214, %v4925, %v4924
        %v5178 = vsel %vm3216, %v4926, %v5177
        %v5179 = vsel %vm3218, %v4927, %v5178
        %v5180 = vsel %vm3220, %v4928, %v5179
        %v5181 = vsel %vm3222, %v4929, %v5180
        %v5182 = vsel %vm3224, %v4930, %v5181
        %v5183 = vsel %vm3226, %v4931, %v5182
        %v5184 = vsel %vm3214, %v4933, %v4932
        %v5185 = vsel %vm3216, %v4934, %v5184
        %v5186 = vsel %vm3218, %v4935, %v5185
        %v5187 = vsel %vm3220, %v4936, %v5186
        %v5188 = vsel %vm3222, %v4937, %v5187
        %v5189 = vsel %vm3224, %v4938, %v5188
        %v5190 = vsel %vm3226, %v4939, %v5189
        %v5191 = vsel %vm3214, %v4941, %v4940
        %v5192 = vsel %vm3216, %v4942, %v5191
        %v5193 = vsel %vm3218, %v4943, %v5192
        %v5194 = vsel %vm3220, %v4944, %v5193
        %v5195 = vsel %vm3222, %v4945, %v5194
        %v5196 = vsel %vm3224, %v4946, %v5195
        %v5197 = vsel %vm3226, %v4947, %v5196
        %v5198 = vsel %vm3214, %v4949, %v4948
        %v5199 = vsel %vm3216, %v4950, %v5198
        %v5200 = vsel %vm3218, %v4951, %v5199
        %v5201 = vsel %vm3220, %v4952, %v5200
        %v5202 = vsel %vm3222, %v4953, %v5201
        %v5203 = vsel %vm3224, %v4954, %v5202
        %v5204 = vsel %vm3226, %v4955, %v5203
        %v5205 = vsel %vm3214, %v4957, %v4956
        %v5206 = vsel %vm3216, %v4958, %v5205
        %v5207 = vsel %vm3218, %v4959, %v5206
        %v5208 = vsel %vm3220, %v4960, %v5207
        %v5209 = vsel %vm3222, %v4961, %v5208
        %v5210 = vsel %vm3224, %v4962, %v5209
        %v5211 = vsel %vm3226, %v4963, %v5210
        %v5212 = vsel %vm3214, %v4965, %v4964
        %v5213 = vsel %vm3216, %v4966, %v5212
        %v5214 = vsel %vm3218, %v4967, %v5213
        %v5215 = vsel %vm3220, %v4968, %v5214
        %v5216 = vsel %vm3222, %v4969, %v5215
        %v5217 = vsel %vm3224, %v4970, %v5216
        %v5218 = vsel %vm3226, %v4971, %v5217
        %v5219 = vsel %vm3214, %v4973, %v4972
        %v5220 = vsel %vm3216, %v4974, %v5219
        %v5221 = vsel %vm3218, %v4975, %v5220
        %v5222 = vsel %vm3220, %v4976, %v5221
        %v5223 = vsel %vm3222, %v4977, %v5222
        %v5224 = vsel %vm3224, %v4978, %v5223
        %v5225 = vsel %vm3226, %v4979, %v5224
        %v5226 = vsel %vm3214, %v4981, %v4980
        %v5227 = vsel %vm3216, %v4982, %v5226
        %v5228 = vsel %vm3218, %v4983, %v5227
        %v5229 = vsel %vm3220, %v4984, %v5228
        %v5230 = vsel %vm3222, %v4985, %v5229
        %v5231 = vsel %vm3224, %v4986, %v5230
        %v5232 = vsel %vm3226, %v4987, %v5231
        %v5233 = vsel %vm3214, %v4989, %v4988
        %v5234 = vsel %vm3216, %v4990, %v5233
        %v5235 = vsel %vm3218, %v4991, %v5234
        %v5236 = vsel %vm3220, %v4992, %v5235
        %v5237 = vsel %vm3222, %v4993, %v5236
        %v5238 = vsel %vm3224, %v4994, %v5237
        %v5239 = vsel %vm3226, %v4995, %v5238
        %v5240 = vsel %vm3214, %v4997, %v4996
        %v5241 = vsel %vm3216, %v4998, %v5240
        %v5242 = vsel %vm3218, %v4999, %v5241
        %v5243 = vsel %vm3220, %v5000, %v5242
        %v5244 = vsel %vm3222, %v5001, %v5243
        %v5245 = vsel %vm3224, %v5002, %v5244
        %v5246 = vsel %vm3226, %v5003, %v5245
        %v5247 = vsel %vm3214, %v5005, %v5004
        %v5248 = vsel %vm3216, %v5006, %v5247
        %v5249 = vsel %vm3218, %v5007, %v5248
        %v5250 = vsel %vm3220, %v5008, %v5249
        %v5251 = vsel %vm3222, %v5009, %v5250
        %v5252 = vsel %vm3224, %v5010, %v5251
        %v5253 = vsel %vm3226, %v5011, %v5252
        %v5254 = vsel %vm3214, %v5013, %v5012
        %v5255 = vsel %vm3216, %v5014, %v5254
        %v5256 = vsel %vm3218, %v5015, %v5255
        %v5257 = vsel %vm3220, %v5016, %v5256
        %v5258 = vsel %vm3222, %v5017, %v5257
        %v5259 = vsel %vm3224, %v5018, %v5258
        %v5260 = vsel %vm3226, %v5019, %v5259
        %v5261 = vsel %vm3214, %v5021, %v5020
        %v5262 = vsel %vm3216, %v5022, %v5261
        %v5263 = vsel %vm3218, %v5023, %v5262
        %v5264 = vsel %vm3220, %v5024, %v5263
        %v5265 = vsel %vm3222, %v5025, %v5264
        %v5266 = vsel %vm3224, %v5026, %v5265
        %v5267 = vsel %vm3226, %v5027, %v5266
        %v5268 = vsel %vm3214, %v5029, %v5028
        %v5269 = vsel %vm3216, %v5030, %v5268
        %v5270 = vsel %vm3218, %v5031, %v5269
        %v5271 = vsel %vm3220, %v5032, %v5270
        %v5272 = vsel %vm3222, %v5033, %v5271
        %v5273 = vsel %vm3224, %v5034, %v5272
        %v5274 = vsel %vm3226, %v5035, %v5273
        %v5275 = vsel %vm3214, %v5037, %v5036
        %v5276 = vsel %vm3216, %v5038, %v5275
        %v5277 = vsel %vm3218, %v5039, %v5276
        %v5278 = vsel %vm3220, %v5040, %v5277
        %v5279 = vsel %vm3222, %v5041, %v5278
        %v5280 = vsel %vm3224, %v5042, %v5279
        %v5281 = vsel %vm3226, %v5043, %v5280
        %v5282 = vsel %vm3214, %v5045, %v5044
        %v5283 = vsel %vm3216, %v5046, %v5282
        %v5284 = vsel %vm3218, %v5047, %v5283
        %v5285 = vsel %vm3220, %v5048, %v5284
        %v5286 = vsel %vm3222, %v5049, %v5285
        %v5287 = vsel %vm3224, %v5050, %v5286
        %v5288 = vsel %vm3226, %v5051, %v5287
        %v5289 = vsel %vm3214, %v5053, %v5052
        %v5290 = vsel %vm3216, %v5054, %v5289
        %v5291 = vsel %vm3218, %v5055, %v5290
        %v5292 = vsel %vm3220, %v5056, %v5291
        %v5293 = vsel %vm3222, %v5057, %v5292
        %v5294 = vsel %vm3224, %v5058, %v5293
        %v5295 = vsel %vm3226, %v5059, %v5294
        %v5296 = vsel %vm3214, %v5061, %v5060
        %v5297 = vsel %vm3216, %v5062, %v5296
        %v5298 = vsel %vm3218, %v5063, %v5297
        %v5299 = vsel %vm3220, %v5064, %v5298
        %v5300 = vsel %vm3222, %v5065, %v5299
        %v5301 = vsel %vm3224, %v5066, %v5300
        %v5302 = vsel %vm3226, %v5067, %v5301
        %v5303 = vsel %vm3214, %v5069, %v5068
        %v5304 = vsel %vm3216, %v5070, %v5303
        %v5305 = vsel %vm3218, %v5071, %v5304
        %v5306 = vsel %vm3220, %v5072, %v5305
        %v5307 = vsel %vm3222, %v5073, %v5306
        %v5308 = vsel %vm3224, %v5074, %v5307
        %v5309 = vsel %vm3226, %v5075, %v5308
        %v5310 = vsel %vm3214, %v5077, %v5076
        %v5311 = vsel %vm3216, %v5078, %v5310
        %v5312 = vsel %vm3218, %v5079, %v5311
        %v5313 = vsel %vm3220, %v5080, %v5312
        %v5314 = vsel %vm3222, %v5081, %v5313
        %v5315 = vsel %vm3224, %v5082, %v5314
        %v5316 = vsel %vm3226, %v5083, %v5315
        %v5317 = vsel %vm3214, %v5085, %v5084
        %v5318 = vsel %vm3216, %v5086, %v5317
        %v5319 = vsel %vm3218, %v5087, %v5318
        %v5320 = vsel %vm3220, %v5088, %v5319
        %v5321 = vsel %vm3222, %v5089, %v5320
        %v5322 = vsel %vm3224, %v5090, %v5321
        %v5323 = vsel %vm3226, %v5091, %v5322
        %v5324 = vsel %vm3214, %v5093, %v5092
        %v5325 = vsel %vm3216, %v5094, %v5324
        %v5326 = vsel %vm3218, %v5095, %v5325
        %v5327 = vsel %vm3220, %v5096, %v5326
        %v5328 = vsel %vm3222, %v5097, %v5327
        %v5329 = vsel %vm3224, %v5098, %v5328
        %v5330 = vsel %vm3226, %v5099, %v5329
        %v5331 = vsel %vm3214, %v5101, %v5100
        %v5332 = vsel %vm3216, %v5102, %v5331
        %v5333 = vsel %vm3218, %v5103, %v5332
        %v5334 = vsel %vm3220, %v5104, %v5333
        %v5335 = vsel %vm3222, %v5105, %v5334
        %v5336 = vsel %vm3224, %v5106, %v5335
        %v5337 = vsel %vm3226, %v5107, %v5336
        %v5338 = vsel %vm3214, %v5109, %v5108
        %v5339 = vsel %vm3216, %v5110, %v5338
        %v5340 = vsel %vm3218, %v5111, %v5339
        %v5341 = vsel %vm3220, %v5112, %v5340
        %v5342 = vsel %vm3222, %v5113, %v5341
        %v5343 = vsel %vm3224, %v5114, %v5342
        %v5344 = vsel %vm3226, %v5115, %v5343
        %v5345 = vsel %vm3214, %v5117, %v5116
        %v5346 = vsel %vm3216, %v5118, %v5345
        %v5347 = vsel %vm3218, %v5119, %v5346
        %v5348 = vsel %vm3220, %v5120, %v5347
        %v5349 = vsel %vm3222, %v5121, %v5348
        %v5350 = vsel %vm3224, %v5122, %v5349
        %v5351 = vsel %vm3226, %v5123, %v5350
        %v5352 = vsel %vm3214, %v5125, %v5124
        %v5353 = vsel %vm3216, %v5126, %v5352
        %v5354 = vsel %vm3218, %v5127, %v5353
        %v5355 = vsel %vm3220, %v5128, %v5354
        %v5356 = vsel %vm3222, %v5129, %v5355
        %v5357 = vsel %vm3224, %v5130, %v5356
        %v5358 = vsel %vm3226, %v5131, %v5357
        %v5359 = vsel %vm3214, %v5133, %v5132
        %v5360 = vsel %vm3216, %v5134, %v5359
        %v5361 = vsel %vm3218, %v5135, %v5360
        %v5362 = vsel %vm3220, %v5136, %v5361
        %v5363 = vsel %vm3222, %v5137, %v5362
        %v5364 = vsel %vm3224, %v5138, %v5363
        %v5365 = vsel %vm3226, %v5139, %v5364
        %v5366 = vsel %vm3214, %v5141, %v5140
        %v5367 = vsel %vm3216, %v5142, %v5366
        %v5368 = vsel %vm3218, %v5143, %v5367
        %v5369 = vsel %vm3220, %v5144, %v5368
        %v5370 = vsel %vm3222, %v5145, %v5369
        %v5371 = vsel %vm3224, %v5146, %v5370
        %v5372 = vsel %vm3226, %v5147, %v5371
        %v5373 = vsel %vm3214, %v5149, %v5148
        %v5374 = vsel %vm3216, %v5150, %v5373
        %v5375 = vsel %vm3218, %v5151, %v5374
        %v5376 = vsel %vm3220, %v5152, %v5375
        %v5377 = vsel %vm3222, %v5153, %v5376
        %v5378 = vsel %vm3224, %v5154, %v5377
        %v5379 = vsel %vm3226, %v5155, %v5378
        %v5412 = vmax.f32 %v4868, %v5162
        %v5413 = vmax.f32 %v4869, %v5169
        %v5414 = vmax.f32 %v4870, %v5176
        %v5415 = vmax.f32 %v4871, %v5183
        %v5416 = vmax.f32 %v4872, %v5190
        %v5417 = vmax.f32 %v4873, %v5197
        %v5418 = vmax.f32 %v4874, %v5204
        %v5419 = vmax.f32 %v4875, %v5211
        %v5420 = vmax.f32 %v4876, %v5218
        %v5421 = vmax.f32 %v4877, %v5225
        %v5422 = vmax.f32 %v4878, %v5232
        %v5423 = vmax.f32 %v4879, %v5239
        %v5424 = vmax.f32 %v4880, %v5246
        %v5425 = vmax.f32 %v4881, %v5253
        %v5426 = vmax.f32 %v4882, %v5260
        %v5427 = vmax.f32 %v4883, %v5267
        %v5428 = vmax.f32 %v4884, %v5274
        %v5429 = vmax.f32 %v4885, %v5281
        %v5430 = vmax.f32 %v4886, %v5288
        %v5431 = vmax.f32 %v4887, %v5295
        %v5432 = vmax.f32 %v4888, %v5302
        %v5433 = vmax.f32 %v4889, %v5309
        %v5434 = vmax.f32 %v4890, %v5316
        %v5435 = vmax.f32 %v4891, %v5323
        %v5436 = vmax.f32 %v4892, %v5330
        %v5437 = vmax.f32 %v4893, %v5337
        %v5438 = vmax.f32 %v4894, %v5344
        %v5439 = vmax.f32 %v4895, %v5351
        %v5440 = vmax.f32 %v4896, %v5358
        %v5441 = vmax.f32 %v4897, %v5365
        %v5442 = vmax.f32 %v4898, %v5372
        %v5443 = vmax.f32 %v4899, %v5379
        %v5444 = vperm.slane %v2601, 1
        %v5445 = vperm.slane %v2625, 1
        %v5446 = vperm.slane %v2649, 1
        %v5447 = vperm.slane %v2673, 1
        %v5448 = vperm.slane %v2697, 1
        %v5449 = vperm.slane %v2721, 1
        %v5450 = vperm.slane %v2745, 1
        %v5451 = vperm.slane %v2769, 1
        %v5452 = vperm.slane %v2793, 1
        %v5453 = vperm.slane %v2817, 1
        %v5454 = vperm.slane %v2841, 1
        %v5455 = vperm.slane %v2865, 1
        %v5456 = vperm.slane %v2889, 1
        %v5457 = vperm.slane %v2913, 1
        %v5458 = vperm.slane %v2937, 1
        %v5459 = vperm.slane %v2961, 1
        %v5460 = vsel %vm3214, %v4038, %v4037
        %v5461 = vsel %vm3216, %v4039, %v5460
        %v5462 = vsel %vm3218, %v4040, %v5461
        %v5463 = vsel %vm3220, %v4041, %v5462
        %v5464 = vsel %vm3222, %v4042, %v5463
        %v5465 = vsel %vm3224, %v4043, %v5464
        %v5466 = vsel %vm3226, %v4044, %v5465
        %v5467 = vsel %vm3214, %v4046, %v4045
        %v5468 = vsel %vm3216, %v4047, %v5467
        %v5469 = vsel %vm3218, %v4048, %v5468
        %v5470 = vsel %vm3220, %v4049, %v5469
        %v5471 = vsel %vm3222, %v4050, %v5470
        %v5472 = vsel %vm3224, %v4051, %v5471
        %v5473 = vsel %vm3226, %v5444, %v5472
        %v5474 = vsel %vm3214, %v4053, %v4052
        %v5475 = vsel %vm3216, %v4054, %v5474
        %v5476 = vsel %vm3218, %v4055, %v5475
        %v5477 = vsel %vm3220, %v4056, %v5476
        %v5478 = vsel %vm3222, %v4057, %v5477
        %v5479 = vsel %vm3224, %v4058, %v5478
        %v5480 = vsel %vm3226, %v4059, %v5479
        %v5481 = vsel %vm3214, %v4061, %v4060
        %v5482 = vsel %vm3216, %v4062, %v5481
        %v5483 = vsel %vm3218, %v4063, %v5482
        %v5484 = vsel %vm3220, %v4064, %v5483
        %v5485 = vsel %vm3222, %v4065, %v5484
        %v5486 = vsel %vm3224, %v4066, %v5485
        %v5487 = vsel %vm3226, %v5445, %v5486
        %v5488 = vsel %vm3214, %v4068, %v4067
        %v5489 = vsel %vm3216, %v4069, %v5488
        %v5490 = vsel %vm3218, %v4070, %v5489
        %v5491 = vsel %vm3220, %v4071, %v5490
        %v5492 = vsel %vm3222, %v4072, %v5491
        %v5493 = vsel %vm3224, %v4073, %v5492
        %v5494 = vsel %vm3226, %v4074, %v5493
        %v5495 = vsel %vm3214, %v4076, %v4075
        %v5496 = vsel %vm3216, %v4077, %v5495
        %v5497 = vsel %vm3218, %v4078, %v5496
        %v5498 = vsel %vm3220, %v4079, %v5497
        %v5499 = vsel %vm3222, %v4080, %v5498
        %v5500 = vsel %vm3224, %v4081, %v5499
        %v5501 = vsel %vm3226, %v5446, %v5500
        %v5502 = vsel %vm3214, %v4083, %v4082
        %v5503 = vsel %vm3216, %v4084, %v5502
        %v5504 = vsel %vm3218, %v4085, %v5503
        %v5505 = vsel %vm3220, %v4086, %v5504
        %v5506 = vsel %vm3222, %v4087, %v5505
        %v5507 = vsel %vm3224, %v4088, %v5506
        %v5508 = vsel %vm3226, %v4089, %v5507
        %v5509 = vsel %vm3214, %v4091, %v4090
        %v5510 = vsel %vm3216, %v4092, %v5509
        %v5511 = vsel %vm3218, %v4093, %v5510
        %v5512 = vsel %vm3220, %v4094, %v5511
        %v5513 = vsel %vm3222, %v4095, %v5512
        %v5514 = vsel %vm3224, %v4096, %v5513
        %v5515 = vsel %vm3226, %v5447, %v5514
        %v5516 = vsel %vm3214, %v4098, %v4097
        %v5517 = vsel %vm3216, %v4099, %v5516
        %v5518 = vsel %vm3218, %v4100, %v5517
        %v5519 = vsel %vm3220, %v4101, %v5518
        %v5520 = vsel %vm3222, %v4102, %v5519
        %v5521 = vsel %vm3224, %v4103, %v5520
        %v5522 = vsel %vm3226, %v4104, %v5521
        %v5523 = vsel %vm3214, %v4106, %v4105
        %v5524 = vsel %vm3216, %v4107, %v5523
        %v5525 = vsel %vm3218, %v4108, %v5524
        %v5526 = vsel %vm3220, %v4109, %v5525
        %v5527 = vsel %vm3222, %v4110, %v5526
        %v5528 = vsel %vm3224, %v4111, %v5527
        %v5529 = vsel %vm3226, %v5448, %v5528
        %v5530 = vsel %vm3214, %v4113, %v4112
        %v5531 = vsel %vm3216, %v4114, %v5530
        %v5532 = vsel %vm3218, %v4115, %v5531
        %v5533 = vsel %vm3220, %v4116, %v5532
        %v5534 = vsel %vm3222, %v4117, %v5533
        %v5535 = vsel %vm3224, %v4118, %v5534
        %v5536 = vsel %vm3226, %v4119, %v5535
        %v5537 = vsel %vm3214, %v4121, %v4120
        %v5538 = vsel %vm3216, %v4122, %v5537
        %v5539 = vsel %vm3218, %v4123, %v5538
        %v5540 = vsel %vm3220, %v4124, %v5539
        %v5541 = vsel %vm3222, %v4125, %v5540
        %v5542 = vsel %vm3224, %v4126, %v5541
        %v5543 = vsel %vm3226, %v5449, %v5542
        %v5544 = vsel %vm3214, %v4128, %v4127
        %v5545 = vsel %vm3216, %v4129, %v5544
        %v5546 = vsel %vm3218, %v4130, %v5545
        %v5547 = vsel %vm3220, %v4131, %v5546
        %v5548 = vsel %vm3222, %v4132, %v5547
        %v5549 = vsel %vm3224, %v4133, %v5548
        %v5550 = vsel %vm3226, %v4134, %v5549
        %v5551 = vsel %vm3214, %v4136, %v4135
        %v5552 = vsel %vm3216, %v4137, %v5551
        %v5553 = vsel %vm3218, %v4138, %v5552
        %v5554 = vsel %vm3220, %v4139, %v5553
        %v5555 = vsel %vm3222, %v4140, %v5554
        %v5556 = vsel %vm3224, %v4141, %v5555
        %v5557 = vsel %vm3226, %v5450, %v5556
        %v5558 = vsel %vm3214, %v4143, %v4142
        %v5559 = vsel %vm3216, %v4144, %v5558
        %v5560 = vsel %vm3218, %v4145, %v5559
        %v5561 = vsel %vm3220, %v4146, %v5560
        %v5562 = vsel %vm3222, %v4147, %v5561
        %v5563 = vsel %vm3224, %v4148, %v5562
        %v5564 = vsel %vm3226, %v4149, %v5563
        %v5565 = vsel %vm3214, %v4151, %v4150
        %v5566 = vsel %vm3216, %v4152, %v5565
        %v5567 = vsel %vm3218, %v4153, %v5566
        %v5568 = vsel %vm3220, %v4154, %v5567
        %v5569 = vsel %vm3222, %v4155, %v5568
        %v5570 = vsel %vm3224, %v4156, %v5569
        %v5571 = vsel %vm3226, %v5451, %v5570
        %v5572 = vsel %vm3214, %v4158, %v4157
        %v5573 = vsel %vm3216, %v4159, %v5572
        %v5574 = vsel %vm3218, %v4160, %v5573
        %v5575 = vsel %vm3220, %v4161, %v5574
        %v5576 = vsel %vm3222, %v4162, %v5575
        %v5577 = vsel %vm3224, %v4163, %v5576
        %v5578 = vsel %vm3226, %v4164, %v5577
        %v5579 = vsel %vm3214, %v4166, %v4165
        %v5580 = vsel %vm3216, %v4167, %v5579
        %v5581 = vsel %vm3218, %v4168, %v5580
        %v5582 = vsel %vm3220, %v4169, %v5581
        %v5583 = vsel %vm3222, %v4170, %v5582
        %v5584 = vsel %vm3224, %v4171, %v5583
        %v5585 = vsel %vm3226, %v5452, %v5584
        %v5586 = vsel %vm3214, %v4173, %v4172
        %v5587 = vsel %vm3216, %v4174, %v5586
        %v5588 = vsel %vm3218, %v4175, %v5587
        %v5589 = vsel %vm3220, %v4176, %v5588
        %v5590 = vsel %vm3222, %v4177, %v5589
        %v5591 = vsel %vm3224, %v4178, %v5590
        %v5592 = vsel %vm3226, %v4179, %v5591
        %v5593 = vsel %vm3214, %v4181, %v4180
        %v5594 = vsel %vm3216, %v4182, %v5593
        %v5595 = vsel %vm3218, %v4183, %v5594
        %v5596 = vsel %vm3220, %v4184, %v5595
        %v5597 = vsel %vm3222, %v4185, %v5596
        %v5598 = vsel %vm3224, %v4186, %v5597
        %v5599 = vsel %vm3226, %v5453, %v5598
        %v5600 = vsel %vm3214, %v4188, %v4187
        %v5601 = vsel %vm3216, %v4189, %v5600
        %v5602 = vsel %vm3218, %v4190, %v5601
        %v5603 = vsel %vm3220, %v4191, %v5602
        %v5604 = vsel %vm3222, %v4192, %v5603
        %v5605 = vsel %vm3224, %v4193, %v5604
        %v5606 = vsel %vm3226, %v4194, %v5605
        %v5607 = vsel %vm3214, %v4196, %v4195
        %v5608 = vsel %vm3216, %v4197, %v5607
        %v5609 = vsel %vm3218, %v4198, %v5608
        %v5610 = vsel %vm3220, %v4199, %v5609
        %v5611 = vsel %vm3222, %v4200, %v5610
        %v5612 = vsel %vm3224, %v4201, %v5611
        %v5613 = vsel %vm3226, %v5454, %v5612
        %v5614 = vsel %vm3214, %v4203, %v4202
        %v5615 = vsel %vm3216, %v4204, %v5614
        %v5616 = vsel %vm3218, %v4205, %v5615
        %v5617 = vsel %vm3220, %v4206, %v5616
        %v5618 = vsel %vm3222, %v4207, %v5617
        %v5619 = vsel %vm3224, %v4208, %v5618
        %v5620 = vsel %vm3226, %v4209, %v5619
        %v5621 = vsel %vm3214, %v4211, %v4210
        %v5622 = vsel %vm3216, %v4212, %v5621
        %v5623 = vsel %vm3218, %v4213, %v5622
        %v5624 = vsel %vm3220, %v4214, %v5623
        %v5625 = vsel %vm3222, %v4215, %v5624
        %v5626 = vsel %vm3224, %v4216, %v5625
        %v5627 = vsel %vm3226, %v5455, %v5626
        %v5628 = vsel %vm3214, %v4218, %v4217
        %v5629 = vsel %vm3216, %v4219, %v5628
        %v5630 = vsel %vm3218, %v4220, %v5629
        %v5631 = vsel %vm3220, %v4221, %v5630
        %v5632 = vsel %vm3222, %v4222, %v5631
        %v5633 = vsel %vm3224, %v4223, %v5632
        %v5634 = vsel %vm3226, %v4224, %v5633
        %v5635 = vsel %vm3214, %v4226, %v4225
        %v5636 = vsel %vm3216, %v4227, %v5635
        %v5637 = vsel %vm3218, %v4228, %v5636
        %v5638 = vsel %vm3220, %v4229, %v5637
        %v5639 = vsel %vm3222, %v4230, %v5638
        %v5640 = vsel %vm3224, %v4231, %v5639
        %v5641 = vsel %vm3226, %v5456, %v5640
        %v5642 = vsel %vm3214, %v4233, %v4232
        %v5643 = vsel %vm3216, %v4234, %v5642
        %v5644 = vsel %vm3218, %v4235, %v5643
        %v5645 = vsel %vm3220, %v4236, %v5644
        %v5646 = vsel %vm3222, %v4237, %v5645
        %v5647 = vsel %vm3224, %v4238, %v5646
        %v5648 = vsel %vm3226, %v4239, %v5647
        %v5649 = vsel %vm3214, %v4241, %v4240
        %v5650 = vsel %vm3216, %v4242, %v5649
        %v5651 = vsel %vm3218, %v4243, %v5650
        %v5652 = vsel %vm3220, %v4244, %v5651
        %v5653 = vsel %vm3222, %v4245, %v5652
        %v5654 = vsel %vm3224, %v4246, %v5653
        %v5655 = vsel %vm3226, %v5457, %v5654
        %v5656 = vsel %vm3214, %v4248, %v4247
        %v5657 = vsel %vm3216, %v4249, %v5656
        %v5658 = vsel %vm3218, %v4250, %v5657
        %v5659 = vsel %vm3220, %v4251, %v5658
        %v5660 = vsel %vm3222, %v4252, %v5659
        %v5661 = vsel %vm3224, %v4253, %v5660
        %v5662 = vsel %vm3226, %v4254, %v5661
        %v5663 = vsel %vm3214, %v4256, %v4255
        %v5664 = vsel %vm3216, %v4257, %v5663
        %v5665 = vsel %vm3218, %v4258, %v5664
        %v5666 = vsel %vm3220, %v4259, %v5665
        %v5667 = vsel %vm3222, %v4260, %v5666
        %v5668 = vsel %vm3224, %v4261, %v5667
        %v5669 = vsel %vm3226, %v5458, %v5668
        %v5670 = vsel %vm3214, %v4263, %v4262
        %v5671 = vsel %vm3216, %v4264, %v5670
        %v5672 = vsel %vm3218, %v4265, %v5671
        %v5673 = vsel %vm3220, %v4266, %v5672
        %v5674 = vsel %vm3222, %v4267, %v5673
        %v5675 = vsel %vm3224, %v4268, %v5674
        %v5676 = vsel %vm3226, %v4269, %v5675
        %v5677 = vsel %vm3214, %v4271, %v4270
        %v5678 = vsel %vm3216, %v4272, %v5677
        %v5679 = vsel %vm3218, %v4273, %v5678
        %v5680 = vsel %vm3220, %v4274, %v5679
        %v5681 = vsel %vm3222, %v4275, %v5680
        %v5682 = vsel %vm3224, %v4276, %v5681
        %v5683 = vsel %vm3226, %v5459, %v5682
        %v5716 = vmax.f32 %v5412, %v5466
        %v5717 = vmax.f32 %v5413, %v5473
        %v5718 = vmax.f32 %v5414, %v5480
        %v5719 = vmax.f32 %v5415, %v5487
        %v5720 = vmax.f32 %v5416, %v5494
        %v5721 = vmax.f32 %v5417, %v5501
        %v5722 = vmax.f32 %v5418, %v5508
        %v5723 = vmax.f32 %v5419, %v5515
        %v5724 = vmax.f32 %v5420, %v5522
        %v5725 = vmax.f32 %v5421, %v5529
        %v5726 = vmax.f32 %v5422, %v5536
        %v5727 = vmax.f32 %v5423, %v5543
        %v5728 = vmax.f32 %v5424, %v5550
        %v5729 = vmax.f32 %v5425, %v5557
        %v5730 = vmax.f32 %v5426, %v5564
        %v5731 = vmax.f32 %v5427, %v5571
        %v5732 = vmax.f32 %v5428, %v5578
        %v5733 = vmax.f32 %v5429, %v5585
        %v5734 = vmax.f32 %v5430, %v5592
        %v5735 = vmax.f32 %v5431, %v5599
        %v5736 = vmax.f32 %v5432, %v5606
        %v5737 = vmax.f32 %v5433, %v5613
        %v5738 = vmax.f32 %v5434, %v5620
        %v5739 = vmax.f32 %v5435, %v5627
        %v5740 = vmax.f32 %v5436, %v5634
        %v5741 = vmax.f32 %v5437, %v5641
        %v5742 = vmax.f32 %v5438, %v5648
        %v5743 = vmax.f32 %v5439, %v5655
        %v5744 = vmax.f32 %v5440, %v5662
        %v5745 = vmax.f32 %v5441, %v5669
        %v5746 = vmax.f32 %v5442, %v5676
        %v5747 = vmax.f32 %v5443, %v5683
        %v5748 = vmax.f32 %v5716, %v4788
        %v5749 = vmax.f32 %v5717, %v4560
        %v5750 = vmax.f32 %v5718, %v4789
        %v5751 = vmax.f32 %v5719, %v4573
        %v5752 = vmax.f32 %v5720, %v4790
        %v5753 = vmax.f32 %v5721, %v4586
        %v5754 = vmax.f32 %v5722, %v4791
        %v5755 = vmax.f32 %v5723, %v4599
        %v5756 = vmax.f32 %v5724, %v4792
        %v5757 = vmax.f32 %v5725, %v4612
        %v5758 = vmax.f32 %v5726, %v4793
        %v5759 = vmax.f32 %v5727, %v4625
        %v5760 = vmax.f32 %v5728, %v4794
        %v5761 = vmax.f32 %v5729, %v4638
        %v5762 = vmax.f32 %v5730, %v4795
        %v5763 = vmax.f32 %v5731, %v4651
        %v5764 = vmax.f32 %v5732, %v4796
        %v5765 = vmax.f32 %v5733, %v4664
        %v5766 = vmax.f32 %v5734, %v4797
        %v5767 = vmax.f32 %v5735, %v4677
        %v5768 = vmax.f32 %v5736, %v4798
        %v5769 = vmax.f32 %v5737, %v4690
        %v5770 = vmax.f32 %v5738, %v4799
        %v5771 = vmax.f32 %v5739, %v4703
        %v5772 = vmax.f32 %v5740, %v4800
        %v5773 = vmax.f32 %v5741, %v4716
        %v5774 = vmax.f32 %v5742, %v4801
        %v5775 = vmax.f32 %v5743, %v4729
        %v5776 = vmax.f32 %v5744, %v4802
        %v5777 = vmax.f32 %v5745, %v4742
        %v5778 = vmax.f32 %v5746, %v4803
        %v5779 = vmax.f32 %v5747, %v4755
        %v5780 = vperm.slane %v2458, 0
        %v5781 = vperm.slane %v2962, 0
        %v5782 = vperm.slane %v2963, 0
        %v5783 = vperm.slane %v2964, 0
        %v5784 = vperm.slane %v2459, 0
        %v5785 = vperm.slane %v2965, 0
        %v5786 = vperm.slane %v2966, 0
        %v5787 = vperm.slane %v2967, 0
        %v5788 = vperm.slane %v2460, 0
        %v5789 = vperm.slane %v2968, 0
        %v5790 = vperm.slane %v2969, 0
        %v5791 = vperm.slane %v2970, 0
        %v5792 = vperm.slane %v2461, 0
        %v5793 = vperm.slane %v2971, 0
        %v5794 = vperm.slane %v2972, 0
        %v5795 = vperm.slane %v2973, 0
        %v5796 = vsel %vm3214, %v5781, %v5780
        %v5797 = vsel %vm3216, %v5782, %v5796
        %v5798 = vsel %vm3218, %v5783, %v5797
        %v5799 = vsel %vm3220, %v5784, %v5798
        %v5800 = vsel %vm3222, %v5785, %v5799
        %v5801 = vsel %vm3224, %v5786, %v5800
        %v5802 = vsel %vm3226, %v5787, %v5801
        %v5803 = vsel %vm3214, %v5789, %v5788
        %v5804 = vsel %vm3216, %v5790, %v5803
        %v5805 = vsel %vm3218, %v5791, %v5804
        %v5806 = vsel %vm3220, %v5792, %v5805
        %v5807 = vsel %vm3222, %v5793, %v5806
        %v5808 = vsel %vm3224, %v5794, %v5807
        %v5809 = vsel %vm3226, %v5795, %v5808
        %v5812 = vmax.f32 %v5748, %v3803
        %v5813 = vmax.f32 %v5749, %v3810
        %v5814 = vmax.f32 %v5750, %v3817
        %v5815 = vmax.f32 %v5751, %v3824
        %v5816 = vmax.f32 %v5752, %v3831
        %v5817 = vmax.f32 %v5753, %v3838
        %v5818 = vmax.f32 %v5754, %v3845
        %v5819 = vmax.f32 %v5755, %v3852
        %v5820 = vmax.f32 %v5756, %v3859
        %v5821 = vmax.f32 %v5757, %v3866
        %v5822 = vmax.f32 %v5758, %v3873
        %v5823 = vmax.f32 %v5759, %v3880
        %v5824 = vmax.f32 %v5760, %v3887
        %v5825 = vmax.f32 %v5761, %v3894
        %v5826 = vmax.f32 %v5762, %v3901
        %v5827 = vmax.f32 %v5763, %v3908
        %v5828 = vmax.f32 %v5764, %v3915
        %v5829 = vmax.f32 %v5765, %v3922
        %v5830 = vmax.f32 %v5766, %v3929
        %v5831 = vmax.f32 %v5767, %v3936
        %v5832 = vmax.f32 %v5768, %v3943
        %v5833 = vmax.f32 %v5769, %v3950
        %v5834 = vmax.f32 %v5770, %v3957
        %v5835 = vmax.f32 %v5771, %v3964
        %v5836 = vmax.f32 %v5772, %v3971
        %v5837 = vmax.f32 %v5773, %v3978
        %v5838 = vmax.f32 %v5774, %v3985
        %v5839 = vmax.f32 %v5775, %v3992
        %v5840 = vmax.f32 %v5776, %v3999
        %v5841 = vmax.f32 %v5777, %v4006
        %v5842 = vmax.f32 %v5778, %v5802
        %v5843 = vmax.f32 %v5779, %v5809
        %v5844 = vperm.slane %v2973, 1
        %v5845 = vsel %vm3214, %v4534, %v4533
        %v5846 = vsel %vm3216, %v4535, %v5845
        %v5847 = vsel %vm3218, %v4536, %v5846
        %v5848 = vsel %vm3220, %v4537, %v5847
        %v5849 = vsel %vm3222, %v4538, %v5848
        %v5850 = vsel %vm3224, %v4539, %v5849
        %v5851 = vsel %vm3226, %v4540, %v5850
        %v5852 = vsel %vm3214, %v4542, %v4541
        %v5853 = vsel %vm3216, %v4543, %v5852
        %v5854 = vsel %vm3218, %v4544, %v5853
        %v5855 = vsel %vm3220, %v4545, %v5854
        %v5856 = vsel %vm3222, %v4546, %v5855
        %v5857 = vsel %vm3224, %v4547, %v5856
        %v5858 = vsel %vm3226, %v5844, %v5857
        %v5861 = vmax.f32 %v5812, %v3227
        %v5862 = vmax.f32 %v5813, %v3234
        %v5863 = vmax.f32 %v5814, %v3241
        %v5864 = vmax.f32 %v5815, %v3248
        %v5865 = vmax.f32 %v5816, %v3255
        %v5866 = vmax.f32 %v5817, %v3262
        %v5867 = vmax.f32 %v5818, %v3269
        %v5868 = vmax.f32 %v5819, %v3276
        %v5869 = vmax.f32 %v5820, %v3283
        %v5870 = vmax.f32 %v5821, %v3290
        %v5871 = vmax.f32 %v5822, %v3297
        %v5872 = vmax.f32 %v5823, %v3304
        %v5873 = vmax.f32 %v5824, %v3311
        %v5874 = vmax.f32 %v5825, %v3318
        %v5875 = vmax.f32 %v5826, %v3325
        %v5876 = vmax.f32 %v5827, %v3332
        %v5877 = vmax.f32 %v5828, %v3339
        %v5878 = vmax.f32 %v5829, %v3346
        %v5879 = vmax.f32 %v5830, %v3353
        %v5880 = vmax.f32 %v5831, %v3360
        %v5881 = vmax.f32 %v5832, %v3367
        %v5882 = vmax.f32 %v5833, %v3374
        %v5883 = vmax.f32 %v5834, %v3381
        %v5884 = vmax.f32 %v5835, %v3388
        %v5885 = vmax.f32 %v5836, %v3395
        %v5886 = vmax.f32 %v5837, %v3402
        %v5887 = vmax.f32 %v5838, %v3409
        %v5888 = vmax.f32 %v5839, %v3416
        %v5889 = vmax.f32 %v5840, %v3423
        %v5890 = vmax.f32 %v5841, %v3430
        %v5891 = vmax.f32 %v5842, %v5851
        %v5892 = vmax.f32 %v5843, %v5858
        %v5893 = vpack.c.bf16 %v5862, %v5861
        %v5894 = vpack.c.bf16 %v5864, %v5863
        %v5895 = vpack.c.bf16 %v5866, %v5865
        %v5896 = vpack.c.bf16 %v5868, %v5867
        %v5897 = vpack.c.bf16 %v5870, %v5869
        %v5898 = vpack.c.bf16 %v5872, %v5871
        %v5899 = vpack.c.bf16 %v5874, %v5873
        %v5900 = vpack.c.bf16 %v5876, %v5875
        %v5901 = vpack.c.bf16 %v5878, %v5877
        %v5902 = vpack.c.bf16 %v5880, %v5879
        %v5903 = vpack.c.bf16 %v5882, %v5881
        %v5904 = vpack.c.bf16 %v5884, %v5883
        %v5905 = vpack.c.bf16 %v5886, %v5885
        %v5906 = vpack.c.bf16 %v5888, %v5887
        %v5907 = vpack.c.bf16 %v5890, %v5889
        %v5908 = vpack.c.bf16 %v5892, %v5891
        %v5909 = vld [vmem:[%s3] sm:$0xf]
        %v5910 = vld [vmem:[%s3 + $0x4] sm:$0xf]
        %v5911 = vld [vmem:[%s3 + $0x8] sm:$0xf]
        %v5912 = vld [vmem:[%s3 + $0xc] sm:$0xf]
        %v5913 = vld [vmem:[%s4] sm:$0x1]
        %v5915 = vperm.slane %v5913, 0
        %v5921 = vunpack.c.l.b16 %v5909
        %v5922 = vunpack.c.l.b16 %v5910
        %v5923 = vunpack.c.l.b16 %v5911
        %v5924 = vunpack.c.l.b16 %v5912
        %v5925 = vpack.c.b16 %v5922, %v5921
        %v5926 = vpack.c.b16 %v5924, %v5923
        %vm5929 = vcmask 261120
        %v5931 = vsel %vm5929, %v5893, 0
        %v5934 = vsel %vm5929, %v5894, 0
        %v5937 = vsel %vm5929, %v5895, 0
        %v5940 = vsel %vm5929, %v5896, 0
        %v5943 = vsel %vm5929, %v5897, 0
        %v5946 = vsel %vm5929, %v5898, 0
        %v5949 = vsel %vm5929, %v5899, 0
        %v5952 = vsel %vm5929, %v5900, 0
        %v5955 = vsel %vm5929, %v5901, 0
        %v5958 = vsel %vm5929, %v5902, 0
        %v5961 = vsel %vm5929, %v5903, 0
        %v5964 = vsel %vm5929, %v5904, 0
        %v5967 = vsel %vm5929, %v5905, 0
        %v5970 = vsel %vm5929, %v5906, 0
        %v5973 = vsel %vm5929, %v5907, 0
        %v5976 = vsel %vm5929, %v5908, 0
        %5978 = vmatpush.bf16.msra.mxu0 0
        %5979 = vmatpush.bf16.msra.mxu0 0
        %5980 = vmatpush.bf16.msra.mxu0 0
        %5981 = vmatpush.bf16.msra.mxu0 0
        %5982 = vmatpush.bf16.msra.mxu0 0
        %5983 = vmatpush.bf16.msra.mxu0 0
        %5984 = vmatpush.bf16.msra.mxu0 %v5926
        %5985 = vmatpush.bf16.msra.mxu0 %v5925
        %5986 = vmatmul.bf16.gmra.mxu0 %v5931
        %v5987 = vpop.f32.mrf.mxu0
        %v5988 = vadd.f32 %v5915, %v5987
        %v5989 = vpop.f32.mrf.mxu0
        %v5990 = vadd.f32 %v5915, %v5989
        %5991 = vmatmul.bf16.gmra.mxu0 %v5934
        %v5992 = vpop.f32.mrf.mxu0
        %v5993 = vadd.f32 %v5915, %v5992
        %v5994 = vpop.f32.mrf.mxu0
        %v5995 = vadd.f32 %v5915, %v5994
        %5996 = vmatmul.bf16.gmra.mxu0 %v5937
        %v5997 = vpop.f32.mrf.mxu0
        %v5998 = vadd.f32 %v5915, %v5997
        %v5999 = vpop.f32.mrf.mxu0
        %v6000 = vadd.f32 %v5915, %v5999
        %6001 = vmatmul.bf16.gmra.mxu0 %v5940
        %v6002 = vpop.f32.mrf.mxu0
        %v6003 = vadd.f32 %v5915, %v6002
        %v6004 = vpop.f32.mrf.mxu0
        %v6005 = vadd.f32 %v5915, %v6004
        %6006 = vmatmul.bf16.gmra.mxu0 %v5943
        %v6007 = vpop.f32.mrf.mxu0
        %v6008 = vadd.f32 %v5915, %v6007
        %v6009 = vpop.f32.mrf.mxu0
        %v6010 = vadd.f32 %v5915, %v6009
        %6011 = vmatmul.bf16.gmra.mxu0 %v5946
        %v6012 = vpop.f32.mrf.mxu0
        %v6013 = vadd.f32 %v5915, %v6012
        %v6014 = vpop.f32.mrf.mxu0
        %v6015 = vadd.f32 %v5915, %v6014
        %6016 = vmatmul.bf16.gmra.mxu0 %v5949
        %v6017 = vpop.f32.mrf.mxu0
        %v6018 = vadd.f32 %v5915, %v6017
        %v6019 = vpop.f32.mrf.mxu0
        %v6020 = vadd.f32 %v5915, %v6019
        %6021 = vmatmul.bf16.gmra.mxu0 %v5952
        %v6022 = vpop.f32.mrf.mxu0
        %v6023 = vadd.f32 %v5915, %v6022
        %v6024 = vpop.f32.mrf.mxu0
        %v6025 = vadd.f32 %v5915, %v6024
        %6026 = vmatmul.bf16.gmra.mxu0 %v5955
        %v6027 = vpop.f32.mrf.mxu0
        %v6028 = vadd.f32 %v5915, %v6027
        %v6029 = vpop.f32.mrf.mxu0
        %v6030 = vadd.f32 %v5915, %v6029
        %6031 = vmatmul.bf16.gmra.mxu0 %v5958
        %v6032 = vpop.f32.mrf.mxu0
        %v6033 = vadd.f32 %v5915, %v6032
        %v6034 = vpop.f32.mrf.mxu0
        %v6035 = vadd.f32 %v5915, %v6034
        %6036 = vmatmul.bf16.gmra.mxu0 %v5961
        %v6037 = vpop.f32.mrf.mxu0
        %v6038 = vadd.f32 %v5915, %v6037
        %v6039 = vpop.f32.mrf.mxu0
        %v6040 = vadd.f32 %v5915, %v6039
        %6041 = vmatmul.bf16.gmra.mxu0 %v5964
        %v6042 = vpop.f32.mrf.mxu0
        %v6043 = vadd.f32 %v5915, %v6042
        %v6044 = vpop.f32.mrf.mxu0
        %v6045 = vadd.f32 %v5915, %v6044
        %6046 = vmatmul.bf16.gmra.mxu0 %v5967
        %v6047 = vpop.f32.mrf.mxu0
        %v6048 = vadd.f32 %v5915, %v6047
        %v6049 = vpop.f32.mrf.mxu0
        %v6050 = vadd.f32 %v5915, %v6049
        %6051 = vmatmul.bf16.gmra.mxu0 %v5970
        %v6052 = vpop.f32.mrf.mxu0
        %v6053 = vadd.f32 %v5915, %v6052
        %v6054 = vpop.f32.mrf.mxu0
        %v6055 = vadd.f32 %v5915, %v6054
        %6056 = vmatmul.bf16.gmra.mxu0 %v5973
        %v6057 = vpop.f32.mrf.mxu0
        %v6058 = vadd.f32 %v5915, %v6057
        %v6059 = vpop.f32.mrf.mxu0
        %v6060 = vadd.f32 %v5915, %v6059
        %6061 = vmatmul.bf16.gmra.mxu0 %v5976
        %v6062 = vpop.f32.mrf.mxu0
        %v6063 = vadd.f32 %v5915, %v6062
        %v6064 = vpop.f32.mrf.mxu0
        %v6065 = vadd.f32 %v5915, %v6064
        %6066 = vdwg.mxu0
        %v6067 = vmax.f32 %v5988, 0.0
        %v6068 = vmax.f32 %v5990, 0.0
        %v6069 = vmax.f32 %v5993, 0.0
        %v6070 = vmax.f32 %v5995, 0.0
        %v6071 = vmax.f32 %v5998, 0.0
        %v6072 = vmax.f32 %v6000, 0.0
        %v6073 = vmax.f32 %v6003, 0.0
        %v6074 = vmax.f32 %v6005, 0.0
        %v6075 = vmax.f32 %v6008, 0.0
        %v6076 = vmax.f32 %v6010, 0.0
        %v6077 = vmax.f32 %v6013, 0.0
        %v6078 = vmax.f32 %v6015, 0.0
        %v6079 = vmax.f32 %v6018, 0.0
        %v6080 = vmax.f32 %v6020, 0.0
        %v6081 = vmax.f32 %v6023, 0.0
        %v6082 = vmax.f32 %v6025, 0.0
        %v6083 = vmax.f32 %v6028, 0.0
        %v6084 = vmax.f32 %v6030, 0.0
        %v6085 = vmax.f32 %v6033, 0.0
        %v6086 = vmax.f32 %v6035, 0.0
        %v6087 = vmax.f32 %v6038, 0.0
        %v6088 = vmax.f32 %v6040, 0.0
        %v6089 = vmax.f32 %v6043, 0.0
        %v6090 = vmax.f32 %v6045, 0.0
        %v6091 = vmax.f32 %v6048, 0.0
        %v6092 = vmax.f32 %v6050, 0.0
        %v6093 = vmax.f32 %v6053, 0.0
        %v6094 = vmax.f32 %v6055, 0.0
        %v6095 = vmax.f32 %v6058, 0.0
        %v6096 = vmax.f32 %v6060, 0.0
        %v6097 = vmax.f32 %v6063, 0.0
        %v6098 = vmax.f32 %v6065, 0.0
        %v6129 = vrot.slane %v6067, 7
        %v6130 = vrot.slane %v6068, 7
        %v6131 = vsel %vm1669, %v6129, %v6130
        %v6132 = vrot.slane %v6069, 7
        %v6133 = vrot.slane %v6070, 7
        %v6134 = vsel %vm1669, %v6132, %v6133
        %v6135 = vrot.slane %v6071, 7
        %v6136 = vrot.slane %v6072, 7
        %v6137 = vsel %vm1669, %v6135, %v6136
        %v6138 = vrot.slane %v6073, 7
        %v6139 = vrot.slane %v6074, 7
        %v6140 = vsel %vm1669, %v6138, %v6139
        %v6141 = vrot.slane %v6075, 7
        %v6142 = vrot.slane %v6076, 7
        %v6143 = vsel %vm1669, %v6141, %v6142
        %v6144 = vrot.slane %v6077, 7
        %v6145 = vrot.slane %v6078, 7
        %v6146 = vsel %vm1669, %v6144, %v6145
        %v6147 = vrot.slane %v6079, 7
        %v6148 = vrot.slane %v6080, 7
        %v6149 = vsel %vm1669, %v6147, %v6148
        %v6150 = vrot.slane %v6081, 7
        %v6151 = vrot.slane %v6082, 7
        %v6152 = vsel %vm1669, %v6150, %v6151
        %v6153 = vrot.slane %v6083, 7
        %v6154 = vrot.slane %v6084, 7
        %v6155 = vsel %vm1669, %v6153, %v6154
        %v6156 = vrot.slane %v6085, 7
        %v6157 = vrot.slane %v6086, 7
        %v6158 = vsel %vm1669, %v6156, %v6157
        %v6159 = vrot.slane %v6087, 7
        %v6160 = vrot.slane %v6088, 7
        %v6161 = vsel %vm1669, %v6159, %v6160
        %v6162 = vrot.slane %v6089, 7
        %v6163 = vrot.slane %v6090, 7
        %v6164 = vsel %vm1669, %v6162, %v6163
        %v6165 = vrot.slane %v6091, 7
        %v6166 = vrot.slane %v6092, 7
        %v6167 = vsel %vm1669, %v6165, %v6166
        %v6168 = vrot.slane %v6093, 7
        %v6169 = vrot.slane %v6094, 7
        %v6170 = vsel %vm1669, %v6168, %v6169
        %v6171 = vrot.slane %v6095, 7
        %v6172 = vrot.slane %v6096, 7
        %v6173 = vsel %vm1669, %v6171, %v6172
        %v6204 = vsel %vm1669, 0.0, %v6129
        %v6205 = vsel %vm1669, 0.0, %v6132
        %v6206 = vsel %vm1669, 0.0, %v6135
        %v6207 = vsel %vm1669, 0.0, %v6138
        %v6208 = vsel %vm1669, 0.0, %v6141
        %v6209 = vsel %vm1669, 0.0, %v6144
        %v6210 = vsel %vm1669, 0.0, %v6147
        %v6211 = vsel %vm1669, 0.0, %v6150
        %v6212 = vsel %vm1669, 0.0, %v6153
        %v6213 = vsel %vm1669, 0.0, %v6156
        %v6214 = vsel %vm1669, 0.0, %v6159
        %v6215 = vsel %vm1669, 0.0, %v6162
        %v6216 = vsel %vm1669, 0.0, %v6165
        %v6217 = vsel %vm1669, 0.0, %v6168
        %v6218 = vsel %vm1669, 0.0, %v6171
        %vm6219 = vcmask 1046528
        %v6220 = vrot.slane 0.0, 1
        %v6221 = vsel %vm6219, %v6220, %v6220
        %v6222 = vrot.slane %v6067, 1
        %v6223 = vrot.slane %v6068, 1
        %v6224 = vsel %vm6219, %v6222, %v6223
        %v6225 = vrot.slane %v6069, 1
        %v6226 = vrot.slane %v6070, 1
        %v6227 = vsel %vm6219, %v6225, %v6226
        %v6228 = vrot.slane %v6071, 1
        %v6229 = vrot.slane %v6072, 1
        %v6230 = vsel %vm6219, %v6228, %v6229
        %v6231 = vrot.slane %v6073, 1
        %v6232 = vrot.slane %v6074, 1
        %v6233 = vsel %vm6219, %v6231, %v6232
        %v6234 = vrot.slane %v6075, 1
        %v6235 = vrot.slane %v6076, 1
        %v6236 = vsel %vm6219, %v6234, %v6235
        %v6237 = vrot.slane %v6077, 1
        %v6238 = vrot.slane %v6078, 1
        %v6239 = vsel %vm6219, %v6237, %v6238
        %v6240 = vrot.slane %v6079, 1
        %v6241 = vrot.slane %v6080, 1
        %v6242 = vsel %vm6219, %v6240, %v6241
        %v6243 = vrot.slane %v6081, 1
        %v6244 = vrot.slane %v6082, 1
        %v6245 = vsel %vm6219, %v6243, %v6244
        %v6246 = vrot.slane %v6083, 1
        %v6247 = vrot.slane %v6084, 1
        %v6248 = vsel %vm6219, %v6246, %v6247
        %v6249 = vrot.slane %v6085, 1
        %v6250 = vrot.slane %v6086, 1
        %v6251 = vsel %vm6219, %v6249, %v6250
        %v6252 = vrot.slane %v6087, 1
        %v6253 = vrot.slane %v6088, 1
        %v6254 = vsel %vm6219, %v6252, %v6253
        %v6255 = vrot.slane %v6089, 1
        %v6256 = vrot.slane %v6090, 1
        %v6257 = vsel %vm6219, %v6255, %v6256
        %v6258 = vrot.slane %v6091, 1
        %v6259 = vrot.slane %v6092, 1
        %v6260 = vsel %vm6219, %v6258, %v6259
        %v6261 = vrot.slane %v6093, 1
        %v6262 = vrot.slane %v6094, 1
        %v6263 = vsel %vm6219, %v6261, %v6262
        %v6264 = vrot.slane %v6095, 1
        %v6265 = vrot.slane %v6096, 1
        %v6266 = vsel %vm6219, %v6264, %v6265
        %v6283 = vsel %vm6219, %v6220, 0.0
        %v6284 = vsel %vm6219, %v6223, 0.0
        %v6285 = vsel %vm6219, %v6226, 0.0
        %v6286 = vsel %vm6219, %v6229, 0.0
        %v6287 = vsel %vm6219, %v6232, 0.0
        %v6288 = vsel %vm6219, %v6235, 0.0
        %v6289 = vsel %vm6219, %v6238, 0.0
        %v6290 = vsel %vm6219, %v6241, 0.0
        %v6291 = vsel %vm6219, %v6244, 0.0
        %v6292 = vsel %vm6219, %v6247, 0.0
        %v6293 = vsel %vm6219, %v6250, 0.0
        %v6294 = vsel %vm6219, %v6253, 0.0
        %v6295 = vsel %vm6219, %v6256, 0.0
        %v6296 = vsel %vm6219, %v6259, 0.0
        %v6297 = vsel %vm6219, %v6262, 0.0
        %v6298 = vsel %vm6219, %v6265, 0.0
        %v6301 = vrot.slane %v6097, 7
        %v6302 = vrot.slane %v6098, 7
        %v6303 = vsel %vm1669, %v6301, %v6302
        %v6305 = vsel %vm1669, 0.0, %v6301
        %v6306 = vrot.slane %v6097, 1
        %v6307 = vrot.slane %v6098, 1
        %v6308 = vsel %vm6219, %v6306, %v6307
        %v6310 = vsel %vm6219, %v6307, 0.0
        %6327 = vrot.lane.b32.xlu0 0.0, 16
        %v6328 = vpop.permute.xlu0 %6327
        %6329 = vrot.lane.b32.xlu0 %v6067, 16
        %v6330 = vpop.permute.xlu0 %6329
        %6331 = vrot.lane.b32.xlu0 %v6068, 16
        %v6332 = vpop.permute.xlu0 %6331
        %6333 = vrot.lane.b32.xlu0 %v6069, 16
        %v6334 = vpop.permute.xlu0 %6333
        %6335 = vrot.lane.b32.xlu0 %v6070, 16
        %v6336 = vpop.permute.xlu0 %6335
        %6337 = vrot.lane.b32.xlu0 %v6071, 16
        %v6338 = vpop.permute.xlu0 %6337
        %6339 = vrot.lane.b32.xlu0 %v6072, 16
        %v6340 = vpop.permute.xlu0 %6339
        %6341 = vrot.lane.b32.xlu0 %v6073, 16
        %v6342 = vpop.permute.xlu0 %6341
        %6343 = vrot.lane.b32.xlu0 %v6074, 16
        %v6344 = vpop.permute.xlu0 %6343
        %6345 = vrot.lane.b32.xlu0 %v6075, 16
        %v6346 = vpop.permute.xlu0 %6345
        %6347 = vrot.lane.b32.xlu0 %v6076, 16
        %v6348 = vpop.permute.xlu0 %6347
        %6349 = vrot.lane.b32.xlu0 %v6077, 16
        %v6350 = vpop.permute.xlu0 %6349
        %6351 = vrot.lane.b32.xlu0 %v6078, 16
        %v6352 = vpop.permute.xlu0 %6351
        %6353 = vrot.lane.b32.xlu0 %v6079, 16
        %v6354 = vpop.permute.xlu0 %6353
        %6355 = vrot.lane.b32.xlu0 %v6080, 16
        %v6356 = vpop.permute.xlu0 %6355
        %6357 = vrot.lane.b32.xlu0 %v6081, 16
        %v6358 = vpop.permute.xlu0 %6357
        %6359 = vrot.lane.b32.xlu0 %v6082, 16
        %v6360 = vpop.permute.xlu0 %6359
        %6361 = vrot.lane.b32.xlu0 %v6083, 16
        %v6362 = vpop.permute.xlu0 %6361
        %6363 = vrot.lane.b32.xlu0 %v6084, 16
        %v6364 = vpop.permute.xlu0 %6363
        %6365 = vrot.lane.b32.xlu0 %v6085, 16
        %v6366 = vpop.permute.xlu0 %6365
        %6367 = vrot.lane.b32.xlu0 %v6086, 16
        %v6368 = vpop.permute.xlu0 %6367
        %6369 = vrot.lane.b32.xlu0 %v6087, 16
        %v6370 = vpop.permute.xlu0 %6369
        %6371 = vrot.lane.b32.xlu0 %v6088, 16
        %v6372 = vpop.permute.xlu0 %6371
        %6373 = vrot.lane.b32.xlu0 %v6089, 16
        %v6374 = vpop.permute.xlu0 %6373
        %6375 = vrot.lane.b32.xlu0 %v6090, 16
        %v6376 = vpop.permute.xlu0 %6375
        %6377 = vrot.lane.b32.xlu0 %v6091, 16
        %v6378 = vpop.permute.xlu0 %6377
        %6379 = vrot.lane.b32.xlu0 %v6092, 16
        %v6380 = vpop.permute.xlu0 %6379
        %6381 = vrot.lane.b32.xlu0 %v6093, 16
        %v6382 = vpop.permute.xlu0 %6381
        %6383 = vrot.lane.b32.xlu0 %v6094, 16
        %v6384 = vpop.permute.xlu0 %6383
        %6385 = vrot.lane.b32.xlu0 %v6095, 16
        %v6386 = vpop.permute.xlu0 %6385
        %6387 = vrot.lane.b32.xlu0 %v6096, 16
        %v6388 = vpop.permute.xlu0 %6387
        %6436 = vrot.lane.b32.xlu0 %v6221, 32
        %v6437 = vpop.permute.xlu0 %6436
        %6438 = vrot.lane.b32.xlu0 %v6283, 32
        %v6439 = vpop.permute.xlu0 %6438
        %6440 = vrot.lane.b32.xlu0 %v6224, 32
        %v6441 = vpop.permute.xlu0 %6440
        %6442 = vrot.lane.b32.xlu0 %v6284, 32
        %v6443 = vpop.permute.xlu0 %6442
        %6444 = vrot.lane.b32.xlu0 %v6227, 32
        %v6445 = vpop.permute.xlu0 %6444
        %6446 = vrot.lane.b32.xlu0 %v6285, 32
        %v6447 = vpop.permute.xlu0 %6446
        %6448 = vrot.lane.b32.xlu0 %v6230, 32
        %v6449 = vpop.permute.xlu0 %6448
        %6450 = vrot.lane.b32.xlu0 %v6286, 32
        %v6451 = vpop.permute.xlu0 %6450
        %6452 = vrot.lane.b32.xlu0 %v6233, 32
        %v6453 = vpop.permute.xlu0 %6452
        %6454 = vrot.lane.b32.xlu0 %v6287, 32
        %v6455 = vpop.permute.xlu0 %6454
        %6456 = vrot.lane.b32.xlu0 %v6236, 32
        %v6457 = vpop.permute.xlu0 %6456
        %6458 = vrot.lane.b32.xlu0 %v6288, 32
        %v6459 = vpop.permute.xlu0 %6458
        %6460 = vrot.lane.b32.xlu0 %v6239, 32
        %v6461 = vpop.permute.xlu0 %6460
        %6462 = vrot.lane.b32.xlu0 %v6289, 32
        %v6463 = vpop.permute.xlu0 %6462
        %6464 = vrot.lane.b32.xlu0 %v6242, 32
        %v6465 = vpop.permute.xlu0 %6464
        %6466 = vrot.lane.b32.xlu0 %v6290, 32
        %v6467 = vpop.permute.xlu0 %6466
        %6468 = vrot.lane.b32.xlu0 %v6245, 32
        %v6469 = vpop.permute.xlu0 %6468
        %6470 = vrot.lane.b32.xlu0 %v6291, 32
        %v6471 = vpop.permute.xlu0 %6470
        %6472 = vrot.lane.b32.xlu0 %v6248, 32
        %v6473 = vpop.permute.xlu0 %6472
        %6474 = vrot.lane.b32.xlu0 %v6292, 32
        %v6475 = vpop.permute.xlu0 %6474
        %6476 = vrot.lane.b32.xlu0 %v6251, 32
        %v6477 = vpop.permute.xlu0 %6476
        %6478 = vrot.lane.b32.xlu0 %v6293, 32
        %v6479 = vpop.permute.xlu0 %6478
        %6480 = vrot.lane.b32.xlu0 %v6254, 32
        %v6481 = vpop.permute.xlu0 %6480
        %6482 = vrot.lane.b32.xlu0 %v6294, 32
        %v6483 = vpop.permute.xlu0 %6482
        %6484 = vrot.lane.b32.xlu0 %v6257, 32
        %v6485 = vpop.permute.xlu0 %6484
        %6486 = vrot.lane.b32.xlu0 %v6295, 32
        %v6487 = vpop.permute.xlu0 %6486
        %6488 = vrot.lane.b32.xlu0 %v6260, 32
        %v6489 = vpop.permute.xlu0 %6488
        %6490 = vrot.lane.b32.xlu0 %v6296, 32
        %v6491 = vpop.permute.xlu0 %6490
        %6492 = vrot.lane.b32.xlu0 %v6263, 32
        %v6493 = vpop.permute.xlu0 %6492
        %6494 = vrot.lane.b32.xlu0 %v6297, 32
        %v6495 = vpop.permute.xlu0 %6494
        %6496 = vrot.lane.b32.xlu0 %v6266, 32
        %v6497 = vpop.permute.xlu0 %6496
        %6498 = vrot.lane.b32.xlu0 %v6298, 32
        %v6499 = vpop.permute.xlu0 %6498
        %6548 = vrot.lane.b32.xlu0 %v6204, 48
        %v6549 = vpop.permute.xlu0 %6548
        %6550 = vrot.lane.b32.xlu0 %v6131, 48
        %v6551 = vpop.permute.xlu0 %6550
        %6552 = vrot.lane.b32.xlu0 %v6205, 48
        %v6553 = vpop.permute.xlu0 %6552
        %6554 = vrot.lane.b32.xlu0 %v6134, 48
        %v6555 = vpop.permute.xlu0 %6554
        %6556 = vrot.lane.b32.xlu0 %v6206, 48
        %v6557 = vpop.permute.xlu0 %6556
        %6558 = vrot.lane.b32.xlu0 %v6137, 48
        %v6559 = vpop.permute.xlu0 %6558
        %6560 = vrot.lane.b32.xlu0 %v6207, 48
        %v6561 = vpop.permute.xlu0 %6560
        %6562 = vrot.lane.b32.xlu0 %v6140, 48
        %v6563 = vpop.permute.xlu0 %6562
        %6564 = vrot.lane.b32.xlu0 %v6208, 48
        %v6565 = vpop.permute.xlu0 %6564
        %6566 = vrot.lane.b32.xlu0 %v6143, 48
        %v6567 = vpop.permute.xlu0 %6566
        %6568 = vrot.lane.b32.xlu0 %v6209, 48
        %v6569 = vpop.permute.xlu0 %6568
        %6570 = vrot.lane.b32.xlu0 %v6146, 48
        %v6571 = vpop.permute.xlu0 %6570
        %6572 = vrot.lane.b32.xlu0 %v6210, 48
        %v6573 = vpop.permute.xlu0 %6572
        %6574 = vrot.lane.b32.xlu0 %v6149, 48
        %v6575 = vpop.permute.xlu0 %6574
        %6576 = vrot.lane.b32.xlu0 %v6211, 48
        %v6577 = vpop.permute.xlu0 %6576
        %6578 = vrot.lane.b32.xlu0 %v6152, 48
        %v6579 = vpop.permute.xlu0 %6578
        %6580 = vrot.lane.b32.xlu0 %v6212, 48
        %v6581 = vpop.permute.xlu0 %6580
        %6582 = vrot.lane.b32.xlu0 %v6155, 48
        %v6583 = vpop.permute.xlu0 %6582
        %6584 = vrot.lane.b32.xlu0 %v6213, 48
        %v6585 = vpop.permute.xlu0 %6584
        %6586 = vrot.lane.b32.xlu0 %v6158, 48
        %v6587 = vpop.permute.xlu0 %6586
        %6588 = vrot.lane.b32.xlu0 %v6214, 48
        %v6589 = vpop.permute.xlu0 %6588
        %6590 = vrot.lane.b32.xlu0 %v6161, 48
        %v6591 = vpop.permute.xlu0 %6590
        %6592 = vrot.lane.b32.xlu0 %v6215, 48
        %v6593 = vpop.permute.xlu0 %6592
        %6594 = vrot.lane.b32.xlu0 %v6164, 48
        %v6595 = vpop.permute.xlu0 %6594
        %6596 = vrot.lane.b32.xlu0 %v6216, 48
        %v6597 = vpop.permute.xlu0 %6596
        %6598 = vrot.lane.b32.xlu0 %v6167, 48
        %v6599 = vpop.permute.xlu0 %6598
        %6600 = vrot.lane.b32.xlu0 %v6217, 48
        %v6601 = vpop.permute.xlu0 %6600
        %6602 = vrot.lane.b32.xlu0 %v6170, 48
        %v6603 = vpop.permute.xlu0 %6602
        %6604 = vrot.lane.b32.xlu0 %v6218, 48
        %v6605 = vpop.permute.xlu0 %6604
        %6606 = vrot.lane.b32.xlu0 %v6173, 48
        %v6607 = vpop.permute.xlu0 %6606
        %6608 = vrot.lane.b32.xlu0 %v6305, 48
        %v6609 = vpop.permute.xlu0 %6608
        %6610 = vrot.lane.b32.xlu0 %v6303, 48
        %v6611 = vpop.permute.xlu0 %6610
        %6644 = vrot.lane.b32.xlu0 %v6067, 64
        %v6645 = vpop.permute.xlu0 %6644
        %6646 = vrot.lane.b32.xlu0 %v6068, 64
        %v6647 = vpop.permute.xlu0 %6646
        %6648 = vrot.lane.b32.xlu0 %v6069, 64
        %v6649 = vpop.permute.xlu0 %6648
        %6650 = vrot.lane.b32.xlu0 %v6070, 64
        %v6651 = vpop.permute.xlu0 %6650
        %6652 = vrot.lane.b32.xlu0 %v6071, 64
        %v6653 = vpop.permute.xlu0 %6652
        %6654 = vrot.lane.b32.xlu0 %v6072, 64
        %v6655 = vpop.permute.xlu0 %6654
        %6656 = vrot.lane.b32.xlu0 %v6073, 64
        %v6657 = vpop.permute.xlu0 %6656
        %6658 = vrot.lane.b32.xlu0 %v6074, 64
        %v6659 = vpop.permute.xlu0 %6658
        %6660 = vrot.lane.b32.xlu0 %v6075, 64
        %v6661 = vpop.permute.xlu0 %6660
        %6662 = vrot.lane.b32.xlu0 %v6076, 64
        %v6663 = vpop.permute.xlu0 %6662
        %6664 = vrot.lane.b32.xlu0 %v6077, 64
        %v6665 = vpop.permute.xlu0 %6664
        %6666 = vrot.lane.b32.xlu0 %v6078, 64
        %v6667 = vpop.permute.xlu0 %6666
        %6668 = vrot.lane.b32.xlu0 %v6079, 64
        %v6669 = vpop.permute.xlu0 %6668
        %6670 = vrot.lane.b32.xlu0 %v6080, 64
        %v6671 = vpop.permute.xlu0 %6670
        %6672 = vrot.lane.b32.xlu0 %v6081, 64
        %v6673 = vpop.permute.xlu0 %6672
        %6674 = vrot.lane.b32.xlu0 %v6082, 64
        %v6675 = vpop.permute.xlu0 %6674
        %6676 = vrot.lane.b32.xlu0 %v6083, 64
        %v6677 = vpop.permute.xlu0 %6676
        %6678 = vrot.lane.b32.xlu0 %v6084, 64
        %v6679 = vpop.permute.xlu0 %6678
        %6680 = vrot.lane.b32.xlu0 %v6085, 64
        %v6681 = vpop.permute.xlu0 %6680
        %6682 = vrot.lane.b32.xlu0 %v6086, 64
        %v6683 = vpop.permute.xlu0 %6682
        %6684 = vrot.lane.b32.xlu0 %v6087, 64
        %v6685 = vpop.permute.xlu0 %6684
        %6686 = vrot.lane.b32.xlu0 %v6088, 64
        %v6687 = vpop.permute.xlu0 %6686
        %6688 = vrot.lane.b32.xlu0 %v6089, 64
        %v6689 = vpop.permute.xlu0 %6688
        %6690 = vrot.lane.b32.xlu0 %v6090, 64
        %v6691 = vpop.permute.xlu0 %6690
        %6692 = vrot.lane.b32.xlu0 %v6091, 64
        %v6693 = vpop.permute.xlu0 %6692
        %6694 = vrot.lane.b32.xlu0 %v6092, 64
        %v6695 = vpop.permute.xlu0 %6694
        %6696 = vrot.lane.b32.xlu0 %v6093, 64
        %v6697 = vpop.permute.xlu0 %6696
        %6698 = vrot.lane.b32.xlu0 %v6094, 64
        %v6699 = vpop.permute.xlu0 %6698
        %6700 = vrot.lane.b32.xlu0 %v6095, 64
        %v6701 = vpop.permute.xlu0 %6700
        %6702 = vrot.lane.b32.xlu0 %v6096, 64
        %v6703 = vpop.permute.xlu0 %6702
        %6704 = vrot.lane.b32.xlu0 %v6097, 64
        %v6705 = vpop.permute.xlu0 %6704
        %6706 = vrot.lane.b32.xlu0 %v6098, 64
        %v6707 = vpop.permute.xlu0 %6706
        %6741 = vrot.lane.b32.xlu0 %v6224, 80
        %v6742 = vpop.permute.xlu0 %6741
        %6743 = vrot.lane.b32.xlu0 %v6284, 80
        %v6744 = vpop.permute.xlu0 %6743
        %6745 = vrot.lane.b32.xlu0 %v6227, 80
        %v6746 = vpop.permute.xlu0 %6745
        %6747 = vrot.lane.b32.xlu0 %v6285, 80
        %v6748 = vpop.permute.xlu0 %6747
        %6749 = vrot.lane.b32.xlu0 %v6230, 80
        %v6750 = vpop.permute.xlu0 %6749
        %6751 = vrot.lane.b32.xlu0 %v6286, 80
        %v6752 = vpop.permute.xlu0 %6751
        %6753 = vrot.lane.b32.xlu0 %v6233, 80
        %v6754 = vpop.permute.xlu0 %6753
        %6755 = vrot.lane.b32.xlu0 %v6287, 80
        %v6756 = vpop.permute.xlu0 %6755
        %6757 = vrot.lane.b32.xlu0 %v6236, 80
        %v6758 = vpop.permute.xlu0 %6757
        %6759 = vrot.lane.b32.xlu0 %v6288, 80
        %v6760 = vpop.permute.xlu0 %6759
        %6761 = vrot.lane.b32.xlu0 %v6239, 80
        %v6762 = vpop.permute.xlu0 %6761
        %6763 = vrot.lane.b32.xlu0 %v6289, 80
        %v6764 = vpop.permute.xlu0 %6763
        %6765 = vrot.lane.b32.xlu0 %v6242, 80
        %v6766 = vpop.permute.xlu0 %6765
        %6767 = vrot.lane.b32.xlu0 %v6290, 80
        %v6768 = vpop.permute.xlu0 %6767
        %6769 = vrot.lane.b32.xlu0 %v6245, 80
        %v6770 = vpop.permute.xlu0 %6769
        %6771 = vrot.lane.b32.xlu0 %v6291, 80
        %v6772 = vpop.permute.xlu0 %6771
        %6773 = vrot.lane.b32.xlu0 %v6248, 80
        %v6774 = vpop.permute.xlu0 %6773
        %6775 = vrot.lane.b32.xlu0 %v6292, 80
        %v6776 = vpop.permute.xlu0 %6775
        %6777 = vrot.lane.b32.xlu0 %v6251, 80
        %v6778 = vpop.permute.xlu0 %6777
        %6779 = vrot.lane.b32.xlu0 %v6293, 80
        %v6780 = vpop.permute.xlu0 %6779
        %6781 = vrot.lane.b32.xlu0 %v6254, 80
        %v6782 = vpop.permute.xlu0 %6781
        %6783 = vrot.lane.b32.xlu0 %v6294, 80
        %v6784 = vpop.permute.xlu0 %6783
        %6785 = vrot.lane.b32.xlu0 %v6257, 80
        %v6786 = vpop.permute.xlu0 %6785
        %6787 = vrot.lane.b32.xlu0 %v6295, 80
        %v6788 = vpop.permute.xlu0 %6787
        %6789 = vrot.lane.b32.xlu0 %v6260, 80
        %v6790 = vpop.permute.xlu0 %6789
        %6791 = vrot.lane.b32.xlu0 %v6296, 80
        %v6792 = vpop.permute.xlu0 %6791
        %6793 = vrot.lane.b32.xlu0 %v6263, 80
        %v6794 = vpop.permute.xlu0 %6793
        %6795 = vrot.lane.b32.xlu0 %v6297, 80
        %v6796 = vpop.permute.xlu0 %6795
        %6797 = vrot.lane.b32.xlu0 %v6266, 80
        %v6798 = vpop.permute.xlu0 %6797
        %6799 = vrot.lane.b32.xlu0 %v6298, 80
        %v6800 = vpop.permute.xlu0 %6799
        %6801 = vrot.lane.b32.xlu0 %v6308, 80
        %v6802 = vpop.permute.xlu0 %6801
        %6803 = vrot.lane.b32.xlu0 %v6310, 80
        %v6804 = vpop.permute.xlu0 %6803
        %6838 = vrot.lane.b32.xlu0 %v6205, 96
        %v6839 = vpop.permute.xlu0 %6838
        %6840 = vrot.lane.b32.xlu0 %v6134, 96
        %v6841 = vpop.permute.xlu0 %6840
        %6842 = vrot.lane.b32.xlu0 %v6206, 96
        %v6843 = vpop.permute.xlu0 %6842
        %6844 = vrot.lane.b32.xlu0 %v6137, 96
        %v6845 = vpop.permute.xlu0 %6844
        %6846 = vrot.lane.b32.xlu0 %v6207, 96
        %v6847 = vpop.permute.xlu0 %6846
        %6848 = vrot.lane.b32.xlu0 %v6140, 96
        %v6849 = vpop.permute.xlu0 %6848
        %6850 = vrot.lane.b32.xlu0 %v6208, 96
        %v6851 = vpop.permute.xlu0 %6850
        %6852 = vrot.lane.b32.xlu0 %v6143, 96
        %v6853 = vpop.permute.xlu0 %6852
        %6854 = vrot.lane.b32.xlu0 %v6209, 96
        %v6855 = vpop.permute.xlu0 %6854
        %6856 = vrot.lane.b32.xlu0 %v6146, 96
        %v6857 = vpop.permute.xlu0 %6856
        %6858 = vrot.lane.b32.xlu0 %v6210, 96
        %v6859 = vpop.permute.xlu0 %6858
        %6860 = vrot.lane.b32.xlu0 %v6149, 96
        %v6861 = vpop.permute.xlu0 %6860
        %6862 = vrot.lane.b32.xlu0 %v6211, 96
        %v6863 = vpop.permute.xlu0 %6862
        %6864 = vrot.lane.b32.xlu0 %v6152, 96
        %v6865 = vpop.permute.xlu0 %6864
        %6866 = vrot.lane.b32.xlu0 %v6212, 96
        %v6867 = vpop.permute.xlu0 %6866
        %6868 = vrot.lane.b32.xlu0 %v6155, 96
        %v6869 = vpop.permute.xlu0 %6868
        %6870 = vrot.lane.b32.xlu0 %v6213, 96
        %v6871 = vpop.permute.xlu0 %6870
        %6872 = vrot.lane.b32.xlu0 %v6158, 96
        %v6873 = vpop.permute.xlu0 %6872
        %6874 = vrot.lane.b32.xlu0 %v6214, 96
        %v6875 = vpop.permute.xlu0 %6874
        %6876 = vrot.lane.b32.xlu0 %v6161, 96
        %v6877 = vpop.permute.xlu0 %6876
        %6878 = vrot.lane.b32.xlu0 %v6215, 96
        %v6879 = vpop.permute.xlu0 %6878
        %6880 = vrot.lane.b32.xlu0 %v6164, 96
        %v6881 = vpop.permute.xlu0 %6880
        %6882 = vrot.lane.b32.xlu0 %v6216, 96
        %v6883 = vpop.permute.xlu0 %6882
        %6884 = vrot.lane.b32.xlu0 %v6167, 96
        %v6885 = vpop.permute.xlu0 %6884
        %6886 = vrot.lane.b32.xlu0 %v6217, 96
        %v6887 = vpop.permute.xlu0 %6886
        %6888 = vrot.lane.b32.xlu0 %v6170, 96
        %v6889 = vpop.permute.xlu0 %6888
        %6890 = vrot.lane.b32.xlu0 %v6218, 96
        %v6891 = vpop.permute.xlu0 %6890
        %6892 = vrot.lane.b32.xlu0 %v6173, 96
        %v6893 = vpop.permute.xlu0 %6892
        %6894 = vrot.lane.b32.xlu0 %v6305, 96
        %v6895 = vpop.permute.xlu0 %6894
        %6896 = vrot.lane.b32.xlu0 %v6303, 96
        %v6897 = vpop.permute.xlu0 %6896
        %6898 = vrot.lane.b32.xlu0 %v3541, 96
        %v6899 = vpop.permute.xlu0 %6898
        %6900 = vrot.lane.b32.xlu0 %v3463, 96
        %v6901 = vpop.permute.xlu0 %6900
        %6934 = vrot.lane.b32.xlu0 %v6069, 112
        %v6935 = vpop.permute.xlu0 %6934
        %6936 = vrot.lane.b32.xlu0 %v6070, 112
        %v6937 = vpop.permute.xlu0 %6936
        %6938 = vrot.lane.b32.xlu0 %v6071, 112
        %v6939 = vpop.permute.xlu0 %6938
        %6940 = vrot.lane.b32.xlu0 %v6072, 112
        %v6941 = vpop.permute.xlu0 %6940
        %6942 = vrot.lane.b32.xlu0 %v6073, 112
        %v6943 = vpop.permute.xlu0 %6942
        %6944 = vrot.lane.b32.xlu0 %v6074, 112
        %v6945 = vpop.permute.xlu0 %6944
        %6946 = vrot.lane.b32.xlu0 %v6075, 112
        %v6947 = vpop.permute.xlu0 %6946
        %6948 = vrot.lane.b32.xlu0 %v6076, 112
        %v6949 = vpop.permute.xlu0 %6948
        %6950 = vrot.lane.b32.xlu0 %v6077, 112
        %v6951 = vpop.permute.xlu0 %6950
        %6952 = vrot.lane.b32.xlu0 %v6078, 112
        %v6953 = vpop.permute.xlu0 %6952
        %6954 = vrot.lane.b32.xlu0 %v6079, 112
        %v6955 = vpop.permute.xlu0 %6954
        %6956 = vrot.lane.b32.xlu0 %v6080, 112
        %v6957 = vpop.permute.xlu0 %6956
        %6958 = vrot.lane.b32.xlu0 %v6081, 112
        %v6959 = vpop.permute.xlu0 %6958
        %6960 = vrot.lane.b32.xlu0 %v6082, 112
        %v6961 = vpop.permute.xlu0 %6960
        %6962 = vrot.lane.b32.xlu0 %v6083, 112
        %v6963 = vpop.permute.xlu0 %6962
        %6964 = vrot.lane.b32.xlu0 %v6084, 112
        %v6965 = vpop.permute.xlu0 %6964
        %6966 = vrot.lane.b32.xlu0 %v6085, 112
        %v6967 = vpop.permute.xlu0 %6966
        %6968 = vrot.lane.b32.xlu0 %v6086, 112
        %v6969 = vpop.permute.xlu0 %6968
        %6970 = vrot.lane.b32.xlu0 %v6087, 112
        %v6971 = vpop.permute.xlu0 %6970
        %6972 = vrot.lane.b32.xlu0 %v6088, 112
        %v6973 = vpop.permute.xlu0 %6972
        %6974 = vrot.lane.b32.xlu0 %v6089, 112
        %v6975 = vpop.permute.xlu0 %6974
        %6976 = vrot.lane.b32.xlu0 %v6090, 112
        %v6977 = vpop.permute.xlu0 %6976
        %6978 = vrot.lane.b32.xlu0 %v6091, 112
        %v6979 = vpop.permute.xlu0 %6978
        %6980 = vrot.lane.b32.xlu0 %v6092, 112
        %v6981 = vpop.permute.xlu0 %6980
        %6982 = vrot.lane.b32.xlu0 %v6093, 112
        %v6983 = vpop.permute.xlu0 %6982
        %6984 = vrot.lane.b32.xlu0 %v6094, 112
        %v6985 = vpop.permute.xlu0 %6984
        %6986 = vrot.lane.b32.xlu0 %v6095, 112
        %v6987 = vpop.permute.xlu0 %6986
        %6988 = vrot.lane.b32.xlu0 %v6096, 112
        %v6989 = vpop.permute.xlu0 %6988
        %6990 = vrot.lane.b32.xlu0 %v6097, 112
        %v6991 = vpop.permute.xlu0 %6990
        %6992 = vrot.lane.b32.xlu0 %v6098, 112
        %v6993 = vpop.permute.xlu0 %6992
        %6994 = vrot.lane.b32.xlu0 0.0, 112
        %v6995 = vpop.permute.xlu0 %6994
        %vm7027 = vcmask 130048
        %v7028 = vsel %vm7027, %v3541, %v6328
        %v7029 = vsel %vm7027, %v3463, %v6328
        %v7030 = vsel %vm7027, %v6204, %v6330
        %v7031 = vsel %vm7027, %v6131, %v6332
        %v7032 = vsel %vm7027, %v6205, %v6334
        %v7033 = vsel %vm7027, %v6134, %v6336
        %v7034 = vsel %vm7027, %v6206, %v6338
        %v7035 = vsel %vm7027, %v6137, %v6340
        %v7036 = vsel %vm7027, %v6207, %v6342
        %v7037 = vsel %vm7027, %v6140, %v6344
        %v7038 = vsel %vm7027, %v6208, %v6346
        %v7039 = vsel %vm7027, %v6143, %v6348
        %v7040 = vsel %vm7027, %v6209, %v6350
        %v7041 = vsel %vm7027, %v6146, %v6352
        %v7042 = vsel %vm7027, %v6210, %v6354
        %v7043 = vsel %vm7027, %v6149, %v6356
        %v7044 = vsel %vm7027, %v6211, %v6358
        %v7045 = vsel %vm7027, %v6152, %v6360
        %v7046 = vsel %vm7027, %v6212, %v6362
        %v7047 = vsel %vm7027, %v6155, %v6364
        %v7048 = vsel %vm7027, %v6213, %v6366
        %v7049 = vsel %vm7027, %v6158, %v6368
        %v7050 = vsel %vm7027, %v6214, %v6370
        %v7051 = vsel %vm7027, %v6161, %v6372
        %v7052 = vsel %vm7027, %v6215, %v6374
        %v7053 = vsel %vm7027, %v6164, %v6376
        %v7054 = vsel %vm7027, %v6216, %v6378
        %v7055 = vsel %vm7027, %v6167, %v6380
        %v7056 = vsel %vm7027, %v6217, %v6382
        %v7057 = vsel %vm7027, %v6170, %v6384
        %v7058 = vsel %vm7027, %v6218, %v6386
        %v7059 = vsel %vm7027, %v6173, %v6388
        %v7060 = vsel %vm5929, %v7028, %v6437
        %v7061 = vsel %vm5929, %v7029, %v6439
        %v7062 = vsel %vm5929, %v7030, %v6441
        %v7063 = vsel %vm5929, %v7031, %v6443
        %v7064 = vsel %vm5929, %v7032, %v6445
        %v7065 = vsel %vm5929, %v7033, %v6447
        %v7066 = vsel %vm5929, %v7034, %v6449
        %v7067 = vsel %vm5929, %v7035, %v6451
        %v7068 = vsel %vm5929, %v7036, %v6453
        %v7069 = vsel %vm5929, %v7037, %v6455
        %v7070 = vsel %vm5929, %v7038, %v6457
        %v7071 = vsel %vm5929, %v7039, %v6459
        %v7072 = vsel %vm5929, %v7040, %v6461
        %v7073 = vsel %vm5929, %v7041, %v6463
        %v7074 = vsel %vm5929, %v7042, %v6465
        %v7075 = vsel %vm5929, %v7043, %v6467
        %v7076 = vsel %vm5929, %v7044, %v6469
        %v7077 = vsel %vm5929, %v7045, %v6471
        %v7078 = vsel %vm5929, %v7046, %v6473
        %v7079 = vsel %vm5929, %v7047, %v6475
        %v7080 = vsel %vm5929, %v7048, %v6477
        %v7081 = vsel %vm5929, %v7049, %v6479
        %v7082 = vsel %vm5929, %v7050, %v6481
        %v7083 = vsel %vm5929, %v7051, %v6483
        %v7084 = vsel %vm5929, %v7052, %v6485
        %v7085 = vsel %vm5929, %v7053, %v6487
        %v7086 = vsel %vm5929, %v7054, %v6489
        %v7087 = vsel %vm5929, %v7055, %v6491
        %v7088 = vsel %vm5929, %v7056, %v6493
        %v7089 = vsel %vm5929, %v7057, %v6495
        %v7090 = vsel %vm5929, %v7058, %v6497
        %v7091 = vsel %vm5929, %v7059, %v6499
        %vm7092 = vcmask 392192
        %v7093 = vsel %vm7092, %v7060, %v6549
        %v7094 = vsel %vm7092, %v7061, %v6551
        %v7095 = vsel %vm7092, %v7062, %v6553
        %v7096 = vsel %vm7092, %v7063, %v6555
        %v7097 = vsel %vm7092, %v7064, %v6557
        %v7098 = vsel %vm7092, %v7065, %v6559
        %v7099 = vsel %vm7092, %v7066, %v6561
        %v7100 = vsel %vm7092, %v7067, %v6563
        %v7101 = vsel %vm7092, %v7068, %v6565
        %v7102 = vsel %vm7092, %v7069, %v6567
        %v7103 = vsel %vm7092, %v7070, %v6569
        %v7104 = vsel %vm7092, %v7071, %v6571
        %v7105 = vsel %vm7092, %v7072, %v6573
        %v7106 = vsel %vm7092, %v7073, %v6575
        %v7107 = vsel %vm7092, %v7074, %v6577
        %v7108 = vsel %vm7092, %v7075, %v6579
        %v7109 = vsel %vm7092, %v7076, %v6581
        %v7110 = vsel %vm7092, %v7077, %v6583
        %v7111 = vsel %vm7092, %v7078, %v6585
        %v7112 = vsel %vm7092, %v7079, %v6587
        %v7113 = vsel %vm7092, %v7080, %v6589
        %v7114 = vsel %vm7092, %v7081, %v6591
        %v7115 = vsel %vm7092, %v7082, %v6593
        %v7116 = vsel %vm7092, %v7083, %v6595
        %v7117 = vsel %vm7092, %v7084, %v6597
        %v7118 = vsel %vm7092, %v7085, %v6599
        %v7119 = vsel %vm7092, %v7086, %v6601
        %v7120 = vsel %vm7092, %v7087, %v6603
        %v7121 = vsel %vm7092, %v7088, %v6605
        %v7122 = vsel %vm7092, %v7089, %v6607
        %v7123 = vsel %vm7092, %v7090, %v6609
        %v7124 = vsel %vm7092, %v7091, %v6611
        %vm7125 = vcmask 523264
        %v7126 = vsel %vm7125, %v7093, %v6645
        %v7127 = vsel %vm7125, %v7094, %v6647
        %v7128 = vsel %vm7125, %v7095, %v6649
        %v7129 = vsel %vm7125, %v7096, %v6651
        %v7130 = vsel %vm7125, %v7097, %v6653
        %v7131 = vsel %vm7125, %v7098, %v6655
        %v7132 = vsel %vm7125, %v7099, %v6657
        %v7133 = vsel %vm7125, %v7100, %v6659
        %v7134 = vsel %vm7125, %v7101, %v6661
        %v7135 = vsel %vm7125, %v7102, %v6663
        %v7136 = vsel %vm7125, %v7103, %v6665
        %v7137 = vsel %vm7125, %v7104, %v6667
        %v7138 = vsel %vm7125, %v7105, %v6669
        %v7139 = vsel %vm7125, %v7106, %v6671
        %v7140 = vsel %vm7125, %v7107, %v6673
        %v7141 = vsel %vm7125, %v7108, %v6675
        %v7142 = vsel %vm7125, %v7109, %v6677
        %v7143 = vsel %vm7125, %v7110, %v6679
        %v7144 = vsel %vm7125, %v7111, %v6681
        %v7145 = vsel %vm7125, %v7112, %v6683
        %v7146 = vsel %vm7125, %v7113, %v6685
        %v7147 = vsel %vm7125, %v7114, %v6687
        %v7148 = vsel %vm7125, %v7115, %v6689
        %v7149 = vsel %vm7125, %v7116, %v6691
        %v7150 = vsel %vm7125, %v7117, %v6693
        %v7151 = vsel %vm7125, %v7118, %v6695
        %v7152 = vsel %vm7125, %v7119, %v6697
        %v7153 = vsel %vm7125, %v7120, %v6699
        %v7154 = vsel %vm7125, %v7121, %v6701
        %v7155 = vsel %vm7125, %v7122, %v6703
        %v7156 = vsel %vm7125, %v7123, %v6705
        %v7157 = vsel %vm7125, %v7124, %v6707
        %vm7158 = vcmask 654336
        %v7159 = vsel %vm7158, %v7126, %v6742
        %v7160 = vsel %vm7158, %v7127, %v6744
        %v7161 = vsel %vm7158, %v7128, %v6746
        %v7162 = vsel %vm7158, %v7129, %v6748
        %v7163 = vsel %vm7158, %v7130, %v6750
        %v7164 = vsel %vm7158, %v7131, %v6752
        %v7165 = vsel %vm7158, %v7132, %v6754
        %v7166 = vsel %vm7158, %v7133, %v6756
        %v7167 = vsel %vm7158, %v7134, %v6758
        %v7168 = vsel %vm7158, %v7135, %v6760
        %v7169 = vsel %vm7158, %v7136, %v6762
        %v7170 = vsel %vm7158, %v7137, %v6764
        %v7171 = vsel %vm7158, %v7138, %v6766
        %v7172 = vsel %vm7158, %v7139, %v6768
        %v7173 = vsel %vm7158, %v7140, %v6770
        %v7174 = vsel %vm7158, %v7141, %v6772
        %v7175 = vsel %vm7158, %v7142, %v6774
        %v7176 = vsel %vm7158, %v7143, %v6776
        %v7177 = vsel %vm7158, %v7144, %v6778
        %v7178 = vsel %vm7158, %v7145, %v6780
        %v7179 = vsel %vm7158, %v7146, %v6782
        %v7180 = vsel %vm7158, %v7147, %v6784
        %v7181 = vsel %vm7158, %v7148, %v6786
        %v7182 = vsel %vm7158, %v7149, %v6788
        %v7183 = vsel %vm7158, %v7150, %v6790
        %v7184 = vsel %vm7158, %v7151, %v6792
        %v7185 = vsel %vm7158, %v7152, %v6794
        %v7186 = vsel %vm7158, %v7153, %v6796
        %v7187 = vsel %vm7158, %v7154, %v6798
        %v7188 = vsel %vm7158, %v7155, %v6800
        %v7189 = vsel %vm7158, %v7156, %v6802
        %v7190 = vsel %vm7158, %v7157, %v6804
        %vm7191 = vcmask 785408
        %v7192 = vsel %vm7191, %v7159, %v6839
        %v7193 = vsel %vm7191, %v7160, %v6841
        %v7194 = vsel %vm7191, %v7161, %v6843
        %v7195 = vsel %vm7191, %v7162, %v6845
        %v7196 = vsel %vm7191, %v7163, %v6847
        %v7197 = vsel %vm7191, %v7164, %v6849
        %v7198 = vsel %vm7191, %v7165, %v6851
        %v7199 = vsel %vm7191, %v7166, %v6853
        %v7200 = vsel %vm7191, %v7167, %v6855
        %v7201 = vsel %vm7191, %v7168, %v6857
        %v7202 = vsel %vm7191, %v7169, %v6859
        %v7203 = vsel %vm7191, %v7170, %v6861
        %v7204 = vsel %vm7191, %v7171, %v6863
        %v7205 = vsel %vm7191, %v7172, %v6865
        %v7206 = vsel %vm7191, %v7173, %v6867
        %v7207 = vsel %vm7191, %v7174, %v6869
        %v7208 = vsel %vm7191, %v7175, %v6871
        %v7209 = vsel %vm7191, %v7176, %v6873
        %v7210 = vsel %vm7191, %v7177, %v6875
        %v7211 = vsel %vm7191, %v7178, %v6877
        %v7212 = vsel %vm7191, %v7179, %v6879
        %v7213 = vsel %vm7191, %v7180, %v6881
        %v7214 = vsel %vm7191, %v7181, %v6883
        %v7215 = vsel %vm7191, %v7182, %v6885
        %v7216 = vsel %vm7191, %v7183, %v6887
        %v7217 = vsel %vm7191, %v7184, %v6889
        %v7218 = vsel %vm7191, %v7185, %v6891
        %v7219 = vsel %vm7191, %v7186, %v6893
        %v7220 = vsel %vm7191, %v7187, %v6895
        %v7221 = vsel %vm7191, %v7188, %v6897
        %v7222 = vsel %vm7191, %v7189, %v6899
        %v7223 = vsel %vm7191, %v7190, %v6901
        %vm7224 = vcmask 916480
        %v7225 = vsel %vm7224, %v7192, %v6935
        %v7226 = vsel %vm7224, %v7193, %v6937
        %v7227 = vsel %vm7224, %v7194, %v6939
        %v7228 = vsel %vm7224, %v7195, %v6941
        %v7229 = vsel %vm7224, %v7196, %v6943
        %v7230 = vsel %vm7224, %v7197, %v6945
        %v7231 = vsel %vm7224, %v7198, %v6947
        %v7232 = vsel %vm7224, %v7199, %v6949
        %v7233 = vsel %vm7224, %v7200, %v6951
        %v7234 = vsel %vm7224, %v7201, %v6953
        %v7235 = vsel %vm7224, %v7202, %v6955
        %v7236 = vsel %vm7224, %v7203, %v6957
        %v7237 = vsel %vm7224, %v7204, %v6959
        %v7238 = vsel %vm7224, %v7205, %v6961
        %v7239 = vsel %vm7224, %v7206, %v6963
        %v7240 = vsel %vm7224, %v7207, %v6965
        %v7241 = vsel %vm7224, %v7208, %v6967
        %v7242 = vsel %vm7224, %v7209, %v6969
        %v7243 = vsel %vm7224, %v7210, %v6971
        %v7244 = vsel %vm7224, %v7211, %v6973
        %v7245 = vsel %vm7224, %v7212, %v6975
        %v7246 = vsel %vm7224, %v7213, %v6977
        %v7247 = vsel %vm7224, %v7214, %v6979
        %v7248 = vsel %vm7224, %v7215, %v6981
        %v7249 = vsel %vm7224, %v7216, %v6983
        %v7250 = vsel %vm7224, %v7217, %v6985
        %v7251 = vsel %vm7224, %v7218, %v6987
        %v7252 = vsel %vm7224, %v7219, %v6989
        %v7253 = vsel %vm7224, %v7220, %v6991
        %v7254 = vsel %vm7224, %v7221, %v6993
        %v7255 = vsel %vm7224, %v7222, %v6995
        %v7256 = vsel %vm7224, %v7223, %v6995
        %v7257 = vpack.c.bf16 %v7226, %v7225
        %v7258 = vpack.c.bf16 %v6285, %v6227
        %v7259 = vpack.c.bf16 %v7228, %v7227
        %v7260 = vpack.c.bf16 %v6286, %v6230
        %v7261 = vpack.c.bf16 %v7230, %v7229
        %v7262 = vpack.c.bf16 %v6287, %v6233
        %v7263 = vpack.c.bf16 %v7232, %v7231
        %v7264 = vpack.c.bf16 %v6288, %v6236
        %v7265 = vpack.c.bf16 %v7234, %v7233
        %v7266 = vpack.c.bf16 %v6289, %v6239
        %v7267 = vpack.c.bf16 %v7236, %v7235
        %v7268 = vpack.c.bf16 %v6290, %v6242
        %v7269 = vpack.c.bf16 %v7238, %v7237
        %v7270 = vpack.c.bf16 %v6291, %v6245
        %v7271 = vpack.c.bf16 %v7240, %v7239
        %v7272 = vpack.c.bf16 %v6292, %v6248
        %v7273 = vpack.c.bf16 %v7242, %v7241
        %v7274 = vpack.c.bf16 %v6293, %v6251
        %v7275 = vpack.c.bf16 %v7244, %v7243
        %v7276 = vpack.c.bf16 %v6294, %v6254
        %v7277 = vpack.c.bf16 %v7246, %v7245
        %v7278 = vpack.c.bf16 %v6295, %v6257
        %v7279 = vpack.c.bf16 %v7248, %v7247
        %v7280 = vpack.c.bf16 %v6296, %v6260
        %v7281 = vpack.c.bf16 %v7250, %v7249
        %v7282 = vpack.c.bf16 %v6297, %v6263
        %v7283 = vpack.c.bf16 %v7252, %v7251
        %v7284 = vpack.c.bf16 %v6298, %v6266
        %v7285 = vpack.c.bf16 %v7254, %v7253
        %v7286 = vpack.c.bf16 %v6310, %v6308
        %v7287 = vpack.c.bf16 %v7256, %v7255
        %v7288 = vpack.c.bf16 %v6283, %v6221
        %v7289 = vld [vmem:[%s5] sm:$0xf]
        %v7290 = vld [vmem:[%s5 + $0x4] sm:$0xf]
        %v7291 = vld [vmem:[%s5 + $0x8] sm:$0xf]
        %v7292 = vld [vmem:[%s5 + $0xc] sm:$0xf]
        %v7293 = vld [vmem:[%s5 + $0x10] sm:$0xf]
        %v7294 = vld [vmem:[%s5 + $0x14] sm:$0xf]
        %v7295 = vld [vmem:[%s5 + $0x18] sm:$0xf]
        %v7296 = vld [vmem:[%s5 + $0x1c] sm:$0xf]
        %v7297 = vld [vmem:[%s5 + $0x20] sm:$0xf]
        %v7298 = vld [vmem:[%s5 + $0x24] sm:$0xf]
        %v7299 = vld [vmem:[%s5 + $0x28] sm:$0xf]
        %v7300 = vld [vmem:[%s5 + $0x2c] sm:$0xf]
        %v7301 = vld [vmem:[%s5 + $0x30] sm:$0xf]
        %v7302 = vld [vmem:[%s5 + $0x34] sm:$0xf]
        %v7303 = vld [vmem:[%s5 + $0x38] sm:$0xf]
        %v7304 = vld [vmem:[%s5 + $0x3c] sm:$0xf]
        %v7305 = vld [vmem:[%s5 + $0x40] sm:$0xf]
        %v7306 = vld [vmem:[%s5 + $0x44] sm:$0xf]
        %v7307 = vld [vmem:[%s6] sm:$0x1]
        %v7309 = vperm.slane %v7307, 0
        %v7329 = vunpack.c.l.b16 %v7289
        %v7330 = vunpack.c.l.b16 %v7290
        %v7331 = vunpack.c.l.b16 %v7291
        %v7332 = vunpack.c.l.b16 %v7292
        %v7333 = vunpack.c.l.b16 %v7293
        %v7334 = vunpack.c.l.b16 %v7294
        %v7335 = vunpack.c.l.b16 %v7295
        %v7336 = vunpack.c.l.b16 %v7296
        %v7337 = vunpack.c.l.b16 %v7297
        %v7338 = vunpack.c.l.b16 %v7298
        %v7339 = vunpack.c.l.b16 %v7299
        %v7340 = vunpack.c.l.b16 %v7300
        %v7341 = vunpack.c.l.b16 %v7301
        %v7342 = vunpack.c.l.b16 %v7302
        %v7343 = vunpack.c.l.b16 %v7303
        %v7344 = vunpack.c.l.b16 %v7304
        %v7345 = vunpack.c.l.b16 %v7305
        %v7346 = vunpack.c.l.b16 %v7306
        %v7347 = vpack.c.b16 %v7330, %v7329
        %v7348 = vpack.c.b16 %v7332, %v7331
        %v7349 = vpack.c.b16 %v7334, %v7333
        %v7350 = vpack.c.b16 %v7336, %v7335
        %v7351 = vpack.c.b16 %v7338, %v7337
        %v7352 = vpack.c.b16 %v7340, %v7339
        %v7353 = vpack.c.b16 %v7342, %v7341
        %v7354 = vpack.c.b16 %v7344, %v7343
        %v7355 = vpack.c.b16 %v7346, %v7345
        %v7366 = vsel %vm7027, %v7258, 0
        %v7369 = vsel %vm7027, %v7260, 0
        %v7372 = vsel %vm7027, %v7262, 0
        %v7375 = vsel %vm7027, %v7264, 0
        %v7378 = vsel %vm7027, %v7266, 0
        %v7381 = vsel %vm7027, %v7268, 0
        %v7384 = vsel %vm7027, %v7270, 0
        %v7387 = vsel %vm7027, %v7272, 0
        %v7390 = vsel %vm7027, %v7274, 0
        %v7393 = vsel %vm7027, %v7276, 0
        %v7396 = vsel %vm7027, %v7278, 0
        %v7399 = vsel %vm7027, %v7280, 0
        %v7402 = vsel %vm7027, %v7282, 0
        %v7405 = vsel %vm7027, %v7284, 0
        %v7408 = vsel %vm7027, %v7286, 0
        %v7411 = vsel %vm7027, %v7288, 0
        %7413 = vmatpush.bf16.msra.mxu0 %v7354
        %7414 = vmatpush.bf16.msra.mxu0 %v7353
        %7415 = vmatpush.bf16.msra.mxu0 %v7352
        %7416 = vmatpush.bf16.msra.mxu0 %v7351
        %7417 = vmatpush.bf16.msra.mxu0 %v7350
        %7418 = vmatpush.bf16.msra.mxu0 %v7349
        %7419 = vmatpush.bf16.msra.mxu0 %v7348
        %7420 = vmatpush.bf16.msra.mxu0 %v7347
        %7421 = vmatmul.bf16.gmra.mxu0 %v7257
        %v7422 = vpop.f32.mrf.mxu0
        %v7423 = vadd.f32 %v7309, %v7422
        %v7424 = vpop.f32.mrf.mxu0
        %v7425 = vadd.f32 %v7309, %v7424
        %7426 = vmatmul.bf16.gmra.mxu0 %v7259
        %v7427 = vpop.f32.mrf.mxu0
        %v7428 = vadd.f32 %v7309, %v7427
        %v7429 = vpop.f32.mrf.mxu0
        %v7430 = vadd.f32 %v7309, %v7429
        %7431 = vmatmul.bf16.gmra.mxu0 %v7261
        %v7432 = vpop.f32.mrf.mxu0
        %v7433 = vadd.f32 %v7309, %v7432
        %v7434 = vpop.f32.mrf.mxu0
        %v7435 = vadd.f32 %v7309, %v7434
        %7436 = vmatmul.bf16.gmra.mxu0 %v7263
        %v7437 = vpop.f32.mrf.mxu0
        %v7438 = vadd.f32 %v7309, %v7437
        %v7439 = vpop.f32.mrf.mxu0
        %v7440 = vadd.f32 %v7309, %v7439
        %7441 = vmatmul.bf16.gmra.mxu0 %v7265
        %v7442 = vpop.f32.mrf.mxu0
        %v7443 = vadd.f32 %v7309, %v7442
        %v7444 = vpop.f32.mrf.mxu0
        %v7445 = vadd.f32 %v7309, %v7444
        %7446 = vmatmul.bf16.gmra.mxu0 %v7267
        %v7447 = vpop.f32.mrf.mxu0
        %v7448 = vadd.f32 %v7309, %v7447
        %v7449 = vpop.f32.mrf.mxu0
        %v7450 = vadd.f32 %v7309, %v7449
        %7451 = vmatmul.bf16.gmra.mxu0 %v7269
        %v7452 = vpop.f32.mrf.mxu0
        %v7453 = vadd.f32 %v7309, %v7452
        %v7454 = vpop.f32.mrf.mxu0
        %v7455 = vadd.f32 %v7309, %v7454
        %7456 = vmatmul.bf16.gmra.mxu0 %v7271
        %v7457 = vpop.f32.mrf.mxu0
        %v7458 = vadd.f32 %v7309, %v7457
        %v7459 = vpop.f32.mrf.mxu0
        %v7460 = vadd.f32 %v7309, %v7459
        %7461 = vmatmul.bf16.gmra.mxu0 %v7273
        %v7462 = vpop.f32.mrf.mxu0
        %v7463 = vadd.f32 %v7309, %v7462
        %v7464 = vpop.f32.mrf.mxu0
        %v7465 = vadd.f32 %v7309, %v7464
        %7466 = vmatmul.bf16.gmra.mxu0 %v7275
        %v7467 = vpop.f32.mrf.mxu0
        %v7468 = vadd.f32 %v7309, %v7467
        %v7469 = vpop.f32.mrf.mxu0
        %v7470 = vadd.f32 %v7309, %v7469
        %7471 = vmatmul.bf16.gmra.mxu0 %v7277
        %v7472 = vpop.f32.mrf.mxu0
        %v7473 = vadd.f32 %v7309, %v7472
        %v7474 = vpop.f32.mrf.mxu0
        %v7475 = vadd.f32 %v7309, %v7474
        %7476 = vmatmul.bf16.gmra.mxu0 %v7279
        %v7477 = vpop.f32.mrf.mxu0
        %v7478 = vadd.f32 %v7309, %v7477
        %v7479 = vpop.f32.mrf.mxu0
        %v7480 = vadd.f32 %v7309, %v7479
        %7481 = vmatmul.bf16.gmra.mxu0 %v7281
        %v7482 = vpop.f32.mrf.mxu0
        %v7483 = vadd.f32 %v7309, %v7482
        %v7484 = vpop.f32.mrf.mxu0
        %v7485 = vadd.f32 %v7309, %v7484
        %7486 = vmatmul.bf16.gmra.mxu0 %v7283
        %v7487 = vpop.f32.mrf.mxu0
        %v7488 = vadd.f32 %v7309, %v7487
        %v7489 = vpop.f32.mrf.mxu0
        %v7490 = vadd.f32 %v7309, %v7489
        %7491 = vmatmul.bf16.gmra.mxu0 %v7285
        %v7492 = vpop.f32.mrf.mxu0
        %v7493 = vadd.f32 %v7309, %v7492
        %v7494 = vpop.f32.mrf.mxu0
        %v7495 = vadd.f32 %v7309, %v7494
        %7496 = vmatmul.bf16.gmra.mxu0 %v7287
        %v7497 = vpop.f32.mrf.mxu0
        %v7498 = vadd.f32 %v7309, %v7497
        %v7499 = vpop.f32.mrf.mxu0
        %v7500 = vadd.f32 %v7309, %v7499
        %7501 = vdwg.mxu0
        %7502 = vmatpush.bf16.msra.mxu0 0
        %7503 = vmatpush.bf16.msra.mxu0 0
        %7504 = vmatpush.bf16.msra.mxu0 0
        %7505 = vmatpush.bf16.msra.mxu0 0
        %7506 = vmatpush.bf16.msra.mxu0 0
        %7507 = vmatpush.bf16.msra.mxu0 0
        %7508 = vmatpush.bf16.msra.mxu0 0
        %7509 = vmatpush.bf16.msra.mxu0 %v7355
        %7510 = vmatmul.bf16.gmra.mxu0 %v7366
        %v7511 = vpop.f32.mrf.mxu0
        %v7512 = vadd.f32 %v7423, %v7511
        %v7513 = vpop.f32.mrf.mxu0
        %v7514 = vadd.f32 %v7425, %v7513
        %7515 = vmatmul.bf16.gmra.mxu0 %v7369
        %v7516 = vpop.f32.mrf.mxu0
        %v7517 = vadd.f32 %v7428, %v7516
        %v7518 = vpop.f32.mrf.mxu0
        %v7519 = vadd.f32 %v7430, %v7518
        %7520 = vmatmul.bf16.gmra.mxu0 %v7372
        %v7521 = vpop.f32.mrf.mxu0
        %v7522 = vadd.f32 %v7433, %v7521
        %v7523 = vpop.f32.mrf.mxu0
        %v7524 = vadd.f32 %v7435, %v7523
        %7525 = vmatmul.bf16.gmra.mxu0 %v7375
        %v7526 = vpop.f32.mrf.mxu0
        %v7527 = vadd.f32 %v7438, %v7526
        %v7528 = vpop.f32.mrf.mxu0
        %v7529 = vadd.f32 %v7440, %v7528
        %7530 = vmatmul.bf16.gmra.mxu0 %v7378
        %v7531 = vpop.f32.mrf.mxu0
        %v7532 = vadd.f32 %v7443, %v7531
        %v7533 = vpop.f32.mrf.mxu0
        %v7534 = vadd.f32 %v7445, %v7533
        %7535 = vmatmul.bf16.gmra.mxu0 %v7381
        %v7536 = vpop.f32.mrf.mxu0
        %v7537 = vadd.f32 %v7448, %v7536
        %v7538 = vpop.f32.mrf.mxu0
        %v7539 = vadd.f32 %v7450, %v7538
        %7540 = vmatmul.bf16.gmra.mxu0 %v7384
        %v7541 = vpop.f32.mrf.mxu0
        %v7542 = vadd.f32 %v7453, %v7541
        %v7543 = vpop.f32.mrf.mxu0
        %v7544 = vadd.f32 %v7455, %v7543
        %7545 = vmatmul.bf16.gmra.mxu0 %v7387
        %v7546 = vpop.f32.mrf.mxu0
        %v7547 = vadd.f32 %v7458, %v7546
        %v7548 = vpop.f32.mrf.mxu0
        %v7549 = vadd.f32 %v7460, %v7548
        %7550 = vmatmul.bf16.gmra.mxu0 %v7390
        %v7551 = vpop.f32.mrf.mxu0
        %v7552 = vadd.f32 %v7463, %v7551
        %v7553 = vpop.f32.mrf.mxu0
        %v7554 = vadd.f32 %v7465, %v7553
        %7555 = vmatmul.bf16.gmra.mxu0 %v7393
        %v7556 = vpop.f32.mrf.mxu0
        %v7557 = vadd.f32 %v7468, %v7556
        %v7558 = vpop.f32.mrf.mxu0
        %v7559 = vadd.f32 %v7470, %v7558
        %7560 = vmatmul.bf16.gmra.mxu0 %v7396
        %v7561 = vpop.f32.mrf.mxu0
        %v7562 = vadd.f32 %v7473, %v7561
        %v7563 = vpop.f32.mrf.mxu0
        %v7564 = vadd.f32 %v7475, %v7563
        %7565 = vmatmul.bf16.gmra.mxu0 %v7399
        %v7566 = vpop.f32.mrf.mxu0
        %v7567 = vadd.f32 %v7478, %v7566
        %v7568 = vpop.f32.mrf.mxu0
        %v7569 = vadd.f32 %v7480, %v7568
        %7570 = vmatmul.bf16.gmra.mxu0 %v7402
        %v7571 = vpop.f32.mrf.mxu0
        %v7572 = vadd.f32 %v7483, %v7571
        %v7573 = vpop.f32.mrf.mxu0
        %v7574 = vadd.f32 %v7485, %v7573
        %7575 = vmatmul.bf16.gmra.mxu0 %v7405
        %v7576 = vpop.f32.mrf.mxu0
        %v7577 = vadd.f32 %v7488, %v7576
        %v7578 = vpop.f32.mrf.mxu0
        %v7579 = vadd.f32 %v7490, %v7578
        %7580 = vmatmul.bf16.gmra.mxu0 %v7408
        %v7581 = vpop.f32.mrf.mxu0
        %v7582 = vadd.f32 %v7493, %v7581
        %v7583 = vpop.f32.mrf.mxu0
        %v7584 = vadd.f32 %v7495, %v7583
        %7585 = vmatmul.bf16.gmra.mxu0 %v7411
        %v7586 = vpop.f32.mrf.mxu0
        %v7587 = vadd.f32 %v7498, %v7586
        %v7588 = vpop.f32.mrf.mxu0
        %v7589 = vadd.f32 %v7500, %v7588
        %7590 = vdwg.mxu0
        %v7591 = vmax.f32 %v7512, 0.0
        %v7592 = vmax.f32 %v7514, 0.0
        %v7593 = vmax.f32 %v7517, 0.0
        %v7594 = vmax.f32 %v7519, 0.0
        %v7595 = vmax.f32 %v7522, 0.0
        %v7596 = vmax.f32 %v7524, 0.0
        %v7597 = vmax.f32 %v7527, 0.0
        %v7598 = vmax.f32 %v7529, 0.0
        %v7599 = vmax.f32 %v7532, 0.0
        %v7600 = vmax.f32 %v7534, 0.0
        %v7601 = vmax.f32 %v7537, 0.0
        %v7602 = vmax.f32 %v7539, 0.0
        %v7603 = vmax.f32 %v7542, 0.0
        %v7604 = vmax.f32 %v7544, 0.0
        %v7605 = vmax.f32 %v7547, 0.0
        %v7606 = vmax.f32 %v7549, 0.0
        %v7607 = vmax.f32 %v7552, 0.0
        %v7608 = vmax.f32 %v7554, 0.0
        %v7609 = vmax.f32 %v7557, 0.0
        %v7610 = vmax.f32 %v7559, 0.0
        %v7611 = vmax.f32 %v7562, 0.0
        %v7612 = vmax.f32 %v7564, 0.0
        %v7613 = vmax.f32 %v7567, 0.0
        %v7614 = vmax.f32 %v7569, 0.0
        %v7615 = vmax.f32 %v7572, 0.0
        %v7616 = vmax.f32 %v7574, 0.0
        %v7617 = vmax.f32 %v7577, 0.0
        %v7618 = vmax.f32 %v7579, 0.0
        %v7619 = vmax.f32 %v7582, 0.0
        %v7620 = vmax.f32 %v7584, 0.0
        %v7621 = vmax.f32 %v7587, 0.0
        %v7622 = vmax.f32 %v7589, 0.0
        %v7623 = vpack.c.bf16 %v7592, %v7591
        %v7624 = vpack.c.bf16 %v7594, %v7593
        %v7625 = vpack.c.bf16 %v7596, %v7595
        %v7626 = vpack.c.bf16 %v7598, %v7597
        %v7627 = vpack.c.bf16 %v7600, %v7599
        %v7628 = vpack.c.bf16 %v7602, %v7601
        %v7629 = vpack.c.bf16 %v7604, %v7603
        %v7630 = vpack.c.bf16 %v7606, %v7605
        %v7631 = vpack.c.bf16 %v7608, %v7607
        %v7632 = vpack.c.bf16 %v7610, %v7609
        %v7633 = vpack.c.bf16 %v7612, %v7611
        %v7634 = vpack.c.bf16 %v7614, %v7613
        %v7635 = vpack.c.bf16 %v7616, %v7615
        %v7636 = vpack.c.bf16 %v7618, %v7617
        %v7637 = vpack.c.bf16 %v7620, %v7619
        %v7638 = vpack.c.bf16 %v7622, %v7621
        %v7639 = vld [vmem:[%s7] sm:$0xf]
        %v7640 = vld [vmem:[%s7 + $0x4] sm:$0xf]
        %v7641 = vld [vmem:[%s8] sm:$0x1]
        %v7643 = vperm.slane %v7641, 0
        %v7647 = vunpack.c.l.b16 %v7639
        %v7648 = vunpack.c.l.b16 %v7640
        %v7649 = vpack.c.b16 %v7648, %v7647
        %v7652 = vsel %vm7027, %v7623, 0
        %v7655 = vsel %vm7027, %v7624, 0
        %v7658 = vsel %vm7027, %v7625, 0
        %v7661 = vsel %vm7027, %v7626, 0
        %v7664 = vsel %vm7027, %v7627, 0
        %v7667 = vsel %vm7027, %v7628, 0
        %v7670 = vsel %vm7027, %v7629, 0
        %v7673 = vsel %vm7027, %v7630, 0
        %v7676 = vsel %vm7027, %v7631, 0
        %v7679 = vsel %vm7027, %v7632, 0
        %v7682 = vsel %vm7027, %v7633, 0
        %v7685 = vsel %vm7027, %v7634, 0
        %v7688 = vsel %vm7027, %v7635, 0
        %v7691 = vsel %vm7027, %v7636, 0
        %v7694 = vsel %vm7027, %v7637, 0
        %v7697 = vsel %vm7027, %v7638, 0
        %7699 = vmatpush.bf16.msra.mxu0 0
        %7700 = vmatpush.bf16.msra.mxu0 0
        %7701 = vmatpush.bf16.msra.mxu0 0
        %7702 = vmatpush.bf16.msra.mxu0 0
        %7703 = vmatpush.bf16.msra.mxu0 0
        %7704 = vmatpush.bf16.msra.mxu0 0
        %7705 = vmatpush.bf16.msra.mxu0 0
        %7706 = vmatpush.bf16.msra.mxu0 %v7649
        %7707 = vmatmul.bf16.gmra.mxu0 %v7652
        %v7708 = vpop.f32.mrf.mxu0
        %v7709 = vadd.f32 %v7643, %v7708
        %v7710 = vpop.f32.mrf.mxu0
        %v7711 = vadd.f32 %v7643, %v7710
        %7712 = vmatmul.bf16.gmra.mxu0 %v7655
        %v7713 = vpop.f32.mrf.mxu0
        %v7714 = vadd.f32 %v7643, %v7713
        %v7715 = vpop.f32.mrf.mxu0
        %v7716 = vadd.f32 %v7643, %v7715
        %7717 = vmatmul.bf16.gmra.mxu0 %v7658
        %v7718 = vpop.f32.mrf.mxu0
        %v7719 = vadd.f32 %v7643, %v7718
        %v7720 = vpop.f32.mrf.mxu0
        %v7721 = vadd.f32 %v7643, %v7720
        %7722 = vmatmul.bf16.gmra.mxu0 %v7661
        %v7723 = vpop.f32.mrf.mxu0
        %v7724 = vadd.f32 %v7643, %v7723
        %v7725 = vpop.f32.mrf.mxu0
        %v7726 = vadd.f32 %v7643, %v7725
        %7727 = vmatmul.bf16.gmra.mxu0 %v7664
        %v7728 = vpop.f32.mrf.mxu0
        %v7729 = vadd.f32 %v7643, %v7728
        %v7730 = vpop.f32.mrf.mxu0
        %v7731 = vadd.f32 %v7643, %v7730
        %7732 = vmatmul.bf16.gmra.mxu0 %v7667
        %v7733 = vpop.f32.mrf.mxu0
        %v7734 = vadd.f32 %v7643, %v7733
        %v7735 = vpop.f32.mrf.mxu0
        %v7736 = vadd.f32 %v7643, %v7735
        %7737 = vmatmul.bf16.gmra.mxu0 %v7670
        %v7738 = vpop.f32.mrf.mxu0
        %v7739 = vadd.f32 %v7643, %v7738
        %v7740 = vpop.f32.mrf.mxu0
        %v7741 = vadd.f32 %v7643, %v7740
        %7742 = vmatmul.bf16.gmra.mxu0 %v7673
        %v7743 = vpop.f32.mrf.mxu0
        %v7744 = vadd.f32 %v7643, %v7743
        %v7745 = vpop.f32.mrf.mxu0
        %v7746 = vadd.f32 %v7643, %v7745
        %7747 = vmatmul.bf16.gmra.mxu0 %v7676
        %v7748 = vpop.f32.mrf.mxu0
        %v7749 = vadd.f32 %v7643, %v7748
        %v7750 = vpop.f32.mrf.mxu0
        %v7751 = vadd.f32 %v7643, %v7750
        %7752 = vmatmul.bf16.gmra.mxu0 %v7679
        %v7753 = vpop.f32.mrf.mxu0
        %v7754 = vadd.f32 %v7643, %v7753
        %v7755 = vpop.f32.mrf.mxu0
        %v7756 = vadd.f32 %v7643, %v7755
        %7757 = vmatmul.bf16.gmra.mxu0 %v7682
        %v7758 = vpop.f32.mrf.mxu0
        %v7759 = vadd.f32 %v7643, %v7758
        %v7760 = vpop.f32.mrf.mxu0
        %v7761 = vadd.f32 %v7643, %v7760
        %7762 = vmatmul.bf16.gmra.mxu0 %v7685
        %v7763 = vpop.f32.mrf.mxu0
        %v7764 = vadd.f32 %v7643, %v7763
        %v7765 = vpop.f32.mrf.mxu0
        %v7766 = vadd.f32 %v7643, %v7765
        %7767 = vmatmul.bf16.gmra.mxu0 %v7688
        %v7768 = vpop.f32.mrf.mxu0
        %v7769 = vadd.f32 %v7643, %v7768
        %v7770 = vpop.f32.mrf.mxu0
        %v7771 = vadd.f32 %v7643, %v7770
        %7772 = vmatmul.bf16.gmra.mxu0 %v7691
        %v7773 = vpop.f32.mrf.mxu0
        %v7774 = vadd.f32 %v7643, %v7773
        %v7775 = vpop.f32.mrf.mxu0
        %v7776 = vadd.f32 %v7643, %v7775
        %7777 = vmatmul.bf16.gmra.mxu0 %v7694
        %v7778 = vpop.f32.mrf.mxu0
        %v7779 = vadd.f32 %v7643, %v7778
        %v7780 = vpop.f32.mrf.mxu0
        %v7781 = vadd.f32 %v7643, %v7780
        %7782 = vmatmul.bf16.gmra.mxu0 %v7697
        %v7783 = vpop.f32.mrf.mxu0
        %v7784 = vadd.f32 %v7643, %v7783
        %v7785 = vpop.f32.mrf.mxu0
        %v7786 = vadd.f32 %v7643, %v7785
        %7787 = vdwg.mxu0
        %v7788 = vld [vmem:[%s9] sm:$0xf]
        %v7789 = vld [vmem:[%s9 + $0x4] sm:$0xf]
        %v7790 = vld [vmem:[%s9 + $0x8] sm:$0xf]
        %v7791 = vld [vmem:[%s9 + $0xc] sm:$0xf]
        %v7796 = vunpack.c.l.b16 %v7788
        %v7797 = vunpack.c.l.b16 %v7789
        %v7798 = vunpack.c.l.b16 %v7790
        %v7799 = vunpack.c.l.b16 %v7791
        %v7800 = vpack.c.b16 %v7797, %v7796
        %v7801 = vpack.c.b16 %v7799, %v7798
        %7804 = vmatpush.bf16.msra.mxu0 0
        %7805 = vmatpush.bf16.msra.mxu0 0
        %7806 = vmatpush.bf16.msra.mxu0 0
        %7807 = vmatpush.bf16.msra.mxu0 0
        %7808 = vmatpush.bf16.msra.mxu0 0
        %7809 = vmatpush.bf16.msra.mxu0 0
        %7810 = vmatpush.bf16.msra.mxu0 %v7801
        %7811 = vmatpush.bf16.msra.mxu0 %v7800
        %7812 = vmatmul.bf16.gmra.mxu0 %v5931
        %v7813 = vpop.f32.mrf.mxu0
        %v7814 = vadd.f32 0.0, %v7813
        %v7815 = vpop.f32.mrf.mxu0
        %v7816 = vadd.f32 0.0, %v7815
        %7817 = vmatmul.bf16.gmra.mxu0 %v5934
        %v7818 = vpop.f32.mrf.mxu0
        %v7819 = vadd.f32 0.0, %v7818
        %v7820 = vpop.f32.mrf.mxu0
        %v7821 = vadd.f32 0.0, %v7820
        %7822 = vmatmul.bf16.gmra.mxu0 %v5937
        %v7823 = vpop.f32.mrf.mxu0
        %v7824 = vadd.f32 0.0, %v7823
        %v7825 = vpop.f32.mrf.mxu0
        %v7826 = vadd.f32 0.0, %v7825
        %7827 = vmatmul.bf16.gmra.mxu0 %v5940
        %v7828 = vpop.f32.mrf.mxu0
        %v7829 = vadd.f32 0.0, %v7828
        %v7830 = vpop.f32.mrf.mxu0
        %v7831 = vadd.f32 0.0, %v7830
        %7832 = vmatmul.bf16.gmra.mxu0 %v5943
        %v7833 = vpop.f32.mrf.mxu0
        %v7834 = vadd.f32 0.0, %v7833
        %v7835 = vpop.f32.mrf.mxu0
        %v7836 = vadd.f32 0.0, %v7835
        %7837 = vmatmul.bf16.gmra.mxu0 %v5946
        %v7838 = vpop.f32.mrf.mxu0
        %v7839 = vadd.f32 0.0, %v7838
        %v7840 = vpop.f32.mrf.mxu0
        %v7841 = vadd.f32 0.0, %v7840
        %7842 = vmatmul.bf16.gmra.mxu0 %v5949
        %v7843 = vpop.f32.mrf.mxu0
        %v7844 = vadd.f32 0.0, %v7843
        %v7845 = vpop.f32.mrf.mxu0
        %v7846 = vadd.f32 0.0, %v7845
        %7847 = vmatmul.bf16.gmra.mxu0 %v5952
        %v7848 = vpop.f32.mrf.mxu0
        %v7849 = vadd.f32 0.0, %v7848
        %v7850 = vpop.f32.mrf.mxu0
        %v7851 = vadd.f32 0.0, %v7850
        %7852 = vmatmul.bf16.gmra.mxu0 %v5955
        %v7853 = vpop.f32.mrf.mxu0
        %v7854 = vadd.f32 0.0, %v7853
        %v7855 = vpop.f32.mrf.mxu0
        %v7856 = vadd.f32 0.0, %v7855
        %7857 = vmatmul.bf16.gmra.mxu0 %v5958
        %v7858 = vpop.f32.mrf.mxu0
        %v7859 = vadd.f32 0.0, %v7858
        %v7860 = vpop.f32.mrf.mxu0
        %v7861 = vadd.f32 0.0, %v7860
        %7862 = vmatmul.bf16.gmra.mxu0 %v5961
        %v7863 = vpop.f32.mrf.mxu0
        %v7864 = vadd.f32 0.0, %v7863
        %v7865 = vpop.f32.mrf.mxu0
        %v7866 = vadd.f32 0.0, %v7865
        %7867 = vmatmul.bf16.gmra.mxu0 %v5964
        %v7868 = vpop.f32.mrf.mxu0
        %v7869 = vadd.f32 0.0, %v7868
        %v7870 = vpop.f32.mrf.mxu0
        %v7871 = vadd.f32 0.0, %v7870
        %7872 = vmatmul.bf16.gmra.mxu0 %v5967
        %v7873 = vpop.f32.mrf.mxu0
        %v7874 = vadd.f32 0.0, %v7873
        %v7875 = vpop.f32.mrf.mxu0
        %v7876 = vadd.f32 0.0, %v7875
        %7877 = vmatmul.bf16.gmra.mxu0 %v5970
        %v7878 = vpop.f32.mrf.mxu0
        %v7879 = vadd.f32 0.0, %v7878
        %v7880 = vpop.f32.mrf.mxu0
        %v7881 = vadd.f32 0.0, %v7880
        %7882 = vmatmul.bf16.gmra.mxu0 %v5973
        %v7883 = vpop.f32.mrf.mxu0
        %v7884 = vadd.f32 0.0, %v7883
        %v7885 = vpop.f32.mrf.mxu0
        %v7886 = vadd.f32 0.0, %v7885
        %7887 = vmatmul.bf16.gmra.mxu0 %v5976
        %v7888 = vpop.f32.mrf.mxu0
        %v7889 = vadd.f32 0.0, %v7888
        %v7890 = vpop.f32.mrf.mxu0
        %v7891 = vadd.f32 0.0, %v7890
        %7892 = vdwg.mxu0
        %v7893 = vadd.f32 %v7709, %v7814
        %v7894 = vadd.f32 %v7711, %v7816
        %v7895 = vadd.f32 %v7714, %v7819
        %v7896 = vadd.f32 %v7716, %v7821
        %v7897 = vadd.f32 %v7719, %v7824
        %v7898 = vadd.f32 %v7721, %v7826
        %v7899 = vadd.f32 %v7724, %v7829
        %v7900 = vadd.f32 %v7726, %v7831
        %v7901 = vadd.f32 %v7729, %v7834
        %v7902 = vadd.f32 %v7731, %v7836
        %v7903 = vadd.f32 %v7734, %v7839
        %v7904 = vadd.f32 %v7736, %v7841
        %v7905 = vadd.f32 %v7739, %v7844
        %v7906 = vadd.f32 %v7741, %v7846
        %v7907 = vadd.f32 %v7744, %v7849
        %v7908 = vadd.f32 %v7746, %v7851
        %v7909 = vadd.f32 %v7749, %v7854
        %v7910 = vadd.f32 %v7751, %v7856
        %v7911 = vadd.f32 %v7754, %v7859
        %v7912 = vadd.f32 %v7756, %v7861
        %v7913 = vadd.f32 %v7759, %v7864
        %v7914 = vadd.f32 %v7761, %v7866
        %v7915 = vadd.f32 %v7764, %v7869
        %v7916 = vadd.f32 %v7766, %v7871
        %v7917 = vadd.f32 %v7769, %v7874
        %v7918 = vadd.f32 %v7771, %v7876
        %v7919 = vadd.f32 %v7774, %v7879
        %v7920 = vadd.f32 %v7776, %v7881
        %v7921 = vadd.f32 %v7779, %v7884
        %v7922 = vadd.f32 %v7781, %v7886
        %v7923 = vadd.f32 %v7784, %v7889
        %v7924 = vadd.f32 %v7786, %v7891
        %v7925 = vld [vmem:[%s10] sm:$0x1]
        %v7927 = vperm.slane %v7925, 0
        %v7929 = vadd.f32 %v7893, %v7927
        %v7930 = vadd.f32 %v7894, %v7927
        %v7931 = vadd.f32 %v7895, %v7927
        %v7932 = vadd.f32 %v7896, %v7927
        %v7933 = vadd.f32 %v7897, %v7927
        %v7934 = vadd.f32 %v7898, %v7927
        %v7935 = vadd.f32 %v7899, %v7927
        %v7936 = vadd.f32 %v7900, %v7927
        %v7937 = vadd.f32 %v7901, %v7927
        %v7938 = vadd.f32 %v7902, %v7927
        %v7939 = vadd.f32 %v7903, %v7927
        %v7940 = vadd.f32 %v7904, %v7927
        %v7941 = vadd.f32 %v7905, %v7927
        %v7942 = vadd.f32 %v7906, %v7927
        %v7943 = vadd.f32 %v7907, %v7927
        %v7944 = vadd.f32 %v7908, %v7927
        %v7945 = vadd.f32 %v7909, %v7927
        %v7946 = vadd.f32 %v7910, %v7927
        %v7947 = vadd.f32 %v7911, %v7927
        %v7948 = vadd.f32 %v7912, %v7927
        %v7949 = vadd.f32 %v7913, %v7927
        %v7950 = vadd.f32 %v7914, %v7927
        %v7951 = vadd.f32 %v7915, %v7927
        %v7952 = vadd.f32 %v7916, %v7927
        %v7953 = vadd.f32 %v7917, %v7927
        %v7954 = vadd.f32 %v7918, %v7927
        %v7955 = vadd.f32 %v7919, %v7927
        %v7956 = vadd.f32 %v7920, %v7927
        %v7957 = vadd.f32 %v7921, %v7927
        %v7958 = vadd.f32 %v7922, %v7927
        %v7959 = vadd.f32 %v7923, %v7927
        %v7960 = vadd.f32 %v7924, %v7927
        %v7961 = vmax.f32 %v7929, 0.0
        %v7962 = vmax.f32 %v7930, 0.0
        %v7963 = vmax.f32 %v7931, 0.0
        %v7964 = vmax.f32 %v7932, 0.0
        %v7965 = vmax.f32 %v7933, 0.0
        %v7966 = vmax.f32 %v7934, 0.0
        %v7967 = vmax.f32 %v7935, 0.0
        %v7968 = vmax.f32 %v7936, 0.0
        %v7969 = vmax.f32 %v7937, 0.0
        %v7970 = vmax.f32 %v7938, 0.0
        %v7971 = vmax.f32 %v7939, 0.0
        %v7972 = vmax.f32 %v7940, 0.0
        %v7973 = vmax.f32 %v7941, 0.0
        %v7974 = vmax.f32 %v7942, 0.0
        %v7975 = vmax.f32 %v7943, 0.0
        %v7976 = vmax.f32 %v7944, 0.0
        %v7977 = vmax.f32 %v7945, 0.0
        %v7978 = vmax.f32 %v7946, 0.0
        %v7979 = vmax.f32 %v7947, 0.0
        %v7980 = vmax.f32 %v7948, 0.0
        %v7981 = vmax.f32 %v7949, 0.0
        %v7982 = vmax.f32 %v7950, 0.0
        %v7983 = vmax.f32 %v7951, 0.0
        %v7984 = vmax.f32 %v7952, 0.0
        %v7985 = vmax.f32 %v7953, 0.0
        %v7986 = vmax.f32 %v7954, 0.0
        %v7987 = vmax.f32 %v7955, 0.0
        %v7988 = vmax.f32 %v7956, 0.0
        %v7989 = vmax.f32 %v7957, 0.0
        %v7990 = vmax.f32 %v7958, 0.0
        %v7991 = vmax.f32 %v7959, 0.0
        %v7992 = vmax.f32 %v7960, 0.0
        %v7993 = vpack.c.bf16 %v7962, %v7961
        %v7994 = vpack.c.bf16 %v7964, %v7963
        %v7995 = vpack.c.bf16 %v7966, %v7965
        %v7996 = vpack.c.bf16 %v7968, %v7967
        %v7997 = vpack.c.bf16 %v7970, %v7969
        %v7998 = vpack.c.bf16 %v7972, %v7971
        %v7999 = vpack.c.bf16 %v7974, %v7973
        %v8000 = vpack.c.bf16 %v7976, %v7975
        %v8001 = vpack.c.bf16 %v7978, %v7977
        %v8002 = vpack.c.bf16 %v7980, %v7979
        %v8003 = vpack.c.bf16 %v7982, %v7981
        %v8004 = vpack.c.bf16 %v7984, %v7983
        %v8005 = vpack.c.bf16 %v7986, %v7985
        %v8006 = vpack.c.bf16 %v7988, %v7987
        %v8007 = vpack.c.bf16 %v7990, %v7989
        %v8008 = vpack.c.bf16 %v7992, %v7991
        %v8009 = vld [vmem:[%s11] sm:$0xf]
        %v8010 = vld [vmem:[%s11 + $0x4] sm:$0xf]
        %v8011 = vld [vmem:[%s11 + $0x8] sm:$0xf]
        %v8012 = vld [vmem:[%s11 + $0xc] sm:$0xf]
        %v8013 = vld [vmem:[%s11 + $0x10] sm:$0xf]
        %v8014 = vld [vmem:[%s11 + $0x14] sm:$0xf]
        %v8015 = vld [vmem:[%s11 + $0x18] sm:$0xf]
        %v8016 = vld [vmem:[%s11 + $0x1c] sm:$0xf]
        %v8017 = vld [vmem:[%s12] sm:$0x1]
        %v8019 = vperm.slane %v8017, 0
        %v8029 = vunpack.c.l.b16 %v8009
        %v8030 = vunpack.c.l.b16 %v8010
        %v8031 = vunpack.c.l.b16 %v8011
        %v8032 = vunpack.c.l.b16 %v8012
        %v8033 = vunpack.c.l.b16 %v8013
        %v8034 = vunpack.c.l.b16 %v8014
        %v8035 = vunpack.c.l.b16 %v8015
        %v8036 = vunpack.c.l.b16 %v8016
        %v8037 = vpack.c.b16 %v8030, %v8029
        %v8038 = vpack.c.b16 %v8032, %v8031
        %v8039 = vpack.c.b16 %v8034, %v8033
        %v8040 = vpack.c.b16 %v8036, %v8035
        %v8046 = vsel %vm7125, %v7993, 0
        %v8049 = vsel %vm7125, %v7994, 0
        %v8052 = vsel %vm7125, %v7995, 0
        %v8055 = vsel %vm7125, %v7996, 0
        %v8058 = vsel %vm7125, %v7997, 0
        %v8061 = vsel %vm7125, %v7998, 0
        %v8064 = vsel %vm7125, %v7999, 0
        %v8067 = vsel %vm7125, %v8000, 0
        %v8070 = vsel %vm7125, %v8001, 0
        %v8073 = vsel %vm7125, %v8002, 0
        %v8076 = vsel %vm7125, %v8003, 0
        %v8079 = vsel %vm7125, %v8004, 0
        %v8082 = vsel %vm7125, %v8005, 0
        %v8085 = vsel %vm7125, %v8006, 0
        %v8088 = vsel %vm7125, %v8007, 0
        %v8091 = vsel %vm7125, %v8008, 0
        %8093 = vmatpush.bf16.msra.mxu0 0
        %8094 = vmatpush.bf16.msra.mxu0 0
        %8095 = vmatpush.bf16.msra.mxu0 0
        %8096 = vmatpush.bf16.msra.mxu0 0
        %8097 = vmatpush.bf16.msra.mxu0 %v8040
        %8098 = vmatpush.bf16.msra.mxu0 %v8039
        %8099 = vmatpush.bf16.msra.mxu0 %v8038
        %8100 = vmatpush.bf16.msra.mxu0 %v8037
        %8101 = vmatmul.bf16.gmra.mxu0 %v8046
        %v8102 = vpop.f32.mrf.mxu0
        %v8103 = vadd.f32 %v8019, %v8102
        %v8104 = vpop.f32.mrf.mxu0
        %v8105 = vadd.f32 %v8019, %v8104
        %8106 = vmatmul.bf16.gmra.mxu0 %v8049
        %v8107 = vpop.f32.mrf.mxu0
        %v8108 = vadd.f32 %v8019, %v8107
        %v8109 = vpop.f32.mrf.mxu0
        %v8110 = vadd.f32 %v8019, %v8109
        %8111 = vmatmul.bf16.gmra.mxu0 %v8052
        %v8112 = vpop.f32.mrf.mxu0
        %v8113 = vadd.f32 %v8019, %v8112
        %v8114 = vpop.f32.mrf.mxu0
        %v8115 = vadd.f32 %v8019, %v8114
        %8116 = vmatmul.bf16.gmra.mxu0 %v8055
        %v8117 = vpop.f32.mrf.mxu0
        %v8118 = vadd.f32 %v8019, %v8117
        %v8119 = vpop.f32.mrf.mxu0
        %v8120 = vadd.f32 %v8019, %v8119
        %8121 = vmatmul.bf16.gmra.mxu0 %v8058
        %v8122 = vpop.f32.mrf.mxu0
        %v8123 = vadd.f32 %v8019, %v8122
        %v8124 = vpop.f32.mrf.mxu0
        %v8125 = vadd.f32 %v8019, %v8124
        %8126 = vmatmul.bf16.gmra.mxu0 %v8061
        %v8127 = vpop.f32.mrf.mxu0
        %v8128 = vadd.f32 %v8019, %v8127
        %v8129 = vpop.f32.mrf.mxu0
        %v8130 = vadd.f32 %v8019, %v8129
        %8131 = vmatmul.bf16.gmra.mxu0 %v8064
        %v8132 = vpop.f32.mrf.mxu0
        %v8133 = vadd.f32 %v8019, %v8132
        %v8134 = vpop.f32.mrf.mxu0
        %v8135 = vadd.f32 %v8019, %v8134
        %8136 = vmatmul.bf16.gmra.mxu0 %v8067
        %v8137 = vpop.f32.mrf.mxu0
        %v8138 = vadd.f32 %v8019, %v8137
        %v8139 = vpop.f32.mrf.mxu0
        %v8140 = vadd.f32 %v8019, %v8139
        %8141 = vmatmul.bf16.gmra.mxu0 %v8070
        %v8142 = vpop.f32.mrf.mxu0
        %v8143 = vadd.f32 %v8019, %v8142
        %v8144 = vpop.f32.mrf.mxu0
        %v8145 = vadd.f32 %v8019, %v8144
        %8146 = vmatmul.bf16.gmra.mxu0 %v8073
        %v8147 = vpop.f32.mrf.mxu0
        %v8148 = vadd.f32 %v8019, %v8147
        %v8149 = vpop.f32.mrf.mxu0
        %v8150 = vadd.f32 %v8019, %v8149
        %8151 = vmatmul.bf16.gmra.mxu0 %v8076
        %v8152 = vpop.f32.mrf.mxu0
        %v8153 = vadd.f32 %v8019, %v8152
        %v8154 = vpop.f32.mrf.mxu0
        %v8155 = vadd.f32 %v8019, %v8154
        %8156 = vmatmul.bf16.gmra.mxu0 %v8079
        %v8157 = vpop.f32.mrf.mxu0
        %v8158 = vadd.f32 %v8019, %v8157
        %v8159 = vpop.f32.mrf.mxu0
        %v8160 = vadd.f32 %v8019, %v8159
        %8161 = vmatmul.bf16.gmra.mxu0 %v8082
        %v8162 = vpop.f32.mrf.mxu0
        %v8163 = vadd.f32 %v8019, %v8162
        %v8164 = vpop.f32.mrf.mxu0
        %v8165 = vadd.f32 %v8019, %v8164
        %8166 = vmatmul.bf16.gmra.mxu0 %v8085
        %v8167 = vpop.f32.mrf.mxu0
        %v8168 = vadd.f32 %v8019, %v8167
        %v8169 = vpop.f32.mrf.mxu0
        %v8170 = vadd.f32 %v8019, %v8169
        %8171 = vmatmul.bf16.gmra.mxu0 %v8088
        %v8172 = vpop.f32.mrf.mxu0
        %v8173 = vadd.f32 %v8019, %v8172
        %v8174 = vpop.f32.mrf.mxu0
        %v8175 = vadd.f32 %v8019, %v8174
        %8176 = vmatmul.bf16.gmra.mxu0 %v8091
        %v8177 = vpop.f32.mrf.mxu0
        %v8178 = vadd.f32 %v8019, %v8177
        %v8179 = vpop.f32.mrf.mxu0
        %v8180 = vadd.f32 %v8019, %v8179
        %8181 = vdwg.mxu0
        %v8182 = vmax.f32 %v8103, 0.0
        %v8183 = vmax.f32 %v8105, 0.0
        %v8184 = vmax.f32 %v8108, 0.0
        %v8185 = vmax.f32 %v8110, 0.0
        %v8186 = vmax.f32 %v8113, 0.0
        %v8187 = vmax.f32 %v8115, 0.0
        %v8188 = vmax.f32 %v8118, 0.0
        %v8189 = vmax.f32 %v8120, 0.0
        %v8190 = vmax.f32 %v8123, 0.0
        %v8191 = vmax.f32 %v8125, 0.0
        %v8192 = vmax.f32 %v8128, 0.0
        %v8193 = vmax.f32 %v8130, 0.0
        %v8194 = vmax.f32 %v8133, 0.0
        %v8195 = vmax.f32 %v8135, 0.0
        %v8196 = vmax.f32 %v8138, 0.0
        %v8197 = vmax.f32 %v8140, 0.0
        %v8198 = vmax.f32 %v8143, 0.0
        %v8199 = vmax.f32 %v8145, 0.0
        %v8200 = vmax.f32 %v8148, 0.0
        %v8201 = vmax.f32 %v8150, 0.0
        %v8202 = vmax.f32 %v8153, 0.0
        %v8203 = vmax.f32 %v8155, 0.0
        %v8204 = vmax.f32 %v8158, 0.0
        %v8205 = vmax.f32 %v8160, 0.0
        %v8206 = vmax.f32 %v8163, 0.0
        %v8207 = vmax.f32 %v8165, 0.0
        %v8208 = vmax.f32 %v8168, 0.0
        %v8209 = vmax.f32 %v8170, 0.0
        %v8210 = vmax.f32 %v8173, 0.0
        %v8211 = vmax.f32 %v8175, 0.0
        %v8212 = vmax.f32 %v8178, 0.0
        %v8213 = vmax.f32 %v8180, 0.0
        %v8246 = vrot.slane %v8182, 2
        %v8247 = vrot.slane %v8182, 4
        %v8248 = vrot.slane %v8182, 6
        %v8249 = vrot.slane %v8183, 2
        %v8250 = vrot.slane %v8183, 4
        %v8251 = vrot.slane %v8183, 6
        %v8252 = vrot.slane %v8184, 2
        %v8253 = vrot.slane %v8184, 4
        %v8254 = vrot.slane %v8184, 6
        %v8255 = vrot.slane %v8185, 2
        %v8256 = vrot.slane %v8185, 4
        %v8257 = vrot.slane %v8185, 6
        %v8258 = vrot.slane %v8186, 2
        %v8259 = vrot.slane %v8186, 4
        %v8260 = vrot.slane %v8186, 6
        %v8261 = vrot.slane %v8187, 2
        %v8262 = vrot.slane %v8187, 4
        %v8263 = vrot.slane %v8187, 6
        %v8264 = vrot.slane %v8188, 2
        %v8265 = vrot.slane %v8188, 4
        %v8266 = vrot.slane %v8188, 6
        %v8267 = vrot.slane %v8189, 2
        %v8268 = vrot.slane %v8189, 4
        %v8269 = vrot.slane %v8189, 6
        %v8270 = vrot.slane %v8190, 2
        %v8271 = vrot.slane %v8190, 4
        %v8272 = vrot.slane %v8190, 6
        %v8273 = vrot.slane %v8191, 2
        %v8274 = vrot.slane %v8191, 4
        %v8275 = vrot.slane %v8191, 6
        %v8276 = vrot.slane %v8192, 2
        %v8277 = vrot.slane %v8192, 4
        %v8278 = vrot.slane %v8192, 6
        %v8279 = vrot.slane %v8193, 2
        %v8280 = vrot.slane %v8193, 4
        %v8281 = vrot.slane %v8193, 6
        %v8282 = vrot.slane %v8194, 2
        %v8283 = vrot.slane %v8194, 4
        %v8284 = vrot.slane %v8194, 6
        %v8285 = vrot.slane %v8195, 2
        %v8286 = vrot.slane %v8195, 4
        %v8287 = vrot.slane %v8195, 6
        %v8288 = vrot.slane %v8196, 2
        %v8289 = vrot.slane %v8196, 4
        %v8290 = vrot.slane %v8196, 6
        %v8291 = vrot.slane %v8197, 2
        %v8292 = vrot.slane %v8197, 4
        %v8293 = vrot.slane %v8197, 6
        %v8294 = vrot.slane %v8198, 2
        %v8295 = vrot.slane %v8198, 4
        %v8296 = vrot.slane %v8198, 6
        %v8297 = vrot.slane %v8199, 2
        %v8298 = vrot.slane %v8199, 4
        %v8299 = vrot.slane %v8199, 6
        %v8300 = vrot.slane %v8200, 2
        %v8301 = vrot.slane %v8200, 4
        %v8302 = vrot.slane %v8200, 6
        %v8303 = vrot.slane %v8201, 2
        %v8304 = vrot.slane %v8201, 4
        %v8305 = vrot.slane %v8201, 6
        %v8306 = vrot.slane %v8202, 2
        %v8307 = vrot.slane %v8202, 4
        %v8308 = vrot.slane %v8202, 6
        %v8309 = vrot.slane %v8203, 2
        %v8310 = vrot.slane %v8203, 4
        %v8311 = vrot.slane %v8203, 6
        %v8312 = vrot.slane %v8204, 2
        %v8313 = vrot.slane %v8204, 4
        %v8314 = vrot.slane %v8204, 6
        %v8315 = vrot.slane %v8205, 2
        %v8316 = vrot.slane %v8205, 4
        %v8317 = vrot.slane %v8205, 6
        %v8318 = vrot.slane %v8206, 2
        %v8319 = vrot.slane %v8206, 4
        %v8320 = vrot.slane %v8206, 6
        %v8321 = vrot.slane %v8207, 2
        %v8322 = vrot.slane %v8207, 4
        %v8323 = vrot.slane %v8207, 6
        %v8324 = vrot.slane %v8208, 2
        %v8325 = vrot.slane %v8208, 4
        %v8326 = vrot.slane %v8208, 6
        %v8327 = vrot.slane %v8209, 2
        %v8328 = vrot.slane %v8209, 4
        %v8329 = vrot.slane %v8209, 6
        %v8330 = vrot.slane %v8210, 2
        %v8331 = vrot.slane %v8210, 4
        %v8332 = vrot.slane %v8210, 6
        %v8333 = vrot.slane %v8211, 2
        %v8334 = vrot.slane %v8211, 4
        %v8335 = vrot.slane %v8211, 6
        %v8336 = vrot.slane %v8212, 2
        %v8337 = vrot.slane %v8212, 4
        %v8338 = vrot.slane %v8212, 6
        %v8339 = vrot.slane %v8213, 2
        %v8340 = vrot.slane %v8213, 4
        %v8341 = vrot.slane %v8213, 6
        %v8342 = vperm.slane %v8184, 1
        %v8343 = vperm.slane %v8252, 1
        %v8344 = vperm.slane %v8253, 1
        %v8345 = vperm.slane %v8254, 1
        %v8346 = vperm.slane %v8185, 1
        %v8347 = vperm.slane %v8255, 1
        %v8348 = vperm.slane %v8256, 1
        %v8349 = vperm.slane %v8257, 1
        %v8350 = vperm.slane %v8188, 1
        %v8351 = vperm.slane %v8264, 1
        %v8352 = vperm.slane %v8265, 1
        %v8353 = vperm.slane %v8266, 1
        %v8354 = vperm.slane %v8189, 1
        %v8355 = vperm.slane %v8267, 1
        %v8356 = vperm.slane %v8268, 1
        %v8357 = vperm.slane %v8269, 1
        %v8358 = vperm.slane %v8192, 1
        %v8359 = vperm.slane %v8276, 1
        %v8360 = vperm.slane %v8277, 1
        %v8361 = vperm.slane %v8278, 1
        %v8362 = vperm.slane %v8193, 1
        %v8363 = vperm.slane %v8279, 1
        %v8364 = vperm.slane %v8280, 1
        %v8365 = vperm.slane %v8281, 1
        %v8366 = vperm.slane %v8196, 1
        %v8367 = vperm.slane %v8288, 1
        %v8368 = vperm.slane %v8289, 1
        %v8369 = vperm.slane %v8290, 1
        %v8370 = vperm.slane %v8197, 1
        %v8371 = vperm.slane %v8291, 1
        %v8372 = vperm.slane %v8292, 1
        %v8373 = vperm.slane %v8293, 1
        %v8374 = vperm.slane %v8200, 1
        %v8375 = vperm.slane %v8300, 1
        %v8376 = vperm.slane %v8301, 1
        %v8377 = vperm.slane %v8302, 1
        %v8378 = vperm.slane %v8201, 1
        %v8379 = vperm.slane %v8303, 1
        %v8380 = vperm.slane %v8304, 1
        %v8381 = vperm.slane %v8305, 1
        %v8382 = vperm.slane %v8204, 1
        %v8383 = vperm.slane %v8312, 1
        %v8384 = vperm.slane %v8313, 1
        %v8385 = vperm.slane %v8314, 1
        %v8386 = vperm.slane %v8205, 1
        %v8387 = vperm.slane %v8315, 1
        %v8388 = vperm.slane %v8316, 1
        %v8389 = vperm.slane %v8317, 1
        %v8390 = vperm.slane %v8208, 1
        %v8391 = vperm.slane %v8324, 1
        %v8392 = vperm.slane %v8325, 1
        %v8393 = vperm.slane %v8326, 1
        %v8394 = vperm.slane %v8209, 1
        %v8395 = vperm.slane %v8327, 1
        %v8396 = vperm.slane %v8328, 1
        %v8397 = vperm.slane %v8329, 1
        %v8398 = vsel %vm3214, %v8343, %v8342
        %v8399 = vsel %vm3216, %v8344, %v8398
        %v8400 = vsel %vm3218, %v8345, %v8399
        %v8401 = vsel %vm3220, %v8346, %v8400
        %v8402 = vsel %vm3222, %v8347, %v8401
        %v8403 = vsel %vm3224, %v8348, %v8402
        %v8404 = vsel %vm3226, %v8349, %v8403
        %v8405 = vsel %vm3214, %v8351, %v8350
        %v8406 = vsel %vm3216, %v8352, %v8405
        %v8407 = vsel %vm3218, %v8353, %v8406
        %v8408 = vsel %vm3220, %v8354, %v8407
        %v8409 = vsel %vm3222, %v8355, %v8408
        %v8410 = vsel %vm3224, %v8356, %v8409
        %v8411 = vsel %vm3226, %v8357, %v8410
        %v8412 = vsel %vm3214, %v8359, %v8358
        %v8413 = vsel %vm3216, %v8360, %v8412
        %v8414 = vsel %vm3218, %v8361, %v8413
        %v8415 = vsel %vm3220, %v8362, %v8414
        %v8416 = vsel %vm3222, %v8363, %v8415
        %v8417 = vsel %vm3224, %v8364, %v8416
        %v8418 = vsel %vm3226, %v8365, %v8417
        %v8419 = vsel %vm3214, %v8367, %v8366
        %v8420 = vsel %vm3216, %v8368, %v8419
        %v8421 = vsel %vm3218, %v8369, %v8420
        %v8422 = vsel %vm3220, %v8370, %v8421
        %v8423 = vsel %vm3222, %v8371, %v8422
        %v8424 = vsel %vm3224, %v8372, %v8423
        %v8425 = vsel %vm3226, %v8373, %v8424
        %v8426 = vsel %vm3214, %v8375, %v8374
        %v8427 = vsel %vm3216, %v8376, %v8426
        %v8428 = vsel %vm3218, %v8377, %v8427
        %v8429 = vsel %vm3220, %v8378, %v8428
        %v8430 = vsel %vm3222, %v8379, %v8429
        %v8431 = vsel %vm3224, %v8380, %v8430
        %v8432 = vsel %vm3226, %v8381, %v8431
        %v8433 = vsel %vm3214, %v8383, %v8382
        %v8434 = vsel %vm3216, %v8384, %v8433
        %v8435 = vsel %vm3218, %v8385, %v8434
        %v8436 = vsel %vm3220, %v8386, %v8435
        %v8437 = vsel %vm3222, %v8387, %v8436
        %v8438 = vsel %vm3224, %v8388, %v8437
        %v8439 = vsel %vm3226, %v8389, %v8438
        %v8440 = vsel %vm3214, %v8391, %v8390
        %v8441 = vsel %vm3216, %v8392, %v8440
        %v8442 = vsel %vm3218, %v8393, %v8441
        %v8443 = vsel %vm3220, %v8394, %v8442
        %v8444 = vsel %vm3222, %v8395, %v8443
        %v8445 = vsel %vm3224, %v8396, %v8444
        %v8446 = vsel %vm3226, %v8397, %v8445
        %v8447 = vrot.slane %v8404, 7
        %v8448 = vrot.slane %v8411, 7
        %v8449 = vrot.slane %v8418, 7
        %v8450 = vrot.slane %v8425, 7
        %v8451 = vrot.slane %v8432, 7
        %v8452 = vrot.slane %v8439, 7
        %v8453 = vrot.slane %v8446, 7
        %v8461 = vsel %vm1669, 0.0, %v8447
        %v8462 = vsel %vm1669, 0.0, %v8448
        %v8463 = vsel %vm1669, 0.0, %v8449
        %v8464 = vsel %vm1669, 0.0, %v8450
        %v8465 = vsel %vm1669, 0.0, %v8451
        %v8466 = vsel %vm1669, 0.0, %v8452
        %v8467 = vsel %vm1669, 0.0, %v8453
        %v8468 = vperm.slane %v8184, 0
        %v8469 = vperm.slane %v8252, 0
        %v8470 = vperm.slane %v8253, 0
        %v8471 = vperm.slane %v8254, 0
        %v8472 = vperm.slane %v8185, 0
        %v8473 = vperm.slane %v8255, 0
        %v8474 = vperm.slane %v8256, 0
        %v8475 = vperm.slane %v8257, 0
        %v8476 = vperm.slane %v8188, 0
        %v8477 = vperm.slane %v8264, 0
        %v8478 = vperm.slane %v8265, 0
        %v8479 = vperm.slane %v8266, 0
        %v8480 = vperm.slane %v8189, 0
        %v8481 = vperm.slane %v8267, 0
        %v8482 = vperm.slane %v8268, 0
        %v8483 = vperm.slane %v8269, 0
        %v8484 = vperm.slane %v8192, 0
        %v8485 = vperm.slane %v8276, 0
        %v8486 = vperm.slane %v8277, 0
        %v8487 = vperm.slane %v8278, 0
        %v8488 = vperm.slane %v8193, 0
        %v8489 = vperm.slane %v8279, 0
        %v8490 = vperm.slane %v8280, 0
        %v8491 = vperm.slane %v8281, 0
        %v8492 = vperm.slane %v8196, 0
        %v8493 = vperm.slane %v8288, 0
        %v8494 = vperm.slane %v8289, 0
        %v8495 = vperm.slane %v8290, 0
        %v8496 = vperm.slane %v8197, 0
        %v8497 = vperm.slane %v8291, 0
        %v8498 = vperm.slane %v8292, 0
        %v8499 = vperm.slane %v8293, 0
        %v8500 = vperm.slane %v8200, 0
        %v8501 = vperm.slane %v8300, 0
        %v8502 = vperm.slane %v8301, 0
        %v8503 = vperm.slane %v8302, 0
        %v8504 = vperm.slane %v8201, 0
        %v8505 = vperm.slane %v8303, 0
        %v8506 = vperm.slane %v8304, 0
        %v8507 = vperm.slane %v8305, 0
        %v8508 = vperm.slane %v8204, 0
        %v8509 = vperm.slane %v8312, 0
        %v8510 = vperm.slane %v8313, 0
        %v8511 = vperm.slane %v8314, 0
        %v8512 = vperm.slane %v8205, 0
        %v8513 = vperm.slane %v8315, 0
        %v8514 = vperm.slane %v8316, 0
        %v8515 = vperm.slane %v8317, 0
        %v8516 = vperm.slane %v8208, 0
        %v8517 = vperm.slane %v8324, 0
        %v8518 = vperm.slane %v8325, 0
        %v8519 = vperm.slane %v8326, 0
        %v8520 = vperm.slane %v8209, 0
        %v8521 = vperm.slane %v8327, 0
        %v8522 = vperm.slane %v8328, 0
        %v8523 = vperm.slane %v8329, 0
        %v8524 = vsel %vm3214, %v8469, %v8468
        %v8525 = vsel %vm3216, %v8470, %v8524
        %v8526 = vsel %vm3218, %v8471, %v8525
        %v8527 = vsel %vm3220, %v8472, %v8526
        %v8528 = vsel %vm3222, %v8473, %v8527
        %v8529 = vsel %vm3224, %v8474, %v8528
        %v8530 = vsel %vm3226, %v8475, %v8529
        %v8531 = vsel %vm3214, %v8477, %v8476
        %v8532 = vsel %vm3216, %v8478, %v8531
        %v8533 = vsel %vm3218, %v8479, %v8532
        %v8534 = vsel %vm3220, %v8480, %v8533
        %v8535 = vsel %vm3222, %v8481, %v8534
        %v8536 = vsel %vm3224, %v8482, %v8535
        %v8537 = vsel %vm3226, %v8483, %v8536
        %v8538 = vsel %vm3214, %v8485, %v8484
        %v8539 = vsel %vm3216, %v8486, %v8538
        %v8540 = vsel %vm3218, %v8487, %v8539
        %v8541 = vsel %vm3220, %v8488, %v8540
        %v8542 = vsel %vm3222, %v8489, %v8541
        %v8543 = vsel %vm3224, %v8490, %v8542
        %v8544 = vsel %vm3226, %v8491, %v8543
        %v8545 = vsel %vm3214, %v8493, %v8492
        %v8546 = vsel %vm3216, %v8494, %v8545
        %v8547 = vsel %vm3218, %v8495, %v8546
        %v8548 = vsel %vm3220, %v8496, %v8547
        %v8549 = vsel %vm3222, %v8497, %v8548
        %v8550 = vsel %vm3224, %v8498, %v8549
        %v8551 = vsel %vm3226, %v8499, %v8550
        %v8552 = vsel %vm3214, %v8501, %v8500
        %v8553 = vsel %vm3216, %v8502, %v8552
        %v8554 = vsel %vm3218, %v8503, %v8553
        %v8555 = vsel %vm3220, %v8504, %v8554
        %v8556 = vsel %vm3222, %v8505, %v8555
        %v8557 = vsel %vm3224, %v8506, %v8556
        %v8558 = vsel %vm3226, %v8507, %v8557
        %v8559 = vsel %vm3214, %v8509, %v8508
        %v8560 = vsel %vm3216, %v8510, %v8559
        %v8561 = vsel %vm3218, %v8511, %v8560
        %v8562 = vsel %vm3220, %v8512, %v8561
        %v8563 = vsel %vm3222, %v8513, %v8562
        %v8564 = vsel %vm3224, %v8514, %v8563
        %v8565 = vsel %vm3226, %v8515, %v8564
        %v8566 = vsel %vm3214, %v8517, %v8516
        %v8567 = vsel %vm3216, %v8518, %v8566
        %v8568 = vsel %vm3218, %v8519, %v8567
        %v8569 = vsel %vm3220, %v8520, %v8568
        %v8570 = vsel %vm3222, %v8521, %v8569
        %v8571 = vsel %vm3224, %v8522, %v8570
        %v8572 = vsel %vm3226, %v8523, %v8571
        %v8573 = vperm.slane %v8182, 1
        %v8574 = vperm.slane %v8246, 1
        %v8575 = vperm.slane %v8247, 1
        %v8576 = vperm.slane %v8248, 1
        %v8577 = vperm.slane %v8183, 1
        %v8578 = vperm.slane %v8249, 1
        %v8579 = vperm.slane %v8250, 1
        %v8580 = vperm.slane %v8186, 1
        %v8581 = vperm.slane %v8258, 1
        %v8582 = vperm.slane %v8259, 1
        %v8583 = vperm.slane %v8260, 1
        %v8584 = vperm.slane %v8187, 1
        %v8585 = vperm.slane %v8261, 1
        %v8586 = vperm.slane %v8262, 1
        %v8587 = vperm.slane %v8190, 1
        %v8588 = vperm.slane %v8270, 1
        %v8589 = vperm.slane %v8271, 1
        %v8590 = vperm.slane %v8272, 1
        %v8591 = vperm.slane %v8191, 1
        %v8592 = vperm.slane %v8273, 1
        %v8593 = vperm.slane %v8274, 1
        %v8594 = vperm.slane %v8194, 1
        %v8595 = vperm.slane %v8282, 1
        %v8596 = vperm.slane %v8283, 1
        %v8597 = vperm.slane %v8284, 1
        %v8598 = vperm.slane %v8195, 1
        %v8599 = vperm.slane %v8285, 1
        %v8600 = vperm.slane %v8286, 1
        %v8601 = vperm.slane %v8198, 1
        %v8602 = vperm.slane %v8294, 1
        %v8603 = vperm.slane %v8295, 1
        %v8604 = vperm.slane %v8296, 1
        %v8605 = vperm.slane %v8199, 1
        %v8606 = vperm.slane %v8297, 1
        %v8607 = vperm.slane %v8298, 1
        %v8608 = vperm.slane %v8202, 1
        %v8609 = vperm.slane %v8306, 1
        %v8610 = vperm.slane %v8307, 1
        %v8611 = vperm.slane %v8308, 1
        %v8612 = vperm.slane %v8203, 1
        %v8613 = vperm.slane %v8309, 1
        %v8614 = vperm.slane %v8310, 1
        %v8615 = vperm.slane %v8206, 1
        %v8616 = vperm.slane %v8318, 1
        %v8617 = vperm.slane %v8319, 1
        %v8618 = vperm.slane %v8320, 1
        %v8619 = vperm.slane %v8207, 1
        %v8620 = vperm.slane %v8321, 1
        %v8621 = vperm.slane %v8322, 1
        %v8622 = vperm.slane %v8210, 1
        %v8623 = vperm.slane %v8330, 1
        %v8624 = vperm.slane %v8331, 1
        %v8625 = vperm.slane %v8332, 1
        %v8626 = vperm.slane %v8211, 1
        %v8627 = vperm.slane %v8333, 1
        %v8628 = vperm.slane %v8334, 1
        %v8629 = vsel %vm3216, %v8574, %v8573
        %v8630 = vsel %vm3218, %v8575, %v8629
        %v8631 = vsel %vm3220, %v8576, %v8630
        %v8632 = vsel %vm3222, %v8577, %v8631
        %v8633 = vsel %vm3224, %v8578, %v8632
        %v8634 = vsel %vm3226, %v8579, %v8633
        %v8635 = vsel %vm3216, %v8581, %v8580
        %v8636 = vsel %vm3218, %v8582, %v8635
        %v8637 = vsel %vm3220, %v8583, %v8636
        %v8638 = vsel %vm3222, %v8584, %v8637
        %v8639 = vsel %vm3224, %v8585, %v8638
        %v8640 = vsel %vm3226, %v8586, %v8639
        %v8641 = vsel %vm3216, %v8588, %v8587
        %v8642 = vsel %vm3218, %v8589, %v8641
        %v8643 = vsel %vm3220, %v8590, %v8642
        %v8644 = vsel %vm3222, %v8591, %v8643
        %v8645 = vsel %vm3224, %v8592, %v8644
        %v8646 = vsel %vm3226, %v8593, %v8645
        %v8647 = vsel %vm3216, %v8595, %v8594
        %v8648 = vsel %vm3218, %v8596, %v8647
        %v8649 = vsel %vm3220, %v8597, %v8648
        %v8650 = vsel %vm3222, %v8598, %v8649
        %v8651 = vsel %vm3224, %v8599, %v8650
        %v8652 = vsel %vm3226, %v8600, %v8651
        %v8653 = vsel %vm3216, %v8602, %v8601
        %v8654 = vsel %vm3218, %v8603, %v8653
        %v8655 = vsel %vm3220, %v8604, %v8654
        %v8656 = vsel %vm3222, %v8605, %v8655
        %v8657 = vsel %vm3224, %v8606, %v8656
        %v8658 = vsel %vm3226, %v8607, %v8657
        %v8659 = vsel %vm3216, %v8609, %v8608
        %v8660 = vsel %vm3218, %v8610, %v8659
        %v8661 = vsel %vm3220, %v8611, %v8660
        %v8662 = vsel %vm3222, %v8612, %v8661
        %v8663 = vsel %vm3224, %v8613, %v8662
        %v8664 = vsel %vm3226, %v8614, %v8663
        %v8665 = vsel %vm3216, %v8616, %v8615
        %v8666 = vsel %vm3218, %v8617, %v8665
        %v8667 = vsel %vm3220, %v8618, %v8666
        %v8668 = vsel %vm3222, %v8619, %v8667
        %v8669 = vsel %vm3224, %v8620, %v8668
        %v8670 = vsel %vm3226, %v8621, %v8669
        %v8671 = vsel %vm3216, %v8623, %v8622
        %v8672 = vsel %vm3218, %v8624, %v8671
        %v8673 = vsel %vm3220, %v8625, %v8672
        %v8674 = vsel %vm3222, %v8626, %v8673
        %v8675 = vsel %vm3224, %v8627, %v8674
        %v8676 = vsel %vm3226, %v8628, %v8675
        %v8685 = vsel %vm1669, 0.0, %v8634
        %v8686 = vsel %vm1669, 0.0, %v8640
        %v8687 = vsel %vm1669, 0.0, %v8646
        %v8688 = vsel %vm1669, 0.0, %v8652
        %v8689 = vsel %vm1669, 0.0, %v8658
        %v8690 = vsel %vm1669, 0.0, %v8664
        %v8691 = vsel %vm1669, 0.0, %v8670
        %v8692 = vsel %vm1669, 0.0, %v8676
        %v8693 = vperm.slane %v8212, 1
        %v8694 = vperm.slane %v8336, 1
        %v8695 = vperm.slane %v8337, 1
        %v8696 = vperm.slane %v8338, 1
        %v8697 = vperm.slane %v8213, 1
        %v8698 = vperm.slane %v8339, 1
        %v8699 = vperm.slane %v8340, 1
        %v8700 = vsel %vm3216, %v8343, %v8342
        %v8701 = vsel %vm3218, %v8344, %v8700
        %v8702 = vsel %vm3220, %v8345, %v8701
        %v8703 = vsel %vm3222, %v8346, %v8702
        %v8704 = vsel %vm3224, %v8347, %v8703
        %v8705 = vsel %vm3226, %v8348, %v8704
        %v8706 = vsel %vm3216, %v8351, %v8350
        %v8707 = vsel %vm3218, %v8352, %v8706
        %v8708 = vsel %vm3220, %v8353, %v8707
        %v8709 = vsel %vm3222, %v8354, %v8708
        %v8710 = vsel %vm3224, %v8355, %v8709
        %v8711 = vsel %vm3226, %v8356, %v8710
        %v8712 = vsel %vm3216, %v8359, %v8358
        %v8713 = vsel %vm3218, %v8360, %v8712
        %v8714 = vsel %vm3220, %v8361, %v8713
        %v8715 = vsel %vm3222, %v8362, %v8714
        %v8716 = vsel %vm3224, %v8363, %v8715
        %v8717 = vsel %vm3226, %v8364, %v8716
        %v8718 = vsel %vm3216, %v8367, %v8366
        %v8719 = vsel %vm3218, %v8368, %v8718
        %v8720 = vsel %vm3220, %v8369, %v8719
        %v8721 = vsel %vm3222, %v8370, %v8720
        %v8722 = vsel %vm3224, %v8371, %v8721
        %v8723 = vsel %vm3226, %v8372, %v8722
        %v8724 = vsel %vm3216, %v8375, %v8374
        %v8725 = vsel %vm3218, %v8376, %v8724
        %v8726 = vsel %vm3220, %v8377, %v8725
        %v8727 = vsel %vm3222, %v8378, %v8726
        %v8728 = vsel %vm3224, %v8379, %v8727
        %v8729 = vsel %vm3226, %v8380, %v8728
        %v8730 = vsel %vm3216, %v8383, %v8382
        %v8731 = vsel %vm3218, %v8384, %v8730
        %v8732 = vsel %vm3220, %v8385, %v8731
        %v8733 = vsel %vm3222, %v8386, %v8732
        %v8734 = vsel %vm3224, %v8387, %v8733
        %v8735 = vsel %vm3226, %v8388, %v8734
        %v8736 = vsel %vm3216, %v8391, %v8390
        %v8737 = vsel %vm3218, %v8392, %v8736
        %v8738 = vsel %vm3220, %v8393, %v8737
        %v8739 = vsel %vm3222, %v8394, %v8738
        %v8740 = vsel %vm3224, %v8395, %v8739
        %v8741 = vsel %vm3226, %v8396, %v8740
        %v8742 = vsel %vm3216, %v8694, %v8693
        %v8743 = vsel %vm3218, %v8695, %v8742
        %v8744 = vsel %vm3220, %v8696, %v8743
        %v8745 = vsel %vm3222, %v8697, %v8744
        %v8746 = vsel %vm3224, %v8698, %v8745
        %v8747 = vsel %vm3226, %v8699, %v8746
        %v8756 = vsel %vm1669, 0.0, %v8705
        %v8757 = vsel %vm1669, 0.0, %v8711
        %v8758 = vsel %vm1669, 0.0, %v8717
        %v8759 = vsel %vm1669, 0.0, %v8723
        %v8760 = vsel %vm1669, 0.0, %v8729
        %v8761 = vsel %vm1669, 0.0, %v8735
        %v8762 = vsel %vm1669, 0.0, %v8741
        %v8763 = vsel %vm1669, 0.0, %v8747
        %8764 = vrot.lane.b32.xlu0 0.0, 32
        %v8765 = vpop.permute.xlu0 %8764
        %8766 = vrot.lane.b32.xlu0 %v8530, 32
        %v8767 = vpop.permute.xlu0 %8766
        %8768 = vrot.lane.b32.xlu0 %v8537, 32
        %v8769 = vpop.permute.xlu0 %8768
        %8770 = vrot.lane.b32.xlu0 %v8544, 32
        %v8771 = vpop.permute.xlu0 %8770
        %8772 = vrot.lane.b32.xlu0 %v8551, 32
        %v8773 = vpop.permute.xlu0 %8772
        %8774 = vrot.lane.b32.xlu0 %v8558, 32
        %v8775 = vpop.permute.xlu0 %8774
        %8776 = vrot.lane.b32.xlu0 %v8565, 32
        %v8777 = vpop.permute.xlu0 %8776
        %8778 = vrot.lane.b32.xlu0 %v8572, 32
        %v8779 = vpop.permute.xlu0 %8778
        %8788 = vrot.lane.b32.xlu0 0.0, 64
        %v8789 = vpop.permute.xlu0 %8788
        %8790 = vrot.lane.b32.xlu0 %v8404, 64
        %v8791 = vpop.permute.xlu0 %8790
        %8792 = vrot.lane.b32.xlu0 %v8411, 64
        %v8793 = vpop.permute.xlu0 %8792
        %8794 = vrot.lane.b32.xlu0 %v8418, 64
        %v8795 = vpop.permute.xlu0 %8794
        %8796 = vrot.lane.b32.xlu0 %v8425, 64
        %v8797 = vpop.permute.xlu0 %8796
        %8798 = vrot.lane.b32.xlu0 %v8432, 64
        %v8799 = vpop.permute.xlu0 %8798
        %8800 = vrot.lane.b32.xlu0 %v8439, 64
        %v8801 = vpop.permute.xlu0 %8800
        %8802 = vrot.lane.b32.xlu0 %v8446, 64
        %v8803 = vpop.permute.xlu0 %8802
        %8820 = vrot.lane.b32.xlu0 %v8685, 96
        %v8821 = vpop.permute.xlu0 %8820
        %8822 = vrot.lane.b32.xlu0 %v8686, 96
        %v8823 = vpop.permute.xlu0 %8822
        %8824 = vrot.lane.b32.xlu0 %v8687, 96
        %v8825 = vpop.permute.xlu0 %8824
        %8826 = vrot.lane.b32.xlu0 %v8688, 96
        %v8827 = vpop.permute.xlu0 %8826
        %8828 = vrot.lane.b32.xlu0 %v8689, 96
        %v8829 = vpop.permute.xlu0 %8828
        %8830 = vrot.lane.b32.xlu0 %v8690, 96
        %v8831 = vpop.permute.xlu0 %8830
        %8832 = vrot.lane.b32.xlu0 %v8691, 96
        %v8833 = vpop.permute.xlu0 %8832
        %8834 = vrot.lane.b32.xlu0 %v8692, 96
        %v8835 = vpop.permute.xlu0 %8834
        %v8844 = vperm.slane %v8182, 0
        %v8845 = vperm.slane %v8246, 0
        %v8846 = vperm.slane %v8247, 0
        %v8847 = vperm.slane %v8248, 0
        %v8848 = vperm.slane %v8183, 0
        %v8849 = vperm.slane %v8249, 0
        %v8850 = vperm.slane %v8250, 0
        %v8851 = vperm.slane %v8251, 0
        %v8852 = vperm.slane %v8186, 0
        %v8853 = vperm.slane %v8258, 0
        %v8854 = vperm.slane %v8259, 0
        %v8855 = vperm.slane %v8260, 0
        %v8856 = vperm.slane %v8187, 0
        %v8857 = vperm.slane %v8261, 0
        %v8858 = vperm.slane %v8262, 0
        %v8859 = vperm.slane %v8263, 0
        %v8860 = vperm.slane %v8190, 0
        %v8861 = vperm.slane %v8270, 0
        %v8862 = vperm.slane %v8271, 0
        %v8863 = vperm.slane %v8272, 0
        %v8864 = vperm.slane %v8191, 0
        %v8865 = vperm.slane %v8273, 0
        %v8866 = vperm.slane %v8274, 0
        %v8867 = vperm.slane %v8275, 0
        %v8868 = vperm.slane %v8194, 0
        %v8869 = vperm.slane %v8282, 0
        %v8870 = vperm.slane %v8283, 0
        %v8871 = vperm.slane %v8284, 0
        %v8872 = vperm.slane %v8195, 0
        %v8873 = vperm.slane %v8285, 0
        %v8874 = vperm.slane %v8286, 0
        %v8875 = vperm.slane %v8287, 0
        %v8876 = vperm.slane %v8198, 0
        %v8877 = vperm.slane %v8294, 0
        %v8878 = vperm.slane %v8295, 0
        %v8879 = vperm.slane %v8296, 0
        %v8880 = vperm.slane %v8199, 0
        %v8881 = vperm.slane %v8297, 0
        %v8882 = vperm.slane %v8298, 0
        %v8883 = vperm.slane %v8299, 0
        %v8884 = vperm.slane %v8202, 0
        %v8885 = vperm.slane %v8306, 0
        %v8886 = vperm.slane %v8307, 0
        %v8887 = vperm.slane %v8308, 0
        %v8888 = vperm.slane %v8203, 0
        %v8889 = vperm.slane %v8309, 0
        %v8890 = vperm.slane %v8310, 0
        %v8891 = vperm.slane %v8311, 0
        %v8892 = vperm.slane %v8206, 0
        %v8893 = vperm.slane %v8318, 0
        %v8894 = vperm.slane %v8319, 0
        %v8895 = vperm.slane %v8320, 0
        %v8896 = vperm.slane %v8207, 0
        %v8897 = vperm.slane %v8321, 0
        %v8898 = vperm.slane %v8322, 0
        %v8899 = vperm.slane %v8323, 0
        %v8900 = vperm.slane %v8210, 0
        %v8901 = vperm.slane %v8330, 0
        %v8902 = vperm.slane %v8331, 0
        %v8903 = vperm.slane %v8332, 0
        %v8904 = vperm.slane %v8211, 0
        %v8905 = vperm.slane %v8333, 0
        %v8906 = vperm.slane %v8334, 0
        %v8907 = vperm.slane %v8335, 0
        %v8908 = vsel %vm3214, %v8845, %v8844
        %v8909 = vsel %vm3216, %v8846, %v8908
        %v8910 = vsel %vm3218, %v8847, %v8909
        %v8911 = vsel %vm3220, %v8848, %v8910
        %v8912 = vsel %vm3222, %v8849, %v8911
        %v8913 = vsel %vm3224, %v8850, %v8912
        %v8914 = vsel %vm3226, %v8851, %v8913
        %v8915 = vsel %vm3214, %v8853, %v8852
        %v8916 = vsel %vm3216, %v8854, %v8915
        %v8917 = vsel %vm3218, %v8855, %v8916
        %v8918 = vsel %vm3220, %v8856, %v8917
        %v8919 = vsel %vm3222, %v8857, %v8918
        %v8920 = vsel %vm3224, %v8858, %v8919
        %v8921 = vsel %vm3226, %v8859, %v8920
        %v8922 = vsel %vm3214, %v8861, %v8860
        %v8923 = vsel %vm3216, %v8862, %v8922
        %v8924 = vsel %vm3218, %v8863, %v8923
        %v8925 = vsel %vm3220, %v8864, %v8924
        %v8926 = vsel %vm3222, %v8865, %v8925
        %v8927 = vsel %vm3224, %v8866, %v8926
        %v8928 = vsel %vm3226, %v8867, %v8927
        %v8929 = vsel %vm3214, %v8869, %v8868
        %v8930 = vsel %vm3216, %v8870, %v8929
        %v8931 = vsel %vm3218, %v8871, %v8930
        %v8932 = vsel %vm3220, %v8872, %v8931
        %v8933 = vsel %vm3222, %v8873, %v8932
        %v8934 = vsel %vm3224, %v8874, %v8933
        %v8935 = vsel %vm3226, %v8875, %v8934
        %v8936 = vsel %vm3214, %v8877, %v8876
        %v8937 = vsel %vm3216, %v8878, %v8936
        %v8938 = vsel %vm3218, %v8879, %v8937
        %v8939 = vsel %vm3220, %v8880, %v8938
        %v8940 = vsel %vm3222, %v8881, %v8939
        %v8941 = vsel %vm3224, %v8882, %v8940
        %v8942 = vsel %vm3226, %v8883, %v8941
        %v8943 = vsel %vm3214, %v8885, %v8884
        %v8944 = vsel %vm3216, %v8886, %v8943
        %v8945 = vsel %vm3218, %v8887, %v8944
        %v8946 = vsel %vm3220, %v8888, %v8945
        %v8947 = vsel %vm3222, %v8889, %v8946
        %v8948 = vsel %vm3224, %v8890, %v8947
        %v8949 = vsel %vm3226, %v8891, %v8948
        %v8950 = vsel %vm3214, %v8893, %v8892
        %v8951 = vsel %vm3216, %v8894, %v8950
        %v8952 = vsel %vm3218, %v8895, %v8951
        %v8953 = vsel %vm3220, %v8896, %v8952
        %v8954 = vsel %vm3222, %v8897, %v8953
        %v8955 = vsel %vm3224, %v8898, %v8954
        %v8956 = vsel %vm3226, %v8899, %v8955
        %v8957 = vsel %vm3214, %v8901, %v8900
        %v8958 = vsel %vm3216, %v8902, %v8957
        %v8959 = vsel %vm3218, %v8903, %v8958
        %v8960 = vsel %vm3220, %v8904, %v8959
        %v8961 = vsel %vm3222, %v8905, %v8960
        %v8962 = vsel %vm3224, %v8906, %v8961
        %v8963 = vsel %vm3226, %v8907, %v8962
        %v8972 = vperm.slane %v8251, 1
        %v8973 = vperm.slane %v8263, 1
        %v8974 = vperm.slane %v8275, 1
        %v8975 = vperm.slane %v8287, 1
        %v8976 = vperm.slane %v8299, 1
        %v8977 = vperm.slane %v8311, 1
        %v8978 = vperm.slane %v8323, 1
        %v8979 = vperm.slane %v8335, 1
        %v8980 = vsel %vm3214, %v8574, %v8573
        %v8981 = vsel %vm3216, %v8575, %v8980
        %v8982 = vsel %vm3218, %v8576, %v8981
        %v8983 = vsel %vm3220, %v8577, %v8982
        %v8984 = vsel %vm3222, %v8578, %v8983
        %v8985 = vsel %vm3224, %v8579, %v8984
        %v8986 = vsel %vm3226, %v8972, %v8985
        %v8987 = vsel %vm3214, %v8581, %v8580
        %v8988 = vsel %vm3216, %v8582, %v8987
        %v8989 = vsel %vm3218, %v8583, %v8988
        %v8990 = vsel %vm3220, %v8584, %v8989
        %v8991 = vsel %vm3222, %v8585, %v8990
        %v8992 = vsel %vm3224, %v8586, %v8991
        %v8993 = vsel %vm3226, %v8973, %v8992
        %v8994 = vsel %vm3214, %v8588, %v8587
        %v8995 = vsel %vm3216, %v8589, %v8994
        %v8996 = vsel %vm3218, %v8590, %v8995
        %v8997 = vsel %vm3220, %v8591, %v8996
        %v8998 = vsel %vm3222, %v8592, %v8997
        %v8999 = vsel %vm3224, %v8593, %v8998
        %v9000 = vsel %vm3226, %v8974, %v8999
        %v9001 = vsel %vm3214, %v8595, %v8594
        %v9002 = vsel %vm3216, %v8596, %v9001
        %v9003 = vsel %vm3218, %v8597, %v9002
        %v9004 = vsel %vm3220, %v8598, %v9003
        %v9005 = vsel %vm3222, %v8599, %v9004
        %v9006 = vsel %vm3224, %v8600, %v9005
        %v9007 = vsel %vm3226, %v8975, %v9006
        %v9008 = vsel %vm3214, %v8602, %v8601
        %v9009 = vsel %vm3216, %v8603, %v9008
        %v9010 = vsel %vm3218, %v8604, %v9009
        %v9011 = vsel %vm3220, %v8605, %v9010
        %v9012 = vsel %vm3222, %v8606, %v9011
        %v9013 = vsel %vm3224, %v8607, %v9012
        %v9014 = vsel %vm3226, %v8976, %v9013
        %v9015 = vsel %vm3214, %v8609, %v8608
        %v9016 = vsel %vm3216, %v8610, %v9015
        %v9017 = vsel %vm3218, %v8611, %v9016
        %v9018 = vsel %vm3220, %v8612, %v9017
        %v9019 = vsel %vm3222, %v8613, %v9018
        %v9020 = vsel %vm3224, %v8614, %v9019
        %v9021 = vsel %vm3226, %v8977, %v9020
        %v9022 = vsel %vm3214, %v8616, %v8615
        %v9023 = vsel %vm3216, %v8617, %v9022
        %v9024 = vsel %vm3218, %v8618, %v9023
        %v9025 = vsel %vm3220, %v8619, %v9024
        %v9026 = vsel %vm3222, %v8620, %v9025
        %v9027 = vsel %vm3224, %v8621, %v9026
        %v9028 = vsel %vm3226, %v8978, %v9027
        %v9029 = vsel %vm3214, %v8623, %v8622
        %v9030 = vsel %vm3216, %v8624, %v9029
        %v9031 = vsel %vm3218, %v8625, %v9030
        %v9032 = vsel %vm3220, %v8626, %v9031
        %v9033 = vsel %vm3222, %v8627, %v9032
        %v9034 = vsel %vm3224, %v8628, %v9033
        %v9035 = vsel %vm3226, %v8979, %v9034
        %9036 = vrot.lane.b32.xlu0 %v8986, 32
        %v9037 = vpop.permute.xlu0 %9036
        %9038 = vrot.lane.b32.xlu0 %v8993, 32
        %v9039 = vpop.permute.xlu0 %9038
        %9040 = vrot.lane.b32.xlu0 %v9000, 32
        %v9041 = vpop.permute.xlu0 %9040
        %9042 = vrot.lane.b32.xlu0 %v9007, 32
        %v9043 = vpop.permute.xlu0 %9042
        %9044 = vrot.lane.b32.xlu0 %v9014, 32
        %v9045 = vpop.permute.xlu0 %9044
        %9046 = vrot.lane.b32.xlu0 %v9021, 32
        %v9047 = vpop.permute.xlu0 %9046
        %9048 = vrot.lane.b32.xlu0 %v9028, 32
        %v9049 = vpop.permute.xlu0 %9048
        %9050 = vrot.lane.b32.xlu0 %v9035, 32
        %v9051 = vpop.permute.xlu0 %9050
        %9068 = vrot.lane.b32.xlu0 %v8756, 64
        %v9069 = vpop.permute.xlu0 %9068
        %9070 = vrot.lane.b32.xlu0 %v8757, 64
        %v9071 = vpop.permute.xlu0 %9070
        %9072 = vrot.lane.b32.xlu0 %v8758, 64
        %v9073 = vpop.permute.xlu0 %9072
        %9074 = vrot.lane.b32.xlu0 %v8759, 64
        %v9075 = vpop.permute.xlu0 %9074
        %9076 = vrot.lane.b32.xlu0 %v8760, 64
        %v9077 = vpop.permute.xlu0 %9076
        %9078 = vrot.lane.b32.xlu0 %v8761, 64
        %v9079 = vpop.permute.xlu0 %9078
        %9080 = vrot.lane.b32.xlu0 %v8762, 64
        %v9081 = vpop.permute.xlu0 %9080
        %9082 = vrot.lane.b32.xlu0 %v8763, 64
        %v9083 = vpop.permute.xlu0 %9082
        %v9092 = vperm.slane %v8212, 0
        %v9093 = vperm.slane %v8336, 0
        %v9094 = vperm.slane %v8337, 0
        %v9095 = vperm.slane %v8338, 0
        %v9096 = vperm.slane %v8213, 0
        %v9097 = vperm.slane %v8339, 0
        %v9098 = vperm.slane %v8340, 0
        %v9099 = vperm.slane %v8341, 0
        %v9100 = vsel %vm3214, %v9093, %v9092
        %v9101 = vsel %vm3216, %v9094, %v9100
        %v9102 = vsel %vm3218, %v9095, %v9101
        %v9103 = vsel %vm3220, %v9096, %v9102
        %v9104 = vsel %vm3222, %v9097, %v9103
        %v9105 = vsel %vm3224, %v9098, %v9104
        %v9106 = vsel %vm3226, %v9099, %v9105
        %9107 = vrot.lane.b32.xlu0 %v8530, 96
        %v9108 = vpop.permute.xlu0 %9107
        %9109 = vrot.lane.b32.xlu0 %v8537, 96
        %v9110 = vpop.permute.xlu0 %9109
        %9111 = vrot.lane.b32.xlu0 %v8544, 96
        %v9112 = vpop.permute.xlu0 %9111
        %9113 = vrot.lane.b32.xlu0 %v8551, 96
        %v9114 = vpop.permute.xlu0 %9113
        %9115 = vrot.lane.b32.xlu0 %v8558, 96
        %v9116 = vpop.permute.xlu0 %9115
        %9117 = vrot.lane.b32.xlu0 %v8565, 96
        %v9118 = vpop.permute.xlu0 %9117
        %9119 = vrot.lane.b32.xlu0 %v8572, 96
        %v9120 = vpop.permute.xlu0 %9119
        %9121 = vrot.lane.b32.xlu0 %v9106, 96
        %v9122 = vpop.permute.xlu0 %9121
        %v9131 = vperm.slane %v8341, 1
        %v9132 = vsel %vm3214, %v8694, %v8693
        %v9133 = vsel %vm3216, %v8695, %v9132
        %v9134 = vsel %vm3218, %v8696, %v9133
        %v9135 = vsel %vm3220, %v8697, %v9134
        %v9136 = vsel %vm3222, %v8698, %v9135
        %v9137 = vsel %vm3224, %v8699, %v9136
        %v9138 = vsel %vm3226, %v9131, %v9137
        %v9147 = vsel %vm5929, %v3541, %v8765
        %v9148 = vsel %vm5929, %v8461, %v8767
        %v9149 = vsel %vm5929, %v8462, %v8769
        %v9150 = vsel %vm5929, %v8463, %v8771
        %v9151 = vsel %vm5929, %v8464, %v8773
        %v9152 = vsel %vm5929, %v8465, %v8775
        %v9153 = vsel %vm5929, %v8466, %v8777
        %v9154 = vsel %vm5929, %v8467, %v8779
        %v9155 = vsel %vm7125, %v9147, %v8789
        %v9156 = vsel %vm7125, %v9148, %v8791
        %v9157 = vsel %vm7125, %v9149, %v8793
        %v9158 = vsel %vm7125, %v9150, %v8795
        %v9159 = vsel %vm7125, %v9151, %v8797
        %v9160 = vsel %vm7125, %v9152, %v8799
        %v9161 = vsel %vm7125, %v9153, %v8801
        %v9162 = vsel %vm7125, %v9154, %v8803
        %v9163 = vsel %vm7191, %v9155, %v8821
        %v9164 = vsel %vm7191, %v9156, %v8823
        %v9165 = vsel %vm7191, %v9157, %v8825
        %v9166 = vsel %vm7191, %v9158, %v8827
        %v9167 = vsel %vm7191, %v9159, %v8829
        %v9168 = vsel %vm7191, %v9160, %v8831
        %v9169 = vsel %vm7191, %v9161, %v8833
        %v9170 = vsel %vm7191, %v9162, %v8835
        %v9171 = vsel %vm5929, %v8914, %v9037
        %v9172 = vsel %vm5929, %v8921, %v9039
        %v9173 = vsel %vm5929, %v8928, %v9041
        %v9174 = vsel %vm5929, %v8935, %v9043
        %v9175 = vsel %vm5929, %v8942, %v9045
        %v9176 = vsel %vm5929, %v8949, %v9047
        %v9177 = vsel %vm5929, %v8956, %v9049
        %v9178 = vsel %vm5929, %v8963, %v9051
        %v9179 = vsel %vm7125, %v9171, %v9069
        %v9180 = vsel %vm7125, %v9172, %v9071
        %v9181 = vsel %vm7125, %v9173, %v9073
        %v9182 = vsel %vm7125, %v9174, %v9075
        %v9183 = vsel %vm7125, %v9175, %v9077
        %v9184 = vsel %vm7125, %v9176, %v9079
        %v9185 = vsel %vm7125, %v9177, %v9081
        %v9186 = vsel %vm7125, %v9178, %v9083
        %v9187 = vsel %vm7191, %v9179, %v9108
        %v9188 = vsel %vm7191, %v9180, %v9110
        %v9189 = vsel %vm7191, %v9181, %v9112
        %v9190 = vsel %vm7191, %v9182, %v9114
        %v9191 = vsel %vm7191, %v9183, %v9116
        %v9192 = vsel %vm7191, %v9184, %v9118
        %v9193 = vsel %vm7191, %v9185, %v9120
        %v9194 = vsel %vm7191, %v9186, %v9122
        %v9195 = vpack.c.bf16 %v9164, %v9163
        %v9196 = vpack.c.bf16 %v9188, %v9187
        %v9197 = vpack.c.bf16 %v8411, %v8404
        %v9198 = vpack.c.bf16 %v9166, %v9165
        %v9199 = vpack.c.bf16 %v9190, %v9189
        %v9200 = vpack.c.bf16 %v8425, %v8418
        %v9201 = vpack.c.bf16 %v9168, %v9167
        %v9202 = vpack.c.bf16 %v9192, %v9191
        %v9203 = vpack.c.bf16 %v8439, %v8432
        %v9204 = vpack.c.bf16 %v9170, %v9169
        %v9205 = vpack.c.bf16 %v9194, %v9193
        %v9206 = vpack.c.bf16 %v9138, %v8446
        %v9207 = vld [vmem:[%s13] sm:$0xf]
        %v9208 = vld [vmem:[%s13 + $0x4] sm:$0xf]
        %v9209 = vld [vmem:[%s13 + $0x8] sm:$0xf]
        %v9210 = vld [vmem:[%s13 + $0xc] sm:$0xf]
        %v9211 = vld [vmem:[%s13 + $0x10] sm:$0xf]
        %v9212 = vld [vmem:[%s13 + $0x14] sm:$0xf]
        %v9213 = vld [vmem:[%s13 + $0x18] sm:$0xf]
        %v9214 = vld [vmem:[%s13 + $0x1c] sm:$0xf]
        %v9215 = vld [vmem:[%s13 + $0x20] sm:$0xf]
        %v9216 = vld [vmem:[%s13 + $0x24] sm:$0xf]
        %v9217 = vld [vmem:[%s13 + $0x28] sm:$0xf]
        %v9218 = vld [vmem:[%s13 + $0x2c] sm:$0xf]
        %v9219 = vld [vmem:[%s13 + $0x30] sm:$0xf]
        %v9220 = vld [vmem:[%s13 + $0x34] sm:$0xf]
        %v9221 = vld [vmem:[%s13 + $0x38] sm:$0xf]
        %v9222 = vld [vmem:[%s13 + $0x3c] sm:$0xf]
        %v9223 = vld [vmem:[%s13 + $0x40] sm:$0xf]
        %v9224 = vld [vmem:[%s13 + $0x44] sm:$0xf]
        %v9225 = vld [vmem:[%s13 + $0x48] sm:$0xf]
        %v9226 = vld [vmem:[%s13 + $0x4c] sm:$0xf]
        %v9227 = vld [vmem:[%s13 + $0x50] sm:$0xf]
        %v9228 = vld [vmem:[%s13 + $0x54] sm:$0xf]
        %v9229 = vld [vmem:[%s13 + $0x58] sm:$0xf]
        %v9230 = vld [vmem:[%s13 + $0x5c] sm:$0xf]
        %v9231 = vld [vmem:[%s13 + $0x60] sm:$0xf]
        %v9232 = vld [vmem:[%s13 + $0x64] sm:$0xf]
        %v9233 = vld [vmem:[%s13 + $0x68] sm:$0xf]
        %v9234 = vld [vmem:[%s13 + $0x6c] sm:$0xf]
        %v9235 = vld [vmem:[%s13 + $0x70] sm:$0xf]
        %v9236 = vld [vmem:[%s13 + $0x74] sm:$0xf]
        %v9237 = vld [vmem:[%s13 + $0x78] sm:$0xf]
        %v9238 = vld [vmem:[%s13 + $0x7c] sm:$0xf]
        %v9239 = vld [vmem:[%s13 + $0x80] sm:$0xf]
        %v9240 = vld [vmem:[%s13 + $0x84] sm:$0xf]
        %v9241 = vld [vmem:[%s13 + $0x88] sm:$0xf]
        %v9242 = vld [vmem:[%s13 + $0x8c] sm:$0xf]
        %v9243 = vld [vmem:[%s14] sm:$0x1]
        %v9245 = vperm.slane %v9243, 0
        %v9283 = vunpack.c.l.b16 %v9207
        %v9284 = vunpack.c.l.b16 %v9208
        %v9285 = vunpack.c.l.b16 %v9209
        %v9286 = vunpack.c.l.b16 %v9210
        %v9287 = vunpack.c.l.b16 %v9211
        %v9288 = vunpack.c.l.b16 %v9212
        %v9289 = vunpack.c.l.b16 %v9213
        %v9290 = vunpack.c.l.b16 %v9214
        %v9291 = vunpack.c.l.b16 %v9215
        %v9292 = vunpack.c.l.b16 %v9216
        %v9293 = vunpack.c.l.b16 %v9217
        %v9294 = vunpack.c.l.b16 %v9218
        %v9295 = vunpack.c.l.b16 %v9219
        %v9296 = vunpack.c.l.b16 %v9220
        %v9297 = vunpack.c.l.b16 %v9221
        %v9298 = vunpack.c.l.b16 %v9222
        %v9299 = vunpack.c.l.b16 %v9223
        %v9300 = vunpack.c.l.b16 %v9224
        %v9301 = vunpack.c.l.b16 %v9225
        %v9302 = vunpack.c.l.b16 %v9226
        %v9303 = vunpack.c.l.b16 %v9227
        %v9304 = vunpack.c.l.b16 %v9228
        %v9305 = vunpack.c.l.b16 %v9229
        %v9306 = vunpack.c.l.b16 %v9230
        %v9307 = vunpack.c.l.b16 %v9231
        %v9308 = vunpack.c.l.b16 %v9232
        %v9309 = vunpack.c.l.b16 %v9233
        %v9310 = vunpack.c.l.b16 %v9234
        %v9311 = vunpack.c.l.b16 %v9235
        %v9312 = vunpack.c.l.b16 %v9236
        %v9313 = vunpack.c.l.b16 %v9237
        %v9314 = vunpack.c.l.b16 %v9238
        %v9315 = vunpack.c.l.b16 %v9239
        %v9316 = vunpack.c.l.b16 %v9240
        %v9317 = vunpack.c.l.b16 %v9241
        %v9318 = vunpack.c.l.b16 %v9242
        %v9319 = vpack.c.b16 %v9284, %v9283
        %v9320 = vpack.c.b16 %v9286, %v9285
        %v9321 = vpack.c.b16 %v9288, %v9287
        %v9322 = vpack.c.b16 %v9290, %v9289
        %v9323 = vpack.c.b16 %v9292, %v9291
        %v9324 = vpack.c.b16 %v9294, %v9293
        %v9325 = vpack.c.b16 %v9296, %v9295
        %v9326 = vpack.c.b16 %v9298, %v9297
        %v9327 = vpack.c.b16 %v9300, %v9299
        %v9328 = vpack.c.b16 %v9302, %v9301
        %v9329 = vpack.c.b16 %v9304, %v9303
        %v9330 = vpack.c.b16 %v9306, %v9305
        %v9331 = vpack.c.b16 %v9308, %v9307
        %v9332 = vpack.c.b16 %v9310, %v9309
        %v9333 = vpack.c.b16 %v9312, %v9311
        %v9334 = vpack.c.b16 %v9314, %v9313
        %v9335 = vpack.c.b16 %v9316, %v9315
        %v9336 = vpack.c.b16 %v9318, %v9317
        %v9356 = vsel %vm5929, %v9197, 0
        %v9359 = vsel %vm5929, %v9200, 0
        %v9362 = vsel %vm5929, %v9203, 0
        %v9365 = vsel %vm5929, %v9206, 0
        %9367 = vmatpush.bf16.msra.mxu0 %v9326
        %9368 = vmatpush.bf16.msra.mxu0 %v9325
        %9369 = vmatpush.bf16.msra.mxu0 %v9324
        %9370 = vmatpush.bf16.msra.mxu0 %v9323
        %9371 = vmatpush.bf16.msra.mxu0 %v9322
        %9372 = vmatpush.bf16.msra.mxu0 %v9321
        %9373 = vmatpush.bf16.msra.mxu0 %v9320
        %9374 = vmatpush.bf16.msra.mxu0 %v9319
        %9375 = vmatmul.bf16.gmra.mxu0 %v9195
        %v9376 = vpop.f32.mrf.mxu0
        %v9377 = vadd.f32 %v9245, %v9376
        %v9378 = vpop.f32.mrf.mxu0
        %v9379 = vadd.f32 %v9245, %v9378
        %9380 = vmatmul.bf16.gmra.mxu0 %v9198
        %v9381 = vpop.f32.mrf.mxu0
        %v9382 = vadd.f32 %v9245, %v9381
        %v9383 = vpop.f32.mrf.mxu0
        %v9384 = vadd.f32 %v9245, %v9383
        %9385 = vmatmul.bf16.gmra.mxu0 %v9201
        %v9386 = vpop.f32.mrf.mxu0
        %v9387 = vadd.f32 %v9245, %v9386
        %v9388 = vpop.f32.mrf.mxu0
        %v9389 = vadd.f32 %v9245, %v9388
        %9390 = vmatmul.bf16.gmra.mxu0 %v9204
        %v9391 = vpop.f32.mrf.mxu0
        %v9392 = vadd.f32 %v9245, %v9391
        %v9393 = vpop.f32.mrf.mxu0
        %v9394 = vadd.f32 %v9245, %v9393
        %9395 = vdwg.mxu0
        %9396 = vmatpush.bf16.msra.mxu0 %v9334
        %9397 = vmatpush.bf16.msra.mxu0 %v9333
        %9398 = vmatpush.bf16.msra.mxu0 %v9332
        %9399 = vmatpush.bf16.msra.mxu0 %v9331
        %9400 = vmatpush.bf16.msra.mxu0 %v9330
        %9401 = vmatpush.bf16.msra.mxu0 %v9329
        %9402 = vmatpush.bf16.msra.mxu0 %v9328
        %9403 = vmatpush.bf16.msra.mxu0 %v9327
        %9404 = vmatmul.bf16.gmra.mxu0 %v9196
        %v9405 = vpop.f32.mrf.mxu0
        %v9406 = vadd.f32 %v9377, %v9405
        %v9407 = vpop.f32.mrf.mxu0
        %v9408 = vadd.f32 %v9379, %v9407
        %9409 = vmatmul.bf16.gmra.mxu0 %v9199
        %v9410 = vpop.f32.mrf.mxu0
        %v9411 = vadd.f32 %v9382, %v9410
        %v9412 = vpop.f32.mrf.mxu0
        %v9413 = vadd.f32 %v9384, %v9412
        %9414 = vmatmul.bf16.gmra.mxu0 %v9202
        %v9415 = vpop.f32.mrf.mxu0
        %v9416 = vadd.f32 %v9387, %v9415
        %v9417 = vpop.f32.mrf.mxu0
        %v9418 = vadd.f32 %v9389, %v9417
        %9419 = vmatmul.bf16.gmra.mxu0 %v9205
        %v9420 = vpop.f32.mrf.mxu0
        %v9421 = vadd.f32 %v9392, %v9420
        %v9422 = vpop.f32.mrf.mxu0
        %v9423 = vadd.f32 %v9394, %v9422
        %9424 = vdwg.mxu0
        %9425 = vmatpush.bf16.msra.mxu0 0
        %9426 = vmatpush.bf16.msra.mxu0 0
        %9427 = vmatpush.bf16.msra.mxu0 0
        %9428 = vmatpush.bf16.msra.mxu0 0
        %9429 = vmatpush.bf16.msra.mxu0 0
        %9430 = vmatpush.bf16.msra.mxu0 0
        %9431 = vmatpush.bf16.msra.mxu0 %v9336
        %9432 = vmatpush.bf16.msra.mxu0 %v9335
        %9433 = vmatmul.bf16.gmra.mxu0 %v9356
        %v9434 = vpop.f32.mrf.mxu0
        %v9435 = vadd.f32 %v9406, %v9434
        %v9436 = vpop.f32.mrf.mxu0
        %v9437 = vadd.f32 %v9408, %v9436
        %9438 = vmatmul.bf16.gmra.mxu0 %v9359
        %v9439 = vpop.f32.mrf.mxu0
        %v9440 = vadd.f32 %v9411, %v9439
        %v9441 = vpop.f32.mrf.mxu0
        %v9442 = vadd.f32 %v9413, %v9441
        %9443 = vmatmul.bf16.gmra.mxu0 %v9362
        %v9444 = vpop.f32.mrf.mxu0
        %v9445 = vadd.f32 %v9416, %v9444
        %v9446 = vpop.f32.mrf.mxu0
        %v9447 = vadd.f32 %v9418, %v9446
        %9448 = vmatmul.bf16.gmra.mxu0 %v9365
        %v9449 = vpop.f32.mrf.mxu0
        %v9450 = vadd.f32 %v9421, %v9449
        %v9451 = vpop.f32.mrf.mxu0
        %v9452 = vadd.f32 %v9423, %v9451
        %9453 = vdwg.mxu0
        %v9454 = vmax.f32 %v9435, 0.0
        %v9455 = vmax.f32 %v9437, 0.0
        %v9456 = vmax.f32 %v9440, 0.0
        %v9457 = vmax.f32 %v9442, 0.0
        %v9458 = vmax.f32 %v9445, 0.0
        %v9459 = vmax.f32 %v9447, 0.0
        %v9460 = vmax.f32 %v9450, 0.0
        %v9461 = vmax.f32 %v9452, 0.0
        %v9478 = vrot.slane %v7961, 2
        %v9479 = vrot.slane %v7961, 4
        %v9480 = vrot.slane %v7961, 6
        %v9481 = vrot.slane %v7962, 2
        %v9482 = vrot.slane %v7962, 4
        %v9483 = vrot.slane %v7962, 6
        %v9484 = vrot.slane %v7965, 2
        %v9485 = vrot.slane %v7965, 4
        %v9486 = vrot.slane %v7965, 6
        %v9487 = vrot.slane %v7966, 2
        %v9488 = vrot.slane %v7966, 4
        %v9489 = vrot.slane %v7966, 6
        %v9490 = vrot.slane %v7969, 2
        %v9491 = vrot.slane %v7969, 4
        %v9492 = vrot.slane %v7969, 6
        %v9493 = vrot.slane %v7970, 2
        %v9494 = vrot.slane %v7970, 4
        %v9495 = vrot.slane %v7970, 6
        %v9496 = vrot.slane %v7973, 2
        %v9497 = vrot.slane %v7973, 4
        %v9498 = vrot.slane %v7973, 6
        %v9499 = vrot.slane %v7974, 2
        %v9500 = vrot.slane %v7974, 4
        %v9501 = vrot.slane %v7974, 6
        %v9502 = vrot.slane %v7977, 2
        %v9503 = vrot.slane %v7977, 4
        %v9504 = vrot.slane %v7977, 6
        %v9505 = vrot.slane %v7978, 2
        %v9506 = vrot.slane %v7978, 4
        %v9507 = vrot.slane %v7978, 6
        %v9508 = vrot.slane %v7981, 2
        %v9509 = vrot.slane %v7981, 4
        %v9510 = vrot.slane %v7981, 6
        %v9511 = vrot.slane %v7982, 2
        %v9512 = vrot.slane %v7982, 4
        %v9513 = vrot.slane %v7982, 6
        %v9514 = vrot.slane %v7985, 2
        %v9515 = vrot.slane %v7985, 4
        %v9516 = vrot.slane %v7985, 6
        %v9517 = vrot.slane %v7986, 2
        %v9518 = vrot.slane %v7986, 4
        %v9519 = vrot.slane %v7986, 6
        %v9520 = vrot.slane %v7989, 2
        %v9521 = vrot.slane %v7989, 4
        %v9522 = vrot.slane %v7989, 6
        %v9523 = vrot.slane %v7990, 2
        %v9524 = vrot.slane %v7990, 4
        %v9525 = vrot.slane %v7990, 6
        %v9574 = vpack.c.bf16 %v9455, %v9454
        %v9575 = vpack.c.bf16 %v9457, %v9456
        %v9576 = vpack.c.bf16 %v9459, %v9458
        %v9577 = vpack.c.bf16 %v9461, %v9460
        %v9578 = vld [vmem:[%s15] sm:$0xf]
        %v9579 = vld [vmem:[%s15 + $0x4] sm:$0xf]
        %v9580 = vld [vmem:[%s15 + $0x8] sm:$0xf]
        %v9581 = vld [vmem:[%s15 + $0xc] sm:$0xf]
        %v9582 = vld [vmem:[%s16] sm:$0x1]
        %v9584 = vperm.slane %v9582, 0
        %v9590 = vunpack.c.l.b16 %v9578
        %v9591 = vunpack.c.l.b16 %v9579
        %v9592 = vunpack.c.l.b16 %v9580
        %v9593 = vunpack.c.l.b16 %v9581
        %v9594 = vpack.c.b16 %v9591, %v9590
        %v9595 = vpack.c.b16 %v9593, %v9592
        %v9599 = vsel %vm5929, %v9574, 0
        %v9602 = vsel %vm5929, %v9575, 0
        %v9605 = vsel %vm5929, %v9576, 0
        %v9608 = vsel %vm5929, %v9577, 0
        %9610 = vmatpush.bf16.msra.mxu0 0
        %9611 = vmatpush.bf16.msra.mxu0 0
        %9612 = vmatpush.bf16.msra.mxu0 0
        %9613 = vmatpush.bf16.msra.mxu0 0
        %9614 = vmatpush.bf16.msra.mxu0 0
        %9615 = vmatpush.bf16.msra.mxu0 0
        %9616 = vmatpush.bf16.msra.mxu0 %v9595
        %9617 = vmatpush.bf16.msra.mxu0 %v9594
        %9618 = vmatmul.bf16.gmra.mxu0 %v9599
        %v9619 = vpop.f32.mrf.mxu0
        %v9620 = vadd.f32 %v9584, %v9619
        %v9621 = vpop.f32.mrf.mxu0
        %v9622 = vadd.f32 %v9584, %v9621
        %9623 = vmatmul.bf16.gmra.mxu0 %v9602
        %v9624 = vpop.f32.mrf.mxu0
        %v9625 = vadd.f32 %v9584, %v9624
        %v9626 = vpop.f32.mrf.mxu0
        %v9627 = vadd.f32 %v9584, %v9626
        %9628 = vmatmul.bf16.gmra.mxu0 %v9605
        %v9629 = vpop.f32.mrf.mxu0
        %v9630 = vadd.f32 %v9584, %v9629
        %v9631 = vpop.f32.mrf.mxu0
        %v9632 = vadd.f32 %v9584, %v9631
        %9633 = vmatmul.bf16.gmra.mxu0 %v9608
        %v9634 = vpop.f32.mrf.mxu0
        %v9635 = vadd.f32 %v9584, %v9634
        %v9636 = vpop.f32.mrf.mxu0
        %v9637 = vadd.f32 %v9584, %v9636
        %9638 = vdwg.mxu0
        %v9639 = vpack.c.bf16 %v7961, %v7961
        %v9640 = vpack.c.bf16 %v9478, %v9478
        %v9641 = vpack.c.bf16 %v9479, %v9479
        %v9642 = vpack.c.bf16 %v9480, %v9480
        %v9643 = vpack.c.bf16 %v7962, %v7962
        %v9644 = vpack.c.bf16 %v9481, %v9481
        %v9645 = vpack.c.bf16 %v9482, %v9482
        %v9646 = vpack.c.bf16 %v9483, %v9483
        %v9647 = vpack.c.bf16 %v7965, %v7965
        %v9648 = vpack.c.bf16 %v9484, %v9484
        %v9649 = vpack.c.bf16 %v9485, %v9485
        %v9650 = vpack.c.bf16 %v9486, %v9486
        %v9651 = vpack.c.bf16 %v7966, %v7966
        %v9652 = vpack.c.bf16 %v9487, %v9487
        %v9653 = vpack.c.bf16 %v9488, %v9488
        %v9654 = vpack.c.bf16 %v9489, %v9489
        %v9655 = vpack.c.bf16 %v7969, %v7969
        %v9656 = vpack.c.bf16 %v9490, %v9490
        %v9657 = vpack.c.bf16 %v9491, %v9491
        %v9658 = vpack.c.bf16 %v9492, %v9492
        %v9659 = vpack.c.bf16 %v7970, %v7970
        %v9660 = vpack.c.bf16 %v9493, %v9493
        %v9661 = vpack.c.bf16 %v9494, %v9494
        %v9662 = vpack.c.bf16 %v9495, %v9495
        %v9663 = vpack.c.bf16 %v7973, %v7973
        %v9664 = vpack.c.bf16 %v9496, %v9496
        %v9665 = vpack.c.bf16 %v9497, %v9497
        %v9666 = vpack.c.bf16 %v9498, %v9498
        %v9667 = vpack.c.bf16 %v7974, %v7974
        %v9668 = vpack.c.bf16 %v9499, %v9499
        %v9669 = vpack.c.bf16 %v9500, %v9500
        %v9670 = vpack.c.bf16 %v9501, %v9501
        %v9671 = vpack.c.bf16 %v7977, %v7977
        %v9672 = vpack.c.bf16 %v9502, %v9502
        %v9673 = vpack.c.bf16 %v9503, %v9503
        %v9674 = vpack.c.bf16 %v9504, %v9504
        %v9675 = vpack.c.bf16 %v7978, %v7978
        %v9676 = vpack.c.bf16 %v9505, %v9505
        %v9677 = vpack.c.bf16 %v9506, %v9506
        %v9678 = vpack.c.bf16 %v9507, %v9507
        %v9679 = vpack.c.bf16 %v7981, %v7981
        %v9680 = vpack.c.bf16 %v9508, %v9508
        %v9681 = vpack.c.bf16 %v9509, %v9509
        %v9682 = vpack.c.bf16 %v9510, %v9510
        %v9683 = vpack.c.bf16 %v7982, %v7982
        %v9684 = vpack.c.bf16 %v9511, %v9511
        %v9685 = vpack.c.bf16 %v9512, %v9512
        %v9686 = vpack.c.bf16 %v9513, %v9513
        %v9687 = vpack.c.bf16 %v7985, %v7985
        %v9688 = vpack.c.bf16 %v9514, %v9514
        %v9689 = vpack.c.bf16 %v9515, %v9515
        %v9690 = vpack.c.bf16 %v9516, %v9516
        %v9691 = vpack.c.bf16 %v7986, %v7986
        %v9692 = vpack.c.bf16 %v9517, %v9517
        %v9693 = vpack.c.bf16 %v9518, %v9518
        %v9694 = vpack.c.bf16 %v9519, %v9519
        %v9695 = vpack.c.bf16 %v7989, %v7989
        %v9696 = vpack.c.bf16 %v9520, %v9520
        %v9697 = vpack.c.bf16 %v9521, %v9521
        %v9698 = vpack.c.bf16 %v9522, %v9522
        %v9699 = vpack.c.bf16 %v7990, %v7990
        %v9700 = vpack.c.bf16 %v9523, %v9523
        %v9701 = vpack.c.bf16 %v9524, %v9524
        %v9702 = vpack.c.bf16 %v9525, %v9525
        %v9703 = vld [vmem:[%s17] sm:$0xf]
        %v9704 = vld [vmem:[%s17 + $0x4] sm:$0xf]
        %v9705 = vld [vmem:[%s17 + $0x8] sm:$0xf]
        %v9706 = vld [vmem:[%s17 + $0xc] sm:$0xf]
        %v9707 = vld [vmem:[%s17 + $0x10] sm:$0xf]
        %v9708 = vld [vmem:[%s17 + $0x14] sm:$0xf]
        %v9709 = vld [vmem:[%s17 + $0x18] sm:$0xf]
        %v9710 = vld [vmem:[%s17 + $0x1c] sm:$0xf]
        %v9775 = vunpack.c.l.b16 %v9639
        %v9776 = vunpack.c.l.b16 %v9640
        %v9777 = vunpack.c.l.b16 %v9641
        %v9778 = vunpack.c.l.b16 %v9642
        %v9779 = vunpack.c.l.b16 %v9643
        %v9780 = vunpack.c.l.b16 %v9644
        %v9781 = vunpack.c.l.b16 %v9645
        %v9782 = vunpack.c.l.b16 %v9646
        %v9783 = vunpack.c.l.b16 %v9647
        %v9784 = vunpack.c.l.b16 %v9648
        %v9785 = vunpack.c.l.b16 %v9649
        %v9786 = vunpack.c.l.b16 %v9650
        %v9787 = vunpack.c.l.b16 %v9651
        %v9788 = vunpack.c.l.b16 %v9652
        %v9789 = vunpack.c.l.b16 %v9653
        %v9790 = vunpack.c.l.b16 %v9654
        %v9791 = vunpack.c.l.b16 %v9655
        %v9792 = vunpack.c.l.b16 %v9656
        %v9793 = vunpack.c.l.b16 %v9657
        %v9794 = vunpack.c.l.b16 %v9658
        %v9795 = vunpack.c.l.b16 %v9659
        %v9796 = vunpack.c.l.b16 %v9660
        %v9797 = vunpack.c.l.b16 %v9661
        %v9798 = vunpack.c.l.b16 %v9662
        %v9799 = vunpack.c.l.b16 %v9663
        %v9800 = vunpack.c.l.b16 %v9664
        %v9801 = vunpack.c.l.b16 %v9665
        %v9802 = vunpack.c.l.b16 %v9666
        %v9803 = vunpack.c.l.b16 %v9667
        %v9804 = vunpack.c.l.b16 %v9668
        %v9805 = vunpack.c.l.b16 %v9669
        %v9806 = vunpack.c.l.b16 %v9670
        %v9807 = vunpack.c.l.b16 %v9671
        %v9808 = vunpack.c.l.b16 %v9672
        %v9809 = vunpack.c.l.b16 %v9673
        %v9810 = vunpack.c.l.b16 %v9674
        %v9811 = vunpack.c.l.b16 %v9675
        %v9812 = vunpack.c.l.b16 %v9676
        %v9813 = vunpack.c.l.b16 %v9677
        %v9814 = vunpack.c.l.b16 %v9678
        %v9815 = vunpack.c.l.b16 %v9679
        %v9816 = vunpack.c.l.b16 %v9680
        %v9817 = vunpack.c.l.b16 %v9681
        %v9818 = vunpack.c.l.b16 %v9682
        %v9819 = vunpack.c.l.b16 %v9683
        %v9820 = vunpack.c.l.b16 %v9684
        %v9821 = vunpack.c.l.b16 %v9685
        %v9822 = vunpack.c.l.b16 %v9686
        %v9823 = vunpack.c.l.b16 %v9687
        %v9824 = vunpack.c.l.b16 %v9688
        %v9825 = vunpack.c.l.b16 %v9689
        %v9826 = vunpack.c.l.b16 %v9690
        %v9827 = vunpack.c.l.b16 %v9691
        %v9828 = vunpack.c.l.b16 %v9692
        %v9829 = vunpack.c.l.b16 %v9693
        %v9830 = vunpack.c.l.b16 %v9694
        %v9831 = vunpack.c.l.b16 %v9695
        %v9832 = vunpack.c.l.b16 %v9696
        %v9833 = vunpack.c.l.b16 %v9697
        %v9834 = vunpack.c.l.b16 %v9698
        %v9835 = vunpack.c.l.b16 %v9699
        %v9836 = vunpack.c.l.b16 %v9700
        %v9837 = vunpack.c.l.b16 %v9701
        %v9838 = vunpack.c.l.b16 %v9702
        %v9839 = vrot.slane %v9776, 7
        %v9840 = vsel %vm3214, %v9839, %v9775
        %v9841 = vrot.slane %v9777, 6
        %v9842 = vsel %vm3216, %v9841, %v9840
        %v9843 = vrot.slane %v9778, 5
        %v9844 = vsel %vm3218, %v9843, %v9842
        %v9845 = vrot.slane %v9779, 4
        %v9846 = vsel %vm3220, %v9845, %v9844
        %v9847 = vrot.slane %v9780, 3
        %v9848 = vsel %vm3222, %v9847, %v9846
        %v9849 = vrot.slane %v9781, 2
        %v9850 = vsel %vm3224, %v9849, %v9848
        %v9851 = vrot.slane %v9782, 1
        %v9852 = vsel %vm3226, %v9851, %v9850
        %v9853 = vrot.slane %v9784, 7
        %v9854 = vsel %vm3214, %v9853, %v9783
        %v9855 = vrot.slane %v9785, 6
        %v9856 = vsel %vm3216, %v9855, %v9854
        %v9857 = vrot.slane %v9786, 5
        %v9858 = vsel %vm3218, %v9857, %v9856
        %v9859 = vrot.slane %v9787, 4
        %v9860 = vsel %vm3220, %v9859, %v9858
        %v9861 = vrot.slane %v9788, 3
        %v9862 = vsel %vm3222, %v9861, %v9860
        %v9863 = vrot.slane %v9789, 2
        %v9864 = vsel %vm3224, %v9863, %v9862
        %v9865 = vrot.slane %v9790, 1
        %v9866 = vsel %vm3226, %v9865, %v9864
        %v9867 = vrot.slane %v9792, 7
        %v9868 = vsel %vm3214, %v9867, %v9791
        %v9869 = vrot.slane %v9793, 6
        %v9870 = vsel %vm3216, %v9869, %v9868
        %v9871 = vrot.slane %v9794, 5
        %v9872 = vsel %vm3218, %v9871, %v9870
        %v9873 = vrot.slane %v9795, 4
        %v9874 = vsel %vm3220, %v9873, %v9872
        %v9875 = vrot.slane %v9796, 3
        %v9876 = vsel %vm3222, %v9875, %v9874
        %v9877 = vrot.slane %v9797, 2
        %v9878 = vsel %vm3224, %v9877, %v9876
        %v9879 = vrot.slane %v9798, 1
        %v9880 = vsel %vm3226, %v9879, %v9878
        %v9881 = vrot.slane %v9800, 7
        %v9882 = vsel %vm3214, %v9881, %v9799
        %v9883 = vrot.slane %v9801, 6
        %v9884 = vsel %vm3216, %v9883, %v9882
        %v9885 = vrot.slane %v9802, 5
        %v9886 = vsel %vm3218, %v9885, %v9884
        %v9887 = vrot.slane %v9803, 4
        %v9888 = vsel %vm3220, %v9887, %v9886
        %v9889 = vrot.slane %v9804, 3
        %v9890 = vsel %vm3222, %v9889, %v9888
        %v9891 = vrot.slane %v9805, 2
        %v9892 = vsel %vm3224, %v9891, %v9890
        %v9893 = vrot.slane %v9806, 1
        %v9894 = vsel %vm3226, %v9893, %v9892
        %v9895 = vrot.slane %v9808, 7
        %v9896 = vsel %vm3214, %v9895, %v9807
        %v9897 = vrot.slane %v9809, 6
        %v9898 = vsel %vm3216, %v9897, %v9896
        %v9899 = vrot.slane %v9810, 5
        %v9900 = vsel %vm3218, %v9899, %v9898
        %v9901 = vrot.slane %v9811, 4
        %v9902 = vsel %vm3220, %v9901, %v9900
        %v9903 = vrot.slane %v9812, 3
        %v9904 = vsel %vm3222, %v9903, %v9902
        %v9905 = vrot.slane %v9813, 2
        %v9906 = vsel %vm3224, %v9905, %v9904
        %v9907 = vrot.slane %v9814, 1
        %v9908 = vsel %vm3226, %v9907, %v9906
        %v9909 = vrot.slane %v9816, 7
        %v9910 = vsel %vm3214, %v9909, %v9815
        %v9911 = vrot.slane %v9817, 6
        %v9912 = vsel %vm3216, %v9911, %v9910
        %v9913 = vrot.slane %v9818, 5
        %v9914 = vsel %vm3218, %v9913, %v9912
        %v9915 = vrot.slane %v9819, 4
        %v9916 = vsel %vm3220, %v9915, %v9914
        %v9917 = vrot.slane %v9820, 3
        %v9918 = vsel %vm3222, %v9917, %v9916
        %v9919 = vrot.slane %v9821, 2
        %v9920 = vsel %vm3224, %v9919, %v9918
        %v9921 = vrot.slane %v9822, 1
        %v9922 = vsel %vm3226, %v9921, %v9920
        %v9923 = vrot.slane %v9824, 7
        %v9924 = vsel %vm3214, %v9923, %v9823
        %v9925 = vrot.slane %v9825, 6
        %v9926 = vsel %vm3216, %v9925, %v9924
        %v9927 = vrot.slane %v9826, 5
        %v9928 = vsel %vm3218, %v9927, %v9926
        %v9929 = vrot.slane %v9827, 4
        %v9930 = vsel %vm3220, %v9929, %v9928
        %v9931 = vrot.slane %v9828, 3
        %v9932 = vsel %vm3222, %v9931, %v9930
        %v9933 = vrot.slane %v9829, 2
        %v9934 = vsel %vm3224, %v9933, %v9932
        %v9935 = vrot.slane %v9830, 1
        %v9936 = vsel %vm3226, %v9935, %v9934
        %v9937 = vrot.slane %v9832, 7
        %v9938 = vsel %vm3214, %v9937, %v9831
        %v9939 = vrot.slane %v9833, 6
        %v9940 = vsel %vm3216, %v9939, %v9938
        %v9941 = vrot.slane %v9834, 5
        %v9942 = vsel %vm3218, %v9941, %v9940
        %v9943 = vrot.slane %v9835, 4
        %v9944 = vsel %vm3220, %v9943, %v9942
        %v9945 = vrot.slane %v9836, 3
        %v9946 = vsel %vm3222, %v9945, %v9944
        %v9947 = vrot.slane %v9837, 2
        %v9948 = vsel %vm3224, %v9947, %v9946
        %v9949 = vrot.slane %v9838, 1
        %v9950 = vsel %vm3226, %v9949, %v9948
        %v9951 = vpack.c.b16 %v9866, %v9852
        %v9952 = vpack.c.b16 %v9894, %v9880
        %v9953 = vpack.c.b16 %v9922, %v9908
        %v9954 = vpack.c.b16 %v9950, %v9936
        %v9963 = vunpack.c.l.b16 %v9703
        %v9964 = vunpack.c.l.b16 %v9704
        %v9965 = vunpack.c.l.b16 %v9705
        %v9966 = vunpack.c.l.b16 %v9706
        %v9967 = vunpack.c.l.b16 %v9707
        %v9968 = vunpack.c.l.b16 %v9708
        %v9969 = vunpack.c.l.b16 %v9709
        %v9970 = vunpack.c.l.b16 %v9710
        %v9971 = vpack.c.b16 %v9964, %v9963
        %v9972 = vpack.c.b16 %v9966, %v9965
        %v9973 = vpack.c.b16 %v9968, %v9967
        %v9974 = vpack.c.b16 %v9970, %v9969
        %v9980 = vsel %vm7125, %v9951, 0
        %v9983 = vsel %vm7125, %v9952, 0
        %v9986 = vsel %vm7125, %v9953, 0
        %v9989 = vsel %vm7125, %v9954, 0
        %9991 = vmatpush.bf16.msra.mxu0 0
        %9992 = vmatpush.bf16.msra.mxu0 0
        %9993 = vmatpush.bf16.msra.mxu0 0
        %9994 = vmatpush.bf16.msra.mxu0 0
        %9995 = vmatpush.bf16.msra.mxu0 %v9974
        %9996 = vmatpush.bf16.msra.mxu0 %v9973
        %9997 = vmatpush.bf16.msra.mxu0 %v9972
        %9998 = vmatpush.bf16.msra.mxu0 %v9971
        %9999 = vmatmul.bf16.gmra.mxu0 %v9980
        %v10000 = vpop.f32.mrf.mxu0
        %v10001 = vadd.f32 0.0, %v10000
        %v10002 = vpop.f32.mrf.mxu0
        %v10003 = vadd.f32 0.0, %v10002
        %10004 = vmatmul.bf16.gmra.mxu0 %v9983
        %v10005 = vpop.f32.mrf.mxu0
        %v10006 = vadd.f32 0.0, %v10005
        %v10007 = vpop.f32.mrf.mxu0
        %v10008 = vadd.f32 0.0, %v10007
        %10009 = vmatmul.bf16.gmra.mxu0 %v9986
        %v10010 = vpop.f32.mrf.mxu0
        %v10011 = vadd.f32 0.0, %v10010
        %v10012 = vpop.f32.mrf.mxu0
        %v10013 = vadd.f32 0.0, %v10012
        %10014 = vmatmul.bf16.gmra.mxu0 %v9989
        %v10015 = vpop.f32.mrf.mxu0
        %v10016 = vadd.f32 0.0, %v10015
        %v10017 = vpop.f32.mrf.mxu0
        %v10018 = vadd.f32 0.0, %v10017
        %10019 = vdwg.mxu0
        %v10020 = vadd.f32 %v9620, %v10001
        %v10021 = vadd.f32 %v9622, %v10003
        %v10022 = vadd.f32 %v9625, %v10006
        %v10023 = vadd.f32 %v9627, %v10008
        %v10024 = vadd.f32 %v9630, %v10011
        %v10025 = vadd.f32 %v9632, %v10013
        %v10026 = vadd.f32 %v9635, %v10016
        %v10027 = vadd.f32 %v9637, %v10018
        %v10028 = vld [vmem:[%s18] sm:$0x1]
        %v10030 = vperm.slane %v10028, 0
        %v10032 = vadd.f32 %v10020, %v10030
        %v10033 = vadd.f32 %v10021, %v10030
        %v10034 = vadd.f32 %v10022, %v10030
        %v10035 = vadd.f32 %v10023, %v10030
        %v10036 = vadd.f32 %v10024, %v10030
        %v10037 = vadd.f32 %v10025, %v10030
        %v10038 = vadd.f32 %v10026, %v10030
        %v10039 = vadd.f32 %v10027, %v10030
        %v10040 = vmax.f32 %v10032, 0.0
        %v10041 = vmax.f32 %v10033, 0.0
        %v10042 = vmax.f32 %v10034, 0.0
        %v10043 = vmax.f32 %v10035, 0.0
        %v10044 = vmax.f32 %v10036, 0.0
        %v10045 = vmax.f32 %v10037, 0.0
        %v10046 = vmax.f32 %v10038, 0.0
        %v10047 = vmax.f32 %v10039, 0.0
        %v10048 = vadd.f32 %v10040, %v10041
        %v10049 = vadd.f32 %v10048, %v10042
        %v10050 = vadd.f32 %v10049, %v10043
        %v10051 = vadd.f32 %v10050, %v10044
        %v10052 = vadd.f32 %v10051, %v10045
        %v10053 = vadd.f32 %v10052, %v10046
        %v10054 = vadd.f32 %v10053, %v10047
        %v10055 = vrot.slane %v10054, 4
        %v10056 = vadd.f32 %v10054, %v10055
        %v10057 = vrot.slane %v10056, 2
        %v10058 = vadd.f32 %v10056, %v10057
        %v10059 = vrot.slane %v10058, 1
        %v10060 = vadd.f32 %v10058, %v10059
        %v10061 = vrcp.pop 64.0
        %v10062 = vmul.f32 64.0, %v10061
        %v10063 = vsub.f32 1.0, %v10062
        %v10064 = vmul.f32 %v10061, %v10063
        %v10065 = vadd.f32 %v10061, %v10064
        %vm10066 = vweird.f32 %v10061
        %v10067 = vsel %vm10066, %v10061, %v10065
        %v10068 = vmul.f32 %v10060, %v10067
        %v10069 = vpack.c.bf16 %v10068, %v10068
        %v10070 = vld [vmem:[%s19] sm:$0xf]
        %v10071 = vld [vmem:[%s19 + $0x4] sm:$0xf]
        %v10072 = vld [vmem:[%s19 + $0x8] sm:$0xf]
        %v10073 = vld [vmem:[%s19 + $0xc] sm:$0xf]
        %v10074 = vld [vmem:[%s19 + $0x10] sm:$0xf]
        %v10075 = vld [vmem:[%s19 + $0x14] sm:$0xf]
        %v10076 = vld [vmem:[%s19 + $0x18] sm:$0xf]
        %v10077 = vld [vmem:[%s19 + $0x1c] sm:$0xf]
        %v10078 = vld [vmem:[%s19 + $0x20] sm:$0xf]
        %v10079 = vld [vmem:[%s19 + $0x24] sm:$0xf]
        %v10080 = vld [vmem:[%s19 + $0x28] sm:$0xf]
        %v10081 = vld [vmem:[%s19 + $0x2c] sm:$0xf]
        %v10082 = vld [vmem:[%s19 + $0x30] sm:$0xf]
        %v10083 = vld [vmem:[%s19 + $0x34] sm:$0xf]
        %v10084 = vld [vmem:[%s19 + $0x38] sm:$0xf]
        %v10085 = vld [vmem:[%s19 + $0x3c] sm:$0xf]
        %v10086 = vld [vmem:[%s20] sm:$0x1]
        %v10103 = vunpack.c.l.b16 %v10070
        %v10104 = vunpack.c.l.b16 %v10071
        %v10105 = vunpack.c.l.b16 %v10072
        %v10106 = vunpack.c.l.b16 %v10073
        %v10107 = vunpack.c.l.b16 %v10074
        %v10108 = vunpack.c.l.b16 %v10075
        %v10109 = vunpack.c.l.b16 %v10076
        %v10110 = vunpack.c.l.b16 %v10077
        %v10111 = vunpack.c.l.b16 %v10078
        %v10112 = vunpack.c.l.b16 %v10079
        %v10113 = vunpack.c.l.b16 %v10080
        %v10114 = vunpack.c.l.b16 %v10081
        %v10115 = vunpack.c.l.b16 %v10082
        %v10116 = vunpack.c.l.b16 %v10083
        %v10117 = vunpack.c.l.b16 %v10084
        %v10118 = vunpack.c.l.b16 %v10085
        %v10119 = vpack.c.b16 %v10104, %v10103
        %v10120 = vpack.c.b16 %v10106, %v10105
        %v10121 = vpack.c.b16 %v10108, %v10107
        %v10122 = vpack.c.b16 %v10110, %v10109
        %v10123 = vpack.c.b16 %v10112, %v10111
        %v10124 = vpack.c.b16 %v10114, %v10113
        %v10125 = vpack.c.b16 %v10116, %v10115
        %v10126 = vpack.c.b16 %v10118, %v10117
        %10135 = vmatpush.bf16.msra.mxu0 %v10126
        %10136 = vmatpush.bf16.msra.mxu0 %v10125
        %10137 = vmatpush.bf16.msra.mxu0 %v10124
        %10138 = vmatpush.bf16.msra.mxu0 %v10123
        %10139 = vmatpush.bf16.msra.mxu0 %v10122
        %10140 = vmatpush.bf16.msra.mxu0 %v10121
        %10141 = vmatpush.bf16.msra.mxu0 %v10120
        %10142 = vmatpush.bf16.msra.mxu0 %v10119
        %10143 = vmatmul.bf16.gmra.mxu0 %v10069
        %v10144 = vpop.f32.mrf.mxu0
        %v10145 = vadd.f32 %v10086, %v10144
        %v10146 = vpop.f32.mrf.mxu0
        %10147 = vdwg.mxu0
        %v10148 = vand.u32 2147483647, %v10145
        %v10149 = vsub.f32 0.0, %v10148
        %v10150 = vmul.f32 %v10149, 1.442695
        %v10151 = vpow.pop %v10150
        %vm10152 = vcmp.ge.f32.partialorder %v10145, 0.0
        %v10153 = vadd.f32 %v10151, 1.0
        %v10154 = vrcp.pop %v10153
        %v10155 = vmul.f32 %v10153, %v10154
        %v10156 = vsub.f32 1.0, %v10155
        %v10157 = vmul.f32 %v10154, %v10156
        %v10158 = vadd.f32 %v10154, %v10157
        %vm10159 = vweird.f32 %v10153
        %vm10160 = vweird.f32 %v10154
        %vm10161 = vmor %vm10159, %vm10160
        %v10162 = vsel %vm10161, %v10154, %v10158
        %v10163 = vand.u32 2147483647, %v10153
        %vm10164 = vcmp.eq.f32.partialorder %v10163, 8.507059e+37
        %v10165 = vand.u32 %v10153, 2147483648
        %v10166 = vor.u32 1.1754944e-38, %v10165
        %v10167 = vsel %vm10164, %v10166, %v10162
        %v10168 = vmul.f32 1.0, %v10167
        %v10169 = vmul.f32 %v10151, %v10167
        %v10170 = vsel %vm10152, %v10168, %v10169
        %10171 = vst [vmem:[%s679] sm:$0x1] %v10145
        %10172 = vst [vmem:[%s685] sm:$0x1] %v10170
        %s10173 = sand.u32 %s494, 1
        %s10174 = scalar_lea.sflag [#allocation3], %s10173
        %s10175 = sand.u32 %s494, 1
        %s10176 = scalar_lea.vmem [#allocation2], %s10175
        %s10177 = sand.u32 %s520, 1
        %s10178 = scalar_lea.sflag [#allocation5], %s10177
        %s10179 = sand.u32 %s520, 1
        %s10180 = scalar_lea.vmem [#allocation4], %s10179
        // Predicated region
        $region105: #{resnet_st_phase_forward.1} parent=103 // pred_check
          %p10181 = pneg %p504
        $region106: #{resnet_st_phase_forward.1} parent=103 // pred_check_branch
          %10183 = sbr.rel (%p10181) target = $region108
        $region107: #{resnet_st_phase_forward.1} parent=103 // pred_region
          %10185 = vsyncadd %s10174, 0
          %s10186 = scalar_lea.hbm %s21, %s40
          %s10188 = sshll.u32 %s10176, 4
          %s10189 = int_to_ptr.vmem [resolvable:$true] %s10188
          %s10190 = sshll.u32 %s10186, 4
          %s10191 = int_to_ptr.hbm [resolvable:$true] %s10190
          %10193 = dma.vmem_to_hbm [thread:$0]  %s10189, 16, %s10191, %s10174
        $region108: #{resnet_st_phase_forward.1} parent=103 // pred_fallthru
          _
        // Predicated region
        $region109: #{resnet_st_phase_forward.1} parent=103 // pred_check
          %p10194 = pneg %p530
        $region110: #{resnet_st_phase_forward.1} parent=103 // pred_check_branch
          %10196 = sbr.rel (%p10194) target = $region112
        $region111: #{resnet_st_phase_forward.1} parent=103 // pred_region
          %10198 = vsyncadd %s10178, 0
          %s10199 = scalar_lea.hbm %s22, %s40
          %s10201 = sshll.u32 %s10180, 4
          %s10202 = int_to_ptr.vmem [resolvable:$true] %s10201
          %s10203 = sshll.u32 %s10199, 4
          %s10204 = int_to_ptr.hbm [resolvable:$true] %s10203
          %10206 = dma.vmem_to_hbm [thread:$0]  %s10202, 16, %s10204, %s10178
        $region112: #{resnet_st_phase_forward.1} parent=103 // pred_fallthru
          _
      $region104: #{resnet_st_phase_forward.1} parent=5 // pred_fallthru
        _
      %p10207 = scmp.le.s32.totalorder 2, %s35
      // Predicated region
      $region113: #{resnet_st_phase_forward.1} parent=5 // pred_check
        %p10208 = pneg %p10207
      $region114: #{resnet_st_phase_forward.1} parent=5 // pred_check_branch
        %10210 = sbr.rel (%p10208) target = $region116
      $region115: #{resnet_st_phase_forward.1} parent=5 // pred_region
        %s10211 = ssub.s32 %s35, 2
        // Predicated region
        $region117: #{resnet_st_phase_forward.1} parent=115 // pred_check
          %p10212 = pneg %p510
        $region118: #{resnet_st_phase_forward.1} parent=115 // pred_check_branch
          %10214 = sbr.rel (%p10212) target = $region120
        $region119: #{resnet_st_phase_forward.1} parent=115 // pred_region
          %s10215 = sand.u32 %s495, 1
          %s10216 = scalar_lea.sflag [#allocation3], %s10215
          %s10217 = sand.u32 %s495, 1
          %s10218 = scalar_lea.vmem [#allocation2], %s10217
          %10220 = dma.done %s10216, 16
        $region120: #{resnet_st_phase_forward.1} parent=115 // pred_fallthru
          _
        // Predicated region
        $region121: #{resnet_st_phase_forward.1} parent=115 // pred_check
          %p10221 = pneg %p536
        $region122: #{resnet_st_phase_forward.1} parent=115 // pred_check_branch
          %10223 = sbr.rel (%p10221) target = $region124
        $region123: #{resnet_st_phase_forward.1} parent=115 // pred_region
          %s10224 = sand.u32 %s521, 1
          %s10225 = scalar_lea.sflag [#allocation5], %s10224
          %s10226 = sand.u32 %s521, 1
          %s10227 = scalar_lea.vmem [#allocation4], %s10226
          %10229 = dma.done %s10225, 16
        $region124: #{resnet_st_phase_forward.1} parent=115 // pred_fallthru
          _
      $region116: #{resnet_st_phase_forward.1} parent=5 // pred_fallthru
        _
    $region6: #{resnet_st_phase_forward.1} parent=1 // loop_footer
      %s39 = sadd.s32 1, %s35
    $region7: #{resnet_st_phase_forward.1} parent=1 // loop_footer_branch
      %34 = sbr.rel target = $region3
    $region8: #{resnet_st_phase_forward.1} parent=1 // loop_exit
      _
    %10230 = vsyncpa [#allocation3], 1
    %s10231 = scalar_lea.sflag [#allocation3], 1
    %10232 = vsyncpa %s10231, 1
    %10233 = vsyncpa [#allocation5], 1
    %s10234 = scalar_lea.sflag [#allocation5], 1
    %10235 = vsyncpa %s10234, 1

</llo_original>
